<compile_context>
chip_gen: v7x
topology: tpu7x:2x2x1
jax: 0.10.0
libtpu: 0.0.40
codegen_flags: <defaults>
</compile_context>

<pallas_src>
import functools
from math import sqrt

import jax
import jax.numpy as jnp
from jax import lax
from jax.experimental import pallas as pl
from jax.experimental.pallas import tpu as pltpu


FEATURES = 64   # internal channel width of EDSR
KSIZE = 3


def _edsr_kernel(x_ref, w_ref, o_ref, act_ref, *, H, W, num_layers):
    """One batch element of the fused EDSR forward (all layers in-kernel).

    x_ref  : (1, H+2, W+2, C)  f32   spatially padded, channel-padded input
    w_ref  : (L*9, C, C)       bf16  per-tap weights, tap index = ky*3 + kx
    o_ref  : (1, H, W, C)      f32   final output (written once per sample)
    act_ref: (H+2, W+2, C)     bf16  persistent padded activation (VMEM scratch)
    """
    C = act_ref.shape[-1]

    # Load the padded input image into the VMEM-resident activation buffer.
    # The 1-px halo arrives pre-zeroed from the host pad, so no per-layer pad.
    act_ref[...] = x_ref[0].astype(jnp.bfloat16)

    def conv9(l):
        """3x3 conv of the current activation with layer `l`'s weights, as 9
        accumulated (H*W, C) x (C, C) bf16 MXU dots with f32 accumulation.
        No im2col concat temp is materialized."""
        acc = jnp.zeros((H * W, C), jnp.float32)
        for t in range(KSIZE * KSIZE):
            ky, kx = t // KSIZE, t % KSIZE
            tap = act_ref[pl.ds(ky, H), pl.ds(kx, W), :].reshape(H * W, C)
            acc = acc + jnp.dot(tap, w_ref[l * (KSIZE * KSIZE) + t],
                                preferred_element_type=jnp.float32)
        return acc

    def layer_body(l, carry):
        acc = conv9(l)
        # Safe in-place update: every tap load feeding `acc` has already been
        # materialized before this store (store depends on acc).
        act_ref[pl.ds(1, H), pl.ds(1, W), :] = (
            jnp.maximum(acc, 0.0).reshape(H, W, C).astype(act_ref.dtype))
        return carry

    # Layers 0 .. L-2: conv + ReLU, looped in-kernel (no per-layer grid steps).
    lax.fori_loop(0, num_layers - 1, layer_body, 0)

    # Last layer: conv (no ReLU) + f32 residual add; single store per sample.
    acc = conv9(num_layers - 1)
    res = x_ref[0, pl.ds(1, H), pl.ds(1, W), :]          # f32 residual
    o_ref[0] = (acc.reshape(H, W, C) + res).astype(o_ref.dtype)


def _pack_weights(params):
    """Stack all conv weights as a (L*9, 64, 64) bf16 per-tap weight tensor.

    Degenerate channel counts of the first / last conv are zero-padded to 64
    so every layer uses an identical MXU-friendly (64, 64) tap tile.
    (Padding must stay zero -- see correctness note at the top.)
    """
    C = FEATURES
    cin = params["input"].shape[2]
    cout = params["output"].shape[3]

    w_in = jnp.pad(params["input"], ((0, 0), (0, 0), (0, C - cin), (0, 0)))
    w_out = jnp.pad(params["output"], ((0, 0), (0, 0), (0, 0), (0, C - cout)))

    mats = [w_in] + list(params["blocks"]) + [w_out]      # each (3, 3, C, C)
    w = jnp.stack(mats, axis=0)                           # (L, 3, 3, C, C)
    return w.reshape(-1, C, C).astype(jnp.bfloat16)       # (L*9, C, C)


def edsr_forward(x_nchw, params):
    """Mirrors EDSR.forward. x_nchw: (N, C, H, W) float32."""
    N, Cin, H, W = x_nchw.shape
    C = FEATURES
    Cout = params["output"].shape[3]
    assert Cin == Cout, "final residual add requires in_channels == out_channels"

    w_all = _pack_weights(params)            # (L*9, C, C) bf16, ~1.5 MB
    L = w_all.shape[0] // (KSIZE * KSIZE)

    x = jnp.transpose(x_nchw, (0, 2, 3, 1))  # NCHW -> NHWC
    # Single pad for the whole network: 1-px spatial halo + channel pad to 64.
    xp = jnp.pad(x, ((0, 0), (1, 1), (1, 1), (0, C - Cin))).astype(jnp.float32)

    kernel = functools.partial(_edsr_kernel, H=H, W=W, num_layers=L)

    flops = 2 * N * L * H * W * KSIZE * KSIZE * C * C
    bytes_accessed = xp.size * 4 + w_all.size * 2 + N * H * W * C * 4

    out = pl.pallas_call(
        kernel,
        out_shape=jax.ShapeDtypeStruct((N, H, W, C), jnp.float32),
        grid=(N,),
        in_specs=[
            # per-sample padded input tile (f32, also serves as residual)
            pl.BlockSpec((1, H + 2, W + 2, C), lambda n: (n, 0, 0, 0)),
            # ALL layer weights as one resident block (constant index map ->
            # fetched from HBM exactly once, no per-sample re-streaming)
            pl.BlockSpec((L * KSIZE * KSIZE, C, C), lambda n: (0, 0, 0)),
        ],
        out_specs=pl.BlockSpec((1, H, W, C), lambda n: (n, 0, 0, 0)),
        scratch_shapes=[pltpu.VMEM((H + 2, W + 2, C), jnp.bfloat16)],
        compiler_params=pltpu.CompilerParams(
            dimension_semantics=("parallel",)),
        cost_estimate=pl.CostEstimate(
            flops=flops, transcendentals=0, bytes_accessed=bytes_accessed),
    )(xp, w_all)

    out = out[..., :Cout]
    return jnp.transpose(out, (0, 3, 1, 2))   # NHWC -> NCHW


def init_edsr_params(key, in_channels, out_channels, num_res_blocks=18):
    """He-normal init matching the PyTorch __init__ (std = sqrt(2/(kh*kw*Cout)),
    bias-free convs). Weight layout: (kh, kw, Cin, Cout)."""
    params = {}
    keys = jax.random.split(key, num_res_blocks + 2)

    def he(k, cin, cout):
        std = sqrt(2.0 / (KSIZE * KSIZE * cout))
        return std * jax.random.normal(k, (KSIZE, KSIZE, cin, cout), jnp.float32)

    params["input"] = he(keys[0], in_channels, FEATURES)
    params["blocks"] = [he(keys[1 + i], FEATURES, FEATURES)
                        for i in range(num_res_blocks)]
    params["output"] = he(keys[-1], FEATURES, out_channels)
    return params


def edsr_reference(x_nchw, params):
    """Pure-JAX reference (lax.conv). Emulates the kernel's numerics
    (bf16 operands, f32 accumulation, bf16 inter-layer activations, residual
    add in f32) so the comparison tolerance stays tight."""
    def conv(x, w_khwc, relu):
        w = jnp.transpose(w_khwc, (3, 2, 0, 1)).astype(jnp.bfloat16)
        y = jax.lax.conv_general_dilated(
            x.astype(jnp.bfloat16), w, window_strides=(1, 1),
            padding=((1, 1), (1, 1)),
            dimension_numbers=("NCHW", "OIHW", "NCHW"),
            preferred_element_type=jnp.float32)
        return jnp.maximum(y, 0.0) if relu else y

    residual = x_nchw.astype(jnp.float32)
    out = conv(x_nchw, params["input"], True)
    for w in params["blocks"]:
        out = conv(out, w, True)
    out = conv(out, params["output"], False)
    return out + residual


if __name__ == "__main__":
    key = jax.random.PRNGKey(0)
    k_x, k_p = jax.random.split(key)

    # small shapes consistent with the module: in_channels == out_channels
    # (required by the final residual add), internal features fixed at 64.
    N, C, H, W = 2, 4, 16, 16
    x = jax.random.normal(k_x, (N, C, H, W), jnp.float32)
    params = init_edsr_params(k_p, in_channels=C, out_channels=C)

    out = jax.block_until_ready(jax.jit(edsr_forward)(x, params))
    ref = edsr_reference(x, params)

    assert out.shape == (N, C, H, W)
    err = float(jnp.max(jnp.abs(out - ref)))
    scale = 1.0 + float(jnp.max(jnp.abs(ref)))
    assert err < 1e-2 * scale, f"mismatch vs reference: {err}"

    print("KERNEL_OK")
</pallas_src>

<mosaic_0001>
module attributes {stable_mosaic.version = 11 : i64} {
  func.func @_edsr_kernel(%arg0: i32, %arg1: memref<1x18x18x64xf32, #tpu.memory_space<vmem>>, %arg2: memref<180x64x64xbf16, #tpu.memory_space<vmem>>, %arg3: memref<1x16x16x64xf32, #tpu.memory_space<vmem>>, %arg4: memref<18x18x64xbf16, #tpu.memory_space<vmem>>) attributes {dimension_semantics = [#tpu.dimension_semantics<parallel>], iteration_bounds = array<i64: 2>, scalar_prefetch = 0 : i64, scratch_operands = 1 : i64, tpu.core_type = #tpu.core_type<tc>, window_params = [{transform_indices = @transform_0, window_bounds = array<i64: 1, 18, 18, 64>}, {pipeline_mode = #tpu.pipeline_mode<synchronous>, transform_indices = @transform_1, window_bounds = array<i64: 180, 64, 64>}, {transform_indices = @transform_2, window_bounds = array<i64: 1, 16, 16, 64>}]} {
    %c0 = arith.constant 0 : index
    %c0_0 = arith.constant 0 : index
    %c0_1 = arith.constant 0 : index
    %c0_2 = arith.constant 0 : index
    %0 = vector.load %arg1[%c0, %c0_0, %c0_1, %c0_2] : memref<1x18x18x64xf32, #tpu.memory_space<vmem>>, vector<1x18x18x64xf32>
    %1 = vector.shape_cast %0 : vector<1x18x18x64xf32> to vector<18x18x64xf32>
    %2 = arith.truncf %1 : vector<18x18x64xf32> to vector<18x18x64xbf16>
    %c0_3 = arith.constant 0 : index
    %c0_4 = arith.constant 0 : index
    %c0_5 = arith.constant 0 : index
    %3 = vector.load %arg4[%c0_3, %c0_4, %c0_5] : memref<18x18x64xbf16, #tpu.memory_space<vmem>>, vector<18x18x64xbf16>
    tpu.vector_store %arg4[%c0_3, %c0_4, %c0_5], %2 {strides = array<i32>} : memref<18x18x64xbf16, #tpu.memory_space<vmem>>, vector<18x18x64xbf16>,
    %c0_i32 = arith.constant 0 : i32
    %c19_i32 = arith.constant 19 : i32
    %4 = arith.addi %c0_i32, %c19_i32 : i32
    %c1_i32 = arith.constant 1 : i32
    scf.for %arg5 = %c0_i32 to %4 step %c1_i32  : i32 {
      %cst_67 = arith.constant 0.000000e+00 : f32
      %67 = vector.broadcast %cst_67 : f32 to vector<256x64xf32>
      %c0_68 = arith.constant 0 : index
      %c0_69 = arith.constant 0 : index
      %c0_70 = arith.constant 0 : index
      %68 = vector.load %arg4[%c0_68, %c0_69, %c0_70] : memref<18x18x64xbf16, #tpu.memory_space<vmem>>, vector<16x16x64xbf16>
      %69 = vector.shape_cast %68 : vector<16x16x64xbf16> to vector<256x64xbf16>
      %c9_i32 = arith.constant 9 : i32
      %70 = arith.muli %arg5, %c9_i32 : i32
      %c0_i32_71 = arith.constant 0 : i32
      %71 = arith.addi %70, %c0_i32_71 : i32
      %72 = arith.index_cast %71 : i32 to index
      %c0_72 = arith.constant 0 : index
      %c0_73 = arith.constant 0 : index
      %73 = vector.load %arg2[%72, %c0_72, %c0_73] : memref<180x64x64xbf16, #tpu.memory_space<vmem>>, vector<1x64x64xbf16>
      %74 = vector.shape_cast %73 : vector<1x64x64xbf16> to vector<64x64xbf16>
      %cst_74 = arith.constant dense<0.000000e+00> : vector<256x64xf32>
      %75 = tpu.matmul %69, %74, %cst_74 {dimension_numbers = #tpu.dot_dimension_numbers<[1], [0], [0], [1], [0, 0, 1, 1], [], []>} : vector<256x64xbf16>, vector<64x64xbf16>, vector<256x64xf32> -> vector<256x64xf32>
      %76 = arith.addf %67, %75 : vector<256x64xf32>
      %c0_75 = arith.constant 0 : index
      %c1_76 = arith.constant 1 : index
      %c0_77 = arith.constant 0 : index
      %77 = vector.load %arg4[%c0_75, %c1_76, %c0_77] : memref<18x18x64xbf16, #tpu.memory_space<vmem>>, vector<16x16x64xbf16>
      %78 = vector.shape_cast %77 : vector<16x16x64xbf16> to vector<256x64xbf16>
      %c9_i32_78 = arith.constant 9 : i32
      %79 = arith.muli %arg5, %c9_i32_78 : i32
      %c1_i32_79 = arith.constant 1 : i32
      %80 = arith.addi %79, %c1_i32_79 : i32
      %81 = arith.index_cast %80 : i32 to index
      %c0_80 = arith.constant 0 : index
      %c0_81 = arith.constant 0 : index
      %82 = vector.load %arg2[%81, %c0_80, %c0_81] : memref<180x64x64xbf16, #tpu.memory_space<vmem>>, vector<1x64x64xbf16>
      %83 = vector.shape_cast %82 : vector<1x64x64xbf16> to vector<64x64xbf16>
      %cst_82 = arith.constant dense<0.000000e+00> : vector<256x64xf32>
      %84 = tpu.matmul %78, %83, %cst_82 {dimension_numbers = #tpu.dot_dimension_numbers<[1], [0], [0], [1], [0, 0, 1, 1], [], []>} : vector<256x64xbf16>, vector<64x64xbf16>, vector<256x64xf32> -> vector<256x64xf32>
      %85 = arith.addf %76, %84 : vector<256x64xf32>
      %c0_83 = arith.constant 0 : index
      %c2_84 = arith.constant 2 : index
      %c0_85 = arith.constant 0 : index
      %86 = vector.load %arg4[%c0_83, %c2_84, %c0_85] : memref<18x18x64xbf16, #tpu.memory_space<vmem>>, vector<16x16x64xbf16>
      %87 = vector.shape_cast %86 : vector<16x16x64xbf16> to vector<256x64xbf16>
      %c9_i32_86 = arith.constant 9 : i32
      %88 = arith.muli %arg5, %c9_i32_86 : i32
      %c2_i32 = arith.constant 2 : i32
      %89 = arith.addi %88, %c2_i32 : i32
      %90 = arith.index_cast %89 : i32 to index
      %c0_87 = arith.constant 0 : index
      %c0_88 = arith.constant 0 : index
      %91 = vector.load %arg2[%90, %c0_87, %c0_88] : memref<180x64x64xbf16, #tpu.memory_space<vmem>>, vector<1x64x64xbf16>
      %92 = vector.shape_cast %91 : vector<1x64x64xbf16> to vector<64x64xbf16>
      %cst_89 = arith.constant dense<0.000000e+00> : vector<256x64xf32>
      %93 = tpu.matmul %87, %92, %cst_89 {dimension_numbers = #tpu.dot_dimension_numbers<[1], [0], [0], [1], [0, 0, 1, 1], [], []>} : vector<256x64xbf16>, vector<64x64xbf16>, vector<256x64xf32> -> vector<256x64xf32>
      %94 = arith.addf %85, %93 : vector<256x64xf32>
      %c1_90 = arith.constant 1 : index
      %c0_91 = arith.constant 0 : index
      %c0_92 = arith.constant 0 : index
      %95 = vector.load %arg4[%c1_90, %c0_91, %c0_92] : memref<18x18x64xbf16, #tpu.memory_space<vmem>>, vector<16x16x64xbf16>
      %96 = vector.shape_cast %95 : vector<16x16x64xbf16> to vector<256x64xbf16>
      %c9_i32_93 = arith.constant 9 : i32
      %97 = arith.muli %arg5, %c9_i32_93 : i32
      %c3_i32 = arith.constant 3 : i32
      %98 = arith.addi %97, %c3_i32 : i32
      %99 = arith.index_cast %98 : i32 to index
      %c0_94 = arith.constant 0 : index
      %c0_95 = arith.constant 0 : index
      %100 = vector.load %arg2[%99, %c0_94, %c0_95] : memref<180x64x64xbf16, #tpu.memory_space<vmem>>, vector<1x64x64xbf16>
      %101 = vector.shape_cast %100 : vector<1x64x64xbf16> to vector<64x64xbf16>
      %cst_96 = arith.constant dense<0.000000e+00> : vector<256x64xf32>
      %102 = tpu.matmul %96, %101, %cst_96 {dimension_numbers = #tpu.dot_dimension_numbers<[1], [0], [0], [1], [0, 0, 1, 1], [], []>} : vector<256x64xbf16>, vector<64x64xbf16>, vector<256x64xf32> -> vector<256x64xf32>
      %103 = arith.addf %94, %102 : vector<256x64xf32>
      %c1_97 = arith.constant 1 : index
      %c1_98 = arith.constant 1 : index
      %c0_99 = arith.constant 0 : index
      %104 = vector.load %arg4[%c1_97, %c1_98, %c0_99] : memref<18x18x64xbf16, #tpu.memory_space<vmem>>, vector<16x16x64xbf16>
      %105 = vector.shape_cast %104 : vector<16x16x64xbf16> to vector<256x64xbf16>
      %c9_i32_100 = arith.constant 9 : i32
      %106 = arith.muli %arg5, %c9_i32_100 : i32
      %c4_i32 = arith.constant 4 : i32
      %107 = arith.addi %106, %c4_i32 : i32
      %108 = arith.index_cast %107 : i32 to index
      %c0_101 = arith.constant 0 : index
      %c0_102 = arith.constant 0 : index
      %109 = vector.load %arg2[%108, %c0_101, %c0_102] : memref<180x64x64xbf16, #tpu.memory_space<vmem>>, vector<1x64x64xbf16>
      %110 = vector.shape_cast %109 : vector<1x64x64xbf16> to vector<64x64xbf16>
      %cst_103 = arith.constant dense<0.000000e+00> : vector<256x64xf32>
      %111 = tpu.matmul %105, %110, %cst_103 {dimension_numbers = #tpu.dot_dimension_numbers<[1], [0], [0], [1], [0, 0, 1, 1], [], []>} : vector<256x64xbf16>, vector<64x64xbf16>, vector<256x64xf32> -> vector<256x64xf32>
      %112 = arith.addf %103, %111 : vector<256x64xf32>
      %c1_104 = arith.constant 1 : index
      %c2_105 = arith.constant 2 : index
      %c0_106 = arith.constant 0 : index
      %113 = vector.load %arg4[%c1_104, %c2_105, %c0_106] : memref<18x18x64xbf16, #tpu.memory_space<vmem>>, vector<16x16x64xbf16>
      %114 = vector.shape_cast %113 : vector<16x16x64xbf16> to vector<256x64xbf16>
      %c9_i32_107 = arith.constant 9 : i32
      %115 = arith.muli %arg5, %c9_i32_107 : i32
      %c5_i32 = arith.constant 5 : i32
      %116 = arith.addi %115, %c5_i32 : i32
      %117 = arith.index_cast %116 : i32 to index
      %c0_108 = arith.constant 0 : index
      %c0_109 = arith.constant 0 : index
      %118 = vector.load %arg2[%117, %c0_108, %c0_109] : memref<180x64x64xbf16, #tpu.memory_space<vmem>>, vector<1x64x64xbf16>
      %119 = vector.shape_cast %118 : vector<1x64x64xbf16> to vector<64x64xbf16>
      %cst_110 = arith.constant dense<0.000000e+00> : vector<256x64xf32>
      %120 = tpu.matmul %114, %119, %cst_110 {dimension_numbers = #tpu.dot_dimension_numbers<[1], [0], [0], [1], [0, 0, 1, 1], [], []>} : vector<256x64xbf16>, vector<64x64xbf16>, vector<256x64xf32> -> vector<256x64xf32>
      %121 = arith.addf %112, %120 : vector<256x64xf32>
      %c2_111 = arith.constant 2 : index
      %c0_112 = arith.constant 0 : index
      %c0_113 = arith.constant 0 : index
      %122 = vector.load %arg4[%c2_111, %c0_112, %c0_113] : memref<18x18x64xbf16, #tpu.memory_space<vmem>>, vector<16x16x64xbf16>
      %123 = vector.shape_cast %122 : vector<16x16x64xbf16> to vector<256x64xbf16>
      %c9_i32_114 = arith.constant 9 : i32
      %124 = arith.muli %arg5, %c9_i32_114 : i32
      %c6_i32 = arith.constant 6 : i32
      %125 = arith.addi %124, %c6_i32 : i32
      %126 = arith.index_cast %125 : i32 to index
      %c0_115 = arith.constant 0 : index
      %c0_116 = arith.constant 0 : index
      %127 = vector.load %arg2[%126, %c0_115, %c0_116] : memref<180x64x64xbf16, #tpu.memory_space<vmem>>, vector<1x64x64xbf16>
      %128 = vector.shape_cast %127 : vector<1x64x64xbf16> to vector<64x64xbf16>
      %cst_117 = arith.constant dense<0.000000e+00> : vector<256x64xf32>
      %129 = tpu.matmul %123, %128, %cst_117 {dimension_numbers = #tpu.dot_dimension_numbers<[1], [0], [0], [1], [0, 0, 1, 1], [], []>} : vector<256x64xbf16>, vector<64x64xbf16>, vector<256x64xf32> -> vector<256x64xf32>
      %130 = arith.addf %121, %129 : vector<256x64xf32>
      %c2_118 = arith.constant 2 : index
      %c1_119 = arith.constant 1 : index
      %c0_120 = arith.constant 0 : index
      %131 = vector.load %arg4[%c2_118, %c1_119, %c0_120] : memref<18x18x64xbf16, #tpu.memory_space<vmem>>, vector<16x16x64xbf16>
      %132 = vector.shape_cast %131 : vector<16x16x64xbf16> to vector<256x64xbf16>
      %c9_i32_121 = arith.constant 9 : i32
      %133 = arith.muli %arg5, %c9_i32_121 : i32
      %c7_i32 = arith.constant 7 : i32
      %134 = arith.addi %133, %c7_i32 : i32
      %135 = arith.index_cast %134 : i32 to index
      %c0_122 = arith.constant 0 : index
      %c0_123 = arith.constant 0 : index
      %136 = vector.load %arg2[%135, %c0_122, %c0_123] : memref<180x64x64xbf16, #tpu.memory_space<vmem>>, vector<1x64x64xbf16>
      %137 = vector.shape_cast %136 : vector<1x64x64xbf16> to vector<64x64xbf16>
      %cst_124 = arith.constant dense<0.000000e+00> : vector<256x64xf32>
      %138 = tpu.matmul %132, %137, %cst_124 {dimension_numbers = #tpu.dot_dimension_numbers<[1], [0], [0], [1], [0, 0, 1, 1], [], []>} : vector<256x64xbf16>, vector<64x64xbf16>, vector<256x64xf32> -> vector<256x64xf32>
      %139 = arith.addf %130, %138 : vector<256x64xf32>
      %c2_125 = arith.constant 2 : index
      %c2_126 = arith.constant 2 : index
      %c0_127 = arith.constant 0 : index
      %140 = vector.load %arg4[%c2_125, %c2_126, %c0_127] : memref<18x18x64xbf16, #tpu.memory_space<vmem>>, vector<16x16x64xbf16>
      %141 = vector.shape_cast %140 : vector<16x16x64xbf16> to vector<256x64xbf16>
      %c9_i32_128 = arith.constant 9 : i32
      %142 = arith.muli %arg5, %c9_i32_128 : i32
      %c8_i32 = arith.constant 8 : i32
      %143 = arith.addi %142, %c8_i32 : i32
      %144 = arith.index_cast %143 : i32 to index
      %c0_129 = arith.constant 0 : index
      %c0_130 = arith.constant 0 : index
      %145 = vector.load %arg2[%144, %c0_129, %c0_130] : memref<180x64x64xbf16, #tpu.memory_space<vmem>>, vector<1x64x64xbf16>
      %146 = vector.shape_cast %145 : vector<1x64x64xbf16> to vector<64x64xbf16>
      %cst_131 = arith.constant dense<0.000000e+00> : vector<256x64xf32>
      %147 = tpu.matmul %141, %146, %cst_131 {dimension_numbers = #tpu.dot_dimension_numbers<[1], [0], [0], [1], [0, 0, 1, 1], [], []>} : vector<256x64xbf16>, vector<64x64xbf16>, vector<256x64xf32> -> vector<256x64xf32>
      %148 = arith.addf %139, %147 : vector<256x64xf32>
      %cst_132 = arith.constant 0.000000e+00 : f32
      %149 = vector.broadcast %cst_132 : f32 to vector<256x64xf32>
      %150 = arith.maximumf %148, %149 : vector<256x64xf32>
      %151 = vector.shape_cast %150 : vector<256x64xf32> to vector<16x16x64xf32>
      %152 = arith.truncf %151 : vector<16x16x64xf32> to vector<16x16x64xbf16>
      %c1_133 = arith.constant 1 : index
      %c1_134 = arith.constant 1 : index
      %c0_135 = arith.constant 0 : index
      %153 = vector.load %arg4[%c1_133, %c1_134, %c0_135] : memref<18x18x64xbf16, #tpu.memory_space<vmem>>, vector<16x16x64xbf16>
      tpu.vector_store %arg4[%c1_133, %c1_134, %c0_135], %152 {strides = array<i32>} : memref<18x18x64xbf16, #tpu.memory_space<vmem>>, vector<16x16x64xbf16>,
    }
    %c19_i32_6 = arith.constant 19 : i32
    %cst = arith.constant 0.000000e+00 : f32
    %5 = vector.broadcast %cst : f32 to vector<256x64xf32>
    %c0_7 = arith.constant 0 : index
    %c0_8 = arith.constant 0 : index
    %c0_9 = arith.constant 0 : index
    %6 = vector.load %arg4[%c0_7, %c0_8, %c0_9] : memref<18x18x64xbf16, #tpu.memory_space<vmem>>, vector<16x16x64xbf16>
    %7 = vector.shape_cast %6 : vector<16x16x64xbf16> to vector<256x64xbf16>
    %c171 = arith.constant 171 : index
    %c0_10 = arith.constant 0 : index
    %c0_11 = arith.constant 0 : index
    %8 = vector.load %arg2[%c171, %c0_10, %c0_11] : memref<180x64x64xbf16, #tpu.memory_space<vmem>>, vector<1x64x64xbf16>
    %9 = vector.shape_cast %8 : vector<1x64x64xbf16> to vector<64x64xbf16>
    %cst_12 = arith.constant dense<0.000000e+00> : vector<256x64xf32>
    %10 = tpu.matmul %7, %9, %cst_12 {dimension_numbers = #tpu.dot_dimension_numbers<[1], [0], [0], [1], [0, 0, 1, 1], [], []>} : vector<256x64xbf16>, vector<64x64xbf16>, vector<256x64xf32> -> vector<256x64xf32>
    %11 = arith.addf %5, %10 : vector<256x64xf32>
    %c0_13 = arith.constant 0 : index
    %c1 = arith.constant 1 : index
    %c0_14 = arith.constant 0 : index
    %12 = vector.load %arg4[%c0_13, %c1, %c0_14] : memref<18x18x64xbf16, #tpu.memory_space<vmem>>, vector<16x16x64xbf16>
    %13 = vector.shape_cast %12 : vector<16x16x64xbf16> to vector<256x64xbf16>
    %c172 = arith.constant 172 : index
    %c0_15 = arith.constant 0 : index
    %c0_16 = arith.constant 0 : index
    %14 = vector.load %arg2[%c172, %c0_15, %c0_16] : memref<180x64x64xbf16, #tpu.memory_space<vmem>>, vector<1x64x64xbf16>
    %15 = vector.shape_cast %14 : vector<1x64x64xbf16> to vector<64x64xbf16>
    %cst_17 = arith.constant dense<0.000000e+00> : vector<256x64xf32>
    %16 = tpu.matmul %13, %15, %cst_17 {dimension_numbers = #tpu.dot_dimension_numbers<[1], [0], [0], [1], [0, 0, 1, 1], [], []>} : vector<256x64xbf16>, vector<64x64xbf16>, vector<256x64xf32> -> vector<256x64xf32>
    %17 = arith.addf %11, %16 : vector<256x64xf32>
    %c0_18 = arith.constant 0 : index
    %c2 = arith.constant 2 : index
    %c0_19 = arith.constant 0 : index
    %18 = vector.load %arg4[%c0_18, %c2, %c0_19] : memref<18x18x64xbf16, #tpu.memory_space<vmem>>, vector<16x16x64xbf16>
    %19 = vector.shape_cast %18 : vector<16x16x64xbf16> to vector<256x64xbf16>
    %c173 = arith.constant 173 : index
    %c0_20 = arith.constant 0 : index
    %c0_21 = arith.constant 0 : index
    %20 = vector.load %arg2[%c173, %c0_20, %c0_21] : memref<180x64x64xbf16, #tpu.memory_space<vmem>>, vector<1x64x64xbf16>
    %21 = vector.shape_cast %20 : vector<1x64x64xbf16> to vector<64x64xbf16>
    %cst_22 = arith.constant dense<0.000000e+00> : vector<256x64xf32>
    %22 = tpu.matmul %19, %21, %cst_22 {dimension_numbers = #tpu.dot_dimension_numbers<[1], [0], [0], [1], [0, 0, 1, 1], [], []>} : vector<256x64xbf16>, vector<64x64xbf16>, vector<256x64xf32> -> vector<256x64xf32>
    %23 = arith.addf %17, %22 : vector<256x64xf32>
    %c1_23 = arith.constant 1 : index
    %c0_24 = arith.constant 0 : index
    %c0_25 = arith.constant 0 : index
    %24 = vector.load %arg4[%c1_23, %c0_24, %c0_25] : memref<18x18x64xbf16, #tpu.memory_space<vmem>>, vector<16x16x64xbf16>
    %25 = vector.shape_cast %24 : vector<16x16x64xbf16> to vector<256x64xbf16>
    %c174 = arith.constant 174 : index
    %c0_26 = arith.constant 0 : index
    %c0_27 = arith.constant 0 : index
    %26 = vector.load %arg2[%c174, %c0_26, %c0_27] : memref<180x64x64xbf16, #tpu.memory_space<vmem>>, vector<1x64x64xbf16>
    %27 = vector.shape_cast %26 : vector<1x64x64xbf16> to vector<64x64xbf16>
    %cst_28 = arith.constant dense<0.000000e+00> : vector<256x64xf32>
    %28 = tpu.matmul %25, %27, %cst_28 {dimension_numbers = #tpu.dot_dimension_numbers<[1], [0], [0], [1], [0, 0, 1, 1], [], []>} : vector<256x64xbf16>, vector<64x64xbf16>, vector<256x64xf32> -> vector<256x64xf32>
    %29 = arith.addf %23, %28 : vector<256x64xf32>
    %c1_29 = arith.constant 1 : index
    %c1_30 = arith.constant 1 : index
    %c0_31 = arith.constant 0 : index
    %30 = vector.load %arg4[%c1_29, %c1_30, %c0_31] : memref<18x18x64xbf16, #tpu.memory_space<vmem>>, vector<16x16x64xbf16>
    %31 = vector.shape_cast %30 : vector<16x16x64xbf16> to vector<256x64xbf16>
    %c175 = arith.constant 175 : index
    %c0_32 = arith.constant 0 : index
    %c0_33 = arith.constant 0 : index
    %32 = vector.load %arg2[%c175, %c0_32, %c0_33] : memref<180x64x64xbf16, #tpu.memory_space<vmem>>, vector<1x64x64xbf16>
    %33 = vector.shape_cast %32 : vector<1x64x64xbf16> to vector<64x64xbf16>
    %cst_34 = arith.constant dense<0.000000e+00> : vector<256x64xf32>
    %34 = tpu.matmul %31, %33, %cst_34 {dimension_numbers = #tpu.dot_dimension_numbers<[1], [0], [0], [1], [0, 0, 1, 1], [], []>} : vector<256x64xbf16>, vector<64x64xbf16>, vector<256x64xf32> -> vector<256x64xf32>
    %35 = arith.addf %29, %34 : vector<256x64xf32>
    %c1_35 = arith.constant 1 : index
    %c2_36 = arith.constant 2 : index
    %c0_37 = arith.constant 0 : index
    %36 = vector.load %arg4[%c1_35, %c2_36, %c0_37] : memref<18x18x64xbf16, #tpu.memory_space<vmem>>, vector<16x16x64xbf16>
    %37 = vector.shape_cast %36 : vector<16x16x64xbf16> to vector<256x64xbf16>
    %c176 = arith.constant 176 : index
    %c0_38 = arith.constant 0 : index
    %c0_39 = arith.constant 0 : index
    %38 = vector.load %arg2[%c176, %c0_38, %c0_39] : memref<180x64x64xbf16, #tpu.memory_space<vmem>>, vector<1x64x64xbf16>
    %39 = vector.shape_cast %38 : vector<1x64x64xbf16> to vector<64x64xbf16>
    %cst_40 = arith.constant dense<0.000000e+00> : vector<256x64xf32>
    %40 = tpu.matmul %37, %39, %cst_40 {dimension_numbers = #tpu.dot_dimension_numbers<[1], [0], [0], [1], [0, 0, 1, 1], [], []>} : vector<256x64xbf16>, vector<64x64xbf16>, vector<256x64xf32> -> vector<256x64xf32>
    %41 = arith.addf %35, %40 : vector<256x64xf32>
    %c2_41 = arith.constant 2 : index
    %c0_42 = arith.constant 0 : index
    %c0_43 = arith.constant 0 : index
    %42 = vector.load %arg4[%c2_41, %c0_42, %c0_43] : memref<18x18x64xbf16, #tpu.memory_space<vmem>>, vector<16x16x64xbf16>
    %43 = vector.shape_cast %42 : vector<16x16x64xbf16> to vector<256x64xbf16>
    %c177 = arith.constant 177 : index
    %c0_44 = arith.constant 0 : index
    %c0_45 = arith.constant 0 : index
    %44 = vector.load %arg2[%c177, %c0_44, %c0_45] : memref<180x64x64xbf16, #tpu.memory_space<vmem>>, vector<1x64x64xbf16>
    %45 = vector.shape_cast %44 : vector<1x64x64xbf16> to vector<64x64xbf16>
    %cst_46 = arith.constant dense<0.000000e+00> : vector<256x64xf32>
    %46 = tpu.matmul %43, %45, %cst_46 {dimension_numbers = #tpu.dot_dimension_numbers<[1], [0], [0], [1], [0, 0, 1, 1], [], []>} : vector<256x64xbf16>, vector<64x64xbf16>, vector<256x64xf32> -> vector<256x64xf32>
    %47 = arith.addf %41, %46 : vector<256x64xf32>
    %c2_47 = arith.constant 2 : index
    %c1_48 = arith.constant 1 : index
    %c0_49 = arith.constant 0 : index
    %48 = vector.load %arg4[%c2_47, %c1_48, %c0_49] : memref<18x18x64xbf16, #tpu.memory_space<vmem>>, vector<16x16x64xbf16>
    %49 = vector.shape_cast %48 : vector<16x16x64xbf16> to vector<256x64xbf16>
    %c178 = arith.constant 178 : index
    %c0_50 = arith.constant 0 : index
    %c0_51 = arith.constant 0 : index
    %50 = vector.load %arg2[%c178, %c0_50, %c0_51] : memref<180x64x64xbf16, #tpu.memory_space<vmem>>, vector<1x64x64xbf16>
    %51 = vector.shape_cast %50 : vector<1x64x64xbf16> to vector<64x64xbf16>
    %cst_52 = arith.constant dense<0.000000e+00> : vector<256x64xf32>
    %52 = tpu.matmul %49, %51, %cst_52 {dimension_numbers = #tpu.dot_dimension_numbers<[1], [0], [0], [1], [0, 0, 1, 1], [], []>} : vector<256x64xbf16>, vector<64x64xbf16>, vector<256x64xf32> -> vector<256x64xf32>
    %53 = arith.addf %47, %52 : vector<256x64xf32>
    %c2_53 = arith.constant 2 : index
    %c2_54 = arith.constant 2 : index
    %c0_55 = arith.constant 0 : index
    %54 = vector.load %arg4[%c2_53, %c2_54, %c0_55] : memref<18x18x64xbf16, #tpu.memory_space<vmem>>, vector<16x16x64xbf16>
    %55 = vector.shape_cast %54 : vector<16x16x64xbf16> to vector<256x64xbf16>
    %c179 = arith.constant 179 : index
    %c0_56 = arith.constant 0 : index
    %c0_57 = arith.constant 0 : index
    %56 = vector.load %arg2[%c179, %c0_56, %c0_57] : memref<180x64x64xbf16, #tpu.memory_space<vmem>>, vector<1x64x64xbf16>
    %57 = vector.shape_cast %56 : vector<1x64x64xbf16> to vector<64x64xbf16>
    %cst_58 = arith.constant dense<0.000000e+00> : vector<256x64xf32>
    %58 = tpu.matmul %55, %57, %cst_58 {dimension_numbers = #tpu.dot_dimension_numbers<[1], [0], [0], [1], [0, 0, 1, 1], [], []>} : vector<256x64xbf16>, vector<64x64xbf16>, vector<256x64xf32> -> vector<256x64xf32>
    %59 = arith.addf %53, %58 : vector<256x64xf32>
    %c0_59 = arith.constant 0 : index
    %c1_60 = arith.constant 1 : index
    %c1_61 = arith.constant 1 : index
    %c0_62 = arith.constant 0 : index
    %60 = vector.load %arg1[%c0_59, %c1_60, %c1_61, %c0_62] : memref<1x18x18x64xf32, #tpu.memory_space<vmem>>, vector<1x16x16x64xf32>
    %61 = vector.shape_cast %60 : vector<1x16x16x64xf32> to vector<16x16x64xf32>
    %62 = vector.shape_cast %59 : vector<256x64xf32> to vector<16x16x64xf32>
    %63 = arith.addf %62, %61 : vector<16x16x64xf32>
    %c0_63 = arith.constant 0 : index
    %c0_64 = arith.constant 0 : index
    %c0_65 = arith.constant 0 : index
    %c0_66 = arith.constant 0 : index
    %64 = vector.load %arg3[%c0_63, %c0_64, %c0_65, %c0_66] : memref<1x16x16x64xf32, #tpu.memory_space<vmem>>, vector<1x16x16x64xf32>
    %65 = vector.shape_cast %64 : vector<1x16x16x64xf32> to vector<16x16x64xf32>
    %66 = vector.shape_cast %63 : vector<16x16x64xf32> to vector<1x16x16x64xf32>
    tpu.vector_store %arg3[%c0_63, %c0_64, %c0_65, %c0_66], %66 {strides = array<i32>} : memref<1x16x16x64xf32, #tpu.memory_space<vmem>>, vector<1x16x16x64xf32>,
    return
  }
  func.func @transform_0(%arg0: i32) -> (i32, i32, i32, i32) {
    %c0_i32 = arith.constant 0 : i32
    %c0_i32_0 = arith.constant 0 : i32
    %c0_i32_1 = arith.constant 0 : i32
    %c0_i32_2 = arith.constant 0 : i32
    return %arg0, %c0_i32, %c0_i32_0, %c0_i32_1 : i32, i32, i32, i32
  }
  func.func @transform_1(%arg0: i32) -> (i32, i32, i32) {
    %c0_i32 = arith.constant 0 : i32
    %c0_i32_0 = arith.constant 0 : i32
    %c0_i32_1 = arith.constant 0 : i32
    %c0_i32_2 = arith.constant 0 : i32
    return %c0_i32, %c0_i32_0, %c0_i32_1 : i32, i32, i32
  }
  func.func @transform_2(%arg0: i32) -> (i32, i32, i32, i32) {
    %c0_i32 = arith.constant 0 : i32
    %c0_i32_0 = arith.constant 0 : i32
    %c0_i32_1 = arith.constant 0 : i32
    %c0_i32_2 = arith.constant 0 : i32
    return %arg0, %c0_i32, %c0_i32_0, %c0_i32_1 : i32, i32, i32, i32
  }
}

</mosaic_0001>

<llo_original>
// kernel: edsr_forward.1
$region0: #{edsr_forward.1}
  #allocation0 [shape = 'u32[]', space=smem, size = 0x4, offset = 0x4, fixed_abs, tag = 'smem constant byte address 0x4 - core index']
  #allocation1 [shape = 'u32[144,128]{1,0:T(1,128)}', space=vmem, size = 0x12000, scoped, tag = 'internal scratch']
  #allocation2 [shape = 'bf16[18,18,64]{2,1,0:T(8,128)(2,1)}', space=vmem, size = 0x1b000, scoped, tag = 'scratch operand']
  %s0 = inlined_call_operand.vmem [shape: f32[2,18,18,64], index: 0, kind: input, shape index: {}]
  %s1 = inlined_call_operand.vmem [shape: bf16[180,64,64], index: 1, kind: input, shape index: {}]
  %s2 = inlined_call_operand.vmem [shape: f32[2,16,16,64], index: 2, kind: output, shape index: {}]
  %s3 = sld [smem:[#allocation0]]
  $region48: #{edsr_forward.1} parent=0
    _
  %s5 = ssub.s32 1, %s3
  %s6 = scalar_select 0, %s5, %s3
  loop: start=0, step=1, limit=4
  $region2: #{edsr_forward.1} parent=0 // loop_pre_header
    _
  $region3: #{edsr_forward.1} parent=0 // loop_header
    %s8 = sphi 0, %s12
    %p9 = scmp.ge.s32.totalorder %s8, 4
    %s18 = sphi 0, %s20
    %s21 = sphi 0, %s18
    %s22 = sphi 0, %s21
    %s38 = sphi 0, %s22
    %s42 = sphi 0, %s42
    %s44 = sphi 0, %s42
    %s45 = sphi 0, %s44
    %s59 = sphi 0, %s45
    %s65 = sphi 0, %s67
    %s68 = sphi 0, %s65
    %s69 = sphi 0, %s68
    %s85 = sphi 0, %s69
  $region4: #{edsr_forward.1} parent=0 // loop_header_branch
    %11 = sbr.rel (%p9) target = $region8
  $region5: #{edsr_forward.1} parent=0 // loop_body
    %s13 = ssub.s32 %s8, 1
    %s14 = ssub.s32 %s8, 2
    %s15 = sadd.s32 %s8, 1
    %s16 = ssub.s32 %s8, %s15
    %p17 = scmp.eq.s32.totalorder %s16, 0
    %s19 = sadd.s32 %s18, 1
    %s20 = scalar_select %p17, %s18, %s19
    %p23 = pneg %p17
    %p24 = scmp.eq.s32.totalorder %s8, 1
    %p25 = por %p23, %p24
    %p26 = scmp.ne.s32.totalorder %s18, %s21
    %p27 = scmp.eq.s32.totalorder %s8, 0
    %p28 = por %p26, %p27
    %p29 = scmp.ne.s32.totalorder %s18, %s21
    %p30 = scmp.eq.s32.totalorder %s13, 1
    %p31 = por %p29, %p30
    %p32 = scmp.ne.s32.totalorder %s21, %s22
    %p33 = scmp.eq.s32.totalorder %s13, 0
    %p34 = por %p32, %p33
    %p35 = scmp.ne.s32.totalorder %s21, %s22
    %p36 = scmp.eq.s32.totalorder %s14, 1
    %p37 = por %p35, %p36
    %p39 = scmp.ne.s32.totalorder %s22, %s38
    %p40 = scmp.eq.s32.totalorder %s14, 0
    %p41 = por %p39, %p40
    %s43 = sadd.s32 %s42, 1
    %p46 = scmp.eq.s32.totalorder %s8, 1
    %p47 = scmp.ne.s32.totalorder %s42, %s44
    %p48 = scmp.eq.s32.totalorder %s8, 0
    %p49 = por %p47, %p48
    %p50 = scmp.ne.s32.totalorder %s42, %s44
    %p51 = scmp.eq.s32.totalorder %s13, 1
    %p52 = por %p50, %p51
    %p53 = scmp.ne.s32.totalorder %s44, %s45
    %p54 = scmp.eq.s32.totalorder %s13, 0
    %p55 = por %p53, %p54
    %p56 = scmp.ne.s32.totalorder %s44, %s45
    %p57 = scmp.eq.s32.totalorder %s14, 1
    %p58 = por %p56, %p57
    %p60 = scmp.ne.s32.totalorder %s45, %s59
    %p61 = scmp.eq.s32.totalorder %s14, 0
    %p62 = por %p60, %p61
    %s63 = ssub.s32 %s8, %s15
    %p64 = scmp.eq.s32.totalorder %s63, 0
    %s66 = sadd.s32 %s65, 1
    %s67 = scalar_select %p64, %s65, %s66
    %p70 = pneg %p64
    %p71 = scmp.eq.s32.totalorder %s8, 1
    %p72 = por %p70, %p71
    %p73 = scmp.ne.s32.totalorder %s65, %s68
    %p74 = scmp.eq.s32.totalorder %s8, 0
    %p75 = por %p73, %p74
    %p76 = scmp.ne.s32.totalorder %s65, %s68
    %p77 = scmp.eq.s32.totalorder %s13, 1
    %p78 = por %p76, %p77
    %p79 = scmp.ne.s32.totalorder %s68, %s69
    %p80 = scmp.eq.s32.totalorder %s13, 0
    %p81 = por %p79, %p80
    %p82 = scmp.ne.s32.totalorder %s68, %s69
    %p83 = scmp.eq.s32.totalorder %s14, 1
    %p84 = por %p82, %p83
    %p86 = scmp.ne.s32.totalorder %s69, %s85
    %p87 = scmp.eq.s32.totalorder %s14, 0
    %p88 = por %p86, %p87
    %p89 = scmp.le.s32.totalorder 1, %s8
    %p90 = scmp.lt.s32.totalorder %s8, 3
    %p91 = pnand %p89, %p90
    %p92 = pneg %p91
    // Predicated region
    $region9: #{edsr_forward.1} parent=5 // pred_check
      _
    $region10: #{edsr_forward.1} parent=5 // pred_check_branch
      %94 = sbr.rel (%p91) target = $region12
    $region11: #{edsr_forward.1} parent=5 // pred_region
      %s95 = ssub.s32 %s8, 1
      // Predicated region
      $region13: #{edsr_forward.1} parent=11 // pred_check
        %p96 = pneg %p55
      $region14: #{edsr_forward.1} parent=11 // pred_check_branch
        %98 = sbr.rel (%p96) target = $region16
      $region15: #{edsr_forward.1} parent=11 // pred_region
        _
      $region16: #{edsr_forward.1} parent=11 // pred_fallthru
        _
    $region12: #{edsr_forward.1} parent=5 // pred_fallthru
      _
    %p99 = scmp.lt.s32.totalorder %s8, 2
    // Predicated region
    $region17: #{edsr_forward.1} parent=5 // pred_check
      %p100 = pneg %p99
    $region18: #{edsr_forward.1} parent=5 // pred_check_branch
      %102 = sbr.rel (%p100) target = $region20
    $region19: #{edsr_forward.1} parent=5 // pred_region
      // Predicated region
      $region21: #{edsr_forward.1} parent=19 // pred_check
        %p103 = pneg %p28
      $region22: #{edsr_forward.1} parent=19 // pred_check_branch
        %105 = sbr.rel (%p103) target = $region24
      $region23: #{edsr_forward.1} parent=19 // pred_region
        %p106 = scmp.lt.s32.totalorder %s8, 1
        %s107 = scalar_select %p106, %s8, 1
        %s108 = smul.addr %s107, 54
        %s109 = smul.addr %s108, 8
        %s110 = scalar_lea.vmem %s0, %s109
      $region24: #{edsr_forward.1} parent=19 // pred_fallthru
        _
    $region20: #{edsr_forward.1} parent=5 // pred_fallthru
      _
    %p111 = scmp.le.s32.totalorder 1, %s8
    %p112 = scmp.lt.s32.totalorder %s8, 3
    %p113 = pnand %p111, %p112
    %p114 = pneg %p113
    // Predicated region
    $region25: #{edsr_forward.1} parent=5 // pred_check
      _
    $region26: #{edsr_forward.1} parent=5 // pred_check_branch
      %116 = sbr.rel (%p113) target = $region28
    $region27: #{edsr_forward.1} parent=5 // pred_region
      %s117 = ssub.s32 %s8, 1
      %p118 = scmp.lt.s32.totalorder %s13, 1
      %s119 = scalar_select %p118, %s13, 1
      %s120 = smul.addr %s119, 54
      %s121 = smul.addr %s120, 8
      %s122 = scalar_lea.vmem %s0, %s121
      %p123 = pneg %p34
      %p124 = pneg %p31
      %p125 = pneg %p55
      %p126 = pneg %p52
      %p127 = pneg %p81
      %p128 = pneg %p78
      %p129 = scmp.lt.s32.totalorder %s13, 1
      %s130 = scalar_select %p129, %s13, 1
      %s131 = smul.addr %s130, 32
      %s132 = smul.addr %s131, 8
      %s133 = scalar_lea.vmem %s2, %s132
      %p134 = scmp.lt.s32.totalorder %s13, 1
      %s135 = scalar_select %p134, %s13, 1
      %s136 = smul.addr %s135, 54
      %s137 = smul.addr %s136, 8
      %s138 = scalar_lea.vmem %s0, %s137
      %p139 = scmp.lt.s32.totalorder %s13, 1
      %s140 = scalar_select %p139, %s13, 1
      %s141 = smul.addr %s140, 32
      %s142 = smul.addr %s141, 8
      %s143 = scalar_lea.vmem %s2, %s142
      %v145 = vld [vmem:[%s138] sm:$0xff]
      %v146 = vld [vmem:[%s138 + $0x8] sm:$0xff]
      %v147 = vld [vmem:[%s138 + $0x10] sm:$0x3]
      %v148 = vld [vmem:[%s138 + $0x18] sm:$0xff]
      %v149 = vld [vmem:[%s138 + $0x20] sm:$0xff]
      %v150 = vld [vmem:[%s138 + $0x28] sm:$0x3]
      %v151 = vld [vmem:[%s138 + $0x30] sm:$0xff]
      %v152 = vld [vmem:[%s138 + $0x38] sm:$0xff]
      %v153 = vld [vmem:[%s138 + $0x40] sm:$0x3]
      %v154 = vld [vmem:[%s138 + $0x48] sm:$0xff]
      %v155 = vld [vmem:[%s138 + $0x50] sm:$0xff]
      %v156 = vld [vmem:[%s138 + $0x58] sm:$0x3]
      %v157 = vld [vmem:[%s138 + $0x60] sm:$0xff]
      %v158 = vld [vmem:[%s138 + $0x68] sm:$0xff]
      %v159 = vld [vmem:[%s138 + $0x70] sm:$0x3]
      %v160 = vld [vmem:[%s138 + $0x78] sm:$0xff]
      %v161 = vld [vmem:[%s138 + $0x80] sm:$0xff]
      %v162 = vld [vmem:[%s138 + $0x88] sm:$0x3]
      %v163 = vld [vmem:[%s138 + $0x90] sm:$0xff]
      %v164 = vld [vmem:[%s138 + $0x98] sm:$0xff]
      %v165 = vld [vmem:[%s138 + $0xa0] sm:$0x3]
      %v166 = vld [vmem:[%s138 + $0xa8] sm:$0xff]
      %v167 = vld [vmem:[%s138 + $0xb0] sm:$0xff]
      %v168 = vld [vmem:[%s138 + $0xb8] sm:$0x3]
      %v169 = vld [vmem:[%s138 + $0xc0] sm:$0xff]
      %v170 = vld [vmem:[%s138 + $0xc8] sm:$0xff]
      %v171 = vld [vmem:[%s138 + $0xd0] sm:$0x3]
      %v172 = vld [vmem:[%s138 + $0xd8] sm:$0xff]
      %v173 = vld [vmem:[%s138 + $0xe0] sm:$0xff]
      %v174 = vld [vmem:[%s138 + $0xe8] sm:$0x3]
      %v175 = vld [vmem:[%s138 + $0xf0] sm:$0xff]
      %v176 = vld [vmem:[%s138 + $0xf8] sm:$0xff]
      %v177 = vld [vmem:[%s138 + $0x100] sm:$0x3]
      %v178 = vld [vmem:[%s138 + $0x108] sm:$0xff]
      %v179 = vld [vmem:[%s138 + $0x110] sm:$0xff]
      %v180 = vld [vmem:[%s138 + $0x118] sm:$0x3]
      %v181 = vld [vmem:[%s138 + $0x120] sm:$0xff]
      %v182 = vld [vmem:[%s138 + $0x128] sm:$0xff]
      %v183 = vld [vmem:[%s138 + $0x130] sm:$0x3]
      %v184 = vld [vmem:[%s138 + $0x138] sm:$0xff]
      %v185 = vld [vmem:[%s138 + $0x140] sm:$0xff]
      %v186 = vld [vmem:[%s138 + $0x148] sm:$0x3]
      %v187 = vld [vmem:[%s138 + $0x150] sm:$0xff]
      %v188 = vld [vmem:[%s138 + $0x158] sm:$0xff]
      %v189 = vld [vmem:[%s138 + $0x160] sm:$0x3]
      %v190 = vld [vmem:[%s138 + $0x168] sm:$0xff]
      %v191 = vld [vmem:[%s138 + $0x170] sm:$0xff]
      %v192 = vld [vmem:[%s138 + $0x178] sm:$0x3]
      %v193 = vld [vmem:[%s138 + $0x180] sm:$0xff]
      %v194 = vld [vmem:[%s138 + $0x188] sm:$0xff]
      %v195 = vld [vmem:[%s138 + $0x190] sm:$0x3]
      %v196 = vld [vmem:[%s138 + $0x198] sm:$0xff]
      %v197 = vld [vmem:[%s138 + $0x1a0] sm:$0xff]
      %v198 = vld [vmem:[%s138 + $0x1a8] sm:$0x3]
      %v199 = vpack.c.bf16 %v146, %v145
      %v200 = vpack.c.bf16 %v147, %v147
      %v201 = vpack.c.bf16 %v149, %v148
      %v202 = vpack.c.bf16 %v150, %v150
      %v203 = vpack.c.bf16 %v152, %v151
      %v204 = vpack.c.bf16 %v153, %v153
      %v205 = vpack.c.bf16 %v155, %v154
      %v206 = vpack.c.bf16 %v156, %v156
      %v207 = vpack.c.bf16 %v158, %v157
      %v208 = vpack.c.bf16 %v159, %v159
      %v209 = vpack.c.bf16 %v161, %v160
      %v210 = vpack.c.bf16 %v162, %v162
      %v211 = vpack.c.bf16 %v164, %v163
      %v212 = vpack.c.bf16 %v165, %v165
      %v213 = vpack.c.bf16 %v167, %v166
      %v214 = vpack.c.bf16 %v168, %v168
      %v215 = vpack.c.bf16 %v170, %v169
      %v216 = vpack.c.bf16 %v171, %v171
      %v217 = vpack.c.bf16 %v173, %v172
      %v218 = vpack.c.bf16 %v174, %v174
      %v219 = vpack.c.bf16 %v176, %v175
      %v220 = vpack.c.bf16 %v177, %v177
      %v221 = vpack.c.bf16 %v179, %v178
      %v222 = vpack.c.bf16 %v180, %v180
      %v223 = vpack.c.bf16 %v182, %v181
      %v224 = vpack.c.bf16 %v183, %v183
      %v225 = vpack.c.bf16 %v185, %v184
      %v226 = vpack.c.bf16 %v186, %v186
      %v227 = vpack.c.bf16 %v188, %v187
      %v228 = vpack.c.bf16 %v189, %v189
      %v229 = vpack.c.bf16 %v191, %v190
      %v230 = vpack.c.bf16 %v192, %v192
      %v231 = vpack.c.bf16 %v194, %v193
      %v232 = vpack.c.bf16 %v195, %v195
      %v233 = vpack.c.bf16 %v197, %v196
      %v234 = vpack.c.bf16 %v198, %v198
      %v271 = vunpack.c.l.b16 %v199
      %v272 = vunpack.c.h.b16 %v199
      %v273 = vunpack.c.l.b16 %v200
      %v274 = vunpack.c.l.b16 %v201
      %v275 = vunpack.c.h.b16 %v201
      %v276 = vunpack.c.l.b16 %v202
      %v277 = vunpack.c.l.b16 %v203
      %v278 = vunpack.c.h.b16 %v203
      %v279 = vunpack.c.l.b16 %v204
      %v280 = vunpack.c.l.b16 %v205
      %v281 = vunpack.c.h.b16 %v205
      %v282 = vunpack.c.l.b16 %v206
      %v283 = vunpack.c.l.b16 %v207
      %v284 = vunpack.c.h.b16 %v207
      %v285 = vunpack.c.l.b16 %v208
      %v286 = vunpack.c.l.b16 %v209
      %v287 = vunpack.c.h.b16 %v209
      %v288 = vunpack.c.l.b16 %v210
      %v289 = vunpack.c.l.b16 %v211
      %v290 = vunpack.c.h.b16 %v211
      %v291 = vunpack.c.l.b16 %v212
      %v292 = vunpack.c.l.b16 %v213
      %v293 = vunpack.c.h.b16 %v213
      %v294 = vunpack.c.l.b16 %v214
      %v295 = vunpack.c.l.b16 %v215
      %v296 = vunpack.c.h.b16 %v215
      %v297 = vunpack.c.l.b16 %v216
      %v298 = vunpack.c.l.b16 %v217
      %v299 = vunpack.c.h.b16 %v217
      %v300 = vunpack.c.l.b16 %v218
      %v301 = vunpack.c.l.b16 %v219
      %v302 = vunpack.c.h.b16 %v219
      %v303 = vunpack.c.l.b16 %v220
      %v304 = vunpack.c.l.b16 %v221
      %v305 = vunpack.c.h.b16 %v221
      %v306 = vunpack.c.l.b16 %v222
      %v307 = vunpack.c.l.b16 %v223
      %v308 = vunpack.c.h.b16 %v223
      %v309 = vunpack.c.l.b16 %v224
      %v310 = vunpack.c.l.b16 %v225
      %v311 = vunpack.c.h.b16 %v225
      %v312 = vunpack.c.l.b16 %v226
      %v313 = vunpack.c.l.b16 %v227
      %v314 = vunpack.c.h.b16 %v227
      %v315 = vunpack.c.l.b16 %v228
      %v316 = vunpack.c.l.b16 %v229
      %v317 = vunpack.c.h.b16 %v229
      %v318 = vunpack.c.l.b16 %v230
      %v319 = vunpack.c.l.b16 %v231
      %v320 = vunpack.c.h.b16 %v231
      %v321 = vunpack.c.l.b16 %v232
      %v322 = vunpack.c.l.b16 %v233
      %v323 = vunpack.c.h.b16 %v233
      %v324 = vunpack.c.l.b16 %v234
      %v325 = vpack.c.b16 %v271, %v271
      %v326 = vpack.c.b16 %v272, %v272
      %v327 = vpack.c.b16 %v273, %v273
      %v328 = vpack.c.b16 %v274, %v274
      %v329 = vpack.c.b16 %v275, %v275
      %v330 = vpack.c.b16 %v276, %v276
      %v331 = vpack.c.b16 %v277, %v277
      %v332 = vpack.c.b16 %v278, %v278
      %v333 = vpack.c.b16 %v279, %v279
      %v334 = vpack.c.b16 %v280, %v280
      %v335 = vpack.c.b16 %v281, %v281
      %v336 = vpack.c.b16 %v282, %v282
      %v337 = vpack.c.b16 %v283, %v283
      %v338 = vpack.c.b16 %v284, %v284
      %v339 = vpack.c.b16 %v285, %v285
      %v340 = vpack.c.b16 %v286, %v286
      %v341 = vpack.c.b16 %v287, %v287
      %v342 = vpack.c.b16 %v288, %v288
      %v343 = vpack.c.b16 %v289, %v289
      %v344 = vpack.c.b16 %v290, %v290
      %v345 = vpack.c.b16 %v291, %v291
      %v346 = vpack.c.b16 %v292, %v292
      %v347 = vpack.c.b16 %v293, %v293
      %v348 = vpack.c.b16 %v294, %v294
      %v349 = vpack.c.b16 %v295, %v295
      %v350 = vpack.c.b16 %v296, %v296
      %v351 = vpack.c.b16 %v297, %v297
      %v352 = vpack.c.b16 %v298, %v298
      %v353 = vpack.c.b16 %v299, %v299
      %v354 = vpack.c.b16 %v300, %v300
      %v355 = vpack.c.b16 %v301, %v301
      %v356 = vpack.c.b16 %v302, %v302
      %v357 = vpack.c.b16 %v303, %v303
      %v358 = vpack.c.b16 %v304, %v304
      %v359 = vpack.c.b16 %v305, %v305
      %v360 = vpack.c.b16 %v306, %v306
      %v361 = vpack.c.b16 %v307, %v307
      %v362 = vpack.c.b16 %v308, %v308
      %v363 = vpack.c.b16 %v309, %v309
      %v364 = vpack.c.b16 %v310, %v310
      %v365 = vpack.c.b16 %v311, %v311
      %v366 = vpack.c.b16 %v312, %v312
      %v367 = vpack.c.b16 %v313, %v313
      %v368 = vpack.c.b16 %v314, %v314
      %v369 = vpack.c.b16 %v315, %v315
      %v370 = vpack.c.b16 %v316, %v316
      %v371 = vpack.c.b16 %v317, %v317
      %v372 = vpack.c.b16 %v318, %v318
      %v373 = vpack.c.b16 %v319, %v319
      %v374 = vpack.c.b16 %v320, %v320
      %v375 = vpack.c.b16 %v321, %v321
      %v376 = vpack.c.b16 %v322, %v322
      %v377 = vpack.c.b16 %v323, %v323
      %v378 = vpack.c.b16 %v324, %v324
      %vm433 = vcmask 519168
      %434 = vst.msk [vmem:[#allocation2] sm:$0xf] %vm433, %v325
      %435 = vst.msk [vmem:[#allocation2 + $0x4] sm:$0xf] %vm433, %v326
      %vm436 = vcmask 516096
      %437 = vst.msk [vmem:[#allocation2 + $0x8] sm:$0x1] %vm436, %v327
      %438 = vst.msk [vmem:[#allocation2 + $0xc] sm:$0xf] %vm433, %v328
      %439 = vst.msk [vmem:[#allocation2 + $0x10] sm:$0xf] %vm433, %v329
      %440 = vst.msk [vmem:[#allocation2 + $0x14] sm:$0x1] %vm436, %v330
      %441 = vst.msk [vmem:[#allocation2 + $0x18] sm:$0xf] %vm433, %v331
      %442 = vst.msk [vmem:[#allocation2 + $0x1c] sm:$0xf] %vm433, %v332
      %443 = vst.msk [vmem:[#allocation2 + $0x20] sm:$0x1] %vm436, %v333
      %444 = vst.msk [vmem:[#allocation2 + $0x24] sm:$0xf] %vm433, %v334
      %445 = vst.msk [vmem:[#allocation2 + $0x28] sm:$0xf] %vm433, %v335
      %446 = vst.msk [vmem:[#allocation2 + $0x2c] sm:$0x1] %vm436, %v336
      %447 = vst.msk [vmem:[#allocation2 + $0x30] sm:$0xf] %vm433, %v337
      %448 = vst.msk [vmem:[#allocation2 + $0x34] sm:$0xf] %vm433, %v338
      %449 = vst.msk [vmem:[#allocation2 + $0x38] sm:$0x1] %vm436, %v339
      %450 = vst.msk [vmem:[#allocation2 + $0x3c] sm:$0xf] %vm433, %v340
      %451 = vst.msk [vmem:[#allocation2 + $0x40] sm:$0xf] %vm433, %v341
      %452 = vst.msk [vmem:[#allocation2 + $0x44] sm:$0x1] %vm436, %v342
      %453 = vst.msk [vmem:[#allocation2 + $0x48] sm:$0xf] %vm433, %v343
      %454 = vst.msk [vmem:[#allocation2 + $0x4c] sm:$0xf] %vm433, %v344
      %455 = vst.msk [vmem:[#allocation2 + $0x50] sm:$0x1] %vm436, %v345
      %456 = vst.msk [vmem:[#allocation2 + $0x54] sm:$0xf] %vm433, %v346
      %457 = vst.msk [vmem:[#allocation2 + $0x58] sm:$0xf] %vm433, %v347
      %458 = vst.msk [vmem:[#allocation2 + $0x5c] sm:$0x1] %vm436, %v348
      %459 = vst.msk [vmem:[#allocation2 + $0x60] sm:$0xf] %vm433, %v349
      %460 = vst.msk [vmem:[#allocation2 + $0x64] sm:$0xf] %vm433, %v350
      %461 = vst.msk [vmem:[#allocation2 + $0x68] sm:$0x1] %vm436, %v351
      %462 = vst.msk [vmem:[#allocation2 + $0x6c] sm:$0xf] %vm433, %v352
      %463 = vst.msk [vmem:[#allocation2 + $0x70] sm:$0xf] %vm433, %v353
      %464 = vst.msk [vmem:[#allocation2 + $0x74] sm:$0x1] %vm436, %v354
      %465 = vst.msk [vmem:[#allocation2 + $0x78] sm:$0xf] %vm433, %v355
      %466 = vst.msk [vmem:[#allocation2 + $0x7c] sm:$0xf] %vm433, %v356
      %467 = vst.msk [vmem:[#allocation2 + $0x80] sm:$0x1] %vm436, %v357
      %468 = vst.msk [vmem:[#allocation2 + $0x84] sm:$0xf] %vm433, %v358
      %469 = vst.msk [vmem:[#allocation2 + $0x88] sm:$0xf] %vm433, %v359
      %470 = vst.msk [vmem:[#allocation2 + $0x8c] sm:$0x1] %vm436, %v360
      %471 = vst.msk [vmem:[#allocation2 + $0x90] sm:$0xf] %vm433, %v361
      %472 = vst.msk [vmem:[#allocation2 + $0x94] sm:$0xf] %vm433, %v362
      %473 = vst.msk [vmem:[#allocation2 + $0x98] sm:$0x1] %vm436, %v363
      %474 = vst.msk [vmem:[#allocation2 + $0x9c] sm:$0xf] %vm433, %v364
      %475 = vst.msk [vmem:[#allocation2 + $0xa0] sm:$0xf] %vm433, %v365
      %476 = vst.msk [vmem:[#allocation2 + $0xa4] sm:$0x1] %vm436, %v366
      %477 = vst.msk [vmem:[#allocation2 + $0xa8] sm:$0xf] %vm433, %v367
      %478 = vst.msk [vmem:[#allocation2 + $0xac] sm:$0xf] %vm433, %v368
      %479 = vst.msk [vmem:[#allocation2 + $0xb0] sm:$0x1] %vm436, %v369
      %480 = vst.msk [vmem:[#allocation2 + $0xb4] sm:$0xf] %vm433, %v370
      %481 = vst.msk [vmem:[#allocation2 + $0xb8] sm:$0xf] %vm433, %v371
      %482 = vst.msk [vmem:[#allocation2 + $0xbc] sm:$0x1] %vm436, %v372
      %483 = vst.msk [vmem:[#allocation2 + $0xc0] sm:$0xf] %vm433, %v373
      %484 = vst.msk [vmem:[#allocation2 + $0xc4] sm:$0xf] %vm433, %v374
      %485 = vst.msk [vmem:[#allocation2 + $0xc8] sm:$0x1] %vm436, %v375
      %486 = vst.msk [vmem:[#allocation2 + $0xcc] sm:$0xf] %vm433, %v376
      %487 = vst.msk [vmem:[#allocation2 + $0xd0] sm:$0xf] %vm433, %v377
      %488 = vst.msk [vmem:[#allocation2 + $0xd4] sm:$0x1] %vm436, %v378
      loop: start=0, step=1, limit=19
      $region29: #{edsr_forward.1} parent=27 // loop_pre_header
        _
      $region30: #{edsr_forward.1} parent=27 // loop_header
        %s490 = sphi 0, %s494
        %p491 = scmp.ge.s32.totalorder %s490, 19
      $region31: #{edsr_forward.1} parent=27 // loop_header_branch
        %493 = sbr.rel (%p491) target = $region35
      $region32: #{edsr_forward.1} parent=27 // loop_body
        %v495 = vld [vmem:[#allocation2] sm:$0xf]
        %v496 = vld [vmem:[#allocation2 + $0x4] sm:$0xf]
        %v497 = vld [vmem:[#allocation2 + $0xc] sm:$0xf]
        %v498 = vld [vmem:[#allocation2 + $0x10] sm:$0xf]
        %v499 = vld [vmem:[#allocation2 + $0x18] sm:$0xf]
        %v500 = vld [vmem:[#allocation2 + $0x1c] sm:$0xf]
        %v501 = vld [vmem:[#allocation2 + $0x24] sm:$0xf]
        %v502 = vld [vmem:[#allocation2 + $0x28] sm:$0xf]
        %v503 = vld [vmem:[#allocation2 + $0x30] sm:$0xf]
        %v504 = vld [vmem:[#allocation2 + $0x34] sm:$0xf]
        %v505 = vld [vmem:[#allocation2 + $0x3c] sm:$0xf]
        %v506 = vld [vmem:[#allocation2 + $0x40] sm:$0xf]
        %v507 = vld [vmem:[#allocation2 + $0x48] sm:$0xf]
        %v508 = vld [vmem:[#allocation2 + $0x4c] sm:$0xf]
        %v509 = vld [vmem:[#allocation2 + $0x54] sm:$0xf]
        %v510 = vld [vmem:[#allocation2 + $0x58] sm:$0xf]
        %v511 = vld [vmem:[#allocation2 + $0x60] sm:$0xf]
        %v512 = vld [vmem:[#allocation2 + $0x64] sm:$0xf]
        %v513 = vld [vmem:[#allocation2 + $0x6c] sm:$0xf]
        %v514 = vld [vmem:[#allocation2 + $0x70] sm:$0xf]
        %v515 = vld [vmem:[#allocation2 + $0x78] sm:$0xf]
        %v516 = vld [vmem:[#allocation2 + $0x7c] sm:$0xf]
        %v517 = vld [vmem:[#allocation2 + $0x84] sm:$0xf]
        %v518 = vld [vmem:[#allocation2 + $0x88] sm:$0xf]
        %v519 = vld [vmem:[#allocation2 + $0x90] sm:$0xf]
        %v520 = vld [vmem:[#allocation2 + $0x94] sm:$0xf]
        %v521 = vld [vmem:[#allocation2 + $0x9c] sm:$0xf]
        %v522 = vld [vmem:[#allocation2 + $0xa0] sm:$0xf]
        %v523 = vld [vmem:[#allocation2 + $0xa8] sm:$0xf]
        %v524 = vld [vmem:[#allocation2 + $0xac] sm:$0xf]
        %v525 = vld [vmem:[#allocation2 + $0xb4] sm:$0xf]
        %v526 = vld [vmem:[#allocation2 + $0xb8] sm:$0xf]
        %s527 = smul.u32 %s490, 9
        %s528 = smul.u32 %s527, 8
        %s529 = smul.addr %s528, 4
        %s530 = scalar_lea.vmem %s1, %s529
        %v531 = vld [vmem:[%s530] sm:$0xf]
        %v532 = vld [vmem:[%s530 + $0x4] sm:$0xf]
        %v533 = vld [vmem:[%s530 + $0x8] sm:$0xf]
        %v534 = vld [vmem:[%s530 + $0xc] sm:$0xf]
        %v535 = vld [vmem:[%s530 + $0x10] sm:$0xf]
        %v536 = vld [vmem:[%s530 + $0x14] sm:$0xf]
        %v537 = vld [vmem:[%s530 + $0x18] sm:$0xf]
        %v538 = vld [vmem:[%s530 + $0x1c] sm:$0xf]
        %v539 = vld [vmem:[#allocation2 + $0x8] sm:$0x1]
        %v540 = vld [vmem:[#allocation2 + $0x14] sm:$0x1]
        %v541 = vld [vmem:[#allocation2 + $0x20] sm:$0x1]
        %v542 = vld [vmem:[#allocation2 + $0x2c] sm:$0x1]
        %v543 = vld [vmem:[#allocation2 + $0x38] sm:$0x1]
        %v544 = vld [vmem:[#allocation2 + $0x44] sm:$0x1]
        %v545 = vld [vmem:[#allocation2 + $0x50] sm:$0x1]
        %v546 = vld [vmem:[#allocation2 + $0x5c] sm:$0x1]
        %v547 = vld [vmem:[#allocation2 + $0x68] sm:$0x1]
        %v548 = vld [vmem:[#allocation2 + $0x74] sm:$0x1]
        %v549 = vld [vmem:[#allocation2 + $0x80] sm:$0x1]
        %v550 = vld [vmem:[#allocation2 + $0x8c] sm:$0x1]
        %v551 = vld [vmem:[#allocation2 + $0x98] sm:$0x1]
        %v552 = vld [vmem:[#allocation2 + $0xa4] sm:$0x1]
        %v553 = vld [vmem:[#allocation2 + $0xb0] sm:$0x1]
        %v554 = vld [vmem:[#allocation2 + $0xbc] sm:$0x1]
        %vm555 = vsmask.f32 3328
        %vm556 = vsmask.f32 7440
        %vm557 = vmor %vm555, %vm556
        %v559 = vshrl.u32 %v495, 16
        %v561 = vrot.slane %v559, 4
        %v562 = vshll.u32 %v495, 16
        %v564 = vrot.slane %v562, 5
        %v565 = vor.u32 %v561, %v564
        %v566 = vrot.slane %v565, 4
        %v568 = vshll.u32 %v496, 16
        %v570 = vrot.slane %v568, 5
        %v571 = vsel %vm557, %v566, %v570
        %v572 = vshrl.u32 %v496, 16
        %v574 = vrot.slane %v572, 4
        %v575 = vor.u32 %v574, %v570
        %v576 = vrot.slane %v575, 4
        %v578 = vshll.u32 %v539, 16
        %v580 = vrot.slane %v578, 5
        %v581 = vsel %vm557, %v576, %v580
        %v583 = vshrl.u32 %v497, 16
        %v585 = vrot.slane %v583, 4
        %v586 = vshll.u32 %v497, 16
        %v588 = vrot.slane %v586, 5
        %v589 = vor.u32 %v585, %v588
        %v590 = vrot.slane %v589, 4
        %v592 = vshll.u32 %v498, 16
        %v594 = vrot.slane %v592, 5
        %v595 = vsel %vm557, %v590, %v594
        %v596 = vshrl.u32 %v498, 16
        %v598 = vrot.slane %v596, 4
        %v599 = vor.u32 %v598, %v594
        %v600 = vrot.slane %v599, 4
        %v602 = vshll.u32 %v540, 16
        %v604 = vrot.slane %v602, 5
        %v605 = vsel %vm557, %v600, %v604
        %v607 = vshrl.u32 %v499, 16
        %v609 = vrot.slane %v607, 4
        %v610 = vshll.u32 %v499, 16
        %v612 = vrot.slane %v610, 5
        %v613 = vor.u32 %v609, %v612
        %v614 = vrot.slane %v613, 4
        %v616 = vshll.u32 %v500, 16
        %v618 = vrot.slane %v616, 5
        %v619 = vsel %vm557, %v614, %v618
        %v620 = vshrl.u32 %v500, 16
        %v622 = vrot.slane %v620, 4
        %v623 = vor.u32 %v622, %v618
        %v624 = vrot.slane %v623, 4
        %v626 = vshll.u32 %v541, 16
        %v628 = vrot.slane %v626, 5
        %v629 = vsel %vm557, %v624, %v628
        %v631 = vshrl.u32 %v501, 16
        %v633 = vrot.slane %v631, 4
        %v634 = vshll.u32 %v501, 16
        %v636 = vrot.slane %v634, 5
        %v637 = vor.u32 %v633, %v636
        %v638 = vrot.slane %v637, 4
        %v640 = vshll.u32 %v502, 16
        %v642 = vrot.slane %v640, 5
        %v643 = vsel %vm557, %v638, %v642
        %v644 = vshrl.u32 %v502, 16
        %v646 = vrot.slane %v644, 4
        %v647 = vor.u32 %v646, %v642
        %v648 = vrot.slane %v647, 4
        %v650 = vshll.u32 %v542, 16
        %v652 = vrot.slane %v650, 5
        %v653 = vsel %vm557, %v648, %v652
        %v655 = vshrl.u32 %v503, 16
        %v657 = vrot.slane %v655, 4
        %v658 = vshll.u32 %v503, 16
        %v660 = vrot.slane %v658, 5
        %v661 = vor.u32 %v657, %v660
        %v662 = vrot.slane %v661, 4
        %v664 = vshll.u32 %v504, 16
        %v666 = vrot.slane %v664, 5
        %v667 = vsel %vm557, %v662, %v666
        %v668 = vshrl.u32 %v504, 16
        %v670 = vrot.slane %v668, 4
        %v671 = vor.u32 %v670, %v666
        %v672 = vrot.slane %v671, 4
        %v674 = vshll.u32 %v543, 16
        %v676 = vrot.slane %v674, 5
        %v677 = vsel %vm557, %v672, %v676
        %v679 = vshrl.u32 %v505, 16
        %v681 = vrot.slane %v679, 4
        %v682 = vshll.u32 %v505, 16
        %v684 = vrot.slane %v682, 5
        %v685 = vor.u32 %v681, %v684
        %v686 = vrot.slane %v685, 4
        %v688 = vshll.u32 %v506, 16
        %v690 = vrot.slane %v688, 5
        %v691 = vsel %vm557, %v686, %v690
        %v692 = vshrl.u32 %v506, 16
        %v694 = vrot.slane %v692, 4
        %v695 = vor.u32 %v694, %v690
        %v696 = vrot.slane %v695, 4
        %v698 = vshll.u32 %v544, 16
        %v700 = vrot.slane %v698, 5
        %v701 = vsel %vm557, %v696, %v700
        %v703 = vshrl.u32 %v507, 16
        %v705 = vrot.slane %v703, 4
        %v706 = vshll.u32 %v507, 16
        %v708 = vrot.slane %v706, 5
        %v709 = vor.u32 %v705, %v708
        %v710 = vrot.slane %v709, 4
        %v712 = vshll.u32 %v508, 16
        %v714 = vrot.slane %v712, 5
        %v715 = vsel %vm557, %v710, %v714
        %v716 = vshrl.u32 %v508, 16
        %v718 = vrot.slane %v716, 4
        %v719 = vor.u32 %v718, %v714
        %v720 = vrot.slane %v719, 4
        %v722 = vshll.u32 %v545, 16
        %v724 = vrot.slane %v722, 5
        %v725 = vsel %vm557, %v720, %v724
        %v727 = vshrl.u32 %v509, 16
        %v729 = vrot.slane %v727, 4
        %v730 = vshll.u32 %v509, 16
        %v732 = vrot.slane %v730, 5
        %v733 = vor.u32 %v729, %v732
        %v734 = vrot.slane %v733, 4
        %v736 = vshll.u32 %v510, 16
        %v738 = vrot.slane %v736, 5
        %v739 = vsel %vm557, %v734, %v738
        %v740 = vshrl.u32 %v510, 16
        %v742 = vrot.slane %v740, 4
        %v743 = vor.u32 %v742, %v738
        %v744 = vrot.slane %v743, 4
        %v746 = vshll.u32 %v546, 16
        %v748 = vrot.slane %v746, 5
        %v749 = vsel %vm557, %v744, %v748
        %v751 = vshrl.u32 %v511, 16
        %v753 = vrot.slane %v751, 4
        %v754 = vshll.u32 %v511, 16
        %v756 = vrot.slane %v754, 5
        %v757 = vor.u32 %v753, %v756
        %v758 = vrot.slane %v757, 4
        %v760 = vshll.u32 %v512, 16
        %v762 = vrot.slane %v760, 5
        %v763 = vsel %vm557, %v758, %v762
        %v764 = vshrl.u32 %v512, 16
        %v766 = vrot.slane %v764, 4
        %v767 = vor.u32 %v766, %v762
        %v768 = vrot.slane %v767, 4
        %v770 = vshll.u32 %v547, 16
        %v772 = vrot.slane %v770, 5
        %v773 = vsel %vm557, %v768, %v772
        %v775 = vshrl.u32 %v513, 16
        %v777 = vrot.slane %v775, 4
        %v778 = vshll.u32 %v513, 16
        %v780 = vrot.slane %v778, 5
        %v781 = vor.u32 %v777, %v780
        %v782 = vrot.slane %v781, 4
        %v784 = vshll.u32 %v514, 16
        %v786 = vrot.slane %v784, 5
        %v787 = vsel %vm557, %v782, %v786
        %v788 = vshrl.u32 %v514, 16
        %v790 = vrot.slane %v788, 4
        %v791 = vor.u32 %v790, %v786
        %v792 = vrot.slane %v791, 4
        %v794 = vshll.u32 %v548, 16
        %v796 = vrot.slane %v794, 5
        %v797 = vsel %vm557, %v792, %v796
        %v799 = vshrl.u32 %v515, 16
        %v801 = vrot.slane %v799, 4
        %v802 = vshll.u32 %v515, 16
        %v804 = vrot.slane %v802, 5
        %v805 = vor.u32 %v801, %v804
        %v806 = vrot.slane %v805, 4
        %v808 = vshll.u32 %v516, 16
        %v810 = vrot.slane %v808, 5
        %v811 = vsel %vm557, %v806, %v810
        %v812 = vshrl.u32 %v516, 16
        %v814 = vrot.slane %v812, 4
        %v815 = vor.u32 %v814, %v810
        %v816 = vrot.slane %v815, 4
        %v818 = vshll.u32 %v549, 16
        %v820 = vrot.slane %v818, 5
        %v821 = vsel %vm557, %v816, %v820
        %v823 = vshrl.u32 %v517, 16
        %v825 = vrot.slane %v823, 4
        %v826 = vshll.u32 %v517, 16
        %v828 = vrot.slane %v826, 5
        %v829 = vor.u32 %v825, %v828
        %v830 = vrot.slane %v829, 4
        %v832 = vshll.u32 %v518, 16
        %v834 = vrot.slane %v832, 5
        %v835 = vsel %vm557, %v830, %v834
        %v836 = vshrl.u32 %v518, 16
        %v838 = vrot.slane %v836, 4
        %v839 = vor.u32 %v838, %v834
        %v840 = vrot.slane %v839, 4
        %v842 = vshll.u32 %v550, 16
        %v844 = vrot.slane %v842, 5
        %v845 = vsel %vm557, %v840, %v844
        %v847 = vshrl.u32 %v519, 16
        %v849 = vrot.slane %v847, 4
        %v850 = vshll.u32 %v519, 16
        %v852 = vrot.slane %v850, 5
        %v853 = vor.u32 %v849, %v852
        %v854 = vrot.slane %v853, 4
        %v856 = vshll.u32 %v520, 16
        %v858 = vrot.slane %v856, 5
        %v859 = vsel %vm557, %v854, %v858
        %v860 = vshrl.u32 %v520, 16
        %v862 = vrot.slane %v860, 4
        %v863 = vor.u32 %v862, %v858
        %v864 = vrot.slane %v863, 4
        %v866 = vshll.u32 %v551, 16
        %v868 = vrot.slane %v866, 5
        %v869 = vsel %vm557, %v864, %v868
        %v871 = vshrl.u32 %v521, 16
        %v873 = vrot.slane %v871, 4
        %v874 = vshll.u32 %v521, 16
        %v876 = vrot.slane %v874, 5
        %v877 = vor.u32 %v873, %v876
        %v878 = vrot.slane %v877, 4
        %v880 = vshll.u32 %v522, 16
        %v882 = vrot.slane %v880, 5
        %v883 = vsel %vm557, %v878, %v882
        %v884 = vshrl.u32 %v522, 16
        %v886 = vrot.slane %v884, 4
        %v887 = vor.u32 %v886, %v882
        %v888 = vrot.slane %v887, 4
        %v890 = vshll.u32 %v552, 16
        %v892 = vrot.slane %v890, 5
        %v893 = vsel %vm557, %v888, %v892
        %v895 = vshrl.u32 %v523, 16
        %v897 = vrot.slane %v895, 4
        %v898 = vshll.u32 %v523, 16
        %v900 = vrot.slane %v898, 5
        %v901 = vor.u32 %v897, %v900
        %v902 = vrot.slane %v901, 4
        %v904 = vshll.u32 %v524, 16
        %v906 = vrot.slane %v904, 5
        %v907 = vsel %vm557, %v902, %v906
        %v908 = vshrl.u32 %v524, 16
        %v910 = vrot.slane %v908, 4
        %v911 = vor.u32 %v910, %v906
        %v912 = vrot.slane %v911, 4
        %v914 = vshll.u32 %v553, 16
        %v916 = vrot.slane %v914, 5
        %v917 = vsel %vm557, %v912, %v916
        %v919 = vshrl.u32 %v525, 16
        %v921 = vrot.slane %v919, 4
        %v922 = vshll.u32 %v525, 16
        %v924 = vrot.slane %v922, 5
        %v925 = vor.u32 %v921, %v924
        %v926 = vrot.slane %v925, 4
        %v928 = vshll.u32 %v526, 16
        %v930 = vrot.slane %v928, 5
        %v931 = vsel %vm557, %v926, %v930
        %v932 = vshrl.u32 %v526, 16
        %v934 = vrot.slane %v932, 4
        %v935 = vor.u32 %v934, %v930
        %v936 = vrot.slane %v935, 4
        %v938 = vshll.u32 %v554, 16
        %v940 = vrot.slane %v938, 5
        %v941 = vsel %vm557, %v936, %v940
        %s942 = sadd.s32 %s527, 1
        %s943 = smul.u32 %s942, 8
        %s944 = smul.addr %s943, 4
        %s945 = scalar_lea.vmem %s1, %s944
        %v946 = vld [vmem:[%s945] sm:$0xf]
        %v947 = vld [vmem:[%s945 + $0x4] sm:$0xf]
        %v948 = vld [vmem:[%s945 + $0x8] sm:$0xf]
        %v949 = vld [vmem:[%s945 + $0xc] sm:$0xf]
        %v950 = vld [vmem:[%s945 + $0x10] sm:$0xf]
        %v951 = vld [vmem:[%s945 + $0x14] sm:$0xf]
        %v952 = vld [vmem:[%s945 + $0x18] sm:$0xf]
        %v953 = vld [vmem:[%s945 + $0x1c] sm:$0xf]
        %v954 = vunpack.c.l.b16 %v571
        %v955 = vunpack.c.l.b16 %v581
        %v956 = vunpack.c.l.b16 %v595
        %v957 = vunpack.c.l.b16 %v605
        %v958 = vunpack.c.l.b16 %v619
        %v959 = vunpack.c.l.b16 %v629
        %v960 = vunpack.c.l.b16 %v643
        %v961 = vunpack.c.l.b16 %v653
        %v962 = vunpack.c.l.b16 %v667
        %v963 = vunpack.c.l.b16 %v677
        %v964 = vunpack.c.l.b16 %v691
        %v965 = vunpack.c.l.b16 %v701
        %v966 = vunpack.c.l.b16 %v715
        %v967 = vunpack.c.l.b16 %v725
        %v968 = vunpack.c.l.b16 %v739
        %v969 = vunpack.c.l.b16 %v749
        %v970 = vunpack.c.l.b16 %v763
        %v971 = vunpack.c.l.b16 %v773
        %v972 = vunpack.c.l.b16 %v787
        %v973 = vunpack.c.l.b16 %v797
        %v974 = vunpack.c.l.b16 %v811
        %v975 = vunpack.c.l.b16 %v821
        %v976 = vunpack.c.l.b16 %v835
        %v977 = vunpack.c.l.b16 %v845
        %v978 = vunpack.c.l.b16 %v859
        %v979 = vunpack.c.l.b16 %v869
        %v980 = vunpack.c.l.b16 %v883
        %v981 = vunpack.c.l.b16 %v893
        %v982 = vunpack.c.l.b16 %v907
        %v983 = vunpack.c.l.b16 %v917
        %v984 = vunpack.c.l.b16 %v931
        %v985 = vunpack.c.l.b16 %v941
        %v986 = vpack.c.b16 %v955, %v954
        %v987 = vpack.c.b16 %v957, %v956
        %v988 = vpack.c.b16 %v959, %v958
        %v989 = vpack.c.b16 %v961, %v960
        %v990 = vpack.c.b16 %v963, %v962
        %v991 = vpack.c.b16 %v965, %v964
        %v992 = vpack.c.b16 %v967, %v966
        %v993 = vpack.c.b16 %v969, %v968
        %v994 = vpack.c.b16 %v971, %v970
        %v995 = vpack.c.b16 %v973, %v972
        %v996 = vpack.c.b16 %v975, %v974
        %v997 = vpack.c.b16 %v977, %v976
        %v998 = vpack.c.b16 %v979, %v978
        %v999 = vpack.c.b16 %v981, %v980
        %v1000 = vpack.c.b16 %v983, %v982
        %v1001 = vpack.c.b16 %v985, %v984
        %v1010 = vunpack.c.l.b16 %v946
        %v1011 = vunpack.c.l.b16 %v947
        %v1012 = vunpack.c.l.b16 %v948
        %v1013 = vunpack.c.l.b16 %v949
        %v1014 = vunpack.c.l.b16 %v950
        %v1015 = vunpack.c.l.b16 %v951
        %v1016 = vunpack.c.l.b16 %v952
        %v1017 = vunpack.c.l.b16 %v953
        %v1018 = vpack.c.b16 %v1011, %v1010
        %v1019 = vpack.c.b16 %v1013, %v1012
        %v1020 = vpack.c.b16 %v1015, %v1014
        %v1021 = vpack.c.b16 %v1017, %v1016
        %vm1026 = vcmask 523264
        %v1028 = vsel %vm1026, %v986, 0
        %v1031 = vsel %vm1026, %v987, 0
        %v1034 = vsel %vm1026, %v988, 0
        %v1037 = vsel %vm1026, %v989, 0
        %v1040 = vsel %vm1026, %v990, 0
        %v1043 = vsel %vm1026, %v991, 0
        %v1046 = vsel %vm1026, %v992, 0
        %v1049 = vsel %vm1026, %v993, 0
        %v1052 = vsel %vm1026, %v994, 0
        %v1055 = vsel %vm1026, %v995, 0
        %v1058 = vsel %vm1026, %v996, 0
        %v1061 = vsel %vm1026, %v997, 0
        %v1064 = vsel %vm1026, %v998, 0
        %v1067 = vsel %vm1026, %v999, 0
        %v1070 = vsel %vm1026, %v1000, 0
        %v1073 = vsel %vm1026, %v1001, 0
        %1075 = vmatprep.subr.bf16.mxu0 0
        %1076 = vmatpush1.bf16.msra.mxu0 %v1018
        %1077 = vmatprep.subr.bf16.mxu0 0
        %1078 = vmatpush1.bf16.msra.mxu0 %v1019
        %1079 = vmatprep.subr.bf16.mxu0 0
        %1080 = vmatpush1.bf16.msra.mxu0 %v1020
        %1081 = vmatprep.subr.bf16.mxu0 0
        %1082 = vmatpush1.bf16.msra.mxu0 %v1021
        %1083 = vmatprep.subr.bf16.mxu0 0
        %1084 = vmatpush1.bf16.msra.mxu0 0
        %1085 = vmatprep.subr.bf16.mxu0 0
        %1086 = vmatpush1.bf16.msra.mxu0 0
        %1087 = vmatprep.subr.bf16.mxu0 0
        %1088 = vmatpush1.bf16.msra.mxu0 0
        %1089 = vmatprep.subr.bf16.mxu0 0
        %1090 = vmatpush1.bf16.msra.mxu0 0
        %1091 = vmatprep.subr.bf16.mxu0 0
        %1092 = vmatpush1.bf16.msra.mxu0 0
        %1093 = vmatprep.subr.bf16.mxu0 0
        %1094 = vmatpush1.bf16.msra.mxu0 0
        %1095 = vmatprep.subr.bf16.mxu0 0
        %1096 = vmatpush1.bf16.msra.mxu0 0
        %1097 = vmatprep.subr.bf16.mxu0 0
        %1098 = vmatpush1.bf16.msra.mxu0 0
        %1099 = vmatprep.subr.bf16.mxu0 0
        %1100 = vmatpush1.bf16.msra.mxu0 0
        %1101 = vmatprep.subr.bf16.mxu0 0
        %1102 = vmatpush1.bf16.msra.mxu0 0
        %1103 = vmatprep.subr.bf16.mxu0 0
        %1104 = vmatpush1.bf16.msra.mxu0 0
        %1105 = vmatprep.subr.bf16.mxu0 0
        %1106 = vmatpush1.bf16.msra.mxu0 0
        %1107 = vmatprep.mubr.bf16.mxu0 0
        %1108 = vmatmul.mubr.bf16.gmra.mrb[0].mxu0 %v1028
        %v1109 = vpop.f32.mrb[0].mxu0
        %v1110 = vadd.f32 0.0, %v1109
        %v1111 = vpop.f32.mrb[0].mxu0
        %v1112 = vpop.f32.mrb[0].mxu0
        %v1113 = vadd.f32 0.0, %v1112
        %v1114 = vpop.f32.mrb[0].mxu0
        %1115 = vmatprep.mubr.bf16.mxu0 0
        %1116 = vmatmul.mubr.bf16.gmra.mrb[0].mxu0 %v1031
        %v1117 = vpop.f32.mrb[0].mxu0
        %v1118 = vadd.f32 0.0, %v1117
        %v1119 = vpop.f32.mrb[0].mxu0
        %v1120 = vpop.f32.mrb[0].mxu0
        %v1121 = vadd.f32 0.0, %v1120
        %v1122 = vpop.f32.mrb[0].mxu0
        %1123 = vmatprep.mubr.bf16.mxu0 0
        %1124 = vmatmul.mubr.bf16.gmra.mrb[0].mxu0 %v1034
        %v1125 = vpop.f32.mrb[0].mxu0
        %v1126 = vadd.f32 0.0, %v1125
        %v1127 = vpop.f32.mrb[0].mxu0
        %v1128 = vpop.f32.mrb[0].mxu0
        %v1129 = vadd.f32 0.0, %v1128
        %v1130 = vpop.f32.mrb[0].mxu0
        %1131 = vmatprep.mubr.bf16.mxu0 0
        %1132 = vmatmul.mubr.bf16.gmra.mrb[0].mxu0 %v1037
        %v1133 = vpop.f32.mrb[0].mxu0
        %v1134 = vadd.f32 0.0, %v1133
        %v1135 = vpop.f32.mrb[0].mxu0
        %v1136 = vpop.f32.mrb[0].mxu0
        %v1137 = vadd.f32 0.0, %v1136
        %v1138 = vpop.f32.mrb[0].mxu0
        %1139 = vmatprep.mubr.bf16.mxu0 0
        %1140 = vmatmul.mubr.bf16.gmra.mrb[0].mxu0 %v1040
        %v1141 = vpop.f32.mrb[0].mxu0
        %v1142 = vadd.f32 0.0, %v1141
        %v1143 = vpop.f32.mrb[0].mxu0
        %v1144 = vpop.f32.mrb[0].mxu0
        %v1145 = vadd.f32 0.0, %v1144
        %v1146 = vpop.f32.mrb[0].mxu0
        %1147 = vmatprep.mubr.bf16.mxu0 0
        %1148 = vmatmul.mubr.bf16.gmra.mrb[0].mxu0 %v1043
        %v1149 = vpop.f32.mrb[0].mxu0
        %v1150 = vadd.f32 0.0, %v1149
        %v1151 = vpop.f32.mrb[0].mxu0
        %v1152 = vpop.f32.mrb[0].mxu0
        %v1153 = vadd.f32 0.0, %v1152
        %v1154 = vpop.f32.mrb[0].mxu0
        %1155 = vmatprep.mubr.bf16.mxu0 0
        %1156 = vmatmul.mubr.bf16.gmra.mrb[0].mxu0 %v1046
        %v1157 = vpop.f32.mrb[0].mxu0
        %v1158 = vadd.f32 0.0, %v1157
        %v1159 = vpop.f32.mrb[0].mxu0
        %v1160 = vpop.f32.mrb[0].mxu0
        %v1161 = vadd.f32 0.0, %v1160
        %v1162 = vpop.f32.mrb[0].mxu0
        %1163 = vmatprep.mubr.bf16.mxu0 0
        %1164 = vmatmul.mubr.bf16.gmra.mrb[0].mxu0 %v1049
        %v1165 = vpop.f32.mrb[0].mxu0
        %v1166 = vadd.f32 0.0, %v1165
        %v1167 = vpop.f32.mrb[0].mxu0
        %v1168 = vpop.f32.mrb[0].mxu0
        %v1169 = vadd.f32 0.0, %v1168
        %v1170 = vpop.f32.mrb[0].mxu0
        %1171 = vmatprep.mubr.bf16.mxu0 0
        %1172 = vmatmul.mubr.bf16.gmra.mrb[0].mxu0 %v1052
        %v1173 = vpop.f32.mrb[0].mxu0
        %v1174 = vadd.f32 0.0, %v1173
        %v1175 = vpop.f32.mrb[0].mxu0
        %v1176 = vpop.f32.mrb[0].mxu0
        %v1177 = vadd.f32 0.0, %v1176
        %v1178 = vpop.f32.mrb[0].mxu0
        %1179 = vmatprep.mubr.bf16.mxu0 0
        %1180 = vmatmul.mubr.bf16.gmra.mrb[0].mxu0 %v1055
        %v1181 = vpop.f32.mrb[0].mxu0
        %v1182 = vadd.f32 0.0, %v1181
        %v1183 = vpop.f32.mrb[0].mxu0
        %v1184 = vpop.f32.mrb[0].mxu0
        %v1185 = vadd.f32 0.0, %v1184
        %v1186 = vpop.f32.mrb[0].mxu0
        %1187 = vmatprep.mubr.bf16.mxu0 0
        %1188 = vmatmul.mubr.bf16.gmra.mrb[0].mxu0 %v1058
        %v1189 = vpop.f32.mrb[0].mxu0
        %v1190 = vadd.f32 0.0, %v1189
        %v1191 = vpop.f32.mrb[0].mxu0
        %v1192 = vpop.f32.mrb[0].mxu0
        %v1193 = vadd.f32 0.0, %v1192
        %v1194 = vpop.f32.mrb[0].mxu0
        %1195 = vmatprep.mubr.bf16.mxu0 0
        %1196 = vmatmul.mubr.bf16.gmra.mrb[0].mxu0 %v1061
        %v1197 = vpop.f32.mrb[0].mxu0
        %v1198 = vadd.f32 0.0, %v1197
        %v1199 = vpop.f32.mrb[0].mxu0
        %v1200 = vpop.f32.mrb[0].mxu0
        %v1201 = vadd.f32 0.0, %v1200
        %v1202 = vpop.f32.mrb[0].mxu0
        %1203 = vmatprep.mubr.bf16.mxu0 0
        %1204 = vmatmul.mubr.bf16.gmra.mrb[0].mxu0 %v1064
        %v1205 = vpop.f32.mrb[0].mxu0
        %v1206 = vadd.f32 0.0, %v1205
        %v1207 = vpop.f32.mrb[0].mxu0
        %v1208 = vpop.f32.mrb[0].mxu0
        %v1209 = vadd.f32 0.0, %v1208
        %v1210 = vpop.f32.mrb[0].mxu0
        %1211 = vmatprep.mubr.bf16.mxu0 0
        %1212 = vmatmul.mubr.bf16.gmra.mrb[0].mxu0 %v1067
        %v1213 = vpop.f32.mrb[0].mxu0
        %v1214 = vadd.f32 0.0, %v1213
        %v1215 = vpop.f32.mrb[0].mxu0
        %v1216 = vpop.f32.mrb[0].mxu0
        %v1217 = vadd.f32 0.0, %v1216
        %v1218 = vpop.f32.mrb[0].mxu0
        %1219 = vmatprep.mubr.bf16.mxu0 0
        %1220 = vmatmul.mubr.bf16.gmra.mrb[0].mxu0 %v1070
        %v1221 = vpop.f32.mrb[0].mxu0
        %v1222 = vadd.f32 0.0, %v1221
        %v1223 = vpop.f32.mrb[0].mxu0
        %v1224 = vpop.f32.mrb[0].mxu0
        %v1225 = vadd.f32 0.0, %v1224
        %v1226 = vpop.f32.mrb[0].mxu0
        %1227 = vmatprep.mubr.bf16.mxu0 0
        %1228 = vmatmul.mubr.bf16.gmra.mrb[0].mxu0 %v1073
        %v1229 = vpop.f32.mrb[0].mxu0
        %v1230 = vadd.f32 0.0, %v1229
        %v1231 = vpop.f32.mrb[0].mxu0
        %v1232 = vpop.f32.mrb[0].mxu0
        %v1233 = vadd.f32 0.0, %v1232
        %v1234 = vpop.f32.mrb[0].mxu0
        %1235 = vdwg.mxu0
        %v1268 = vunpack.c.l.b16 %v495
        %v1269 = vunpack.c.l.b16 %v496
        %v1270 = vunpack.c.l.b16 %v497
        %v1271 = vunpack.c.l.b16 %v498
        %v1272 = vunpack.c.l.b16 %v499
        %v1273 = vunpack.c.l.b16 %v500
        %v1274 = vunpack.c.l.b16 %v501
        %v1275 = vunpack.c.l.b16 %v502
        %v1276 = vunpack.c.l.b16 %v503
        %v1277 = vunpack.c.l.b16 %v504
        %v1278 = vunpack.c.l.b16 %v505
        %v1279 = vunpack.c.l.b16 %v506
        %v1280 = vunpack.c.l.b16 %v507
        %v1281 = vunpack.c.l.b16 %v508
        %v1282 = vunpack.c.l.b16 %v509
        %v1283 = vunpack.c.l.b16 %v510
        %v1284 = vunpack.c.l.b16 %v511
        %v1285 = vunpack.c.l.b16 %v512
        %v1286 = vunpack.c.l.b16 %v513
        %v1287 = vunpack.c.l.b16 %v514
        %v1288 = vunpack.c.l.b16 %v515
        %v1289 = vunpack.c.l.b16 %v516
        %v1290 = vunpack.c.l.b16 %v517
        %v1291 = vunpack.c.l.b16 %v518
        %v1292 = vunpack.c.l.b16 %v519
        %v1293 = vunpack.c.l.b16 %v520
        %v1294 = vunpack.c.l.b16 %v521
        %v1295 = vunpack.c.l.b16 %v522
        %v1296 = vunpack.c.l.b16 %v523
        %v1297 = vunpack.c.l.b16 %v524
        %v1298 = vunpack.c.l.b16 %v525
        %v1299 = vunpack.c.l.b16 %v526
        %v1300 = vpack.c.b16 %v1269, %v1268
        %v1301 = vpack.c.b16 %v1271, %v1270
        %v1302 = vpack.c.b16 %v1273, %v1272
        %v1303 = vpack.c.b16 %v1275, %v1274
        %v1304 = vpack.c.b16 %v1277, %v1276
        %v1305 = vpack.c.b16 %v1279, %v1278
        %v1306 = vpack.c.b16 %v1281, %v1280
        %v1307 = vpack.c.b16 %v1283, %v1282
        %v1308 = vpack.c.b16 %v1285, %v1284
        %v1309 = vpack.c.b16 %v1287, %v1286
        %v1310 = vpack.c.b16 %v1289, %v1288
        %v1311 = vpack.c.b16 %v1291, %v1290
        %v1312 = vpack.c.b16 %v1293, %v1292
        %v1313 = vpack.c.b16 %v1295, %v1294
        %v1314 = vpack.c.b16 %v1297, %v1296
        %v1315 = vpack.c.b16 %v1299, %v1298
        %v1324 = vunpack.c.l.b16 %v531
        %v1325 = vunpack.c.l.b16 %v532
        %v1326 = vunpack.c.l.b16 %v533
        %v1327 = vunpack.c.l.b16 %v534
        %v1328 = vunpack.c.l.b16 %v535
        %v1329 = vunpack.c.l.b16 %v536
        %v1330 = vunpack.c.l.b16 %v537
        %v1331 = vunpack.c.l.b16 %v538
        %v1332 = vpack.c.b16 %v1325, %v1324
        %v1333 = vpack.c.b16 %v1327, %v1326
        %v1334 = vpack.c.b16 %v1329, %v1328
        %v1335 = vpack.c.b16 %v1331, %v1330
        %v1341 = vsel %vm1026, %v1300, 0
        %v1344 = vsel %vm1026, %v1301, 0
        %v1347 = vsel %vm1026, %v1302, 0
        %v1350 = vsel %vm1026, %v1303, 0
        %v1353 = vsel %vm1026, %v1304, 0
        %v1356 = vsel %vm1026, %v1305, 0
        %v1359 = vsel %vm1026, %v1306, 0
        %v1362 = vsel %vm1026, %v1307, 0
        %v1365 = vsel %vm1026, %v1308, 0
        %v1368 = vsel %vm1026, %v1309, 0
        %v1371 = vsel %vm1026, %v1310, 0
        %v1374 = vsel %vm1026, %v1311, 0
        %v1377 = vsel %vm1026, %v1312, 0
        %v1380 = vsel %vm1026, %v1313, 0
        %v1383 = vsel %vm1026, %v1314, 0
        %v1386 = vsel %vm1026, %v1315, 0
        %1388 = vmatprep.subr.bf16.mxu0 0
        %1389 = vmatpush1.bf16.msra.mxu0 %v1332
        %1390 = vmatprep.subr.bf16.mxu0 0
        %1391 = vmatpush1.bf16.msra.mxu0 %v1333
        %1392 = vmatprep.subr.bf16.mxu0 0
        %1393 = vmatpush1.bf16.msra.mxu0 %v1334
        %1394 = vmatprep.subr.bf16.mxu0 0
        %1395 = vmatpush1.bf16.msra.mxu0 %v1335
        %1396 = vmatprep.subr.bf16.mxu0 0
        %1397 = vmatpush1.bf16.msra.mxu0 0
        %1398 = vmatprep.subr.bf16.mxu0 0
        %1399 = vmatpush1.bf16.msra.mxu0 0
        %1400 = vmatprep.subr.bf16.mxu0 0
        %1401 = vmatpush1.bf16.msra.mxu0 0
        %1402 = vmatprep.subr.bf16.mxu0 0
        %1403 = vmatpush1.bf16.msra.mxu0 0
        %1404 = vmatprep.subr.bf16.mxu0 0
        %1405 = vmatpush1.bf16.msra.mxu0 0
        %1406 = vmatprep.subr.bf16.mxu0 0
        %1407 = vmatpush1.bf16.msra.mxu0 0
        %1408 = vmatprep.subr.bf16.mxu0 0
        %1409 = vmatpush1.bf16.msra.mxu0 0
        %1410 = vmatprep.subr.bf16.mxu0 0
        %1411 = vmatpush1.bf16.msra.mxu0 0
        %1412 = vmatprep.subr.bf16.mxu0 0
        %1413 = vmatpush1.bf16.msra.mxu0 0
        %1414 = vmatprep.subr.bf16.mxu0 0
        %1415 = vmatpush1.bf16.msra.mxu0 0
        %1416 = vmatprep.subr.bf16.mxu0 0
        %1417 = vmatpush1.bf16.msra.mxu0 0
        %1418 = vmatprep.subr.bf16.mxu0 0
        %1419 = vmatpush1.bf16.msra.mxu0 0
        %1420 = vmatprep.mubr.bf16.mxu0 0
        %1421 = vmatmul.mubr.bf16.gmra.mrb[0].mxu0 %v1341
        %v1422 = vpop.f32.mrb[0].mxu0
        %v1423 = vadd.f32 %v1110, %v1422
        %v1424 = vpop.f32.mrb[0].mxu0
        %v1425 = vpop.f32.mrb[0].mxu0
        %v1426 = vadd.f32 %v1113, %v1425
        %v1427 = vpop.f32.mrb[0].mxu0
        %1428 = vmatprep.mubr.bf16.mxu0 0
        %1429 = vmatmul.mubr.bf16.gmra.mrb[0].mxu0 %v1344
        %v1430 = vpop.f32.mrb[0].mxu0
        %v1431 = vadd.f32 %v1118, %v1430
        %v1432 = vpop.f32.mrb[0].mxu0
        %v1433 = vpop.f32.mrb[0].mxu0
        %v1434 = vadd.f32 %v1121, %v1433
        %v1435 = vpop.f32.mrb[0].mxu0
        %1436 = vmatprep.mubr.bf16.mxu0 0
        %1437 = vmatmul.mubr.bf16.gmra.mrb[0].mxu0 %v1347
        %v1438 = vpop.f32.mrb[0].mxu0
        %v1439 = vadd.f32 %v1126, %v1438
        %v1440 = vpop.f32.mrb[0].mxu0
        %v1441 = vpop.f32.mrb[0].mxu0
        %v1442 = vadd.f32 %v1129, %v1441
        %v1443 = vpop.f32.mrb[0].mxu0
        %1444 = vmatprep.mubr.bf16.mxu0 0
        %1445 = vmatmul.mubr.bf16.gmra.mrb[0].mxu0 %v1350
        %v1446 = vpop.f32.mrb[0].mxu0
        %v1447 = vadd.f32 %v1134, %v1446
        %v1448 = vpop.f32.mrb[0].mxu0
        %v1449 = vpop.f32.mrb[0].mxu0
        %v1450 = vadd.f32 %v1137, %v1449
        %v1451 = vpop.f32.mrb[0].mxu0
        %1452 = vmatprep.mubr.bf16.mxu0 0
        %1453 = vmatmul.mubr.bf16.gmra.mrb[0].mxu0 %v1353
        %v1454 = vpop.f32.mrb[0].mxu0
        %v1455 = vadd.f32 %v1142, %v1454
        %v1456 = vpop.f32.mrb[0].mxu0
        %v1457 = vpop.f32.mrb[0].mxu0
        %v1458 = vadd.f32 %v1145, %v1457
        %v1459 = vpop.f32.mrb[0].mxu0
        %1460 = vmatprep.mubr.bf16.mxu0 0
        %1461 = vmatmul.mubr.bf16.gmra.mrb[0].mxu0 %v1356
        %v1462 = vpop.f32.mrb[0].mxu0
        %v1463 = vadd.f32 %v1150, %v1462
        %v1464 = vpop.f32.mrb[0].mxu0
        %v1465 = vpop.f32.mrb[0].mxu0
        %v1466 = vadd.f32 %v1153, %v1465
        %v1467 = vpop.f32.mrb[0].mxu0
        %1468 = vmatprep.mubr.bf16.mxu0 0
        %1469 = vmatmul.mubr.bf16.gmra.mrb[0].mxu0 %v1359
        %v1470 = vpop.f32.mrb[0].mxu0
        %v1471 = vadd.f32 %v1158, %v1470
        %v1472 = vpop.f32.mrb[0].mxu0
        %v1473 = vpop.f32.mrb[0].mxu0
        %v1474 = vadd.f32 %v1161, %v1473
        %v1475 = vpop.f32.mrb[0].mxu0
        %1476 = vmatprep.mubr.bf16.mxu0 0
        %1477 = vmatmul.mubr.bf16.gmra.mrb[0].mxu0 %v1362
        %v1478 = vpop.f32.mrb[0].mxu0
        %v1479 = vadd.f32 %v1166, %v1478
        %v1480 = vpop.f32.mrb[0].mxu0
        %v1481 = vpop.f32.mrb[0].mxu0
        %v1482 = vadd.f32 %v1169, %v1481
        %v1483 = vpop.f32.mrb[0].mxu0
        %1484 = vmatprep.mubr.bf16.mxu0 0
        %1485 = vmatmul.mubr.bf16.gmra.mrb[0].mxu0 %v1365
        %v1486 = vpop.f32.mrb[0].mxu0
        %v1487 = vadd.f32 %v1174, %v1486
        %v1488 = vpop.f32.mrb[0].mxu0
        %v1489 = vpop.f32.mrb[0].mxu0
        %v1490 = vadd.f32 %v1177, %v1489
        %v1491 = vpop.f32.mrb[0].mxu0
        %1492 = vmatprep.mubr.bf16.mxu0 0
        %1493 = vmatmul.mubr.bf16.gmra.mrb[0].mxu0 %v1368
        %v1494 = vpop.f32.mrb[0].mxu0
        %v1495 = vadd.f32 %v1182, %v1494
        %v1496 = vpop.f32.mrb[0].mxu0
        %v1497 = vpop.f32.mrb[0].mxu0
        %v1498 = vadd.f32 %v1185, %v1497
        %v1499 = vpop.f32.mrb[0].mxu0
        %1500 = vmatprep.mubr.bf16.mxu0 0
        %1501 = vmatmul.mubr.bf16.gmra.mrb[0].mxu0 %v1371
        %v1502 = vpop.f32.mrb[0].mxu0
        %v1503 = vadd.f32 %v1190, %v1502
        %v1504 = vpop.f32.mrb[0].mxu0
        %v1505 = vpop.f32.mrb[0].mxu0
        %v1506 = vadd.f32 %v1193, %v1505
        %v1507 = vpop.f32.mrb[0].mxu0
        %1508 = vmatprep.mubr.bf16.mxu0 0
        %1509 = vmatmul.mubr.bf16.gmra.mrb[0].mxu0 %v1374
        %v1510 = vpop.f32.mrb[0].mxu0
        %v1511 = vadd.f32 %v1198, %v1510
        %v1512 = vpop.f32.mrb[0].mxu0
        %v1513 = vpop.f32.mrb[0].mxu0
        %v1514 = vadd.f32 %v1201, %v1513
        %v1515 = vpop.f32.mrb[0].mxu0
        %1516 = vmatprep.mubr.bf16.mxu0 0
        %1517 = vmatmul.mubr.bf16.gmra.mrb[0].mxu0 %v1377
        %v1518 = vpop.f32.mrb[0].mxu0
        %v1519 = vadd.f32 %v1206, %v1518
        %v1520 = vpop.f32.mrb[0].mxu0
        %v1521 = vpop.f32.mrb[0].mxu0
        %v1522 = vadd.f32 %v1209, %v1521
        %v1523 = vpop.f32.mrb[0].mxu0
        %1524 = vmatprep.mubr.bf16.mxu0 0
        %1525 = vmatmul.mubr.bf16.gmra.mrb[0].mxu0 %v1380
        %v1526 = vpop.f32.mrb[0].mxu0
        %v1527 = vadd.f32 %v1214, %v1526
        %v1528 = vpop.f32.mrb[0].mxu0
        %v1529 = vpop.f32.mrb[0].mxu0
        %v1530 = vadd.f32 %v1217, %v1529
        %v1531 = vpop.f32.mrb[0].mxu0
        %1532 = vmatprep.mubr.bf16.mxu0 0
        %1533 = vmatmul.mubr.bf16.gmra.mrb[0].mxu0 %v1383
        %v1534 = vpop.f32.mrb[0].mxu0
        %v1535 = vadd.f32 %v1222, %v1534
        %v1536 = vpop.f32.mrb[0].mxu0
        %v1537 = vpop.f32.mrb[0].mxu0
        %v1538 = vadd.f32 %v1225, %v1537
        %v1539 = vpop.f32.mrb[0].mxu0
        %1540 = vmatprep.mubr.bf16.mxu0 0
        %1541 = vmatmul.mubr.bf16.gmra.mrb[0].mxu0 %v1386
        %v1542 = vpop.f32.mrb[0].mxu0
        %v1543 = vadd.f32 %v1230, %v1542
        %v1544 = vpop.f32.mrb[0].mxu0
        %v1545 = vpop.f32.mrb[0].mxu0
        %v1546 = vadd.f32 %v1233, %v1545
        %v1547 = vpop.f32.mrb[0].mxu0
        %1548 = vdwg.mxu0
        %v1549 = vld [vmem:[#allocation2] sm:$0xe]
        %v1550 = vld [vmem:[#allocation2 + $0xc] sm:$0xe]
        %v1551 = vld [vmem:[#allocation2 + $0x18] sm:$0xe]
        %v1552 = vld [vmem:[#allocation2 + $0x24] sm:$0xe]
        %v1553 = vld [vmem:[#allocation2 + $0x30] sm:$0xe]
        %v1554 = vld [vmem:[#allocation2 + $0x3c] sm:$0xe]
        %v1555 = vld [vmem:[#allocation2 + $0x48] sm:$0xe]
        %v1556 = vld [vmem:[#allocation2 + $0x54] sm:$0xe]
        %v1557 = vld [vmem:[#allocation2 + $0x60] sm:$0xe]
        %v1558 = vld [vmem:[#allocation2 + $0x6c] sm:$0xe]
        %v1559 = vld [vmem:[#allocation2 + $0x78] sm:$0xe]
        %v1560 = vld [vmem:[#allocation2 + $0x84] sm:$0xe]
        %v1561 = vld [vmem:[#allocation2 + $0x90] sm:$0xe]
        %v1562 = vld [vmem:[#allocation2 + $0x9c] sm:$0xe]
        %v1563 = vld [vmem:[#allocation2 + $0xa8] sm:$0xe]
        %v1564 = vld [vmem:[#allocation2 + $0xb4] sm:$0xe]
        %vm1597 = vcmask 1042432
        %vm1598 = vcmask 1046532
        %vm1599 = vmor %vm1597, %vm1598
        %v1600 = vrot.slane %v1549, 5
        %v1601 = vrot.slane %v1600, 4
        %v1602 = vrot.slane %v496, 5
        %v1603 = vsel %vm1599, %v1601, %v1602
        %v1604 = vrot.slane %v1602, 4
        %v1605 = vrot.slane %v539, 5
        %v1606 = vsel %vm1599, %v1604, %v1605
        %v1607 = vrot.slane %v1550, 5
        %v1608 = vrot.slane %v1607, 4
        %v1609 = vrot.slane %v498, 5
        %v1610 = vsel %vm1599, %v1608, %v1609
        %v1611 = vrot.slane %v1609, 4
        %v1612 = vrot.slane %v540, 5
        %v1613 = vsel %vm1599, %v1611, %v1612
        %v1614 = vrot.slane %v1551, 5
        %v1615 = vrot.slane %v1614, 4
        %v1616 = vrot.slane %v500, 5
        %v1617 = vsel %vm1599, %v1615, %v1616
        %v1618 = vrot.slane %v1616, 4
        %v1619 = vrot.slane %v541, 5
        %v1620 = vsel %vm1599, %v1618, %v1619
        %v1621 = vrot.slane %v1552, 5
        %v1622 = vrot.slane %v1621, 4
        %v1623 = vrot.slane %v502, 5
        %v1624 = vsel %vm1599, %v1622, %v1623
        %v1625 = vrot.slane %v1623, 4
        %v1626 = vrot.slane %v542, 5
        %v1627 = vsel %vm1599, %v1625, %v1626
        %v1628 = vrot.slane %v1553, 5
        %v1629 = vrot.slane %v1628, 4
        %v1630 = vrot.slane %v504, 5
        %v1631 = vsel %vm1599, %v1629, %v1630
        %v1632 = vrot.slane %v1630, 4
        %v1633 = vrot.slane %v543, 5
        %v1634 = vsel %vm1599, %v1632, %v1633
        %v1635 = vrot.slane %v1554, 5
        %v1636 = vrot.slane %v1635, 4
        %v1637 = vrot.slane %v506, 5
        %v1638 = vsel %vm1599, %v1636, %v1637
        %v1639 = vrot.slane %v1637, 4
        %v1640 = vrot.slane %v544, 5
        %v1641 = vsel %vm1599, %v1639, %v1640
        %v1642 = vrot.slane %v1555, 5
        %v1643 = vrot.slane %v1642, 4
        %v1644 = vrot.slane %v508, 5
        %v1645 = vsel %vm1599, %v1643, %v1644
        %v1646 = vrot.slane %v1644, 4
        %v1647 = vrot.slane %v545, 5
        %v1648 = vsel %vm1599, %v1646, %v1647
        %v1649 = vrot.slane %v1556, 5
        %v1650 = vrot.slane %v1649, 4
        %v1651 = vrot.slane %v510, 5
        %v1652 = vsel %vm1599, %v1650, %v1651
        %v1653 = vrot.slane %v1651, 4
        %v1654 = vrot.slane %v546, 5
        %v1655 = vsel %vm1599, %v1653, %v1654
        %v1656 = vrot.slane %v1557, 5
        %v1657 = vrot.slane %v1656, 4
        %v1658 = vrot.slane %v512, 5
        %v1659 = vsel %vm1599, %v1657, %v1658
        %v1660 = vrot.slane %v1658, 4
        %v1661 = vrot.slane %v547, 5
        %v1662 = vsel %vm1599, %v1660, %v1661
        %v1663 = vrot.slane %v1558, 5
        %v1664 = vrot.slane %v1663, 4
        %v1665 = vrot.slane %v514, 5
        %v1666 = vsel %vm1599, %v1664, %v1665
        %v1667 = vrot.slane %v1665, 4
        %v1668 = vrot.slane %v548, 5
        %v1669 = vsel %vm1599, %v1667, %v1668
        %v1670 = vrot.slane %v1559, 5
        %v1671 = vrot.slane %v1670, 4
        %v1672 = vrot.slane %v516, 5
        %v1673 = vsel %vm1599, %v1671, %v1672
        %v1674 = vrot.slane %v1672, 4
        %v1675 = vrot.slane %v549, 5
        %v1676 = vsel %vm1599, %v1674, %v1675
        %v1677 = vrot.slane %v1560, 5
        %v1678 = vrot.slane %v1677, 4
        %v1679 = vrot.slane %v518, 5
        %v1680 = vsel %vm1599, %v1678, %v1679
        %v1681 = vrot.slane %v1679, 4
        %v1682 = vrot.slane %v550, 5
        %v1683 = vsel %vm1599, %v1681, %v1682
        %v1684 = vrot.slane %v1561, 5
        %v1685 = vrot.slane %v1684, 4
        %v1686 = vrot.slane %v520, 5
        %v1687 = vsel %vm1599, %v1685, %v1686
        %v1688 = vrot.slane %v1686, 4
        %v1689 = vrot.slane %v551, 5
        %v1690 = vsel %vm1599, %v1688, %v1689
        %v1691 = vrot.slane %v1562, 5
        %v1692 = vrot.slane %v1691, 4
        %v1693 = vrot.slane %v522, 5
        %v1694 = vsel %vm1599, %v1692, %v1693
        %v1695 = vrot.slane %v1693, 4
        %v1696 = vrot.slane %v552, 5
        %v1697 = vsel %vm1599, %v1695, %v1696
        %v1698 = vrot.slane %v1563, 5
        %v1699 = vrot.slane %v1698, 4
        %v1700 = vrot.slane %v524, 5
        %v1701 = vsel %vm1599, %v1699, %v1700
        %v1702 = vrot.slane %v1700, 4
        %v1703 = vrot.slane %v553, 5
        %v1704 = vsel %vm1599, %v1702, %v1703
        %v1705 = vrot.slane %v1564, 5
        %v1706 = vrot.slane %v1705, 4
        %v1707 = vrot.slane %v526, 5
        %v1708 = vsel %vm1599, %v1706, %v1707
        %v1709 = vrot.slane %v1707, 4
        %v1710 = vrot.slane %v554, 5
        %v1711 = vsel %vm1599, %v1709, %v1710
        %s1712 = sadd.s32 %s527, 2
        %s1713 = smul.u32 %s1712, 8
        %s1714 = smul.addr %s1713, 4
        %s1715 = scalar_lea.vmem %s1, %s1714
        %v1716 = vld [vmem:[%s1715] sm:$0xf]
        %v1717 = vld [vmem:[%s1715 + $0x4] sm:$0xf]
        %v1718 = vld [vmem:[%s1715 + $0x8] sm:$0xf]
        %v1719 = vld [vmem:[%s1715 + $0xc] sm:$0xf]
        %v1720 = vld [vmem:[%s1715 + $0x10] sm:$0xf]
        %v1721 = vld [vmem:[%s1715 + $0x14] sm:$0xf]
        %v1722 = vld [vmem:[%s1715 + $0x18] sm:$0xf]
        %v1723 = vld [vmem:[%s1715 + $0x1c] sm:$0xf]
        %v1724 = vunpack.c.l.b16 %v1603
        %v1725 = vunpack.c.l.b16 %v1606
        %v1726 = vunpack.c.l.b16 %v1610
        %v1727 = vunpack.c.l.b16 %v1613
        %v1728 = vunpack.c.l.b16 %v1617
        %v1729 = vunpack.c.l.b16 %v1620
        %v1730 = vunpack.c.l.b16 %v1624
        %v1731 = vunpack.c.l.b16 %v1627
        %v1732 = vunpack.c.l.b16 %v1631
        %v1733 = vunpack.c.l.b16 %v1634
        %v1734 = vunpack.c.l.b16 %v1638
        %v1735 = vunpack.c.l.b16 %v1641
        %v1736 = vunpack.c.l.b16 %v1645
        %v1737 = vunpack.c.l.b16 %v1648
        %v1738 = vunpack.c.l.b16 %v1652
        %v1739 = vunpack.c.l.b16 %v1655
        %v1740 = vunpack.c.l.b16 %v1659
        %v1741 = vunpack.c.l.b16 %v1662
        %v1742 = vunpack.c.l.b16 %v1666
        %v1743 = vunpack.c.l.b16 %v1669
        %v1744 = vunpack.c.l.b16 %v1673
        %v1745 = vunpack.c.l.b16 %v1676
        %v1746 = vunpack.c.l.b16 %v1680
        %v1747 = vunpack.c.l.b16 %v1683
        %v1748 = vunpack.c.l.b16 %v1687
        %v1749 = vunpack.c.l.b16 %v1690
        %v1750 = vunpack.c.l.b16 %v1694
        %v1751 = vunpack.c.l.b16 %v1697
        %v1752 = vunpack.c.l.b16 %v1701
        %v1753 = vunpack.c.l.b16 %v1704
        %v1754 = vunpack.c.l.b16 %v1708
        %v1755 = vunpack.c.l.b16 %v1711
        %v1756 = vpack.c.b16 %v1725, %v1724
        %v1757 = vpack.c.b16 %v1727, %v1726
        %v1758 = vpack.c.b16 %v1729, %v1728
        %v1759 = vpack.c.b16 %v1731, %v1730
        %v1760 = vpack.c.b16 %v1733, %v1732
        %v1761 = vpack.c.b16 %v1735, %v1734
        %v1762 = vpack.c.b16 %v1737, %v1736
        %v1763 = vpack.c.b16 %v1739, %v1738
        %v1764 = vpack.c.b16 %v1741, %v1740
        %v1765 = vpack.c.b16 %v1743, %v1742
        %v1766 = vpack.c.b16 %v1745, %v1744
        %v1767 = vpack.c.b16 %v1747, %v1746
        %v1768 = vpack.c.b16 %v1749, %v1748
        %v1769 = vpack.c.b16 %v1751, %v1750
        %v1770 = vpack.c.b16 %v1753, %v1752
        %v1771 = vpack.c.b16 %v1755, %v1754
        %v1780 = vunpack.c.l.b16 %v1716
        %v1781 = vunpack.c.l.b16 %v1717
        %v1782 = vunpack.c.l.b16 %v1718
        %v1783 = vunpack.c.l.b16 %v1719
        %v1784 = vunpack.c.l.b16 %v1720
        %v1785 = vunpack.c.l.b16 %v1721
        %v1786 = vunpack.c.l.b16 %v1722
        %v1787 = vunpack.c.l.b16 %v1723
        %v1788 = vpack.c.b16 %v1781, %v1780
        %v1789 = vpack.c.b16 %v1783, %v1782
        %v1790 = vpack.c.b16 %v1785, %v1784
        %v1791 = vpack.c.b16 %v1787, %v1786
        %v1797 = vsel %vm1026, %v1756, 0
        %v1800 = vsel %vm1026, %v1757, 0
        %v1803 = vsel %vm1026, %v1758, 0
        %v1806 = vsel %vm1026, %v1759, 0
        %v1809 = vsel %vm1026, %v1760, 0
        %v1812 = vsel %vm1026, %v1761, 0
        %v1815 = vsel %vm1026, %v1762, 0
        %v1818 = vsel %vm1026, %v1763, 0
        %v1821 = vsel %vm1026, %v1764, 0
        %v1824 = vsel %vm1026, %v1765, 0
        %v1827 = vsel %vm1026, %v1766, 0
        %v1830 = vsel %vm1026, %v1767, 0
        %v1833 = vsel %vm1026, %v1768, 0
        %v1836 = vsel %vm1026, %v1769, 0
        %v1839 = vsel %vm1026, %v1770, 0
        %v1842 = vsel %vm1026, %v1771, 0
        %1844 = vmatprep.subr.bf16.mxu0 0
        %1845 = vmatpush1.bf16.msra.mxu0 %v1788
        %1846 = vmatprep.subr.bf16.mxu0 0
        %1847 = vmatpush1.bf16.msra.mxu0 %v1789
        %1848 = vmatprep.subr.bf16.mxu0 0
        %1849 = vmatpush1.bf16.msra.mxu0 %v1790
        %1850 = vmatprep.subr.bf16.mxu0 0
        %1851 = vmatpush1.bf16.msra.mxu0 %v1791
        %1852 = vmatprep.subr.bf16.mxu0 0
        %1853 = vmatpush1.bf16.msra.mxu0 0
        %1854 = vmatprep.subr.bf16.mxu0 0
        %1855 = vmatpush1.bf16.msra.mxu0 0
        %1856 = vmatprep.subr.bf16.mxu0 0
        %1857 = vmatpush1.bf16.msra.mxu0 0
        %1858 = vmatprep.subr.bf16.mxu0 0
        %1859 = vmatpush1.bf16.msra.mxu0 0
        %1860 = vmatprep.subr.bf16.mxu0 0
        %1861 = vmatpush1.bf16.msra.mxu0 0
        %1862 = vmatprep.subr.bf16.mxu0 0
        %1863 = vmatpush1.bf16.msra.mxu0 0
        %1864 = vmatprep.subr.bf16.mxu0 0
        %1865 = vmatpush1.bf16.msra.mxu0 0
        %1866 = vmatprep.subr.bf16.mxu0 0
        %1867 = vmatpush1.bf16.msra.mxu0 0
        %1868 = vmatprep.subr.bf16.mxu0 0
        %1869 = vmatpush1.bf16.msra.mxu0 0
        %1870 = vmatprep.subr.bf16.mxu0 0
        %1871 = vmatpush1.bf16.msra.mxu0 0
        %1872 = vmatprep.subr.bf16.mxu0 0
        %1873 = vmatpush1.bf16.msra.mxu0 0
        %1874 = vmatprep.subr.bf16.mxu0 0
        %1875 = vmatpush1.bf16.msra.mxu0 0
        %1876 = vmatprep.mubr.bf16.mxu0 0
        %1877 = vmatmul.mubr.bf16.gmra.mrb[0].mxu0 %v1797
        %v1878 = vpop.f32.mrb[0].mxu0
        %v1879 = vadd.f32 0.0, %v1878
        %v1880 = vpop.f32.mrb[0].mxu0
        %v1881 = vpop.f32.mrb[0].mxu0
        %v1882 = vadd.f32 0.0, %v1881
        %v1883 = vpop.f32.mrb[0].mxu0
        %1884 = vmatprep.mubr.bf16.mxu0 0
        %1885 = vmatmul.mubr.bf16.gmra.mrb[0].mxu0 %v1800
        %v1886 = vpop.f32.mrb[0].mxu0
        %v1887 = vadd.f32 0.0, %v1886
        %v1888 = vpop.f32.mrb[0].mxu0
        %v1889 = vpop.f32.mrb[0].mxu0
        %v1890 = vadd.f32 0.0, %v1889
        %v1891 = vpop.f32.mrb[0].mxu0
        %1892 = vmatprep.mubr.bf16.mxu0 0
        %1893 = vmatmul.mubr.bf16.gmra.mrb[0].mxu0 %v1803
        %v1894 = vpop.f32.mrb[0].mxu0
        %v1895 = vadd.f32 0.0, %v1894
        %v1896 = vpop.f32.mrb[0].mxu0
        %v1897 = vpop.f32.mrb[0].mxu0
        %v1898 = vadd.f32 0.0, %v1897
        %v1899 = vpop.f32.mrb[0].mxu0
        %1900 = vmatprep.mubr.bf16.mxu0 0
        %1901 = vmatmul.mubr.bf16.gmra.mrb[0].mxu0 %v1806
        %v1902 = vpop.f32.mrb[0].mxu0
        %v1903 = vadd.f32 0.0, %v1902
        %v1904 = vpop.f32.mrb[0].mxu0
        %v1905 = vpop.f32.mrb[0].mxu0
        %v1906 = vadd.f32 0.0, %v1905
        %v1907 = vpop.f32.mrb[0].mxu0
        %1908 = vmatprep.mubr.bf16.mxu0 0
        %1909 = vmatmul.mubr.bf16.gmra.mrb[0].mxu0 %v1809
        %v1910 = vpop.f32.mrb[0].mxu0
        %v1911 = vadd.f32 0.0, %v1910
        %v1912 = vpop.f32.mrb[0].mxu0
        %v1913 = vpop.f32.mrb[0].mxu0
        %v1914 = vadd.f32 0.0, %v1913
        %v1915 = vpop.f32.mrb[0].mxu0
        %1916 = vmatprep.mubr.bf16.mxu0 0
        %1917 = vmatmul.mubr.bf16.gmra.mrb[0].mxu0 %v1812
        %v1918 = vpop.f32.mrb[0].mxu0
        %v1919 = vadd.f32 0.0, %v1918
        %v1920 = vpop.f32.mrb[0].mxu0
        %v1921 = vpop.f32.mrb[0].mxu0
        %v1922 = vadd.f32 0.0, %v1921
        %v1923 = vpop.f32.mrb[0].mxu0
        %1924 = vmatprep.mubr.bf16.mxu0 0
        %1925 = vmatmul.mubr.bf16.gmra.mrb[0].mxu0 %v1815
        %v1926 = vpop.f32.mrb[0].mxu0
        %v1927 = vadd.f32 0.0, %v1926
        %v1928 = vpop.f32.mrb[0].mxu0
        %v1929 = vpop.f32.mrb[0].mxu0
        %v1930 = vadd.f32 0.0, %v1929
        %v1931 = vpop.f32.mrb[0].mxu0
        %1932 = vmatprep.mubr.bf16.mxu0 0
        %1933 = vmatmul.mubr.bf16.gmra.mrb[0].mxu0 %v1818
        %v1934 = vpop.f32.mrb[0].mxu0
        %v1935 = vadd.f32 0.0, %v1934
        %v1936 = vpop.f32.mrb[0].mxu0
        %v1937 = vpop.f32.mrb[0].mxu0
        %v1938 = vadd.f32 0.0, %v1937
        %v1939 = vpop.f32.mrb[0].mxu0
        %1940 = vmatprep.mubr.bf16.mxu0 0
        %1941 = vmatmul.mubr.bf16.gmra.mrb[0].mxu0 %v1821
        %v1942 = vpop.f32.mrb[0].mxu0
        %v1943 = vadd.f32 0.0, %v1942
        %v1944 = vpop.f32.mrb[0].mxu0
        %v1945 = vpop.f32.mrb[0].mxu0
        %v1946 = vadd.f32 0.0, %v1945
        %v1947 = vpop.f32.mrb[0].mxu0
        %1948 = vmatprep.mubr.bf16.mxu0 0
        %1949 = vmatmul.mubr.bf16.gmra.mrb[0].mxu0 %v1824
        %v1950 = vpop.f32.mrb[0].mxu0
        %v1951 = vadd.f32 0.0, %v1950
        %v1952 = vpop.f32.mrb[0].mxu0
        %v1953 = vpop.f32.mrb[0].mxu0
        %v1954 = vadd.f32 0.0, %v1953
        %v1955 = vpop.f32.mrb[0].mxu0
        %1956 = vmatprep.mubr.bf16.mxu0 0
        %1957 = vmatmul.mubr.bf16.gmra.mrb[0].mxu0 %v1827
        %v1958 = vpop.f32.mrb[0].mxu0
        %v1959 = vadd.f32 0.0, %v1958
        %v1960 = vpop.f32.mrb[0].mxu0
        %v1961 = vpop.f32.mrb[0].mxu0
        %v1962 = vadd.f32 0.0, %v1961
        %v1963 = vpop.f32.mrb[0].mxu0
        %1964 = vmatprep.mubr.bf16.mxu0 0
        %1965 = vmatmul.mubr.bf16.gmra.mrb[0].mxu0 %v1830
        %v1966 = vpop.f32.mrb[0].mxu0
        %v1967 = vadd.f32 0.0, %v1966
        %v1968 = vpop.f32.mrb[0].mxu0
        %v1969 = vpop.f32.mrb[0].mxu0
        %v1970 = vadd.f32 0.0, %v1969
        %v1971 = vpop.f32.mrb[0].mxu0
        %1972 = vmatprep.mubr.bf16.mxu0 0
        %1973 = vmatmul.mubr.bf16.gmra.mrb[0].mxu0 %v1833
        %v1974 = vpop.f32.mrb[0].mxu0
        %v1975 = vadd.f32 0.0, %v1974
        %v1976 = vpop.f32.mrb[0].mxu0
        %v1977 = vpop.f32.mrb[0].mxu0
        %v1978 = vadd.f32 0.0, %v1977
        %v1979 = vpop.f32.mrb[0].mxu0
        %1980 = vmatprep.mubr.bf16.mxu0 0
        %1981 = vmatmul.mubr.bf16.gmra.mrb[0].mxu0 %v1836
        %v1982 = vpop.f32.mrb[0].mxu0
        %v1983 = vadd.f32 0.0, %v1982
        %v1984 = vpop.f32.mrb[0].mxu0
        %v1985 = vpop.f32.mrb[0].mxu0
        %v1986 = vadd.f32 0.0, %v1985
        %v1987 = vpop.f32.mrb[0].mxu0
        %1988 = vmatprep.mubr.bf16.mxu0 0
        %1989 = vmatmul.mubr.bf16.gmra.mrb[0].mxu0 %v1839
        %v1990 = vpop.f32.mrb[0].mxu0
        %v1991 = vadd.f32 0.0, %v1990
        %v1992 = vpop.f32.mrb[0].mxu0
        %v1993 = vpop.f32.mrb[0].mxu0
        %v1994 = vadd.f32 0.0, %v1993
        %v1995 = vpop.f32.mrb[0].mxu0
        %1996 = vmatprep.mubr.bf16.mxu0 0
        %1997 = vmatmul.mubr.bf16.gmra.mrb[0].mxu0 %v1842
        %v1998 = vpop.f32.mrb[0].mxu0
        %v1999 = vadd.f32 0.0, %v1998
        %v2000 = vpop.f32.mrb[0].mxu0
        %v2001 = vpop.f32.mrb[0].mxu0
        %v2002 = vadd.f32 0.0, %v2001
        %v2003 = vpop.f32.mrb[0].mxu0
        %2004 = vdwg.mxu0
        %v2005 = vadd.f32 %v1423, %v1879
        %v2006 = vadd.f32 %v1426, %v1882
        %v2007 = vadd.f32 %v1431, %v1887
        %v2008 = vadd.f32 %v1434, %v1890
        %v2009 = vadd.f32 %v1439, %v1895
        %v2010 = vadd.f32 %v1442, %v1898
        %v2011 = vadd.f32 %v1447, %v1903
        %v2012 = vadd.f32 %v1450, %v1906
        %v2013 = vadd.f32 %v1455, %v1911
        %v2014 = vadd.f32 %v1458, %v1914
        %v2015 = vadd.f32 %v1463, %v1919
        %v2016 = vadd.f32 %v1466, %v1922
        %v2017 = vadd.f32 %v1471, %v1927
        %v2018 = vadd.f32 %v1474, %v1930
        %v2019 = vadd.f32 %v1479, %v1935
        %v2020 = vadd.f32 %v1482, %v1938
        %v2021 = vadd.f32 %v1487, %v1943
        %v2022 = vadd.f32 %v1490, %v1946
        %v2023 = vadd.f32 %v1495, %v1951
        %v2024 = vadd.f32 %v1498, %v1954
        %v2025 = vadd.f32 %v1503, %v1959
        %v2026 = vadd.f32 %v1506, %v1962
        %v2027 = vadd.f32 %v1511, %v1967
        %v2028 = vadd.f32 %v1514, %v1970
        %v2029 = vadd.f32 %v1519, %v1975
        %v2030 = vadd.f32 %v1522, %v1978
        %v2031 = vadd.f32 %v1527, %v1983
        %v2032 = vadd.f32 %v1530, %v1986
        %v2033 = vadd.f32 %v1535, %v1991
        %v2034 = vadd.f32 %v1538, %v1994
        %v2035 = vadd.f32 %v1543, %v1999
        %v2036 = vadd.f32 %v1546, %v2002
        %s2037 = scalar_lea.vmem [#allocation2], 12
        %v2038 = vld [vmem:[%s2037] sm:$0xf]
        %v2039 = vld [vmem:[%s2037 + $0x4] sm:$0xf]
        %v2040 = vld [vmem:[%s2037 + $0xc] sm:$0xf]
        %v2041 = vld [vmem:[%s2037 + $0x10] sm:$0xf]
        %v2042 = vld [vmem:[%s2037 + $0x18] sm:$0xf]
        %v2043 = vld [vmem:[%s2037 + $0x1c] sm:$0xf]
        %v2044 = vld [vmem:[%s2037 + $0x24] sm:$0xf]
        %v2045 = vld [vmem:[%s2037 + $0x28] sm:$0xf]
        %v2046 = vld [vmem:[%s2037 + $0x30] sm:$0xf]
        %v2047 = vld [vmem:[%s2037 + $0x34] sm:$0xf]
        %v2048 = vld [vmem:[%s2037 + $0x3c] sm:$0xf]
        %v2049 = vld [vmem:[%s2037 + $0x40] sm:$0xf]
        %v2050 = vld [vmem:[%s2037 + $0x48] sm:$0xf]
        %v2051 = vld [vmem:[%s2037 + $0x4c] sm:$0xf]
        %v2052 = vld [vmem:[%s2037 + $0x54] sm:$0xf]
        %v2053 = vld [vmem:[%s2037 + $0x58] sm:$0xf]
        %v2054 = vld [vmem:[%s2037 + $0x60] sm:$0xf]
        %v2055 = vld [vmem:[%s2037 + $0x64] sm:$0xf]
        %v2056 = vld [vmem:[%s2037 + $0x6c] sm:$0xf]
        %v2057 = vld [vmem:[%s2037 + $0x70] sm:$0xf]
        %v2058 = vld [vmem:[%s2037 + $0x78] sm:$0xf]
        %v2059 = vld [vmem:[%s2037 + $0x7c] sm:$0xf]
        %v2060 = vld [vmem:[%s2037 + $0x84] sm:$0xf]
        %v2061 = vld [vmem:[%s2037 + $0x88] sm:$0xf]
        %v2062 = vld [vmem:[%s2037 + $0x90] sm:$0xf]
        %v2063 = vld [vmem:[%s2037 + $0x94] sm:$0xf]
        %v2064 = vld [vmem:[%s2037 + $0x9c] sm:$0xf]
        %v2065 = vld [vmem:[%s2037 + $0xa0] sm:$0xf]
        %v2066 = vld [vmem:[%s2037 + $0xa8] sm:$0xf]
        %v2067 = vld [vmem:[%s2037 + $0xac] sm:$0xf]
        %v2068 = vld [vmem:[%s2037 + $0xb4] sm:$0xf]
        %v2069 = vld [vmem:[%s2037 + $0xb8] sm:$0xf]
        %s2070 = sadd.s32 %s527, 3
        %s2071 = smul.u32 %s2070, 8
        %s2072 = smul.addr %s2071, 4
        %s2073 = scalar_lea.vmem %s1, %s2072
        %v2074 = vld [vmem:[%s2073] sm:$0xf]
        %v2075 = vld [vmem:[%s2073 + $0x4] sm:$0xf]
        %v2076 = vld [vmem:[%s2073 + $0x8] sm:$0xf]
        %v2077 = vld [vmem:[%s2073 + $0xc] sm:$0xf]
        %v2078 = vld [vmem:[%s2073 + $0x10] sm:$0xf]
        %v2079 = vld [vmem:[%s2073 + $0x14] sm:$0xf]
        %v2080 = vld [vmem:[%s2073 + $0x18] sm:$0xf]
        %v2081 = vld [vmem:[%s2073 + $0x1c] sm:$0xf]
        %v2114 = vunpack.c.l.b16 %v2038
        %v2115 = vunpack.c.l.b16 %v2039
        %v2116 = vunpack.c.l.b16 %v2040
        %v2117 = vunpack.c.l.b16 %v2041
        %v2118 = vunpack.c.l.b16 %v2042
        %v2119 = vunpack.c.l.b16 %v2043
        %v2120 = vunpack.c.l.b16 %v2044
        %v2121 = vunpack.c.l.b16 %v2045
        %v2122 = vunpack.c.l.b16 %v2046
        %v2123 = vunpack.c.l.b16 %v2047
        %v2124 = vunpack.c.l.b16 %v2048
        %v2125 = vunpack.c.l.b16 %v2049
        %v2126 = vunpack.c.l.b16 %v2050
        %v2127 = vunpack.c.l.b16 %v2051
        %v2128 = vunpack.c.l.b16 %v2052
        %v2129 = vunpack.c.l.b16 %v2053
        %v2130 = vunpack.c.l.b16 %v2054
        %v2131 = vunpack.c.l.b16 %v2055
        %v2132 = vunpack.c.l.b16 %v2056
        %v2133 = vunpack.c.l.b16 %v2057
        %v2134 = vunpack.c.l.b16 %v2058
        %v2135 = vunpack.c.l.b16 %v2059
        %v2136 = vunpack.c.l.b16 %v2060
        %v2137 = vunpack.c.l.b16 %v2061
        %v2138 = vunpack.c.l.b16 %v2062
        %v2139 = vunpack.c.l.b16 %v2063
        %v2140 = vunpack.c.l.b16 %v2064
        %v2141 = vunpack.c.l.b16 %v2065
        %v2142 = vunpack.c.l.b16 %v2066
        %v2143 = vunpack.c.l.b16 %v2067
        %v2144 = vunpack.c.l.b16 %v2068
        %v2145 = vunpack.c.l.b16 %v2069
        %v2146 = vpack.c.b16 %v2115, %v2114
        %v2147 = vpack.c.b16 %v2117, %v2116
        %v2148 = vpack.c.b16 %v2119, %v2118
        %v2149 = vpack.c.b16 %v2121, %v2120
        %v2150 = vpack.c.b16 %v2123, %v2122
        %v2151 = vpack.c.b16 %v2125, %v2124
        %v2152 = vpack.c.b16 %v2127, %v2126
        %v2153 = vpack.c.b16 %v2129, %v2128
        %v2154 = vpack.c.b16 %v2131, %v2130
        %v2155 = vpack.c.b16 %v2133, %v2132
        %v2156 = vpack.c.b16 %v2135, %v2134
        %v2157 = vpack.c.b16 %v2137, %v2136
        %v2158 = vpack.c.b16 %v2139, %v2138
        %v2159 = vpack.c.b16 %v2141, %v2140
        %v2160 = vpack.c.b16 %v2143, %v2142
        %v2161 = vpack.c.b16 %v2145, %v2144
        %v2170 = vunpack.c.l.b16 %v2074
        %v2171 = vunpack.c.l.b16 %v2075
        %v2172 = vunpack.c.l.b16 %v2076
        %v2173 = vunpack.c.l.b16 %v2077
        %v2174 = vunpack.c.l.b16 %v2078
        %v2175 = vunpack.c.l.b16 %v2079
        %v2176 = vunpack.c.l.b16 %v2080
        %v2177 = vunpack.c.l.b16 %v2081
        %v2178 = vpack.c.b16 %v2171, %v2170
        %v2179 = vpack.c.b16 %v2173, %v2172
        %v2180 = vpack.c.b16 %v2175, %v2174
        %v2181 = vpack.c.b16 %v2177, %v2176
        %v2187 = vsel %vm1026, %v2146, 0
        %v2190 = vsel %vm1026, %v2147, 0
        %v2193 = vsel %vm1026, %v2148, 0
        %v2196 = vsel %vm1026, %v2149, 0
        %v2199 = vsel %vm1026, %v2150, 0
        %v2202 = vsel %vm1026, %v2151, 0
        %v2205 = vsel %vm1026, %v2152, 0
        %v2208 = vsel %vm1026, %v2153, 0
        %v2211 = vsel %vm1026, %v2154, 0
        %v2214 = vsel %vm1026, %v2155, 0
        %v2217 = vsel %vm1026, %v2156, 0
        %v2220 = vsel %vm1026, %v2157, 0
        %v2223 = vsel %vm1026, %v2158, 0
        %v2226 = vsel %vm1026, %v2159, 0
        %v2229 = vsel %vm1026, %v2160, 0
        %v2232 = vsel %vm1026, %v2161, 0
        %2234 = vmatprep.subr.bf16.mxu0 0
        %2235 = vmatpush1.bf16.msra.mxu0 %v2178
        %2236 = vmatprep.subr.bf16.mxu0 0
        %2237 = vmatpush1.bf16.msra.mxu0 %v2179
        %2238 = vmatprep.subr.bf16.mxu0 0
        %2239 = vmatpush1.bf16.msra.mxu0 %v2180
        %2240 = vmatprep.subr.bf16.mxu0 0
        %2241 = vmatpush1.bf16.msra.mxu0 %v2181
        %2242 = vmatprep.subr.bf16.mxu0 0
        %2243 = vmatpush1.bf16.msra.mxu0 0
        %2244 = vmatprep.subr.bf16.mxu0 0
        %2245 = vmatpush1.bf16.msra.mxu0 0
        %2246 = vmatprep.subr.bf16.mxu0 0
        %2247 = vmatpush1.bf16.msra.mxu0 0
        %2248 = vmatprep.subr.bf16.mxu0 0
        %2249 = vmatpush1.bf16.msra.mxu0 0
        %2250 = vmatprep.subr.bf16.mxu0 0
        %2251 = vmatpush1.bf16.msra.mxu0 0
        %2252 = vmatprep.subr.bf16.mxu0 0
        %2253 = vmatpush1.bf16.msra.mxu0 0
        %2254 = vmatprep.subr.bf16.mxu0 0
        %2255 = vmatpush1.bf16.msra.mxu0 0
        %2256 = vmatprep.subr.bf16.mxu0 0
        %2257 = vmatpush1.bf16.msra.mxu0 0
        %2258 = vmatprep.subr.bf16.mxu0 0
        %2259 = vmatpush1.bf16.msra.mxu0 0
        %2260 = vmatprep.subr.bf16.mxu0 0
        %2261 = vmatpush1.bf16.msra.mxu0 0
        %2262 = vmatprep.subr.bf16.mxu0 0
        %2263 = vmatpush1.bf16.msra.mxu0 0
        %2264 = vmatprep.subr.bf16.mxu0 0
        %2265 = vmatpush1.bf16.msra.mxu0 0
        %2266 = vmatprep.mubr.bf16.mxu0 0
        %2267 = vmatmul.mubr.bf16.gmra.mrb[0].mxu0 %v2187
        %v2268 = vpop.f32.mrb[0].mxu0
        %v2269 = vadd.f32 0.0, %v2268
        %v2270 = vpop.f32.mrb[0].mxu0
        %v2271 = vpop.f32.mrb[0].mxu0
        %v2272 = vadd.f32 0.0, %v2271
        %v2273 = vpop.f32.mrb[0].mxu0
        %2274 = vmatprep.mubr.bf16.mxu0 0
        %2275 = vmatmul.mubr.bf16.gmra.mrb[0].mxu0 %v2190
        %v2276 = vpop.f32.mrb[0].mxu0
        %v2277 = vadd.f32 0.0, %v2276
        %v2278 = vpop.f32.mrb[0].mxu0
        %v2279 = vpop.f32.mrb[0].mxu0
        %v2280 = vadd.f32 0.0, %v2279
        %v2281 = vpop.f32.mrb[0].mxu0
        %2282 = vmatprep.mubr.bf16.mxu0 0
        %2283 = vmatmul.mubr.bf16.gmra.mrb[0].mxu0 %v2193
        %v2284 = vpop.f32.mrb[0].mxu0
        %v2285 = vadd.f32 0.0, %v2284
        %v2286 = vpop.f32.mrb[0].mxu0
        %v2287 = vpop.f32.mrb[0].mxu0
        %v2288 = vadd.f32 0.0, %v2287
        %v2289 = vpop.f32.mrb[0].mxu0
        %2290 = vmatprep.mubr.bf16.mxu0 0
        %2291 = vmatmul.mubr.bf16.gmra.mrb[0].mxu0 %v2196
        %v2292 = vpop.f32.mrb[0].mxu0
        %v2293 = vadd.f32 0.0, %v2292
        %v2294 = vpop.f32.mrb[0].mxu0
        %v2295 = vpop.f32.mrb[0].mxu0
        %v2296 = vadd.f32 0.0, %v2295
        %v2297 = vpop.f32.mrb[0].mxu0
        %2298 = vmatprep.mubr.bf16.mxu0 0
        %2299 = vmatmul.mubr.bf16.gmra.mrb[0].mxu0 %v2199
        %v2300 = vpop.f32.mrb[0].mxu0
        %v2301 = vadd.f32 0.0, %v2300
        %v2302 = vpop.f32.mrb[0].mxu0
        %v2303 = vpop.f32.mrb[0].mxu0
        %v2304 = vadd.f32 0.0, %v2303
        %v2305 = vpop.f32.mrb[0].mxu0
        %2306 = vmatprep.mubr.bf16.mxu0 0
        %2307 = vmatmul.mubr.bf16.gmra.mrb[0].mxu0 %v2202
        %v2308 = vpop.f32.mrb[0].mxu0
        %v2309 = vadd.f32 0.0, %v2308
        %v2310 = vpop.f32.mrb[0].mxu0
        %v2311 = vpop.f32.mrb[0].mxu0
        %v2312 = vadd.f32 0.0, %v2311
        %v2313 = vpop.f32.mrb[0].mxu0
        %2314 = vmatprep.mubr.bf16.mxu0 0
        %2315 = vmatmul.mubr.bf16.gmra.mrb[0].mxu0 %v2205
        %v2316 = vpop.f32.mrb[0].mxu0
        %v2317 = vadd.f32 0.0, %v2316
        %v2318 = vpop.f32.mrb[0].mxu0
        %v2319 = vpop.f32.mrb[0].mxu0
        %v2320 = vadd.f32 0.0, %v2319
        %v2321 = vpop.f32.mrb[0].mxu0
        %2322 = vmatprep.mubr.bf16.mxu0 0
        %2323 = vmatmul.mubr.bf16.gmra.mrb[0].mxu0 %v2208
        %v2324 = vpop.f32.mrb[0].mxu0
        %v2325 = vadd.f32 0.0, %v2324
        %v2326 = vpop.f32.mrb[0].mxu0
        %v2327 = vpop.f32.mrb[0].mxu0
        %v2328 = vadd.f32 0.0, %v2327
        %v2329 = vpop.f32.mrb[0].mxu0
        %2330 = vmatprep.mubr.bf16.mxu0 0
        %2331 = vmatmul.mubr.bf16.gmra.mrb[0].mxu0 %v2211
        %v2332 = vpop.f32.mrb[0].mxu0
        %v2333 = vadd.f32 0.0, %v2332
        %v2334 = vpop.f32.mrb[0].mxu0
        %v2335 = vpop.f32.mrb[0].mxu0
        %v2336 = vadd.f32 0.0, %v2335
        %v2337 = vpop.f32.mrb[0].mxu0
        %2338 = vmatprep.mubr.bf16.mxu0 0
        %2339 = vmatmul.mubr.bf16.gmra.mrb[0].mxu0 %v2214
        %v2340 = vpop.f32.mrb[0].mxu0
        %v2341 = vadd.f32 0.0, %v2340
        %v2342 = vpop.f32.mrb[0].mxu0
        %v2343 = vpop.f32.mrb[0].mxu0
        %v2344 = vadd.f32 0.0, %v2343
        %v2345 = vpop.f32.mrb[0].mxu0
        %2346 = vmatprep.mubr.bf16.mxu0 0
        %2347 = vmatmul.mubr.bf16.gmra.mrb[0].mxu0 %v2217
        %v2348 = vpop.f32.mrb[0].mxu0
        %v2349 = vadd.f32 0.0, %v2348
        %v2350 = vpop.f32.mrb[0].mxu0
        %v2351 = vpop.f32.mrb[0].mxu0
        %v2352 = vadd.f32 0.0, %v2351
        %v2353 = vpop.f32.mrb[0].mxu0
        %2354 = vmatprep.mubr.bf16.mxu0 0
        %2355 = vmatmul.mubr.bf16.gmra.mrb[0].mxu0 %v2220
        %v2356 = vpop.f32.mrb[0].mxu0
        %v2357 = vadd.f32 0.0, %v2356
        %v2358 = vpop.f32.mrb[0].mxu0
        %v2359 = vpop.f32.mrb[0].mxu0
        %v2360 = vadd.f32 0.0, %v2359
        %v2361 = vpop.f32.mrb[0].mxu0
        %2362 = vmatprep.mubr.bf16.mxu0 0
        %2363 = vmatmul.mubr.bf16.gmra.mrb[0].mxu0 %v2223
        %v2364 = vpop.f32.mrb[0].mxu0
        %v2365 = vadd.f32 0.0, %v2364
        %v2366 = vpop.f32.mrb[0].mxu0
        %v2367 = vpop.f32.mrb[0].mxu0
        %v2368 = vadd.f32 0.0, %v2367
        %v2369 = vpop.f32.mrb[0].mxu0
        %2370 = vmatprep.mubr.bf16.mxu0 0
        %2371 = vmatmul.mubr.bf16.gmra.mrb[0].mxu0 %v2226
        %v2372 = vpop.f32.mrb[0].mxu0
        %v2373 = vadd.f32 0.0, %v2372
        %v2374 = vpop.f32.mrb[0].mxu0
        %v2375 = vpop.f32.mrb[0].mxu0
        %v2376 = vadd.f32 0.0, %v2375
        %v2377 = vpop.f32.mrb[0].mxu0
        %2378 = vmatprep.mubr.bf16.mxu0 0
        %2379 = vmatmul.mubr.bf16.gmra.mrb[0].mxu0 %v2229
        %v2380 = vpop.f32.mrb[0].mxu0
        %v2381 = vadd.f32 0.0, %v2380
        %v2382 = vpop.f32.mrb[0].mxu0
        %v2383 = vpop.f32.mrb[0].mxu0
        %v2384 = vadd.f32 0.0, %v2383
        %v2385 = vpop.f32.mrb[0].mxu0
        %2386 = vmatprep.mubr.bf16.mxu0 0
        %2387 = vmatmul.mubr.bf16.gmra.mrb[0].mxu0 %v2232
        %v2388 = vpop.f32.mrb[0].mxu0
        %v2389 = vadd.f32 0.0, %v2388
        %v2390 = vpop.f32.mrb[0].mxu0
        %v2391 = vpop.f32.mrb[0].mxu0
        %v2392 = vadd.f32 0.0, %v2391
        %v2393 = vpop.f32.mrb[0].mxu0
        %2394 = vdwg.mxu0
        %v2395 = vadd.f32 %v2005, %v2269
        %v2396 = vadd.f32 %v2006, %v2272
        %v2397 = vadd.f32 %v2007, %v2277
        %v2398 = vadd.f32 %v2008, %v2280
        %v2399 = vadd.f32 %v2009, %v2285
        %v2400 = vadd.f32 %v2010, %v2288
        %v2401 = vadd.f32 %v2011, %v2293
        %v2402 = vadd.f32 %v2012, %v2296
        %v2403 = vadd.f32 %v2013, %v2301
        %v2404 = vadd.f32 %v2014, %v2304
        %v2405 = vadd.f32 %v2015, %v2309
        %v2406 = vadd.f32 %v2016, %v2312
        %v2407 = vadd.f32 %v2017, %v2317
        %v2408 = vadd.f32 %v2018, %v2320
        %v2409 = vadd.f32 %v2019, %v2325
        %v2410 = vadd.f32 %v2020, %v2328
        %v2411 = vadd.f32 %v2021, %v2333
        %v2412 = vadd.f32 %v2022, %v2336
        %v2413 = vadd.f32 %v2023, %v2341
        %v2414 = vadd.f32 %v2024, %v2344
        %v2415 = vadd.f32 %v2025, %v2349
        %v2416 = vadd.f32 %v2026, %v2352
        %v2417 = vadd.f32 %v2027, %v2357
        %v2418 = vadd.f32 %v2028, %v2360
        %v2419 = vadd.f32 %v2029, %v2365
        %v2420 = vadd.f32 %v2030, %v2368
        %v2421 = vadd.f32 %v2031, %v2373
        %v2422 = vadd.f32 %v2032, %v2376
        %v2423 = vadd.f32 %v2033, %v2381
        %v2424 = vadd.f32 %v2034, %v2384
        %v2425 = vadd.f32 %v2035, %v2389
        %v2426 = vadd.f32 %v2036, %v2392
        %v2427 = vld [vmem:[%s2037] sm:$0xf]
        %v2428 = vld [vmem:[%s2037 + $0x4] sm:$0xf]
        %v2429 = vld [vmem:[%s2037 + $0x8] sm:$0x1]
        %v2430 = vld [vmem:[%s2037 + $0xc] sm:$0xf]
        %v2431 = vld [vmem:[%s2037 + $0x10] sm:$0xf]
        %v2432 = vld [vmem:[%s2037 + $0x14] sm:$0x1]
        %v2433 = vld [vmem:[%s2037 + $0x18] sm:$0xf]
        %v2434 = vld [vmem:[%s2037 + $0x1c] sm:$0xf]
        %v2435 = vld [vmem:[%s2037 + $0x20] sm:$0x1]
        %v2436 = vld [vmem:[%s2037 + $0x24] sm:$0xf]
        %v2437 = vld [vmem:[%s2037 + $0x28] sm:$0xf]
        %v2438 = vld [vmem:[%s2037 + $0x2c] sm:$0x1]
        %v2439 = vld [vmem:[%s2037 + $0x30] sm:$0xf]
        %v2440 = vld [vmem:[%s2037 + $0x34] sm:$0xf]
        %v2441 = vld [vmem:[%s2037 + $0x38] sm:$0x1]
        %v2442 = vld [vmem:[%s2037 + $0x3c] sm:$0xf]
        %v2443 = vld [vmem:[%s2037 + $0x40] sm:$0xf]
        %v2444 = vld [vmem:[%s2037 + $0x44] sm:$0x1]
        %v2445 = vld [vmem:[%s2037 + $0x48] sm:$0xf]
        %v2446 = vld [vmem:[%s2037 + $0x4c] sm:$0xf]
        %v2447 = vld [vmem:[%s2037 + $0x50] sm:$0x1]
        %v2448 = vld [vmem:[%s2037 + $0x54] sm:$0xf]
        %v2449 = vld [vmem:[%s2037 + $0x58] sm:$0xf]
        %v2450 = vld [vmem:[%s2037 + $0x5c] sm:$0x1]
        %v2451 = vld [vmem:[%s2037 + $0x60] sm:$0xf]
        %v2452 = vld [vmem:[%s2037 + $0x64] sm:$0xf]
        %v2453 = vld [vmem:[%s2037 + $0x68] sm:$0x1]
        %v2454 = vld [vmem:[%s2037 + $0x6c] sm:$0xf]
        %v2455 = vld [vmem:[%s2037 + $0x70] sm:$0xf]
        %v2456 = vld [vmem:[%s2037 + $0x74] sm:$0x1]
        %v2457 = vld [vmem:[%s2037 + $0x78] sm:$0xf]
        %v2458 = vld [vmem:[%s2037 + $0x7c] sm:$0xf]
        %v2459 = vld [vmem:[%s2037 + $0x80] sm:$0x1]
        %v2460 = vld [vmem:[%s2037 + $0x84] sm:$0xf]
        %v2461 = vld [vmem:[%s2037 + $0x88] sm:$0xf]
        %v2462 = vld [vmem:[%s2037 + $0x8c] sm:$0x1]
        %v2463 = vld [vmem:[%s2037 + $0x90] sm:$0xf]
        %v2464 = vld [vmem:[%s2037 + $0x94] sm:$0xf]
        %v2465 = vld [vmem:[%s2037 + $0x98] sm:$0x1]
        %v2466 = vld [vmem:[%s2037 + $0x9c] sm:$0xf]
        %v2467 = vld [vmem:[%s2037 + $0xa0] sm:$0xf]
        %v2468 = vld [vmem:[%s2037 + $0xa4] sm:$0x1]
        %v2469 = vld [vmem:[%s2037 + $0xa8] sm:$0xf]
        %v2470 = vld [vmem:[%s2037 + $0xac] sm:$0xf]
        %v2471 = vld [vmem:[%s2037 + $0xb0] sm:$0x1]
        %v2472 = vld [vmem:[%s2037 + $0xb4] sm:$0xf]
        %v2473 = vld [vmem:[%s2037 + $0xb8] sm:$0xf]
        %v2474 = vld [vmem:[%s2037 + $0xbc] sm:$0x1]
        %v2476 = vshrl.u32 %v2427, 16
        %v2478 = vrot.slane %v2476, 4
        %v2479 = vshll.u32 %v2427, 16
        %v2481 = vrot.slane %v2479, 5
        %v2482 = vor.u32 %v2478, %v2481
        %v2483 = vrot.slane %v2482, 4
        %v2485 = vshll.u32 %v2428, 16
        %v2487 = vrot.slane %v2485, 5
        %v2488 = vsel %vm557, %v2483, %v2487
        %v2489 = vshrl.u32 %v2428, 16
        %v2491 = vrot.slane %v2489, 4
        %v2492 = vor.u32 %v2491, %v2487
        %v2493 = vrot.slane %v2492, 4
        %v2495 = vshll.u32 %v2429, 16
        %v2497 = vrot.slane %v2495, 5
        %v2498 = vsel %vm557, %v2493, %v2497
        %v2500 = vshrl.u32 %v2430, 16
        %v2502 = vrot.slane %v2500, 4
        %v2503 = vshll.u32 %v2430, 16
        %v2505 = vrot.slane %v2503, 5
        %v2506 = vor.u32 %v2502, %v2505
        %v2507 = vrot.slane %v2506, 4
        %v2509 = vshll.u32 %v2431, 16
        %v2511 = vrot.slane %v2509, 5
        %v2512 = vsel %vm557, %v2507, %v2511
        %v2513 = vshrl.u32 %v2431, 16
        %v2515 = vrot.slane %v2513, 4
        %v2516 = vor.u32 %v2515, %v2511
        %v2517 = vrot.slane %v2516, 4
        %v2519 = vshll.u32 %v2432, 16
        %v2521 = vrot.slane %v2519, 5
        %v2522 = vsel %vm557, %v2517, %v2521
        %v2524 = vshrl.u32 %v2433, 16
        %v2526 = vrot.slane %v2524, 4
        %v2527 = vshll.u32 %v2433, 16
        %v2529 = vrot.slane %v2527, 5
        %v2530 = vor.u32 %v2526, %v2529
        %v2531 = vrot.slane %v2530, 4
        %v2533 = vshll.u32 %v2434, 16
        %v2535 = vrot.slane %v2533, 5
        %v2536 = vsel %vm557, %v2531, %v2535
        %v2537 = vshrl.u32 %v2434, 16
        %v2539 = vrot.slane %v2537, 4
        %v2540 = vor.u32 %v2539, %v2535
        %v2541 = vrot.slane %v2540, 4
        %v2543 = vshll.u32 %v2435, 16
        %v2545 = vrot.slane %v2543, 5
        %v2546 = vsel %vm557, %v2541, %v2545
        %v2548 = vshrl.u32 %v2436, 16
        %v2550 = vrot.slane %v2548, 4
        %v2551 = vshll.u32 %v2436, 16
        %v2553 = vrot.slane %v2551, 5
        %v2554 = vor.u32 %v2550, %v2553
        %v2555 = vrot.slane %v2554, 4
        %v2557 = vshll.u32 %v2437, 16
        %v2559 = vrot.slane %v2557, 5
        %v2560 = vsel %vm557, %v2555, %v2559
        %v2561 = vshrl.u32 %v2437, 16
        %v2563 = vrot.slane %v2561, 4
        %v2564 = vor.u32 %v2563, %v2559
        %v2565 = vrot.slane %v2564, 4
        %v2567 = vshll.u32 %v2438, 16
        %v2569 = vrot.slane %v2567, 5
        %v2570 = vsel %vm557, %v2565, %v2569
        %v2572 = vshrl.u32 %v2439, 16
        %v2574 = vrot.slane %v2572, 4
        %v2575 = vshll.u32 %v2439, 16
        %v2577 = vrot.slane %v2575, 5
        %v2578 = vor.u32 %v2574, %v2577
        %v2579 = vrot.slane %v2578, 4
        %v2581 = vshll.u32 %v2440, 16
        %v2583 = vrot.slane %v2581, 5
        %v2584 = vsel %vm557, %v2579, %v2583
        %v2585 = vshrl.u32 %v2440, 16
        %v2587 = vrot.slane %v2585, 4
        %v2588 = vor.u32 %v2587, %v2583
        %v2589 = vrot.slane %v2588, 4
        %v2591 = vshll.u32 %v2441, 16
        %v2593 = vrot.slane %v2591, 5
        %v2594 = vsel %vm557, %v2589, %v2593
        %v2596 = vshrl.u32 %v2442, 16
        %v2598 = vrot.slane %v2596, 4
        %v2599 = vshll.u32 %v2442, 16
        %v2601 = vrot.slane %v2599, 5
        %v2602 = vor.u32 %v2598, %v2601
        %v2603 = vrot.slane %v2602, 4
        %v2605 = vshll.u32 %v2443, 16
        %v2607 = vrot.slane %v2605, 5
        %v2608 = vsel %vm557, %v2603, %v2607
        %v2609 = vshrl.u32 %v2443, 16
        %v2611 = vrot.slane %v2609, 4
        %v2612 = vor.u32 %v2611, %v2607
        %v2613 = vrot.slane %v2612, 4
        %v2615 = vshll.u32 %v2444, 16
        %v2617 = vrot.slane %v2615, 5
        %v2618 = vsel %vm557, %v2613, %v2617
        %v2620 = vshrl.u32 %v2445, 16
        %v2622 = vrot.slane %v2620, 4
        %v2623 = vshll.u32 %v2445, 16
        %v2625 = vrot.slane %v2623, 5
        %v2626 = vor.u32 %v2622, %v2625
        %v2627 = vrot.slane %v2626, 4
        %v2629 = vshll.u32 %v2446, 16
        %v2631 = vrot.slane %v2629, 5
        %v2632 = vsel %vm557, %v2627, %v2631
        %v2633 = vshrl.u32 %v2446, 16
        %v2635 = vrot.slane %v2633, 4
        %v2636 = vor.u32 %v2635, %v2631
        %v2637 = vrot.slane %v2636, 4
        %v2639 = vshll.u32 %v2447, 16
        %v2641 = vrot.slane %v2639, 5
        %v2642 = vsel %vm557, %v2637, %v2641
        %v2644 = vshrl.u32 %v2448, 16
        %v2646 = vrot.slane %v2644, 4
        %v2647 = vshll.u32 %v2448, 16
        %v2649 = vrot.slane %v2647, 5
        %v2650 = vor.u32 %v2646, %v2649
        %v2651 = vrot.slane %v2650, 4
        %v2653 = vshll.u32 %v2449, 16
        %v2655 = vrot.slane %v2653, 5
        %v2656 = vsel %vm557, %v2651, %v2655
        %v2657 = vshrl.u32 %v2449, 16
        %v2659 = vrot.slane %v2657, 4
        %v2660 = vor.u32 %v2659, %v2655
        %v2661 = vrot.slane %v2660, 4
        %v2663 = vshll.u32 %v2450, 16
        %v2665 = vrot.slane %v2663, 5
        %v2666 = vsel %vm557, %v2661, %v2665
        %v2668 = vshrl.u32 %v2451, 16
        %v2670 = vrot.slane %v2668, 4
        %v2671 = vshll.u32 %v2451, 16
        %v2673 = vrot.slane %v2671, 5
        %v2674 = vor.u32 %v2670, %v2673
        %v2675 = vrot.slane %v2674, 4
        %v2677 = vshll.u32 %v2452, 16
        %v2679 = vrot.slane %v2677, 5
        %v2680 = vsel %vm557, %v2675, %v2679
        %v2681 = vshrl.u32 %v2452, 16
        %v2683 = vrot.slane %v2681, 4
        %v2684 = vor.u32 %v2683, %v2679
        %v2685 = vrot.slane %v2684, 4
        %v2687 = vshll.u32 %v2453, 16
        %v2689 = vrot.slane %v2687, 5
        %v2690 = vsel %vm557, %v2685, %v2689
        %v2692 = vshrl.u32 %v2454, 16
        %v2694 = vrot.slane %v2692, 4
        %v2695 = vshll.u32 %v2454, 16
        %v2697 = vrot.slane %v2695, 5
        %v2698 = vor.u32 %v2694, %v2697
        %v2699 = vrot.slane %v2698, 4
        %v2701 = vshll.u32 %v2455, 16
        %v2703 = vrot.slane %v2701, 5
        %v2704 = vsel %vm557, %v2699, %v2703
        %v2705 = vshrl.u32 %v2455, 16
        %v2707 = vrot.slane %v2705, 4
        %v2708 = vor.u32 %v2707, %v2703
        %v2709 = vrot.slane %v2708, 4
        %v2711 = vshll.u32 %v2456, 16
        %v2713 = vrot.slane %v2711, 5
        %v2714 = vsel %vm557, %v2709, %v2713
        %v2716 = vshrl.u32 %v2457, 16
        %v2718 = vrot.slane %v2716, 4
        %v2719 = vshll.u32 %v2457, 16
        %v2721 = vrot.slane %v2719, 5
        %v2722 = vor.u32 %v2718, %v2721
        %v2723 = vrot.slane %v2722, 4
        %v2725 = vshll.u32 %v2458, 16
        %v2727 = vrot.slane %v2725, 5
        %v2728 = vsel %vm557, %v2723, %v2727
        %v2729 = vshrl.u32 %v2458, 16
        %v2731 = vrot.slane %v2729, 4
        %v2732 = vor.u32 %v2731, %v2727
        %v2733 = vrot.slane %v2732, 4
        %v2735 = vshll.u32 %v2459, 16
        %v2737 = vrot.slane %v2735, 5
        %v2738 = vsel %vm557, %v2733, %v2737
        %v2740 = vshrl.u32 %v2460, 16
        %v2742 = vrot.slane %v2740, 4
        %v2743 = vshll.u32 %v2460, 16
        %v2745 = vrot.slane %v2743, 5
        %v2746 = vor.u32 %v2742, %v2745
        %v2747 = vrot.slane %v2746, 4
        %v2749 = vshll.u32 %v2461, 16
        %v2751 = vrot.slane %v2749, 5
        %v2752 = vsel %vm557, %v2747, %v2751
        %v2753 = vshrl.u32 %v2461, 16
        %v2755 = vrot.slane %v2753, 4
        %v2756 = vor.u32 %v2755, %v2751
        %v2757 = vrot.slane %v2756, 4
        %v2759 = vshll.u32 %v2462, 16
        %v2761 = vrot.slane %v2759, 5
        %v2762 = vsel %vm557, %v2757, %v2761
        %v2764 = vshrl.u32 %v2463, 16
        %v2766 = vrot.slane %v2764, 4
        %v2767 = vshll.u32 %v2463, 16
        %v2769 = vrot.slane %v2767, 5
        %v2770 = vor.u32 %v2766, %v2769
        %v2771 = vrot.slane %v2770, 4
        %v2773 = vshll.u32 %v2464, 16
        %v2775 = vrot.slane %v2773, 5
        %v2776 = vsel %vm557, %v2771, %v2775
        %v2777 = vshrl.u32 %v2464, 16
        %v2779 = vrot.slane %v2777, 4
        %v2780 = vor.u32 %v2779, %v2775
        %v2781 = vrot.slane %v2780, 4
        %v2783 = vshll.u32 %v2465, 16
        %v2785 = vrot.slane %v2783, 5
        %v2786 = vsel %vm557, %v2781, %v2785
        %v2788 = vshrl.u32 %v2466, 16
        %v2790 = vrot.slane %v2788, 4
        %v2791 = vshll.u32 %v2466, 16
        %v2793 = vrot.slane %v2791, 5
        %v2794 = vor.u32 %v2790, %v2793
        %v2795 = vrot.slane %v2794, 4
        %v2797 = vshll.u32 %v2467, 16
        %v2799 = vrot.slane %v2797, 5
        %v2800 = vsel %vm557, %v2795, %v2799
        %v2801 = vshrl.u32 %v2467, 16
        %v2803 = vrot.slane %v2801, 4
        %v2804 = vor.u32 %v2803, %v2799
        %v2805 = vrot.slane %v2804, 4
        %v2807 = vshll.u32 %v2468, 16
        %v2809 = vrot.slane %v2807, 5
        %v2810 = vsel %vm557, %v2805, %v2809
        %v2812 = vshrl.u32 %v2469, 16
        %v2814 = vrot.slane %v2812, 4
        %v2815 = vshll.u32 %v2469, 16
        %v2817 = vrot.slane %v2815, 5
        %v2818 = vor.u32 %v2814, %v2817
        %v2819 = vrot.slane %v2818, 4
        %v2821 = vshll.u32 %v2470, 16
        %v2823 = vrot.slane %v2821, 5
        %v2824 = vsel %vm557, %v2819, %v2823
        %v2825 = vshrl.u32 %v2470, 16
        %v2827 = vrot.slane %v2825, 4
        %v2828 = vor.u32 %v2827, %v2823
        %v2829 = vrot.slane %v2828, 4
        %v2831 = vshll.u32 %v2471, 16
        %v2833 = vrot.slane %v2831, 5
        %v2834 = vsel %vm557, %v2829, %v2833
        %v2836 = vshrl.u32 %v2472, 16
        %v2838 = vrot.slane %v2836, 4
        %v2839 = vshll.u32 %v2472, 16
        %v2841 = vrot.slane %v2839, 5
        %v2842 = vor.u32 %v2838, %v2841
        %v2843 = vrot.slane %v2842, 4
        %v2845 = vshll.u32 %v2473, 16
        %v2847 = vrot.slane %v2845, 5
        %v2848 = vsel %vm557, %v2843, %v2847
        %v2849 = vshrl.u32 %v2473, 16
        %v2851 = vrot.slane %v2849, 4
        %v2852 = vor.u32 %v2851, %v2847
        %v2853 = vrot.slane %v2852, 4
        %v2855 = vshll.u32 %v2474, 16
        %v2857 = vrot.slane %v2855, 5
        %v2858 = vsel %vm557, %v2853, %v2857
        %s2859 = sadd.s32 %s527, 4
        %s2860 = smul.u32 %s2859, 8
        %s2861 = smul.addr %s2860, 4
        %s2862 = scalar_lea.vmem %s1, %s2861
        %v2863 = vld [vmem:[%s2862] sm:$0xf]
        %v2864 = vld [vmem:[%s2862 + $0x4] sm:$0xf]
        %v2865 = vld [vmem:[%s2862 + $0x8] sm:$0xf]
        %v2866 = vld [vmem:[%s2862 + $0xc] sm:$0xf]
        %v2867 = vld [vmem:[%s2862 + $0x10] sm:$0xf]
        %v2868 = vld [vmem:[%s2862 + $0x14] sm:$0xf]
        %v2869 = vld [vmem:[%s2862 + $0x18] sm:$0xf]
        %v2870 = vld [vmem:[%s2862 + $0x1c] sm:$0xf]
        %v2871 = vunpack.c.l.b16 %v2488
        %v2872 = vunpack.c.l.b16 %v2498
        %v2873 = vunpack.c.l.b16 %v2512
        %v2874 = vunpack.c.l.b16 %v2522
        %v2875 = vunpack.c.l.b16 %v2536
        %v2876 = vunpack.c.l.b16 %v2546
        %v2877 = vunpack.c.l.b16 %v2560
        %v2878 = vunpack.c.l.b16 %v2570
        %v2879 = vunpack.c.l.b16 %v2584
        %v2880 = vunpack.c.l.b16 %v2594
        %v2881 = vunpack.c.l.b16 %v2608
        %v2882 = vunpack.c.l.b16 %v2618
        %v2883 = vunpack.c.l.b16 %v2632
        %v2884 = vunpack.c.l.b16 %v2642
        %v2885 = vunpack.c.l.b16 %v2656
        %v2886 = vunpack.c.l.b16 %v2666
        %v2887 = vunpack.c.l.b16 %v2680
        %v2888 = vunpack.c.l.b16 %v2690
        %v2889 = vunpack.c.l.b16 %v2704
        %v2890 = vunpack.c.l.b16 %v2714
        %v2891 = vunpack.c.l.b16 %v2728
        %v2892 = vunpack.c.l.b16 %v2738
        %v2893 = vunpack.c.l.b16 %v2752
        %v2894 = vunpack.c.l.b16 %v2762
        %v2895 = vunpack.c.l.b16 %v2776
        %v2896 = vunpack.c.l.b16 %v2786
        %v2897 = vunpack.c.l.b16 %v2800
        %v2898 = vunpack.c.l.b16 %v2810
        %v2899 = vunpack.c.l.b16 %v2824
        %v2900 = vunpack.c.l.b16 %v2834
        %v2901 = vunpack.c.l.b16 %v2848
        %v2902 = vunpack.c.l.b16 %v2858
        %v2903 = vpack.c.b16 %v2872, %v2871
        %v2904 = vpack.c.b16 %v2874, %v2873
        %v2905 = vpack.c.b16 %v2876, %v2875
        %v2906 = vpack.c.b16 %v2878, %v2877
        %v2907 = vpack.c.b16 %v2880, %v2879
        %v2908 = vpack.c.b16 %v2882, %v2881
        %v2909 = vpack.c.b16 %v2884, %v2883
        %v2910 = vpack.c.b16 %v2886, %v2885
        %v2911 = vpack.c.b16 %v2888, %v2887
        %v2912 = vpack.c.b16 %v2890, %v2889
        %v2913 = vpack.c.b16 %v2892, %v2891
        %v2914 = vpack.c.b16 %v2894, %v2893
        %v2915 = vpack.c.b16 %v2896, %v2895
        %v2916 = vpack.c.b16 %v2898, %v2897
        %v2917 = vpack.c.b16 %v2900, %v2899
        %v2918 = vpack.c.b16 %v2902, %v2901
        %v2927 = vunpack.c.l.b16 %v2863
        %v2928 = vunpack.c.l.b16 %v2864
        %v2929 = vunpack.c.l.b16 %v2865
        %v2930 = vunpack.c.l.b16 %v2866
        %v2931 = vunpack.c.l.b16 %v2867
        %v2932 = vunpack.c.l.b16 %v2868
        %v2933 = vunpack.c.l.b16 %v2869
        %v2934 = vunpack.c.l.b16 %v2870
        %v2935 = vpack.c.b16 %v2928, %v2927
        %v2936 = vpack.c.b16 %v2930, %v2929
        %v2937 = vpack.c.b16 %v2932, %v2931
        %v2938 = vpack.c.b16 %v2934, %v2933
        %v2944 = vsel %vm1026, %v2903, 0
        %v2947 = vsel %vm1026, %v2904, 0
        %v2950 = vsel %vm1026, %v2905, 0
        %v2953 = vsel %vm1026, %v2906, 0
        %v2956 = vsel %vm1026, %v2907, 0
        %v2959 = vsel %vm1026, %v2908, 0
        %v2962 = vsel %vm1026, %v2909, 0
        %v2965 = vsel %vm1026, %v2910, 0
        %v2968 = vsel %vm1026, %v2911, 0
        %v2971 = vsel %vm1026, %v2912, 0
        %v2974 = vsel %vm1026, %v2913, 0
        %v2977 = vsel %vm1026, %v2914, 0
        %v2980 = vsel %vm1026, %v2915, 0
        %v2983 = vsel %vm1026, %v2916, 0
        %v2986 = vsel %vm1026, %v2917, 0
        %v2989 = vsel %vm1026, %v2918, 0
        %2991 = vmatprep.subr.bf16.mxu0 0
        %2992 = vmatpush1.bf16.msra.mxu0 %v2935
        %2993 = vmatprep.subr.bf16.mxu0 0
        %2994 = vmatpush1.bf16.msra.mxu0 %v2936
        %2995 = vmatprep.subr.bf16.mxu0 0
        %2996 = vmatpush1.bf16.msra.mxu0 %v2937
        %2997 = vmatprep.subr.bf16.mxu0 0
        %2998 = vmatpush1.bf16.msra.mxu0 %v2938
        %2999 = vmatprep.subr.bf16.mxu0 0
        %3000 = vmatpush1.bf16.msra.mxu0 0
        %3001 = vmatprep.subr.bf16.mxu0 0
        %3002 = vmatpush1.bf16.msra.mxu0 0
        %3003 = vmatprep.subr.bf16.mxu0 0
        %3004 = vmatpush1.bf16.msra.mxu0 0
        %3005 = vmatprep.subr.bf16.mxu0 0
        %3006 = vmatpush1.bf16.msra.mxu0 0
        %3007 = vmatprep.subr.bf16.mxu0 0
        %3008 = vmatpush1.bf16.msra.mxu0 0
        %3009 = vmatprep.subr.bf16.mxu0 0
        %3010 = vmatpush1.bf16.msra.mxu0 0
        %3011 = vmatprep.subr.bf16.mxu0 0
        %3012 = vmatpush1.bf16.msra.mxu0 0
        %3013 = vmatprep.subr.bf16.mxu0 0
        %3014 = vmatpush1.bf16.msra.mxu0 0
        %3015 = vmatprep.subr.bf16.mxu0 0
        %3016 = vmatpush1.bf16.msra.mxu0 0
        %3017 = vmatprep.subr.bf16.mxu0 0
        %3018 = vmatpush1.bf16.msra.mxu0 0
        %3019 = vmatprep.subr.bf16.mxu0 0
        %3020 = vmatpush1.bf16.msra.mxu0 0
        %3021 = vmatprep.subr.bf16.mxu0 0
        %3022 = vmatpush1.bf16.msra.mxu0 0
        %3023 = vmatprep.mubr.bf16.mxu0 0
        %3024 = vmatmul.mubr.bf16.gmra.mrb[0].mxu0 %v2944
        %v3025 = vpop.f32.mrb[0].mxu0
        %v3026 = vadd.f32 0.0, %v3025
        %v3027 = vpop.f32.mrb[0].mxu0
        %v3028 = vpop.f32.mrb[0].mxu0
        %v3029 = vadd.f32 0.0, %v3028
        %v3030 = vpop.f32.mrb[0].mxu0
        %3031 = vmatprep.mubr.bf16.mxu0 0
        %3032 = vmatmul.mubr.bf16.gmra.mrb[0].mxu0 %v2947
        %v3033 = vpop.f32.mrb[0].mxu0
        %v3034 = vadd.f32 0.0, %v3033
        %v3035 = vpop.f32.mrb[0].mxu0
        %v3036 = vpop.f32.mrb[0].mxu0
        %v3037 = vadd.f32 0.0, %v3036
        %v3038 = vpop.f32.mrb[0].mxu0
        %3039 = vmatprep.mubr.bf16.mxu0 0
        %3040 = vmatmul.mubr.bf16.gmra.mrb[0].mxu0 %v2950
        %v3041 = vpop.f32.mrb[0].mxu0
        %v3042 = vadd.f32 0.0, %v3041
        %v3043 = vpop.f32.mrb[0].mxu0
        %v3044 = vpop.f32.mrb[0].mxu0
        %v3045 = vadd.f32 0.0, %v3044
        %v3046 = vpop.f32.mrb[0].mxu0
        %3047 = vmatprep.mubr.bf16.mxu0 0
        %3048 = vmatmul.mubr.bf16.gmra.mrb[0].mxu0 %v2953
        %v3049 = vpop.f32.mrb[0].mxu0
        %v3050 = vadd.f32 0.0, %v3049
        %v3051 = vpop.f32.mrb[0].mxu0
        %v3052 = vpop.f32.mrb[0].mxu0
        %v3053 = vadd.f32 0.0, %v3052
        %v3054 = vpop.f32.mrb[0].mxu0
        %3055 = vmatprep.mubr.bf16.mxu0 0
        %3056 = vmatmul.mubr.bf16.gmra.mrb[0].mxu0 %v2956
        %v3057 = vpop.f32.mrb[0].mxu0
        %v3058 = vadd.f32 0.0, %v3057
        %v3059 = vpop.f32.mrb[0].mxu0
        %v3060 = vpop.f32.mrb[0].mxu0
        %v3061 = vadd.f32 0.0, %v3060
        %v3062 = vpop.f32.mrb[0].mxu0
        %3063 = vmatprep.mubr.bf16.mxu0 0
        %3064 = vmatmul.mubr.bf16.gmra.mrb[0].mxu0 %v2959
        %v3065 = vpop.f32.mrb[0].mxu0
        %v3066 = vadd.f32 0.0, %v3065
        %v3067 = vpop.f32.mrb[0].mxu0
        %v3068 = vpop.f32.mrb[0].mxu0
        %v3069 = vadd.f32 0.0, %v3068
        %v3070 = vpop.f32.mrb[0].mxu0
        %3071 = vmatprep.mubr.bf16.mxu0 0
        %3072 = vmatmul.mubr.bf16.gmra.mrb[0].mxu0 %v2962
        %v3073 = vpop.f32.mrb[0].mxu0
        %v3074 = vadd.f32 0.0, %v3073
        %v3075 = vpop.f32.mrb[0].mxu0
        %v3076 = vpop.f32.mrb[0].mxu0
        %v3077 = vadd.f32 0.0, %v3076
        %v3078 = vpop.f32.mrb[0].mxu0
        %3079 = vmatprep.mubr.bf16.mxu0 0
        %3080 = vmatmul.mubr.bf16.gmra.mrb[0].mxu0 %v2965
        %v3081 = vpop.f32.mrb[0].mxu0
        %v3082 = vadd.f32 0.0, %v3081
        %v3083 = vpop.f32.mrb[0].mxu0
        %v3084 = vpop.f32.mrb[0].mxu0
        %v3085 = vadd.f32 0.0, %v3084
        %v3086 = vpop.f32.mrb[0].mxu0
        %3087 = vmatprep.mubr.bf16.mxu0 0
        %3088 = vmatmul.mubr.bf16.gmra.mrb[0].mxu0 %v2968
        %v3089 = vpop.f32.mrb[0].mxu0
        %v3090 = vadd.f32 0.0, %v3089
        %v3091 = vpop.f32.mrb[0].mxu0
        %v3092 = vpop.f32.mrb[0].mxu0
        %v3093 = vadd.f32 0.0, %v3092
        %v3094 = vpop.f32.mrb[0].mxu0
        %3095 = vmatprep.mubr.bf16.mxu0 0
        %3096 = vmatmul.mubr.bf16.gmra.mrb[0].mxu0 %v2971
        %v3097 = vpop.f32.mrb[0].mxu0
        %v3098 = vadd.f32 0.0, %v3097
        %v3099 = vpop.f32.mrb[0].mxu0
        %v3100 = vpop.f32.mrb[0].mxu0
        %v3101 = vadd.f32 0.0, %v3100
        %v3102 = vpop.f32.mrb[0].mxu0
        %3103 = vmatprep.mubr.bf16.mxu0 0
        %3104 = vmatmul.mubr.bf16.gmra.mrb[0].mxu0 %v2974
        %v3105 = vpop.f32.mrb[0].mxu0
        %v3106 = vadd.f32 0.0, %v3105
        %v3107 = vpop.f32.mrb[0].mxu0
        %v3108 = vpop.f32.mrb[0].mxu0
        %v3109 = vadd.f32 0.0, %v3108
        %v3110 = vpop.f32.mrb[0].mxu0
        %3111 = vmatprep.mubr.bf16.mxu0 0
        %3112 = vmatmul.mubr.bf16.gmra.mrb[0].mxu0 %v2977
        %v3113 = vpop.f32.mrb[0].mxu0
        %v3114 = vadd.f32 0.0, %v3113
        %v3115 = vpop.f32.mrb[0].mxu0
        %v3116 = vpop.f32.mrb[0].mxu0
        %v3117 = vadd.f32 0.0, %v3116
        %v3118 = vpop.f32.mrb[0].mxu0
        %3119 = vmatprep.mubr.bf16.mxu0 0
        %3120 = vmatmul.mubr.bf16.gmra.mrb[0].mxu0 %v2980
        %v3121 = vpop.f32.mrb[0].mxu0
        %v3122 = vadd.f32 0.0, %v3121
        %v3123 = vpop.f32.mrb[0].mxu0
        %v3124 = vpop.f32.mrb[0].mxu0
        %v3125 = vadd.f32 0.0, %v3124
        %v3126 = vpop.f32.mrb[0].mxu0
        %3127 = vmatprep.mubr.bf16.mxu0 0
        %3128 = vmatmul.mubr.bf16.gmra.mrb[0].mxu0 %v2983
        %v3129 = vpop.f32.mrb[0].mxu0
        %v3130 = vadd.f32 0.0, %v3129
        %v3131 = vpop.f32.mrb[0].mxu0
        %v3132 = vpop.f32.mrb[0].mxu0
        %v3133 = vadd.f32 0.0, %v3132
        %v3134 = vpop.f32.mrb[0].mxu0
        %3135 = vmatprep.mubr.bf16.mxu0 0
        %3136 = vmatmul.mubr.bf16.gmra.mrb[0].mxu0 %v2986
        %v3137 = vpop.f32.mrb[0].mxu0
        %v3138 = vadd.f32 0.0, %v3137
        %v3139 = vpop.f32.mrb[0].mxu0
        %v3140 = vpop.f32.mrb[0].mxu0
        %v3141 = vadd.f32 0.0, %v3140
        %v3142 = vpop.f32.mrb[0].mxu0
        %3143 = vmatprep.mubr.bf16.mxu0 0
        %3144 = vmatmul.mubr.bf16.gmra.mrb[0].mxu0 %v2989
        %v3145 = vpop.f32.mrb[0].mxu0
        %v3146 = vadd.f32 0.0, %v3145
        %v3147 = vpop.f32.mrb[0].mxu0
        %v3148 = vpop.f32.mrb[0].mxu0
        %v3149 = vadd.f32 0.0, %v3148
        %v3150 = vpop.f32.mrb[0].mxu0
        %3151 = vdwg.mxu0
        %v3152 = vadd.f32 %v2395, %v3026
        %v3153 = vadd.f32 %v2396, %v3029
        %v3154 = vadd.f32 %v2397, %v3034
        %v3155 = vadd.f32 %v2398, %v3037
        %v3156 = vadd.f32 %v2399, %v3042
        %v3157 = vadd.f32 %v2400, %v3045
        %v3158 = vadd.f32 %v2401, %v3050
        %v3159 = vadd.f32 %v2402, %v3053
        %v3160 = vadd.f32 %v2403, %v3058
        %v3161 = vadd.f32 %v2404, %v3061
        %v3162 = vadd.f32 %v2405, %v3066
        %v3163 = vadd.f32 %v2406, %v3069
        %v3164 = vadd.f32 %v2407, %v3074
        %v3165 = vadd.f32 %v2408, %v3077
        %v3166 = vadd.f32 %v2409, %v3082
        %v3167 = vadd.f32 %v2410, %v3085
        %v3168 = vadd.f32 %v2411, %v3090
        %v3169 = vadd.f32 %v2412, %v3093
        %v3170 = vadd.f32 %v2413, %v3098
        %v3171 = vadd.f32 %v2414, %v3101
        %v3172 = vadd.f32 %v2415, %v3106
        %v3173 = vadd.f32 %v2416, %v3109
        %v3174 = vadd.f32 %v2417, %v3114
        %v3175 = vadd.f32 %v2418, %v3117
        %v3176 = vadd.f32 %v2419, %v3122
        %v3177 = vadd.f32 %v2420, %v3125
        %v3178 = vadd.f32 %v2421, %v3130
        %v3179 = vadd.f32 %v2422, %v3133
        %v3180 = vadd.f32 %v2423, %v3138
        %v3181 = vadd.f32 %v2424, %v3141
        %v3182 = vadd.f32 %v2425, %v3146
        %v3183 = vadd.f32 %v2426, %v3149
        %v3184 = vld [vmem:[%s2037] sm:$0xe]
        %v3185 = vld [vmem:[%s2037 + $0xc] sm:$0xe]
        %v3186 = vld [vmem:[%s2037 + $0x18] sm:$0xe]
        %v3187 = vld [vmem:[%s2037 + $0x24] sm:$0xe]
        %v3188 = vld [vmem:[%s2037 + $0x30] sm:$0xe]
        %v3189 = vld [vmem:[%s2037 + $0x3c] sm:$0xe]
        %v3190 = vld [vmem:[%s2037 + $0x48] sm:$0xe]
        %v3191 = vld [vmem:[%s2037 + $0x54] sm:$0xe]
        %v3192 = vld [vmem:[%s2037 + $0x60] sm:$0xe]
        %v3193 = vld [vmem:[%s2037 + $0x6c] sm:$0xe]
        %v3194 = vld [vmem:[%s2037 + $0x78] sm:$0xe]
        %v3195 = vld [vmem:[%s2037 + $0x84] sm:$0xe]
        %v3196 = vld [vmem:[%s2037 + $0x90] sm:$0xe]
        %v3197 = vld [vmem:[%s2037 + $0x9c] sm:$0xe]
        %v3198 = vld [vmem:[%s2037 + $0xa8] sm:$0xe]
        %v3199 = vld [vmem:[%s2037 + $0xb4] sm:$0xe]
        %v3248 = vrot.slane %v3184, 5
        %v3249 = vrot.slane %v3248, 4
        %v3250 = vrot.slane %v2428, 5
        %v3251 = vsel %vm1599, %v3249, %v3250
        %v3252 = vrot.slane %v3250, 4
        %v3253 = vrot.slane %v2429, 5
        %v3254 = vsel %vm1599, %v3252, %v3253
        %v3255 = vrot.slane %v3185, 5
        %v3256 = vrot.slane %v3255, 4
        %v3257 = vrot.slane %v2431, 5
        %v3258 = vsel %vm1599, %v3256, %v3257
        %v3259 = vrot.slane %v3257, 4
        %v3260 = vrot.slane %v2432, 5
        %v3261 = vsel %vm1599, %v3259, %v3260
        %v3262 = vrot.slane %v3186, 5
        %v3263 = vrot.slane %v3262, 4
        %v3264 = vrot.slane %v2434, 5
        %v3265 = vsel %vm1599, %v3263, %v3264
        %v3266 = vrot.slane %v3264, 4
        %v3267 = vrot.slane %v2435, 5
        %v3268 = vsel %vm1599, %v3266, %v3267
        %v3269 = vrot.slane %v3187, 5
        %v3270 = vrot.slane %v3269, 4
        %v3271 = vrot.slane %v2437, 5
        %v3272 = vsel %vm1599, %v3270, %v3271
        %v3273 = vrot.slane %v3271, 4
        %v3274 = vrot.slane %v2438, 5
        %v3275 = vsel %vm1599, %v3273, %v3274
        %v3276 = vrot.slane %v3188, 5
        %v3277 = vrot.slane %v3276, 4
        %v3278 = vrot.slane %v2440, 5
        %v3279 = vsel %vm1599, %v3277, %v3278
        %v3280 = vrot.slane %v3278, 4
        %v3281 = vrot.slane %v2441, 5
        %v3282 = vsel %vm1599, %v3280, %v3281
        %v3283 = vrot.slane %v3189, 5
        %v3284 = vrot.slane %v3283, 4
        %v3285 = vrot.slane %v2443, 5
        %v3286 = vsel %vm1599, %v3284, %v3285
        %v3287 = vrot.slane %v3285, 4
        %v3288 = vrot.slane %v2444, 5
        %v3289 = vsel %vm1599, %v3287, %v3288
        %v3290 = vrot.slane %v3190, 5
        %v3291 = vrot.slane %v3290, 4
        %v3292 = vrot.slane %v2446, 5
        %v3293 = vsel %vm1599, %v3291, %v3292
        %v3294 = vrot.slane %v3292, 4
        %v3295 = vrot.slane %v2447, 5
        %v3296 = vsel %vm1599, %v3294, %v3295
        %v3297 = vrot.slane %v3191, 5
        %v3298 = vrot.slane %v3297, 4
        %v3299 = vrot.slane %v2449, 5
        %v3300 = vsel %vm1599, %v3298, %v3299
        %v3301 = vrot.slane %v3299, 4
        %v3302 = vrot.slane %v2450, 5
        %v3303 = vsel %vm1599, %v3301, %v3302
        %v3304 = vrot.slane %v3192, 5
        %v3305 = vrot.slane %v3304, 4
        %v3306 = vrot.slane %v2452, 5
        %v3307 = vsel %vm1599, %v3305, %v3306
        %v3308 = vrot.slane %v3306, 4
        %v3309 = vrot.slane %v2453, 5
        %v3310 = vsel %vm1599, %v3308, %v3309
        %v3311 = vrot.slane %v3193, 5
        %v3312 = vrot.slane %v3311, 4
        %v3313 = vrot.slane %v2455, 5
        %v3314 = vsel %vm1599, %v3312, %v3313
        %v3315 = vrot.slane %v3313, 4
        %v3316 = vrot.slane %v2456, 5
        %v3317 = vsel %vm1599, %v3315, %v3316
        %v3318 = vrot.slane %v3194, 5
        %v3319 = vrot.slane %v3318, 4
        %v3320 = vrot.slane %v2458, 5
        %v3321 = vsel %vm1599, %v3319, %v3320
        %v3322 = vrot.slane %v3320, 4
        %v3323 = vrot.slane %v2459, 5
        %v3324 = vsel %vm1599, %v3322, %v3323
        %v3325 = vrot.slane %v3195, 5
        %v3326 = vrot.slane %v3325, 4
        %v3327 = vrot.slane %v2461, 5
        %v3328 = vsel %vm1599, %v3326, %v3327
        %v3329 = vrot.slane %v3327, 4
        %v3330 = vrot.slane %v2462, 5
        %v3331 = vsel %vm1599, %v3329, %v3330
        %v3332 = vrot.slane %v3196, 5
        %v3333 = vrot.slane %v3332, 4
        %v3334 = vrot.slane %v2464, 5
        %v3335 = vsel %vm1599, %v3333, %v3334
        %v3336 = vrot.slane %v3334, 4
        %v3337 = vrot.slane %v2465, 5
        %v3338 = vsel %vm1599, %v3336, %v3337
        %v3339 = vrot.slane %v3197, 5
        %v3340 = vrot.slane %v3339, 4
        %v3341 = vrot.slane %v2467, 5
        %v3342 = vsel %vm1599, %v3340, %v3341
        %v3343 = vrot.slane %v3341, 4
        %v3344 = vrot.slane %v2468, 5
        %v3345 = vsel %vm1599, %v3343, %v3344
        %v3346 = vrot.slane %v3198, 5
        %v3347 = vrot.slane %v3346, 4
        %v3348 = vrot.slane %v2470, 5
        %v3349 = vsel %vm1599, %v3347, %v3348
        %v3350 = vrot.slane %v3348, 4
        %v3351 = vrot.slane %v2471, 5
        %v3352 = vsel %vm1599, %v3350, %v3351
        %v3353 = vrot.slane %v3199, 5
        %v3354 = vrot.slane %v3353, 4
        %v3355 = vrot.slane %v2473, 5
        %v3356 = vsel %vm1599, %v3354, %v3355
        %v3357 = vrot.slane %v3355, 4
        %v3358 = vrot.slane %v2474, 5
        %v3359 = vsel %vm1599, %v3357, %v3358
        %s3360 = sadd.s32 %s527, 5
        %s3361 = smul.u32 %s3360, 8
        %s3362 = smul.addr %s3361, 4
        %s3363 = scalar_lea.vmem %s1, %s3362
        %v3364 = vld [vmem:[%s3363] sm:$0xf]
        %v3365 = vld [vmem:[%s3363 + $0x4] sm:$0xf]
        %v3366 = vld [vmem:[%s3363 + $0x8] sm:$0xf]
        %v3367 = vld [vmem:[%s3363 + $0xc] sm:$0xf]
        %v3368 = vld [vmem:[%s3363 + $0x10] sm:$0xf]
        %v3369 = vld [vmem:[%s3363 + $0x14] sm:$0xf]
        %v3370 = vld [vmem:[%s3363 + $0x18] sm:$0xf]
        %v3371 = vld [vmem:[%s3363 + $0x1c] sm:$0xf]
        %v3372 = vunpack.c.l.b16 %v3251
        %v3373 = vunpack.c.l.b16 %v3254
        %v3374 = vunpack.c.l.b16 %v3258
        %v3375 = vunpack.c.l.b16 %v3261
        %v3376 = vunpack.c.l.b16 %v3265
        %v3377 = vunpack.c.l.b16 %v3268
        %v3378 = vunpack.c.l.b16 %v3272
        %v3379 = vunpack.c.l.b16 %v3275
        %v3380 = vunpack.c.l.b16 %v3279
        %v3381 = vunpack.c.l.b16 %v3282
        %v3382 = vunpack.c.l.b16 %v3286
        %v3383 = vunpack.c.l.b16 %v3289
        %v3384 = vunpack.c.l.b16 %v3293
        %v3385 = vunpack.c.l.b16 %v3296
        %v3386 = vunpack.c.l.b16 %v3300
        %v3387 = vunpack.c.l.b16 %v3303
        %v3388 = vunpack.c.l.b16 %v3307
        %v3389 = vunpack.c.l.b16 %v3310
        %v3390 = vunpack.c.l.b16 %v3314
        %v3391 = vunpack.c.l.b16 %v3317
        %v3392 = vunpack.c.l.b16 %v3321
        %v3393 = vunpack.c.l.b16 %v3324
        %v3394 = vunpack.c.l.b16 %v3328
        %v3395 = vunpack.c.l.b16 %v3331
        %v3396 = vunpack.c.l.b16 %v3335
        %v3397 = vunpack.c.l.b16 %v3338
        %v3398 = vunpack.c.l.b16 %v3342
        %v3399 = vunpack.c.l.b16 %v3345
        %v3400 = vunpack.c.l.b16 %v3349
        %v3401 = vunpack.c.l.b16 %v3352
        %v3402 = vunpack.c.l.b16 %v3356
        %v3403 = vunpack.c.l.b16 %v3359
        %v3404 = vpack.c.b16 %v3373, %v3372
        %v3405 = vpack.c.b16 %v3375, %v3374
        %v3406 = vpack.c.b16 %v3377, %v3376
        %v3407 = vpack.c.b16 %v3379, %v3378
        %v3408 = vpack.c.b16 %v3381, %v3380
        %v3409 = vpack.c.b16 %v3383, %v3382
        %v3410 = vpack.c.b16 %v3385, %v3384
        %v3411 = vpack.c.b16 %v3387, %v3386
        %v3412 = vpack.c.b16 %v3389, %v3388
        %v3413 = vpack.c.b16 %v3391, %v3390
        %v3414 = vpack.c.b16 %v3393, %v3392
        %v3415 = vpack.c.b16 %v3395, %v3394
        %v3416 = vpack.c.b16 %v3397, %v3396
        %v3417 = vpack.c.b16 %v3399, %v3398
        %v3418 = vpack.c.b16 %v3401, %v3400
        %v3419 = vpack.c.b16 %v3403, %v3402
        %v3428 = vunpack.c.l.b16 %v3364
        %v3429 = vunpack.c.l.b16 %v3365
        %v3430 = vunpack.c.l.b16 %v3366
        %v3431 = vunpack.c.l.b16 %v3367
        %v3432 = vunpack.c.l.b16 %v3368
        %v3433 = vunpack.c.l.b16 %v3369
        %v3434 = vunpack.c.l.b16 %v3370
        %v3435 = vunpack.c.l.b16 %v3371
        %v3436 = vpack.c.b16 %v3429, %v3428
        %v3437 = vpack.c.b16 %v3431, %v3430
        %v3438 = vpack.c.b16 %v3433, %v3432
        %v3439 = vpack.c.b16 %v3435, %v3434
        %v3445 = vsel %vm1026, %v3404, 0
        %v3448 = vsel %vm1026, %v3405, 0
        %v3451 = vsel %vm1026, %v3406, 0
        %v3454 = vsel %vm1026, %v3407, 0
        %v3457 = vsel %vm1026, %v3408, 0
        %v3460 = vsel %vm1026, %v3409, 0
        %v3463 = vsel %vm1026, %v3410, 0
        %v3466 = vsel %vm1026, %v3411, 0
        %v3469 = vsel %vm1026, %v3412, 0
        %v3472 = vsel %vm1026, %v3413, 0
        %v3475 = vsel %vm1026, %v3414, 0
        %v3478 = vsel %vm1026, %v3415, 0
        %v3481 = vsel %vm1026, %v3416, 0
        %v3484 = vsel %vm1026, %v3417, 0
        %v3487 = vsel %vm1026, %v3418, 0
        %v3490 = vsel %vm1026, %v3419, 0
        %3492 = vmatprep.subr.bf16.mxu0 0
        %3493 = vmatpush1.bf16.msra.mxu0 %v3436
        %3494 = vmatprep.subr.bf16.mxu0 0
        %3495 = vmatpush1.bf16.msra.mxu0 %v3437
        %3496 = vmatprep.subr.bf16.mxu0 0
        %3497 = vmatpush1.bf16.msra.mxu0 %v3438
        %3498 = vmatprep.subr.bf16.mxu0 0
        %3499 = vmatpush1.bf16.msra.mxu0 %v3439
        %3500 = vmatprep.subr.bf16.mxu0 0
        %3501 = vmatpush1.bf16.msra.mxu0 0
        %3502 = vmatprep.subr.bf16.mxu0 0
        %3503 = vmatpush1.bf16.msra.mxu0 0
        %3504 = vmatprep.subr.bf16.mxu0 0
        %3505 = vmatpush1.bf16.msra.mxu0 0
        %3506 = vmatprep.subr.bf16.mxu0 0
        %3507 = vmatpush1.bf16.msra.mxu0 0
        %3508 = vmatprep.subr.bf16.mxu0 0
        %3509 = vmatpush1.bf16.msra.mxu0 0
        %3510 = vmatprep.subr.bf16.mxu0 0
        %3511 = vmatpush1.bf16.msra.mxu0 0
        %3512 = vmatprep.subr.bf16.mxu0 0
        %3513 = vmatpush1.bf16.msra.mxu0 0
        %3514 = vmatprep.subr.bf16.mxu0 0
        %3515 = vmatpush1.bf16.msra.mxu0 0
        %3516 = vmatprep.subr.bf16.mxu0 0
        %3517 = vmatpush1.bf16.msra.mxu0 0
        %3518 = vmatprep.subr.bf16.mxu0 0
        %3519 = vmatpush1.bf16.msra.mxu0 0
        %3520 = vmatprep.subr.bf16.mxu0 0
        %3521 = vmatpush1.bf16.msra.mxu0 0
        %3522 = vmatprep.subr.bf16.mxu0 0
        %3523 = vmatpush1.bf16.msra.mxu0 0
        %3524 = vmatprep.mubr.bf16.mxu0 0
        %3525 = vmatmul.mubr.bf16.gmra.mrb[0].mxu0 %v3445
        %v3526 = vpop.f32.mrb[0].mxu0
        %v3527 = vadd.f32 0.0, %v3526
        %v3528 = vpop.f32.mrb[0].mxu0
        %v3529 = vpop.f32.mrb[0].mxu0
        %v3530 = vadd.f32 0.0, %v3529
        %v3531 = vpop.f32.mrb[0].mxu0
        %3532 = vmatprep.mubr.bf16.mxu0 0
        %3533 = vmatmul.mubr.bf16.gmra.mrb[0].mxu0 %v3448
        %v3534 = vpop.f32.mrb[0].mxu0
        %v3535 = vadd.f32 0.0, %v3534
        %v3536 = vpop.f32.mrb[0].mxu0
        %v3537 = vpop.f32.mrb[0].mxu0
        %v3538 = vadd.f32 0.0, %v3537
        %v3539 = vpop.f32.mrb[0].mxu0
        %3540 = vmatprep.mubr.bf16.mxu0 0
        %3541 = vmatmul.mubr.bf16.gmra.mrb[0].mxu0 %v3451
        %v3542 = vpop.f32.mrb[0].mxu0
        %v3543 = vadd.f32 0.0, %v3542
        %v3544 = vpop.f32.mrb[0].mxu0
        %v3545 = vpop.f32.mrb[0].mxu0
        %v3546 = vadd.f32 0.0, %v3545
        %v3547 = vpop.f32.mrb[0].mxu0
        %3548 = vmatprep.mubr.bf16.mxu0 0
        %3549 = vmatmul.mubr.bf16.gmra.mrb[0].mxu0 %v3454
        %v3550 = vpop.f32.mrb[0].mxu0
        %v3551 = vadd.f32 0.0, %v3550
        %v3552 = vpop.f32.mrb[0].mxu0
        %v3553 = vpop.f32.mrb[0].mxu0
        %v3554 = vadd.f32 0.0, %v3553
        %v3555 = vpop.f32.mrb[0].mxu0
        %3556 = vmatprep.mubr.bf16.mxu0 0
        %3557 = vmatmul.mubr.bf16.gmra.mrb[0].mxu0 %v3457
        %v3558 = vpop.f32.mrb[0].mxu0
        %v3559 = vadd.f32 0.0, %v3558
        %v3560 = vpop.f32.mrb[0].mxu0
        %v3561 = vpop.f32.mrb[0].mxu0
        %v3562 = vadd.f32 0.0, %v3561
        %v3563 = vpop.f32.mrb[0].mxu0
        %3564 = vmatprep.mubr.bf16.mxu0 0
        %3565 = vmatmul.mubr.bf16.gmra.mrb[0].mxu0 %v3460
        %v3566 = vpop.f32.mrb[0].mxu0
        %v3567 = vadd.f32 0.0, %v3566
        %v3568 = vpop.f32.mrb[0].mxu0
        %v3569 = vpop.f32.mrb[0].mxu0
        %v3570 = vadd.f32 0.0, %v3569
        %v3571 = vpop.f32.mrb[0].mxu0
        %3572 = vmatprep.mubr.bf16.mxu0 0
        %3573 = vmatmul.mubr.bf16.gmra.mrb[0].mxu0 %v3463
        %v3574 = vpop.f32.mrb[0].mxu0
        %v3575 = vadd.f32 0.0, %v3574
        %v3576 = vpop.f32.mrb[0].mxu0
        %v3577 = vpop.f32.mrb[0].mxu0
        %v3578 = vadd.f32 0.0, %v3577
        %v3579 = vpop.f32.mrb[0].mxu0
        %3580 = vmatprep.mubr.bf16.mxu0 0
        %3581 = vmatmul.mubr.bf16.gmra.mrb[0].mxu0 %v3466
        %v3582 = vpop.f32.mrb[0].mxu0
        %v3583 = vadd.f32 0.0, %v3582
        %v3584 = vpop.f32.mrb[0].mxu0
        %v3585 = vpop.f32.mrb[0].mxu0
        %v3586 = vadd.f32 0.0, %v3585
        %v3587 = vpop.f32.mrb[0].mxu0
        %3588 = vmatprep.mubr.bf16.mxu0 0
        %3589 = vmatmul.mubr.bf16.gmra.mrb[0].mxu0 %v3469
        %v3590 = vpop.f32.mrb[0].mxu0
        %v3591 = vadd.f32 0.0, %v3590
        %v3592 = vpop.f32.mrb[0].mxu0
        %v3593 = vpop.f32.mrb[0].mxu0
        %v3594 = vadd.f32 0.0, %v3593
        %v3595 = vpop.f32.mrb[0].mxu0
        %3596 = vmatprep.mubr.bf16.mxu0 0
        %3597 = vmatmul.mubr.bf16.gmra.mrb[0].mxu0 %v3472
        %v3598 = vpop.f32.mrb[0].mxu0
        %v3599 = vadd.f32 0.0, %v3598
        %v3600 = vpop.f32.mrb[0].mxu0
        %v3601 = vpop.f32.mrb[0].mxu0
        %v3602 = vadd.f32 0.0, %v3601
        %v3603 = vpop.f32.mrb[0].mxu0
        %3604 = vmatprep.mubr.bf16.mxu0 0
        %3605 = vmatmul.mubr.bf16.gmra.mrb[0].mxu0 %v3475
        %v3606 = vpop.f32.mrb[0].mxu0
        %v3607 = vadd.f32 0.0, %v3606
        %v3608 = vpop.f32.mrb[0].mxu0
        %v3609 = vpop.f32.mrb[0].mxu0
        %v3610 = vadd.f32 0.0, %v3609
        %v3611 = vpop.f32.mrb[0].mxu0
        %3612 = vmatprep.mubr.bf16.mxu0 0
        %3613 = vmatmul.mubr.bf16.gmra.mrb[0].mxu0 %v3478
        %v3614 = vpop.f32.mrb[0].mxu0
        %v3615 = vadd.f32 0.0, %v3614
        %v3616 = vpop.f32.mrb[0].mxu0
        %v3617 = vpop.f32.mrb[0].mxu0
        %v3618 = vadd.f32 0.0, %v3617
        %v3619 = vpop.f32.mrb[0].mxu0
        %3620 = vmatprep.mubr.bf16.mxu0 0
        %3621 = vmatmul.mubr.bf16.gmra.mrb[0].mxu0 %v3481
        %v3622 = vpop.f32.mrb[0].mxu0
        %v3623 = vadd.f32 0.0, %v3622
        %v3624 = vpop.f32.mrb[0].mxu0
        %v3625 = vpop.f32.mrb[0].mxu0
        %v3626 = vadd.f32 0.0, %v3625
        %v3627 = vpop.f32.mrb[0].mxu0
        %3628 = vmatprep.mubr.bf16.mxu0 0
        %3629 = vmatmul.mubr.bf16.gmra.mrb[0].mxu0 %v3484
        %v3630 = vpop.f32.mrb[0].mxu0
        %v3631 = vadd.f32 0.0, %v3630
        %v3632 = vpop.f32.mrb[0].mxu0
        %v3633 = vpop.f32.mrb[0].mxu0
        %v3634 = vadd.f32 0.0, %v3633
        %v3635 = vpop.f32.mrb[0].mxu0
        %3636 = vmatprep.mubr.bf16.mxu0 0
        %3637 = vmatmul.mubr.bf16.gmra.mrb[0].mxu0 %v3487
        %v3638 = vpop.f32.mrb[0].mxu0
        %v3639 = vadd.f32 0.0, %v3638
        %v3640 = vpop.f32.mrb[0].mxu0
        %v3641 = vpop.f32.mrb[0].mxu0
        %v3642 = vadd.f32 0.0, %v3641
        %v3643 = vpop.f32.mrb[0].mxu0
        %3644 = vmatprep.mubr.bf16.mxu0 0
        %3645 = vmatmul.mubr.bf16.gmra.mrb[0].mxu0 %v3490
        %v3646 = vpop.f32.mrb[0].mxu0
        %v3647 = vadd.f32 0.0, %v3646
        %v3648 = vpop.f32.mrb[0].mxu0
        %v3649 = vpop.f32.mrb[0].mxu0
        %v3650 = vadd.f32 0.0, %v3649
        %v3651 = vpop.f32.mrb[0].mxu0
        %3652 = vdwg.mxu0
        %v3653 = vadd.f32 %v3152, %v3527
        %v3654 = vadd.f32 %v3153, %v3530
        %v3655 = vadd.f32 %v3154, %v3535
        %v3656 = vadd.f32 %v3155, %v3538
        %v3657 = vadd.f32 %v3156, %v3543
        %v3658 = vadd.f32 %v3157, %v3546
        %v3659 = vadd.f32 %v3158, %v3551
        %v3660 = vadd.f32 %v3159, %v3554
        %v3661 = vadd.f32 %v3160, %v3559
        %v3662 = vadd.f32 %v3161, %v3562
        %v3663 = vadd.f32 %v3162, %v3567
        %v3664 = vadd.f32 %v3163, %v3570
        %v3665 = vadd.f32 %v3164, %v3575
        %v3666 = vadd.f32 %v3165, %v3578
        %v3667 = vadd.f32 %v3166, %v3583
        %v3668 = vadd.f32 %v3167, %v3586
        %v3669 = vadd.f32 %v3168, %v3591
        %v3670 = vadd.f32 %v3169, %v3594
        %v3671 = vadd.f32 %v3170, %v3599
        %v3672 = vadd.f32 %v3171, %v3602
        %v3673 = vadd.f32 %v3172, %v3607
        %v3674 = vadd.f32 %v3173, %v3610
        %v3675 = vadd.f32 %v3174, %v3615
        %v3676 = vadd.f32 %v3175, %v3618
        %v3677 = vadd.f32 %v3176, %v3623
        %v3678 = vadd.f32 %v3177, %v3626
        %v3679 = vadd.f32 %v3178, %v3631
        %v3680 = vadd.f32 %v3179, %v3634
        %v3681 = vadd.f32 %v3180, %v3639
        %v3682 = vadd.f32 %v3181, %v3642
        %v3683 = vadd.f32 %v3182, %v3647
        %v3684 = vadd.f32 %v3183, %v3650
        %s3685 = scalar_lea.vmem [#allocation2], 24
        %v3686 = vld [vmem:[%s3685] sm:$0xf]
        %v3687 = vld [vmem:[%s3685 + $0x4] sm:$0xf]
        %v3688 = vld [vmem:[%s3685 + $0xc] sm:$0xf]
        %v3689 = vld [vmem:[%s3685 + $0x10] sm:$0xf]
        %v3690 = vld [vmem:[%s3685 + $0x18] sm:$0xf]
        %v3691 = vld [vmem:[%s3685 + $0x1c] sm:$0xf]
        %v3692 = vld [vmem:[%s3685 + $0x24] sm:$0xf]
        %v3693 = vld [vmem:[%s3685 + $0x28] sm:$0xf]
        %v3694 = vld [vmem:[%s3685 + $0x30] sm:$0xf]
        %v3695 = vld [vmem:[%s3685 + $0x34] sm:$0xf]
        %v3696 = vld [vmem:[%s3685 + $0x3c] sm:$0xf]
        %v3697 = vld [vmem:[%s3685 + $0x40] sm:$0xf]
        %v3698 = vld [vmem:[%s3685 + $0x48] sm:$0xf]
        %v3699 = vld [vmem:[%s3685 + $0x4c] sm:$0xf]
        %v3700 = vld [vmem:[%s3685 + $0x54] sm:$0xf]
        %v3701 = vld [vmem:[%s3685 + $0x58] sm:$0xf]
        %v3702 = vld [vmem:[%s3685 + $0x60] sm:$0xf]
        %v3703 = vld [vmem:[%s3685 + $0x64] sm:$0xf]
        %v3704 = vld [vmem:[%s3685 + $0x6c] sm:$0xf]
        %v3705 = vld [vmem:[%s3685 + $0x70] sm:$0xf]
        %v3706 = vld [vmem:[%s3685 + $0x78] sm:$0xf]
        %v3707 = vld [vmem:[%s3685 + $0x7c] sm:$0xf]
        %v3708 = vld [vmem:[%s3685 + $0x84] sm:$0xf]
        %v3709 = vld [vmem:[%s3685 + $0x88] sm:$0xf]
        %v3710 = vld [vmem:[%s3685 + $0x90] sm:$0xf]
        %v3711 = vld [vmem:[%s3685 + $0x94] sm:$0xf]
        %v3712 = vld [vmem:[%s3685 + $0x9c] sm:$0xf]
        %v3713 = vld [vmem:[%s3685 + $0xa0] sm:$0xf]
        %v3714 = vld [vmem:[%s3685 + $0xa8] sm:$0xf]
        %v3715 = vld [vmem:[%s3685 + $0xac] sm:$0xf]
        %v3716 = vld [vmem:[%s3685 + $0xb4] sm:$0xf]
        %v3717 = vld [vmem:[%s3685 + $0xb8] sm:$0xf]
        %s3718 = sadd.s32 %s527, 6
        %s3719 = smul.u32 %s3718, 8
        %s3720 = smul.addr %s3719, 4
        %s3721 = scalar_lea.vmem %s1, %s3720
        %v3722 = vld [vmem:[%s3721] sm:$0xf]
        %v3723 = vld [vmem:[%s3721 + $0x4] sm:$0xf]
        %v3724 = vld [vmem:[%s3721 + $0x8] sm:$0xf]
        %v3725 = vld [vmem:[%s3721 + $0xc] sm:$0xf]
        %v3726 = vld [vmem:[%s3721 + $0x10] sm:$0xf]
        %v3727 = vld [vmem:[%s3721 + $0x14] sm:$0xf]
        %v3728 = vld [vmem:[%s3721 + $0x18] sm:$0xf]
        %v3729 = vld [vmem:[%s3721 + $0x1c] sm:$0xf]
        %v3762 = vunpack.c.l.b16 %v3686
        %v3763 = vunpack.c.l.b16 %v3687
        %v3764 = vunpack.c.l.b16 %v3688
        %v3765 = vunpack.c.l.b16 %v3689
        %v3766 = vunpack.c.l.b16 %v3690
        %v3767 = vunpack.c.l.b16 %v3691
        %v3768 = vunpack.c.l.b16 %v3692
        %v3769 = vunpack.c.l.b16 %v3693
        %v3770 = vunpack.c.l.b16 %v3694
        %v3771 = vunpack.c.l.b16 %v3695
        %v3772 = vunpack.c.l.b16 %v3696
        %v3773 = vunpack.c.l.b16 %v3697
        %v3774 = vunpack.c.l.b16 %v3698
        %v3775 = vunpack.c.l.b16 %v3699
        %v3776 = vunpack.c.l.b16 %v3700
        %v3777 = vunpack.c.l.b16 %v3701
        %v3778 = vunpack.c.l.b16 %v3702
        %v3779 = vunpack.c.l.b16 %v3703
        %v3780 = vunpack.c.l.b16 %v3704
        %v3781 = vunpack.c.l.b16 %v3705
        %v3782 = vunpack.c.l.b16 %v3706
        %v3783 = vunpack.c.l.b16 %v3707
        %v3784 = vunpack.c.l.b16 %v3708
        %v3785 = vunpack.c.l.b16 %v3709
        %v3786 = vunpack.c.l.b16 %v3710
        %v3787 = vunpack.c.l.b16 %v3711
        %v3788 = vunpack.c.l.b16 %v3712
        %v3789 = vunpack.c.l.b16 %v3713
        %v3790 = vunpack.c.l.b16 %v3714
        %v3791 = vunpack.c.l.b16 %v3715
        %v3792 = vunpack.c.l.b16 %v3716
        %v3793 = vunpack.c.l.b16 %v3717
        %v3794 = vpack.c.b16 %v3763, %v3762
        %v3795 = vpack.c.b16 %v3765, %v3764
        %v3796 = vpack.c.b16 %v3767, %v3766
        %v3797 = vpack.c.b16 %v3769, %v3768
        %v3798 = vpack.c.b16 %v3771, %v3770
        %v3799 = vpack.c.b16 %v3773, %v3772
        %v3800 = vpack.c.b16 %v3775, %v3774
        %v3801 = vpack.c.b16 %v3777, %v3776
        %v3802 = vpack.c.b16 %v3779, %v3778
        %v3803 = vpack.c.b16 %v3781, %v3780
        %v3804 = vpack.c.b16 %v3783, %v3782
        %v3805 = vpack.c.b16 %v3785, %v3784
        %v3806 = vpack.c.b16 %v3787, %v3786
        %v3807 = vpack.c.b16 %v3789, %v3788
        %v3808 = vpack.c.b16 %v3791, %v3790
        %v3809 = vpack.c.b16 %v3793, %v3792
        %v3818 = vunpack.c.l.b16 %v3722
        %v3819 = vunpack.c.l.b16 %v3723
        %v3820 = vunpack.c.l.b16 %v3724
        %v3821 = vunpack.c.l.b16 %v3725
        %v3822 = vunpack.c.l.b16 %v3726
        %v3823 = vunpack.c.l.b16 %v3727
        %v3824 = vunpack.c.l.b16 %v3728
        %v3825 = vunpack.c.l.b16 %v3729
        %v3826 = vpack.c.b16 %v3819, %v3818
        %v3827 = vpack.c.b16 %v3821, %v3820
        %v3828 = vpack.c.b16 %v3823, %v3822
        %v3829 = vpack.c.b16 %v3825, %v3824
        %v3835 = vsel %vm1026, %v3794, 0
        %v3838 = vsel %vm1026, %v3795, 0
        %v3841 = vsel %vm1026, %v3796, 0
        %v3844 = vsel %vm1026, %v3797, 0
        %v3847 = vsel %vm1026, %v3798, 0
        %v3850 = vsel %vm1026, %v3799, 0
        %v3853 = vsel %vm1026, %v3800, 0
        %v3856 = vsel %vm1026, %v3801, 0
        %v3859 = vsel %vm1026, %v3802, 0
        %v3862 = vsel %vm1026, %v3803, 0
        %v3865 = vsel %vm1026, %v3804, 0
        %v3868 = vsel %vm1026, %v3805, 0
        %v3871 = vsel %vm1026, %v3806, 0
        %v3874 = vsel %vm1026, %v3807, 0
        %v3877 = vsel %vm1026, %v3808, 0
        %v3880 = vsel %vm1026, %v3809, 0
        %3882 = vmatprep.subr.bf16.mxu0 0
        %3883 = vmatpush1.bf16.msra.mxu0 %v3826
        %3884 = vmatprep.subr.bf16.mxu0 0
        %3885 = vmatpush1.bf16.msra.mxu0 %v3827
        %3886 = vmatprep.subr.bf16.mxu0 0
        %3887 = vmatpush1.bf16.msra.mxu0 %v3828
        %3888 = vmatprep.subr.bf16.mxu0 0
        %3889 = vmatpush1.bf16.msra.mxu0 %v3829
        %3890 = vmatprep.subr.bf16.mxu0 0
        %3891 = vmatpush1.bf16.msra.mxu0 0
        %3892 = vmatprep.subr.bf16.mxu0 0
        %3893 = vmatpush1.bf16.msra.mxu0 0
        %3894 = vmatprep.subr.bf16.mxu0 0
        %3895 = vmatpush1.bf16.msra.mxu0 0
        %3896 = vmatprep.subr.bf16.mxu0 0
        %3897 = vmatpush1.bf16.msra.mxu0 0
        %3898 = vmatprep.subr.bf16.mxu0 0
        %3899 = vmatpush1.bf16.msra.mxu0 0
        %3900 = vmatprep.subr.bf16.mxu0 0
        %3901 = vmatpush1.bf16.msra.mxu0 0
        %3902 = vmatprep.subr.bf16.mxu0 0
        %3903 = vmatpush1.bf16.msra.mxu0 0
        %3904 = vmatprep.subr.bf16.mxu0 0
        %3905 = vmatpush1.bf16.msra.mxu0 0
        %3906 = vmatprep.subr.bf16.mxu0 0
        %3907 = vmatpush1.bf16.msra.mxu0 0
        %3908 = vmatprep.subr.bf16.mxu0 0
        %3909 = vmatpush1.bf16.msra.mxu0 0
        %3910 = vmatprep.subr.bf16.mxu0 0
        %3911 = vmatpush1.bf16.msra.mxu0 0
        %3912 = vmatprep.subr.bf16.mxu0 0
        %3913 = vmatpush1.bf16.msra.mxu0 0
        %3914 = vmatprep.mubr.bf16.mxu0 0
        %3915 = vmatmul.mubr.bf16.gmra.mrb[0].mxu0 %v3835
        %v3916 = vpop.f32.mrb[0].mxu0
        %v3917 = vadd.f32 0.0, %v3916
        %v3918 = vpop.f32.mrb[0].mxu0
        %v3919 = vpop.f32.mrb[0].mxu0
        %v3920 = vadd.f32 0.0, %v3919
        %v3921 = vpop.f32.mrb[0].mxu0
        %3922 = vmatprep.mubr.bf16.mxu0 0
        %3923 = vmatmul.mubr.bf16.gmra.mrb[0].mxu0 %v3838
        %v3924 = vpop.f32.mrb[0].mxu0
        %v3925 = vadd.f32 0.0, %v3924
        %v3926 = vpop.f32.mrb[0].mxu0
        %v3927 = vpop.f32.mrb[0].mxu0
        %v3928 = vadd.f32 0.0, %v3927
        %v3929 = vpop.f32.mrb[0].mxu0
        %3930 = vmatprep.mubr.bf16.mxu0 0
        %3931 = vmatmul.mubr.bf16.gmra.mrb[0].mxu0 %v3841
        %v3932 = vpop.f32.mrb[0].mxu0
        %v3933 = vadd.f32 0.0, %v3932
        %v3934 = vpop.f32.mrb[0].mxu0
        %v3935 = vpop.f32.mrb[0].mxu0
        %v3936 = vadd.f32 0.0, %v3935
        %v3937 = vpop.f32.mrb[0].mxu0
        %3938 = vmatprep.mubr.bf16.mxu0 0
        %3939 = vmatmul.mubr.bf16.gmra.mrb[0].mxu0 %v3844
        %v3940 = vpop.f32.mrb[0].mxu0
        %v3941 = vadd.f32 0.0, %v3940
        %v3942 = vpop.f32.mrb[0].mxu0
        %v3943 = vpop.f32.mrb[0].mxu0
        %v3944 = vadd.f32 0.0, %v3943
        %v3945 = vpop.f32.mrb[0].mxu0
        %3946 = vmatprep.mubr.bf16.mxu0 0
        %3947 = vmatmul.mubr.bf16.gmra.mrb[0].mxu0 %v3847
        %v3948 = vpop.f32.mrb[0].mxu0
        %v3949 = vadd.f32 0.0, %v3948
        %v3950 = vpop.f32.mrb[0].mxu0
        %v3951 = vpop.f32.mrb[0].mxu0
        %v3952 = vadd.f32 0.0, %v3951
        %v3953 = vpop.f32.mrb[0].mxu0
        %3954 = vmatprep.mubr.bf16.mxu0 0
        %3955 = vmatmul.mubr.bf16.gmra.mrb[0].mxu0 %v3850
        %v3956 = vpop.f32.mrb[0].mxu0
        %v3957 = vadd.f32 0.0, %v3956
        %v3958 = vpop.f32.mrb[0].mxu0
        %v3959 = vpop.f32.mrb[0].mxu0
        %v3960 = vadd.f32 0.0, %v3959
        %v3961 = vpop.f32.mrb[0].mxu0
        %3962 = vmatprep.mubr.bf16.mxu0 0
        %3963 = vmatmul.mubr.bf16.gmra.mrb[0].mxu0 %v3853
        %v3964 = vpop.f32.mrb[0].mxu0
        %v3965 = vadd.f32 0.0, %v3964
        %v3966 = vpop.f32.mrb[0].mxu0
        %v3967 = vpop.f32.mrb[0].mxu0
        %v3968 = vadd.f32 0.0, %v3967
        %v3969 = vpop.f32.mrb[0].mxu0
        %3970 = vmatprep.mubr.bf16.mxu0 0
        %3971 = vmatmul.mubr.bf16.gmra.mrb[0].mxu0 %v3856
        %v3972 = vpop.f32.mrb[0].mxu0
        %v3973 = vadd.f32 0.0, %v3972
        %v3974 = vpop.f32.mrb[0].mxu0
        %v3975 = vpop.f32.mrb[0].mxu0
        %v3976 = vadd.f32 0.0, %v3975
        %v3977 = vpop.f32.mrb[0].mxu0
        %3978 = vmatprep.mubr.bf16.mxu0 0
        %3979 = vmatmul.mubr.bf16.gmra.mrb[0].mxu0 %v3859
        %v3980 = vpop.f32.mrb[0].mxu0
        %v3981 = vadd.f32 0.0, %v3980
        %v3982 = vpop.f32.mrb[0].mxu0
        %v3983 = vpop.f32.mrb[0].mxu0
        %v3984 = vadd.f32 0.0, %v3983
        %v3985 = vpop.f32.mrb[0].mxu0
        %3986 = vmatprep.mubr.bf16.mxu0 0
        %3987 = vmatmul.mubr.bf16.gmra.mrb[0].mxu0 %v3862
        %v3988 = vpop.f32.mrb[0].mxu0
        %v3989 = vadd.f32 0.0, %v3988
        %v3990 = vpop.f32.mrb[0].mxu0
        %v3991 = vpop.f32.mrb[0].mxu0
        %v3992 = vadd.f32 0.0, %v3991
        %v3993 = vpop.f32.mrb[0].mxu0
        %3994 = vmatprep.mubr.bf16.mxu0 0
        %3995 = vmatmul.mubr.bf16.gmra.mrb[0].mxu0 %v3865
        %v3996 = vpop.f32.mrb[0].mxu0
        %v3997 = vadd.f32 0.0, %v3996
        %v3998 = vpop.f32.mrb[0].mxu0
        %v3999 = vpop.f32.mrb[0].mxu0
        %v4000 = vadd.f32 0.0, %v3999
        %v4001 = vpop.f32.mrb[0].mxu0
        %4002 = vmatprep.mubr.bf16.mxu0 0
        %4003 = vmatmul.mubr.bf16.gmra.mrb[0].mxu0 %v3868
        %v4004 = vpop.f32.mrb[0].mxu0
        %v4005 = vadd.f32 0.0, %v4004
        %v4006 = vpop.f32.mrb[0].mxu0
        %v4007 = vpop.f32.mrb[0].mxu0
        %v4008 = vadd.f32 0.0, %v4007
        %v4009 = vpop.f32.mrb[0].mxu0
        %4010 = vmatprep.mubr.bf16.mxu0 0
        %4011 = vmatmul.mubr.bf16.gmra.mrb[0].mxu0 %v3871
        %v4012 = vpop.f32.mrb[0].mxu0
        %v4013 = vadd.f32 0.0, %v4012
        %v4014 = vpop.f32.mrb[0].mxu0
        %v4015 = vpop.f32.mrb[0].mxu0
        %v4016 = vadd.f32 0.0, %v4015
        %v4017 = vpop.f32.mrb[0].mxu0
        %4018 = vmatprep.mubr.bf16.mxu0 0
        %4019 = vmatmul.mubr.bf16.gmra.mrb[0].mxu0 %v3874
        %v4020 = vpop.f32.mrb[0].mxu0
        %v4021 = vadd.f32 0.0, %v4020
        %v4022 = vpop.f32.mrb[0].mxu0
        %v4023 = vpop.f32.mrb[0].mxu0
        %v4024 = vadd.f32 0.0, %v4023
        %v4025 = vpop.f32.mrb[0].mxu0
        %4026 = vmatprep.mubr.bf16.mxu0 0
        %4027 = vmatmul.mubr.bf16.gmra.mrb[0].mxu0 %v3877
        %v4028 = vpop.f32.mrb[0].mxu0
        %v4029 = vadd.f32 0.0, %v4028
        %v4030 = vpop.f32.mrb[0].mxu0
        %v4031 = vpop.f32.mrb[0].mxu0
        %v4032 = vadd.f32 0.0, %v4031
        %v4033 = vpop.f32.mrb[0].mxu0
        %4034 = vmatprep.mubr.bf16.mxu0 0
        %4035 = vmatmul.mubr.bf16.gmra.mrb[0].mxu0 %v3880
        %v4036 = vpop.f32.mrb[0].mxu0
        %v4037 = vadd.f32 0.0, %v4036
        %v4038 = vpop.f32.mrb[0].mxu0
        %v4039 = vpop.f32.mrb[0].mxu0
        %v4040 = vadd.f32 0.0, %v4039
        %v4041 = vpop.f32.mrb[0].mxu0
        %4042 = vdwg.mxu0
        %v4043 = vadd.f32 %v3653, %v3917
        %v4044 = vadd.f32 %v3654, %v3920
        %v4045 = vadd.f32 %v3655, %v3925
        %v4046 = vadd.f32 %v3656, %v3928
        %v4047 = vadd.f32 %v3657, %v3933
        %v4048 = vadd.f32 %v3658, %v3936
        %v4049 = vadd.f32 %v3659, %v3941
        %v4050 = vadd.f32 %v3660, %v3944
        %v4051 = vadd.f32 %v3661, %v3949
        %v4052 = vadd.f32 %v3662, %v3952
        %v4053 = vadd.f32 %v3663, %v3957
        %v4054 = vadd.f32 %v3664, %v3960
        %v4055 = vadd.f32 %v3665, %v3965
        %v4056 = vadd.f32 %v3666, %v3968
        %v4057 = vadd.f32 %v3667, %v3973
        %v4058 = vadd.f32 %v3668, %v3976
        %v4059 = vadd.f32 %v3669, %v3981
        %v4060 = vadd.f32 %v3670, %v3984
        %v4061 = vadd.f32 %v3671, %v3989
        %v4062 = vadd.f32 %v3672, %v3992
        %v4063 = vadd.f32 %v3673, %v3997
        %v4064 = vadd.f32 %v3674, %v4000
        %v4065 = vadd.f32 %v3675, %v4005
        %v4066 = vadd.f32 %v3676, %v4008
        %v4067 = vadd.f32 %v3677, %v4013
        %v4068 = vadd.f32 %v3678, %v4016
        %v4069 = vadd.f32 %v3679, %v4021
        %v4070 = vadd.f32 %v3680, %v4024
        %v4071 = vadd.f32 %v3681, %v4029
        %v4072 = vadd.f32 %v3682, %v4032
        %v4073 = vadd.f32 %v3683, %v4037
        %v4074 = vadd.f32 %v3684, %v4040
        %v4075 = vld [vmem:[%s3685] sm:$0xf]
        %v4076 = vld [vmem:[%s3685 + $0x4] sm:$0xf]
        %v4077 = vld [vmem:[%s3685 + $0x8] sm:$0x1]
        %v4078 = vld [vmem:[%s3685 + $0xc] sm:$0xf]
        %v4079 = vld [vmem:[%s3685 + $0x10] sm:$0xf]
        %v4080 = vld [vmem:[%s3685 + $0x14] sm:$0x1]
        %v4081 = vld [vmem:[%s3685 + $0x18] sm:$0xf]
        %v4082 = vld [vmem:[%s3685 + $0x1c] sm:$0xf]
        %v4083 = vld [vmem:[%s3685 + $0x20] sm:$0x1]
        %v4084 = vld [vmem:[%s3685 + $0x24] sm:$0xf]
        %v4085 = vld [vmem:[%s3685 + $0x28] sm:$0xf]
        %v4086 = vld [vmem:[%s3685 + $0x2c] sm:$0x1]
        %v4087 = vld [vmem:[%s3685 + $0x30] sm:$0xf]
        %v4088 = vld [vmem:[%s3685 + $0x34] sm:$0xf]
        %v4089 = vld [vmem:[%s3685 + $0x38] sm:$0x1]
        %v4090 = vld [vmem:[%s3685 + $0x3c] sm:$0xf]
        %v4091 = vld [vmem:[%s3685 + $0x40] sm:$0xf]
        %v4092 = vld [vmem:[%s3685 + $0x44] sm:$0x1]
        %v4093 = vld [vmem:[%s3685 + $0x48] sm:$0xf]
        %v4094 = vld [vmem:[%s3685 + $0x4c] sm:$0xf]
        %v4095 = vld [vmem:[%s3685 + $0x50] sm:$0x1]
        %v4096 = vld [vmem:[%s3685 + $0x54] sm:$0xf]
        %v4097 = vld [vmem:[%s3685 + $0x58] sm:$0xf]
        %v4098 = vld [vmem:[%s3685 + $0x5c] sm:$0x1]
        %v4099 = vld [vmem:[%s3685 + $0x60] sm:$0xf]
        %v4100 = vld [vmem:[%s3685 + $0x64] sm:$0xf]
        %v4101 = vld [vmem:[%s3685 + $0x68] sm:$0x1]
        %v4102 = vld [vmem:[%s3685 + $0x6c] sm:$0xf]
        %v4103 = vld [vmem:[%s3685 + $0x70] sm:$0xf]
        %v4104 = vld [vmem:[%s3685 + $0x74] sm:$0x1]
        %v4105 = vld [vmem:[%s3685 + $0x78] sm:$0xf]
        %v4106 = vld [vmem:[%s3685 + $0x7c] sm:$0xf]
        %v4107 = vld [vmem:[%s3685 + $0x80] sm:$0x1]
        %v4108 = vld [vmem:[%s3685 + $0x84] sm:$0xf]
        %v4109 = vld [vmem:[%s3685 + $0x88] sm:$0xf]
        %v4110 = vld [vmem:[%s3685 + $0x8c] sm:$0x1]
        %v4111 = vld [vmem:[%s3685 + $0x90] sm:$0xf]
        %v4112 = vld [vmem:[%s3685 + $0x94] sm:$0xf]
        %v4113 = vld [vmem:[%s3685 + $0x98] sm:$0x1]
        %v4114 = vld [vmem:[%s3685 + $0x9c] sm:$0xf]
        %v4115 = vld [vmem:[%s3685 + $0xa0] sm:$0xf]
        %v4116 = vld [vmem:[%s3685 + $0xa4] sm:$0x1]
        %v4117 = vld [vmem:[%s3685 + $0xa8] sm:$0xf]
        %v4118 = vld [vmem:[%s3685 + $0xac] sm:$0xf]
        %v4119 = vld [vmem:[%s3685 + $0xb0] sm:$0x1]
        %v4120 = vld [vmem:[%s3685 + $0xb4] sm:$0xf]
        %v4121 = vld [vmem:[%s3685 + $0xb8] sm:$0xf]
        %v4122 = vld [vmem:[%s3685 + $0xbc] sm:$0x1]
        %v4124 = vshrl.u32 %v4075, 16
        %v4126 = vrot.slane %v4124, 4
        %v4127 = vshll.u32 %v4075, 16
        %v4129 = vrot.slane %v4127, 5
        %v4130 = vor.u32 %v4126, %v4129
        %v4131 = vrot.slane %v4130, 4
        %v4133 = vshll.u32 %v4076, 16
        %v4135 = vrot.slane %v4133, 5
        %v4136 = vsel %vm557, %v4131, %v4135
        %v4137 = vshrl.u32 %v4076, 16
        %v4139 = vrot.slane %v4137, 4
        %v4140 = vor.u32 %v4139, %v4135
        %v4141 = vrot.slane %v4140, 4
        %v4143 = vshll.u32 %v4077, 16
        %v4145 = vrot.slane %v4143, 5
        %v4146 = vsel %vm557, %v4141, %v4145
        %v4148 = vshrl.u32 %v4078, 16
        %v4150 = vrot.slane %v4148, 4
        %v4151 = vshll.u32 %v4078, 16
        %v4153 = vrot.slane %v4151, 5
        %v4154 = vor.u32 %v4150, %v4153
        %v4155 = vrot.slane %v4154, 4
        %v4157 = vshll.u32 %v4079, 16
        %v4159 = vrot.slane %v4157, 5
        %v4160 = vsel %vm557, %v4155, %v4159
        %v4161 = vshrl.u32 %v4079, 16
        %v4163 = vrot.slane %v4161, 4
        %v4164 = vor.u32 %v4163, %v4159
        %v4165 = vrot.slane %v4164, 4
        %v4167 = vshll.u32 %v4080, 16
        %v4169 = vrot.slane %v4167, 5
        %v4170 = vsel %vm557, %v4165, %v4169
        %v4172 = vshrl.u32 %v4081, 16
        %v4174 = vrot.slane %v4172, 4
        %v4175 = vshll.u32 %v4081, 16
        %v4177 = vrot.slane %v4175, 5
        %v4178 = vor.u32 %v4174, %v4177
        %v4179 = vrot.slane %v4178, 4
        %v4181 = vshll.u32 %v4082, 16
        %v4183 = vrot.slane %v4181, 5
        %v4184 = vsel %vm557, %v4179, %v4183
        %v4185 = vshrl.u32 %v4082, 16
        %v4187 = vrot.slane %v4185, 4
        %v4188 = vor.u32 %v4187, %v4183
        %v4189 = vrot.slane %v4188, 4
        %v4191 = vshll.u32 %v4083, 16
        %v4193 = vrot.slane %v4191, 5
        %v4194 = vsel %vm557, %v4189, %v4193
        %v4196 = vshrl.u32 %v4084, 16
        %v4198 = vrot.slane %v4196, 4
        %v4199 = vshll.u32 %v4084, 16
        %v4201 = vrot.slane %v4199, 5
        %v4202 = vor.u32 %v4198, %v4201
        %v4203 = vrot.slane %v4202, 4
        %v4205 = vshll.u32 %v4085, 16
        %v4207 = vrot.slane %v4205, 5
        %v4208 = vsel %vm557, %v4203, %v4207
        %v4209 = vshrl.u32 %v4085, 16
        %v4211 = vrot.slane %v4209, 4
        %v4212 = vor.u32 %v4211, %v4207
        %v4213 = vrot.slane %v4212, 4
        %v4215 = vshll.u32 %v4086, 16
        %v4217 = vrot.slane %v4215, 5
        %v4218 = vsel %vm557, %v4213, %v4217
        %v4220 = vshrl.u32 %v4087, 16
        %v4222 = vrot.slane %v4220, 4
        %v4223 = vshll.u32 %v4087, 16
        %v4225 = vrot.slane %v4223, 5
        %v4226 = vor.u32 %v4222, %v4225
        %v4227 = vrot.slane %v4226, 4
        %v4229 = vshll.u32 %v4088, 16
        %v4231 = vrot.slane %v4229, 5
        %v4232 = vsel %vm557, %v4227, %v4231
        %v4233 = vshrl.u32 %v4088, 16
        %v4235 = vrot.slane %v4233, 4
        %v4236 = vor.u32 %v4235, %v4231
        %v4237 = vrot.slane %v4236, 4
        %v4239 = vshll.u32 %v4089, 16
        %v4241 = vrot.slane %v4239, 5
        %v4242 = vsel %vm557, %v4237, %v4241
        %v4244 = vshrl.u32 %v4090, 16
        %v4246 = vrot.slane %v4244, 4
        %v4247 = vshll.u32 %v4090, 16
        %v4249 = vrot.slane %v4247, 5
        %v4250 = vor.u32 %v4246, %v4249
        %v4251 = vrot.slane %v4250, 4
        %v4253 = vshll.u32 %v4091, 16
        %v4255 = vrot.slane %v4253, 5
        %v4256 = vsel %vm557, %v4251, %v4255
        %v4257 = vshrl.u32 %v4091, 16
        %v4259 = vrot.slane %v4257, 4
        %v4260 = vor.u32 %v4259, %v4255
        %v4261 = vrot.slane %v4260, 4
        %v4263 = vshll.u32 %v4092, 16
        %v4265 = vrot.slane %v4263, 5
        %v4266 = vsel %vm557, %v4261, %v4265
        %v4268 = vshrl.u32 %v4093, 16
        %v4270 = vrot.slane %v4268, 4
        %v4271 = vshll.u32 %v4093, 16
        %v4273 = vrot.slane %v4271, 5
        %v4274 = vor.u32 %v4270, %v4273
        %v4275 = vrot.slane %v4274, 4
        %v4277 = vshll.u32 %v4094, 16
        %v4279 = vrot.slane %v4277, 5
        %v4280 = vsel %vm557, %v4275, %v4279
        %v4281 = vshrl.u32 %v4094, 16
        %v4283 = vrot.slane %v4281, 4
        %v4284 = vor.u32 %v4283, %v4279
        %v4285 = vrot.slane %v4284, 4
        %v4287 = vshll.u32 %v4095, 16
        %v4289 = vrot.slane %v4287, 5
        %v4290 = vsel %vm557, %v4285, %v4289
        %v4292 = vshrl.u32 %v4096, 16
        %v4294 = vrot.slane %v4292, 4
        %v4295 = vshll.u32 %v4096, 16
        %v4297 = vrot.slane %v4295, 5
        %v4298 = vor.u32 %v4294, %v4297
        %v4299 = vrot.slane %v4298, 4
        %v4301 = vshll.u32 %v4097, 16
        %v4303 = vrot.slane %v4301, 5
        %v4304 = vsel %vm557, %v4299, %v4303
        %v4305 = vshrl.u32 %v4097, 16
        %v4307 = vrot.slane %v4305, 4
        %v4308 = vor.u32 %v4307, %v4303
        %v4309 = vrot.slane %v4308, 4
        %v4311 = vshll.u32 %v4098, 16
        %v4313 = vrot.slane %v4311, 5
        %v4314 = vsel %vm557, %v4309, %v4313
        %v4316 = vshrl.u32 %v4099, 16
        %v4318 = vrot.slane %v4316, 4
        %v4319 = vshll.u32 %v4099, 16
        %v4321 = vrot.slane %v4319, 5
        %v4322 = vor.u32 %v4318, %v4321
        %v4323 = vrot.slane %v4322, 4
        %v4325 = vshll.u32 %v4100, 16
        %v4327 = vrot.slane %v4325, 5
        %v4328 = vsel %vm557, %v4323, %v4327
        %v4329 = vshrl.u32 %v4100, 16
        %v4331 = vrot.slane %v4329, 4
        %v4332 = vor.u32 %v4331, %v4327
        %v4333 = vrot.slane %v4332, 4
        %v4335 = vshll.u32 %v4101, 16
        %v4337 = vrot.slane %v4335, 5
        %v4338 = vsel %vm557, %v4333, %v4337
        %v4340 = vshrl.u32 %v4102, 16
        %v4342 = vrot.slane %v4340, 4
        %v4343 = vshll.u32 %v4102, 16
        %v4345 = vrot.slane %v4343, 5
        %v4346 = vor.u32 %v4342, %v4345
        %v4347 = vrot.slane %v4346, 4
        %v4349 = vshll.u32 %v4103, 16
        %v4351 = vrot.slane %v4349, 5
        %v4352 = vsel %vm557, %v4347, %v4351
        %v4353 = vshrl.u32 %v4103, 16
        %v4355 = vrot.slane %v4353, 4
        %v4356 = vor.u32 %v4355, %v4351
        %v4357 = vrot.slane %v4356, 4
        %v4359 = vshll.u32 %v4104, 16
        %v4361 = vrot.slane %v4359, 5
        %v4362 = vsel %vm557, %v4357, %v4361
        %v4364 = vshrl.u32 %v4105, 16
        %v4366 = vrot.slane %v4364, 4
        %v4367 = vshll.u32 %v4105, 16
        %v4369 = vrot.slane %v4367, 5
        %v4370 = vor.u32 %v4366, %v4369
        %v4371 = vrot.slane %v4370, 4
        %v4373 = vshll.u32 %v4106, 16
        %v4375 = vrot.slane %v4373, 5
        %v4376 = vsel %vm557, %v4371, %v4375
        %v4377 = vshrl.u32 %v4106, 16
        %v4379 = vrot.slane %v4377, 4
        %v4380 = vor.u32 %v4379, %v4375
        %v4381 = vrot.slane %v4380, 4
        %v4383 = vshll.u32 %v4107, 16
        %v4385 = vrot.slane %v4383, 5
        %v4386 = vsel %vm557, %v4381, %v4385
        %v4388 = vshrl.u32 %v4108, 16
        %v4390 = vrot.slane %v4388, 4
        %v4391 = vshll.u32 %v4108, 16
        %v4393 = vrot.slane %v4391, 5
        %v4394 = vor.u32 %v4390, %v4393
        %v4395 = vrot.slane %v4394, 4
        %v4397 = vshll.u32 %v4109, 16
        %v4399 = vrot.slane %v4397, 5
        %v4400 = vsel %vm557, %v4395, %v4399
        %v4401 = vshrl.u32 %v4109, 16
        %v4403 = vrot.slane %v4401, 4
        %v4404 = vor.u32 %v4403, %v4399
        %v4405 = vrot.slane %v4404, 4
        %v4407 = vshll.u32 %v4110, 16
        %v4409 = vrot.slane %v4407, 5
        %v4410 = vsel %vm557, %v4405, %v4409
        %v4412 = vshrl.u32 %v4111, 16
        %v4414 = vrot.slane %v4412, 4
        %v4415 = vshll.u32 %v4111, 16
        %v4417 = vrot.slane %v4415, 5
        %v4418 = vor.u32 %v4414, %v4417
        %v4419 = vrot.slane %v4418, 4
        %v4421 = vshll.u32 %v4112, 16
        %v4423 = vrot.slane %v4421, 5
        %v4424 = vsel %vm557, %v4419, %v4423
        %v4425 = vshrl.u32 %v4112, 16
        %v4427 = vrot.slane %v4425, 4
        %v4428 = vor.u32 %v4427, %v4423
        %v4429 = vrot.slane %v4428, 4
        %v4431 = vshll.u32 %v4113, 16
        %v4433 = vrot.slane %v4431, 5
        %v4434 = vsel %vm557, %v4429, %v4433
        %v4436 = vshrl.u32 %v4114, 16
        %v4438 = vrot.slane %v4436, 4
        %v4439 = vshll.u32 %v4114, 16
        %v4441 = vrot.slane %v4439, 5
        %v4442 = vor.u32 %v4438, %v4441
        %v4443 = vrot.slane %v4442, 4
        %v4445 = vshll.u32 %v4115, 16
        %v4447 = vrot.slane %v4445, 5
        %v4448 = vsel %vm557, %v4443, %v4447
        %v4449 = vshrl.u32 %v4115, 16
        %v4451 = vrot.slane %v4449, 4
        %v4452 = vor.u32 %v4451, %v4447
        %v4453 = vrot.slane %v4452, 4
        %v4455 = vshll.u32 %v4116, 16
        %v4457 = vrot.slane %v4455, 5
        %v4458 = vsel %vm557, %v4453, %v4457
        %v4460 = vshrl.u32 %v4117, 16
        %v4462 = vrot.slane %v4460, 4
        %v4463 = vshll.u32 %v4117, 16
        %v4465 = vrot.slane %v4463, 5
        %v4466 = vor.u32 %v4462, %v4465
        %v4467 = vrot.slane %v4466, 4
        %v4469 = vshll.u32 %v4118, 16
        %v4471 = vrot.slane %v4469, 5
        %v4472 = vsel %vm557, %v4467, %v4471
        %v4473 = vshrl.u32 %v4118, 16
        %v4475 = vrot.slane %v4473, 4
        %v4476 = vor.u32 %v4475, %v4471
        %v4477 = vrot.slane %v4476, 4
        %v4479 = vshll.u32 %v4119, 16
        %v4481 = vrot.slane %v4479, 5
        %v4482 = vsel %vm557, %v4477, %v4481
        %v4484 = vshrl.u32 %v4120, 16
        %v4486 = vrot.slane %v4484, 4
        %v4487 = vshll.u32 %v4120, 16
        %v4489 = vrot.slane %v4487, 5
        %v4490 = vor.u32 %v4486, %v4489
        %v4491 = vrot.slane %v4490, 4
        %v4493 = vshll.u32 %v4121, 16
        %v4495 = vrot.slane %v4493, 5
        %v4496 = vsel %vm557, %v4491, %v4495
        %v4497 = vshrl.u32 %v4121, 16
        %v4499 = vrot.slane %v4497, 4
        %v4500 = vor.u32 %v4499, %v4495
        %v4501 = vrot.slane %v4500, 4
        %v4503 = vshll.u32 %v4122, 16
        %v4505 = vrot.slane %v4503, 5
        %v4506 = vsel %vm557, %v4501, %v4505
        %s4507 = sadd.s32 %s527, 7
        %s4508 = smul.u32 %s4507, 8
        %s4509 = smul.addr %s4508, 4
        %s4510 = scalar_lea.vmem %s1, %s4509
        %v4511 = vld [vmem:[%s4510] sm:$0xf]
        %v4512 = vld [vmem:[%s4510 + $0x4] sm:$0xf]
        %v4513 = vld [vmem:[%s4510 + $0x8] sm:$0xf]
        %v4514 = vld [vmem:[%s4510 + $0xc] sm:$0xf]
        %v4515 = vld [vmem:[%s4510 + $0x10] sm:$0xf]
        %v4516 = vld [vmem:[%s4510 + $0x14] sm:$0xf]
        %v4517 = vld [vmem:[%s4510 + $0x18] sm:$0xf]
        %v4518 = vld [vmem:[%s4510 + $0x1c] sm:$0xf]
        %v4519 = vunpack.c.l.b16 %v4136
        %v4520 = vunpack.c.l.b16 %v4146
        %v4521 = vunpack.c.l.b16 %v4160
        %v4522 = vunpack.c.l.b16 %v4170
        %v4523 = vunpack.c.l.b16 %v4184
        %v4524 = vunpack.c.l.b16 %v4194
        %v4525 = vunpack.c.l.b16 %v4208
        %v4526 = vunpack.c.l.b16 %v4218
        %v4527 = vunpack.c.l.b16 %v4232
        %v4528 = vunpack.c.l.b16 %v4242
        %v4529 = vunpack.c.l.b16 %v4256
        %v4530 = vunpack.c.l.b16 %v4266
        %v4531 = vunpack.c.l.b16 %v4280
        %v4532 = vunpack.c.l.b16 %v4290
        %v4533 = vunpack.c.l.b16 %v4304
        %v4534 = vunpack.c.l.b16 %v4314
        %v4535 = vunpack.c.l.b16 %v4328
        %v4536 = vunpack.c.l.b16 %v4338
        %v4537 = vunpack.c.l.b16 %v4352
        %v4538 = vunpack.c.l.b16 %v4362
        %v4539 = vunpack.c.l.b16 %v4376
        %v4540 = vunpack.c.l.b16 %v4386
        %v4541 = vunpack.c.l.b16 %v4400
        %v4542 = vunpack.c.l.b16 %v4410
        %v4543 = vunpack.c.l.b16 %v4424
        %v4544 = vunpack.c.l.b16 %v4434
        %v4545 = vunpack.c.l.b16 %v4448
        %v4546 = vunpack.c.l.b16 %v4458
        %v4547 = vunpack.c.l.b16 %v4472
        %v4548 = vunpack.c.l.b16 %v4482
        %v4549 = vunpack.c.l.b16 %v4496
        %v4550 = vunpack.c.l.b16 %v4506
        %v4551 = vpack.c.b16 %v4520, %v4519
        %v4552 = vpack.c.b16 %v4522, %v4521
        %v4553 = vpack.c.b16 %v4524, %v4523
        %v4554 = vpack.c.b16 %v4526, %v4525
        %v4555 = vpack.c.b16 %v4528, %v4527
        %v4556 = vpack.c.b16 %v4530, %v4529
        %v4557 = vpack.c.b16 %v4532, %v4531
        %v4558 = vpack.c.b16 %v4534, %v4533
        %v4559 = vpack.c.b16 %v4536, %v4535
        %v4560 = vpack.c.b16 %v4538, %v4537
        %v4561 = vpack.c.b16 %v4540, %v4539
        %v4562 = vpack.c.b16 %v4542, %v4541
        %v4563 = vpack.c.b16 %v4544, %v4543
        %v4564 = vpack.c.b16 %v4546, %v4545
        %v4565 = vpack.c.b16 %v4548, %v4547
        %v4566 = vpack.c.b16 %v4550, %v4549
        %v4575 = vunpack.c.l.b16 %v4511
        %v4576 = vunpack.c.l.b16 %v4512
        %v4577 = vunpack.c.l.b16 %v4513
        %v4578 = vunpack.c.l.b16 %v4514
        %v4579 = vunpack.c.l.b16 %v4515
        %v4580 = vunpack.c.l.b16 %v4516
        %v4581 = vunpack.c.l.b16 %v4517
        %v4582 = vunpack.c.l.b16 %v4518
        %v4583 = vpack.c.b16 %v4576, %v4575
        %v4584 = vpack.c.b16 %v4578, %v4577
        %v4585 = vpack.c.b16 %v4580, %v4579
        %v4586 = vpack.c.b16 %v4582, %v4581
        %v4592 = vsel %vm1026, %v4551, 0
        %v4595 = vsel %vm1026, %v4552, 0
        %v4598 = vsel %vm1026, %v4553, 0
        %v4601 = vsel %vm1026, %v4554, 0
        %v4604 = vsel %vm1026, %v4555, 0
        %v4607 = vsel %vm1026, %v4556, 0
        %v4610 = vsel %vm1026, %v4557, 0
        %v4613 = vsel %vm1026, %v4558, 0
        %v4616 = vsel %vm1026, %v4559, 0
        %v4619 = vsel %vm1026, %v4560, 0
        %v4622 = vsel %vm1026, %v4561, 0
        %v4625 = vsel %vm1026, %v4562, 0
        %v4628 = vsel %vm1026, %v4563, 0
        %v4631 = vsel %vm1026, %v4564, 0
        %v4634 = vsel %vm1026, %v4565, 0
        %v4637 = vsel %vm1026, %v4566, 0
        %4639 = vmatprep.subr.bf16.mxu0 0
        %4640 = vmatpush1.bf16.msra.mxu0 %v4583
        %4641 = vmatprep.subr.bf16.mxu0 0
        %4642 = vmatpush1.bf16.msra.mxu0 %v4584
        %4643 = vmatprep.subr.bf16.mxu0 0
        %4644 = vmatpush1.bf16.msra.mxu0 %v4585
        %4645 = vmatprep.subr.bf16.mxu0 0
        %4646 = vmatpush1.bf16.msra.mxu0 %v4586
        %4647 = vmatprep.subr.bf16.mxu0 0
        %4648 = vmatpush1.bf16.msra.mxu0 0
        %4649 = vmatprep.subr.bf16.mxu0 0
        %4650 = vmatpush1.bf16.msra.mxu0 0
        %4651 = vmatprep.subr.bf16.mxu0 0
        %4652 = vmatpush1.bf16.msra.mxu0 0
        %4653 = vmatprep.subr.bf16.mxu0 0
        %4654 = vmatpush1.bf16.msra.mxu0 0
        %4655 = vmatprep.subr.bf16.mxu0 0
        %4656 = vmatpush1.bf16.msra.mxu0 0
        %4657 = vmatprep.subr.bf16.mxu0 0
        %4658 = vmatpush1.bf16.msra.mxu0 0
        %4659 = vmatprep.subr.bf16.mxu0 0
        %4660 = vmatpush1.bf16.msra.mxu0 0
        %4661 = vmatprep.subr.bf16.mxu0 0
        %4662 = vmatpush1.bf16.msra.mxu0 0
        %4663 = vmatprep.subr.bf16.mxu0 0
        %4664 = vmatpush1.bf16.msra.mxu0 0
        %4665 = vmatprep.subr.bf16.mxu0 0
        %4666 = vmatpush1.bf16.msra.mxu0 0
        %4667 = vmatprep.subr.bf16.mxu0 0
        %4668 = vmatpush1.bf16.msra.mxu0 0
        %4669 = vmatprep.subr.bf16.mxu0 0
        %4670 = vmatpush1.bf16.msra.mxu0 0
        %4671 = vmatprep.mubr.bf16.mxu0 0
        %4672 = vmatmul.mubr.bf16.gmra.mrb[0].mxu0 %v4592
        %v4673 = vpop.f32.mrb[0].mxu0
        %v4674 = vadd.f32 0.0, %v4673
        %v4675 = vpop.f32.mrb[0].mxu0
        %v4676 = vpop.f32.mrb[0].mxu0
        %v4677 = vadd.f32 0.0, %v4676
        %v4678 = vpop.f32.mrb[0].mxu0
        %4679 = vmatprep.mubr.bf16.mxu0 0
        %4680 = vmatmul.mubr.bf16.gmra.mrb[0].mxu0 %v4595
        %v4681 = vpop.f32.mrb[0].mxu0
        %v4682 = vadd.f32 0.0, %v4681
        %v4683 = vpop.f32.mrb[0].mxu0
        %v4684 = vpop.f32.mrb[0].mxu0
        %v4685 = vadd.f32 0.0, %v4684
        %v4686 = vpop.f32.mrb[0].mxu0
        %4687 = vmatprep.mubr.bf16.mxu0 0
        %4688 = vmatmul.mubr.bf16.gmra.mrb[0].mxu0 %v4598
        %v4689 = vpop.f32.mrb[0].mxu0
        %v4690 = vadd.f32 0.0, %v4689
        %v4691 = vpop.f32.mrb[0].mxu0
        %v4692 = vpop.f32.mrb[0].mxu0
        %v4693 = vadd.f32 0.0, %v4692
        %v4694 = vpop.f32.mrb[0].mxu0
        %4695 = vmatprep.mubr.bf16.mxu0 0
        %4696 = vmatmul.mubr.bf16.gmra.mrb[0].mxu0 %v4601
        %v4697 = vpop.f32.mrb[0].mxu0
        %v4698 = vadd.f32 0.0, %v4697
        %v4699 = vpop.f32.mrb[0].mxu0
        %v4700 = vpop.f32.mrb[0].mxu0
        %v4701 = vadd.f32 0.0, %v4700
        %v4702 = vpop.f32.mrb[0].mxu0
        %4703 = vmatprep.mubr.bf16.mxu0 0
        %4704 = vmatmul.mubr.bf16.gmra.mrb[0].mxu0 %v4604
        %v4705 = vpop.f32.mrb[0].mxu0
        %v4706 = vadd.f32 0.0, %v4705
        %v4707 = vpop.f32.mrb[0].mxu0
        %v4708 = vpop.f32.mrb[0].mxu0
        %v4709 = vadd.f32 0.0, %v4708
        %v4710 = vpop.f32.mrb[0].mxu0
        %4711 = vmatprep.mubr.bf16.mxu0 0
        %4712 = vmatmul.mubr.bf16.gmra.mrb[0].mxu0 %v4607
        %v4713 = vpop.f32.mrb[0].mxu0
        %v4714 = vadd.f32 0.0, %v4713
        %v4715 = vpop.f32.mrb[0].mxu0
        %v4716 = vpop.f32.mrb[0].mxu0
        %v4717 = vadd.f32 0.0, %v4716
        %v4718 = vpop.f32.mrb[0].mxu0
        %4719 = vmatprep.mubr.bf16.mxu0 0
        %4720 = vmatmul.mubr.bf16.gmra.mrb[0].mxu0 %v4610
        %v4721 = vpop.f32.mrb[0].mxu0
        %v4722 = vadd.f32 0.0, %v4721
        %v4723 = vpop.f32.mrb[0].mxu0
        %v4724 = vpop.f32.mrb[0].mxu0
        %v4725 = vadd.f32 0.0, %v4724
        %v4726 = vpop.f32.mrb[0].mxu0
        %4727 = vmatprep.mubr.bf16.mxu0 0
        %4728 = vmatmul.mubr.bf16.gmra.mrb[0].mxu0 %v4613
        %v4729 = vpop.f32.mrb[0].mxu0
        %v4730 = vadd.f32 0.0, %v4729
        %v4731 = vpop.f32.mrb[0].mxu0
        %v4732 = vpop.f32.mrb[0].mxu0
        %v4733 = vadd.f32 0.0, %v4732
        %v4734 = vpop.f32.mrb[0].mxu0
        %4735 = vmatprep.mubr.bf16.mxu0 0
        %4736 = vmatmul.mubr.bf16.gmra.mrb[0].mxu0 %v4616
        %v4737 = vpop.f32.mrb[0].mxu0
        %v4738 = vadd.f32 0.0, %v4737
        %v4739 = vpop.f32.mrb[0].mxu0
        %v4740 = vpop.f32.mrb[0].mxu0
        %v4741 = vadd.f32 0.0, %v4740
        %v4742 = vpop.f32.mrb[0].mxu0
        %4743 = vmatprep.mubr.bf16.mxu0 0
        %4744 = vmatmul.mubr.bf16.gmra.mrb[0].mxu0 %v4619
        %v4745 = vpop.f32.mrb[0].mxu0
        %v4746 = vadd.f32 0.0, %v4745
        %v4747 = vpop.f32.mrb[0].mxu0
        %v4748 = vpop.f32.mrb[0].mxu0
        %v4749 = vadd.f32 0.0, %v4748
        %v4750 = vpop.f32.mrb[0].mxu0
        %4751 = vmatprep.mubr.bf16.mxu0 0
        %4752 = vmatmul.mubr.bf16.gmra.mrb[0].mxu0 %v4622
        %v4753 = vpop.f32.mrb[0].mxu0
        %v4754 = vadd.f32 0.0, %v4753
        %v4755 = vpop.f32.mrb[0].mxu0
        %v4756 = vpop.f32.mrb[0].mxu0
        %v4757 = vadd.f32 0.0, %v4756
        %v4758 = vpop.f32.mrb[0].mxu0
        %4759 = vmatprep.mubr.bf16.mxu0 0
        %4760 = vmatmul.mubr.bf16.gmra.mrb[0].mxu0 %v4625
        %v4761 = vpop.f32.mrb[0].mxu0
        %v4762 = vadd.f32 0.0, %v4761
        %v4763 = vpop.f32.mrb[0].mxu0
        %v4764 = vpop.f32.mrb[0].mxu0
        %v4765 = vadd.f32 0.0, %v4764
        %v4766 = vpop.f32.mrb[0].mxu0
        %4767 = vmatprep.mubr.bf16.mxu0 0
        %4768 = vmatmul.mubr.bf16.gmra.mrb[0].mxu0 %v4628
        %v4769 = vpop.f32.mrb[0].mxu0
        %v4770 = vadd.f32 0.0, %v4769
        %v4771 = vpop.f32.mrb[0].mxu0
        %v4772 = vpop.f32.mrb[0].mxu0
        %v4773 = vadd.f32 0.0, %v4772
        %v4774 = vpop.f32.mrb[0].mxu0
        %4775 = vmatprep.mubr.bf16.mxu0 0
        %4776 = vmatmul.mubr.bf16.gmra.mrb[0].mxu0 %v4631
        %v4777 = vpop.f32.mrb[0].mxu0
        %v4778 = vadd.f32 0.0, %v4777
        %v4779 = vpop.f32.mrb[0].mxu0
        %v4780 = vpop.f32.mrb[0].mxu0
        %v4781 = vadd.f32 0.0, %v4780
        %v4782 = vpop.f32.mrb[0].mxu0
        %4783 = vmatprep.mubr.bf16.mxu0 0
        %4784 = vmatmul.mubr.bf16.gmra.mrb[0].mxu0 %v4634
        %v4785 = vpop.f32.mrb[0].mxu0
        %v4786 = vadd.f32 0.0, %v4785
        %v4787 = vpop.f32.mrb[0].mxu0
        %v4788 = vpop.f32.mrb[0].mxu0
        %v4789 = vadd.f32 0.0, %v4788
        %v4790 = vpop.f32.mrb[0].mxu0
        %4791 = vmatprep.mubr.bf16.mxu0 0
        %4792 = vmatmul.mubr.bf16.gmra.mrb[0].mxu0 %v4637
        %v4793 = vpop.f32.mrb[0].mxu0
        %v4794 = vadd.f32 0.0, %v4793
        %v4795 = vpop.f32.mrb[0].mxu0
        %v4796 = vpop.f32.mrb[0].mxu0
        %v4797 = vadd.f32 0.0, %v4796
        %v4798 = vpop.f32.mrb[0].mxu0
        %4799 = vdwg.mxu0
        %v4800 = vadd.f32 %v4043, %v4674
        %v4801 = vadd.f32 %v4044, %v4677
        %v4802 = vadd.f32 %v4045, %v4682
        %v4803 = vadd.f32 %v4046, %v4685
        %v4804 = vadd.f32 %v4047, %v4690
        %v4805 = vadd.f32 %v4048, %v4693
        %v4806 = vadd.f32 %v4049, %v4698
        %v4807 = vadd.f32 %v4050, %v4701
        %v4808 = vadd.f32 %v4051, %v4706
        %v4809 = vadd.f32 %v4052, %v4709
        %v4810 = vadd.f32 %v4053, %v4714
        %v4811 = vadd.f32 %v4054, %v4717
        %v4812 = vadd.f32 %v4055, %v4722
        %v4813 = vadd.f32 %v4056, %v4725
        %v4814 = vadd.f32 %v4057, %v4730
        %v4815 = vadd.f32 %v4058, %v4733
        %v4816 = vadd.f32 %v4059, %v4738
        %v4817 = vadd.f32 %v4060, %v4741
        %v4818 = vadd.f32 %v4061, %v4746
        %v4819 = vadd.f32 %v4062, %v4749
        %v4820 = vadd.f32 %v4063, %v4754
        %v4821 = vadd.f32 %v4064, %v4757
        %v4822 = vadd.f32 %v4065, %v4762
        %v4823 = vadd.f32 %v4066, %v4765
        %v4824 = vadd.f32 %v4067, %v4770
        %v4825 = vadd.f32 %v4068, %v4773
        %v4826 = vadd.f32 %v4069, %v4778
        %v4827 = vadd.f32 %v4070, %v4781
        %v4828 = vadd.f32 %v4071, %v4786
        %v4829 = vadd.f32 %v4072, %v4789
        %v4830 = vadd.f32 %v4073, %v4794
        %v4831 = vadd.f32 %v4074, %v4797
        %v4832 = vld [vmem:[%s3685] sm:$0xe]
        %v4833 = vld [vmem:[%s3685 + $0xc] sm:$0xe]
        %v4834 = vld [vmem:[%s3685 + $0x18] sm:$0xe]
        %v4835 = vld [vmem:[%s3685 + $0x24] sm:$0xe]
        %v4836 = vld [vmem:[%s3685 + $0x30] sm:$0xe]
        %v4837 = vld [vmem:[%s3685 + $0x3c] sm:$0xe]
        %v4838 = vld [vmem:[%s3685 + $0x48] sm:$0xe]
        %v4839 = vld [vmem:[%s3685 + $0x54] sm:$0xe]
        %v4840 = vld [vmem:[%s3685 + $0x60] sm:$0xe]
        %v4841 = vld [vmem:[%s3685 + $0x6c] sm:$0xe]
        %v4842 = vld [vmem:[%s3685 + $0x78] sm:$0xe]
        %v4843 = vld [vmem:[%s3685 + $0x84] sm:$0xe]
        %v4844 = vld [vmem:[%s3685 + $0x90] sm:$0xe]
        %v4845 = vld [vmem:[%s3685 + $0x9c] sm:$0xe]
        %v4846 = vld [vmem:[%s3685 + $0xa8] sm:$0xe]
        %v4847 = vld [vmem:[%s3685 + $0xb4] sm:$0xe]
        %v4896 = vrot.slane %v4832, 5
        %v4897 = vrot.slane %v4896, 4
        %v4898 = vrot.slane %v4076, 5
        %v4899 = vsel %vm1599, %v4897, %v4898
        %v4900 = vrot.slane %v4898, 4
        %v4901 = vrot.slane %v4077, 5
        %v4902 = vsel %vm1599, %v4900, %v4901
        %v4903 = vrot.slane %v4833, 5
        %v4904 = vrot.slane %v4903, 4
        %v4905 = vrot.slane %v4079, 5
        %v4906 = vsel %vm1599, %v4904, %v4905
        %v4907 = vrot.slane %v4905, 4
        %v4908 = vrot.slane %v4080, 5
        %v4909 = vsel %vm1599, %v4907, %v4908
        %v4910 = vrot.slane %v4834, 5
        %v4911 = vrot.slane %v4910, 4
        %v4912 = vrot.slane %v4082, 5
        %v4913 = vsel %vm1599, %v4911, %v4912
        %v4914 = vrot.slane %v4912, 4
        %v4915 = vrot.slane %v4083, 5
        %v4916 = vsel %vm1599, %v4914, %v4915
        %v4917 = vrot.slane %v4835, 5
        %v4918 = vrot.slane %v4917, 4
        %v4919 = vrot.slane %v4085, 5
        %v4920 = vsel %vm1599, %v4918, %v4919
        %v4921 = vrot.slane %v4919, 4
        %v4922 = vrot.slane %v4086, 5
        %v4923 = vsel %vm1599, %v4921, %v4922
        %v4924 = vrot.slane %v4836, 5
        %v4925 = vrot.slane %v4924, 4
        %v4926 = vrot.slane %v4088, 5
        %v4927 = vsel %vm1599, %v4925, %v4926
        %v4928 = vrot.slane %v4926, 4
        %v4929 = vrot.slane %v4089, 5
        %v4930 = vsel %vm1599, %v4928, %v4929
        %v4931 = vrot.slane %v4837, 5
        %v4932 = vrot.slane %v4931, 4
        %v4933 = vrot.slane %v4091, 5
        %v4934 = vsel %vm1599, %v4932, %v4933
        %v4935 = vrot.slane %v4933, 4
        %v4936 = vrot.slane %v4092, 5
        %v4937 = vsel %vm1599, %v4935, %v4936
        %v4938 = vrot.slane %v4838, 5
        %v4939 = vrot.slane %v4938, 4
        %v4940 = vrot.slane %v4094, 5
        %v4941 = vsel %vm1599, %v4939, %v4940
        %v4942 = vrot.slane %v4940, 4
        %v4943 = vrot.slane %v4095, 5
        %v4944 = vsel %vm1599, %v4942, %v4943
        %v4945 = vrot.slane %v4839, 5
        %v4946 = vrot.slane %v4945, 4
        %v4947 = vrot.slane %v4097, 5
        %v4948 = vsel %vm1599, %v4946, %v4947
        %v4949 = vrot.slane %v4947, 4
        %v4950 = vrot.slane %v4098, 5
        %v4951 = vsel %vm1599, %v4949, %v4950
        %v4952 = vrot.slane %v4840, 5
        %v4953 = vrot.slane %v4952, 4
        %v4954 = vrot.slane %v4100, 5
        %v4955 = vsel %vm1599, %v4953, %v4954
        %v4956 = vrot.slane %v4954, 4
        %v4957 = vrot.slane %v4101, 5
        %v4958 = vsel %vm1599, %v4956, %v4957
        %v4959 = vrot.slane %v4841, 5
        %v4960 = vrot.slane %v4959, 4
        %v4961 = vrot.slane %v4103, 5
        %v4962 = vsel %vm1599, %v4960, %v4961
        %v4963 = vrot.slane %v4961, 4
        %v4964 = vrot.slane %v4104, 5
        %v4965 = vsel %vm1599, %v4963, %v4964
        %v4966 = vrot.slane %v4842, 5
        %v4967 = vrot.slane %v4966, 4
        %v4968 = vrot.slane %v4106, 5
        %v4969 = vsel %vm1599, %v4967, %v4968
        %v4970 = vrot.slane %v4968, 4
        %v4971 = vrot.slane %v4107, 5
        %v4972 = vsel %vm1599, %v4970, %v4971
        %v4973 = vrot.slane %v4843, 5
        %v4974 = vrot.slane %v4973, 4
        %v4975 = vrot.slane %v4109, 5
        %v4976 = vsel %vm1599, %v4974, %v4975
        %v4977 = vrot.slane %v4975, 4
        %v4978 = vrot.slane %v4110, 5
        %v4979 = vsel %vm1599, %v4977, %v4978
        %v4980 = vrot.slane %v4844, 5
        %v4981 = vrot.slane %v4980, 4
        %v4982 = vrot.slane %v4112, 5
        %v4983 = vsel %vm1599, %v4981, %v4982
        %v4984 = vrot.slane %v4982, 4
        %v4985 = vrot.slane %v4113, 5
        %v4986 = vsel %vm1599, %v4984, %v4985
        %v4987 = vrot.slane %v4845, 5
        %v4988 = vrot.slane %v4987, 4
        %v4989 = vrot.slane %v4115, 5
        %v4990 = vsel %vm1599, %v4988, %v4989
        %v4991 = vrot.slane %v4989, 4
        %v4992 = vrot.slane %v4116, 5
        %v4993 = vsel %vm1599, %v4991, %v4992
        %v4994 = vrot.slane %v4846, 5
        %v4995 = vrot.slane %v4994, 4
        %v4996 = vrot.slane %v4118, 5
        %v4997 = vsel %vm1599, %v4995, %v4996
        %v4998 = vrot.slane %v4996, 4
        %v4999 = vrot.slane %v4119, 5
        %v5000 = vsel %vm1599, %v4998, %v4999
        %v5001 = vrot.slane %v4847, 5
        %v5002 = vrot.slane %v5001, 4
        %v5003 = vrot.slane %v4121, 5
        %v5004 = vsel %vm1599, %v5002, %v5003
        %v5005 = vrot.slane %v5003, 4
        %v5006 = vrot.slane %v4122, 5
        %v5007 = vsel %vm1599, %v5005, %v5006
        %s5008 = sadd.s32 %s527, 8
        %s5009 = smul.u32 %s5008, 8
        %s5010 = smul.addr %s5009, 4
        %s5011 = scalar_lea.vmem %s1, %s5010
        %v5012 = vld [vmem:[%s5011] sm:$0xf]
        %v5013 = vld [vmem:[%s5011 + $0x4] sm:$0xf]
        %v5014 = vld [vmem:[%s5011 + $0x8] sm:$0xf]
        %v5015 = vld [vmem:[%s5011 + $0xc] sm:$0xf]
        %v5016 = vld [vmem:[%s5011 + $0x10] sm:$0xf]
        %v5017 = vld [vmem:[%s5011 + $0x14] sm:$0xf]
        %v5018 = vld [vmem:[%s5011 + $0x18] sm:$0xf]
        %v5019 = vld [vmem:[%s5011 + $0x1c] sm:$0xf]
        %v5020 = vunpack.c.l.b16 %v4899
        %v5021 = vunpack.c.l.b16 %v4902
        %v5022 = vunpack.c.l.b16 %v4906
        %v5023 = vunpack.c.l.b16 %v4909
        %v5024 = vunpack.c.l.b16 %v4913
        %v5025 = vunpack.c.l.b16 %v4916
        %v5026 = vunpack.c.l.b16 %v4920
        %v5027 = vunpack.c.l.b16 %v4923
        %v5028 = vunpack.c.l.b16 %v4927
        %v5029 = vunpack.c.l.b16 %v4930
        %v5030 = vunpack.c.l.b16 %v4934
        %v5031 = vunpack.c.l.b16 %v4937
        %v5032 = vunpack.c.l.b16 %v4941
        %v5033 = vunpack.c.l.b16 %v4944
        %v5034 = vunpack.c.l.b16 %v4948
        %v5035 = vunpack.c.l.b16 %v4951
        %v5036 = vunpack.c.l.b16 %v4955
        %v5037 = vunpack.c.l.b16 %v4958
        %v5038 = vunpack.c.l.b16 %v4962
        %v5039 = vunpack.c.l.b16 %v4965
        %v5040 = vunpack.c.l.b16 %v4969
        %v5041 = vunpack.c.l.b16 %v4972
        %v5042 = vunpack.c.l.b16 %v4976
        %v5043 = vunpack.c.l.b16 %v4979
        %v5044 = vunpack.c.l.b16 %v4983
        %v5045 = vunpack.c.l.b16 %v4986
        %v5046 = vunpack.c.l.b16 %v4990
        %v5047 = vunpack.c.l.b16 %v4993
        %v5048 = vunpack.c.l.b16 %v4997
        %v5049 = vunpack.c.l.b16 %v5000
        %v5050 = vunpack.c.l.b16 %v5004
        %v5051 = vunpack.c.l.b16 %v5007
        %v5052 = vpack.c.b16 %v5021, %v5020
        %v5053 = vpack.c.b16 %v5023, %v5022
        %v5054 = vpack.c.b16 %v5025, %v5024
        %v5055 = vpack.c.b16 %v5027, %v5026
        %v5056 = vpack.c.b16 %v5029, %v5028
        %v5057 = vpack.c.b16 %v5031, %v5030
        %v5058 = vpack.c.b16 %v5033, %v5032
        %v5059 = vpack.c.b16 %v5035, %v5034
        %v5060 = vpack.c.b16 %v5037, %v5036
        %v5061 = vpack.c.b16 %v5039, %v5038
        %v5062 = vpack.c.b16 %v5041, %v5040
        %v5063 = vpack.c.b16 %v5043, %v5042
        %v5064 = vpack.c.b16 %v5045, %v5044
        %v5065 = vpack.c.b16 %v5047, %v5046
        %v5066 = vpack.c.b16 %v5049, %v5048
        %v5067 = vpack.c.b16 %v5051, %v5050
        %v5076 = vunpack.c.l.b16 %v5012
        %v5077 = vunpack.c.l.b16 %v5013
        %v5078 = vunpack.c.l.b16 %v5014
        %v5079 = vunpack.c.l.b16 %v5015
        %v5080 = vunpack.c.l.b16 %v5016
        %v5081 = vunpack.c.l.b16 %v5017
        %v5082 = vunpack.c.l.b16 %v5018
        %v5083 = vunpack.c.l.b16 %v5019
        %v5084 = vpack.c.b16 %v5077, %v5076
        %v5085 = vpack.c.b16 %v5079, %v5078
        %v5086 = vpack.c.b16 %v5081, %v5080
        %v5087 = vpack.c.b16 %v5083, %v5082
        %v5093 = vsel %vm1026, %v5052, 0
        %v5096 = vsel %vm1026, %v5053, 0
        %v5099 = vsel %vm1026, %v5054, 0
        %v5102 = vsel %vm1026, %v5055, 0
        %v5105 = vsel %vm1026, %v5056, 0
        %v5108 = vsel %vm1026, %v5057, 0
        %v5111 = vsel %vm1026, %v5058, 0
        %v5114 = vsel %vm1026, %v5059, 0
        %v5117 = vsel %vm1026, %v5060, 0
        %v5120 = vsel %vm1026, %v5061, 0
        %v5123 = vsel %vm1026, %v5062, 0
        %v5126 = vsel %vm1026, %v5063, 0
        %v5129 = vsel %vm1026, %v5064, 0
        %v5132 = vsel %vm1026, %v5065, 0
        %v5135 = vsel %vm1026, %v5066, 0
        %v5138 = vsel %vm1026, %v5067, 0
        %5140 = vmatprep.subr.bf16.mxu0 0
        %5141 = vmatpush1.bf16.msra.mxu0 %v5084
        %5142 = vmatprep.subr.bf16.mxu0 0
        %5143 = vmatpush1.bf16.msra.mxu0 %v5085
        %5144 = vmatprep.subr.bf16.mxu0 0
        %5145 = vmatpush1.bf16.msra.mxu0 %v5086
        %5146 = vmatprep.subr.bf16.mxu0 0
        %5147 = vmatpush1.bf16.msra.mxu0 %v5087
        %5148 = vmatprep.subr.bf16.mxu0 0
        %5149 = vmatpush1.bf16.msra.mxu0 0
        %5150 = vmatprep.subr.bf16.mxu0 0
        %5151 = vmatpush1.bf16.msra.mxu0 0
        %5152 = vmatprep.subr.bf16.mxu0 0
        %5153 = vmatpush1.bf16.msra.mxu0 0
        %5154 = vmatprep.subr.bf16.mxu0 0
        %5155 = vmatpush1.bf16.msra.mxu0 0
        %5156 = vmatprep.subr.bf16.mxu0 0
        %5157 = vmatpush1.bf16.msra.mxu0 0
        %5158 = vmatprep.subr.bf16.mxu0 0
        %5159 = vmatpush1.bf16.msra.mxu0 0
        %5160 = vmatprep.subr.bf16.mxu0 0
        %5161 = vmatpush1.bf16.msra.mxu0 0
        %5162 = vmatprep.subr.bf16.mxu0 0
        %5163 = vmatpush1.bf16.msra.mxu0 0
        %5164 = vmatprep.subr.bf16.mxu0 0
        %5165 = vmatpush1.bf16.msra.mxu0 0
        %5166 = vmatprep.subr.bf16.mxu0 0
        %5167 = vmatpush1.bf16.msra.mxu0 0
        %5168 = vmatprep.subr.bf16.mxu0 0
        %5169 = vmatpush1.bf16.msra.mxu0 0
        %5170 = vmatprep.subr.bf16.mxu0 0
        %5171 = vmatpush1.bf16.msra.mxu0 0
        %5172 = vmatprep.mubr.bf16.mxu0 0
        %5173 = vmatmul.mubr.bf16.gmra.mrb[0].mxu0 %v5093
        %v5174 = vpop.f32.mrb[0].mxu0
        %v5175 = vadd.f32 0.0, %v5174
        %v5176 = vpop.f32.mrb[0].mxu0
        %v5177 = vpop.f32.mrb[0].mxu0
        %v5178 = vadd.f32 0.0, %v5177
        %v5179 = vpop.f32.mrb[0].mxu0
        %5180 = vmatprep.mubr.bf16.mxu0 0
        %5181 = vmatmul.mubr.bf16.gmra.mrb[0].mxu0 %v5096
        %v5182 = vpop.f32.mrb[0].mxu0
        %v5183 = vadd.f32 0.0, %v5182
        %v5184 = vpop.f32.mrb[0].mxu0
        %v5185 = vpop.f32.mrb[0].mxu0
        %v5186 = vadd.f32 0.0, %v5185
        %v5187 = vpop.f32.mrb[0].mxu0
        %5188 = vmatprep.mubr.bf16.mxu0 0
        %5189 = vmatmul.mubr.bf16.gmra.mrb[0].mxu0 %v5099
        %v5190 = vpop.f32.mrb[0].mxu0
        %v5191 = vadd.f32 0.0, %v5190
        %v5192 = vpop.f32.mrb[0].mxu0
        %v5193 = vpop.f32.mrb[0].mxu0
        %v5194 = vadd.f32 0.0, %v5193
        %v5195 = vpop.f32.mrb[0].mxu0
        %5196 = vmatprep.mubr.bf16.mxu0 0
        %5197 = vmatmul.mubr.bf16.gmra.mrb[0].mxu0 %v5102
        %v5198 = vpop.f32.mrb[0].mxu0
        %v5199 = vadd.f32 0.0, %v5198
        %v5200 = vpop.f32.mrb[0].mxu0
        %v5201 = vpop.f32.mrb[0].mxu0
        %v5202 = vadd.f32 0.0, %v5201
        %v5203 = vpop.f32.mrb[0].mxu0
        %5204 = vmatprep.mubr.bf16.mxu0 0
        %5205 = vmatmul.mubr.bf16.gmra.mrb[0].mxu0 %v5105
        %v5206 = vpop.f32.mrb[0].mxu0
        %v5207 = vadd.f32 0.0, %v5206
        %v5208 = vpop.f32.mrb[0].mxu0
        %v5209 = vpop.f32.mrb[0].mxu0
        %v5210 = vadd.f32 0.0, %v5209
        %v5211 = vpop.f32.mrb[0].mxu0
        %5212 = vmatprep.mubr.bf16.mxu0 0
        %5213 = vmatmul.mubr.bf16.gmra.mrb[0].mxu0 %v5108
        %v5214 = vpop.f32.mrb[0].mxu0
        %v5215 = vadd.f32 0.0, %v5214
        %v5216 = vpop.f32.mrb[0].mxu0
        %v5217 = vpop.f32.mrb[0].mxu0
        %v5218 = vadd.f32 0.0, %v5217
        %v5219 = vpop.f32.mrb[0].mxu0
        %5220 = vmatprep.mubr.bf16.mxu0 0
        %5221 = vmatmul.mubr.bf16.gmra.mrb[0].mxu0 %v5111
        %v5222 = vpop.f32.mrb[0].mxu0
        %v5223 = vadd.f32 0.0, %v5222
        %v5224 = vpop.f32.mrb[0].mxu0
        %v5225 = vpop.f32.mrb[0].mxu0
        %v5226 = vadd.f32 0.0, %v5225
        %v5227 = vpop.f32.mrb[0].mxu0
        %5228 = vmatprep.mubr.bf16.mxu0 0
        %5229 = vmatmul.mubr.bf16.gmra.mrb[0].mxu0 %v5114
        %v5230 = vpop.f32.mrb[0].mxu0
        %v5231 = vadd.f32 0.0, %v5230
        %v5232 = vpop.f32.mrb[0].mxu0
        %v5233 = vpop.f32.mrb[0].mxu0
        %v5234 = vadd.f32 0.0, %v5233
        %v5235 = vpop.f32.mrb[0].mxu0
        %5236 = vmatprep.mubr.bf16.mxu0 0
        %5237 = vmatmul.mubr.bf16.gmra.mrb[0].mxu0 %v5117
        %v5238 = vpop.f32.mrb[0].mxu0
        %v5239 = vadd.f32 0.0, %v5238
        %v5240 = vpop.f32.mrb[0].mxu0
        %v5241 = vpop.f32.mrb[0].mxu0
        %v5242 = vadd.f32 0.0, %v5241
        %v5243 = vpop.f32.mrb[0].mxu0
        %5244 = vmatprep.mubr.bf16.mxu0 0
        %5245 = vmatmul.mubr.bf16.gmra.mrb[0].mxu0 %v5120
        %v5246 = vpop.f32.mrb[0].mxu0
        %v5247 = vadd.f32 0.0, %v5246
        %v5248 = vpop.f32.mrb[0].mxu0
        %v5249 = vpop.f32.mrb[0].mxu0
        %v5250 = vadd.f32 0.0, %v5249
        %v5251 = vpop.f32.mrb[0].mxu0
        %5252 = vmatprep.mubr.bf16.mxu0 0
        %5253 = vmatmul.mubr.bf16.gmra.mrb[0].mxu0 %v5123
        %v5254 = vpop.f32.mrb[0].mxu0
        %v5255 = vadd.f32 0.0, %v5254
        %v5256 = vpop.f32.mrb[0].mxu0
        %v5257 = vpop.f32.mrb[0].mxu0
        %v5258 = vadd.f32 0.0, %v5257
        %v5259 = vpop.f32.mrb[0].mxu0
        %5260 = vmatprep.mubr.bf16.mxu0 0
        %5261 = vmatmul.mubr.bf16.gmra.mrb[0].mxu0 %v5126
        %v5262 = vpop.f32.mrb[0].mxu0
        %v5263 = vadd.f32 0.0, %v5262
        %v5264 = vpop.f32.mrb[0].mxu0
        %v5265 = vpop.f32.mrb[0].mxu0
        %v5266 = vadd.f32 0.0, %v5265
        %v5267 = vpop.f32.mrb[0].mxu0
        %5268 = vmatprep.mubr.bf16.mxu0 0
        %5269 = vmatmul.mubr.bf16.gmra.mrb[0].mxu0 %v5129
        %v5270 = vpop.f32.mrb[0].mxu0
        %v5271 = vadd.f32 0.0, %v5270
        %v5272 = vpop.f32.mrb[0].mxu0
        %v5273 = vpop.f32.mrb[0].mxu0
        %v5274 = vadd.f32 0.0, %v5273
        %v5275 = vpop.f32.mrb[0].mxu0
        %5276 = vmatprep.mubr.bf16.mxu0 0
        %5277 = vmatmul.mubr.bf16.gmra.mrb[0].mxu0 %v5132
        %v5278 = vpop.f32.mrb[0].mxu0
        %v5279 = vadd.f32 0.0, %v5278
        %v5280 = vpop.f32.mrb[0].mxu0
        %v5281 = vpop.f32.mrb[0].mxu0
        %v5282 = vadd.f32 0.0, %v5281
        %v5283 = vpop.f32.mrb[0].mxu0
        %5284 = vmatprep.mubr.bf16.mxu0 0
        %5285 = vmatmul.mubr.bf16.gmra.mrb[0].mxu0 %v5135
        %v5286 = vpop.f32.mrb[0].mxu0
        %v5287 = vadd.f32 0.0, %v5286
        %v5288 = vpop.f32.mrb[0].mxu0
        %v5289 = vpop.f32.mrb[0].mxu0
        %v5290 = vadd.f32 0.0, %v5289
        %v5291 = vpop.f32.mrb[0].mxu0
        %5292 = vmatprep.mubr.bf16.mxu0 0
        %5293 = vmatmul.mubr.bf16.gmra.mrb[0].mxu0 %v5138
        %v5294 = vpop.f32.mrb[0].mxu0
        %v5295 = vadd.f32 0.0, %v5294
        %v5296 = vpop.f32.mrb[0].mxu0
        %v5297 = vpop.f32.mrb[0].mxu0
        %v5298 = vadd.f32 0.0, %v5297
        %v5299 = vpop.f32.mrb[0].mxu0
        %5300 = vdwg.mxu0
        %v5301 = vadd.f32 %v4800, %v5175
        %v5302 = vadd.f32 %v4801, %v5178
        %v5303 = vadd.f32 %v4802, %v5183
        %v5304 = vadd.f32 %v4803, %v5186
        %v5305 = vadd.f32 %v4804, %v5191
        %v5306 = vadd.f32 %v4805, %v5194
        %v5307 = vadd.f32 %v4806, %v5199
        %v5308 = vadd.f32 %v4807, %v5202
        %v5309 = vadd.f32 %v4808, %v5207
        %v5310 = vadd.f32 %v4809, %v5210
        %v5311 = vadd.f32 %v4810, %v5215
        %v5312 = vadd.f32 %v4811, %v5218
        %v5313 = vadd.f32 %v4812, %v5223
        %v5314 = vadd.f32 %v4813, %v5226
        %v5315 = vadd.f32 %v4814, %v5231
        %v5316 = vadd.f32 %v4815, %v5234
        %v5317 = vadd.f32 %v4816, %v5239
        %v5318 = vadd.f32 %v4817, %v5242
        %v5319 = vadd.f32 %v4818, %v5247
        %v5320 = vadd.f32 %v4819, %v5250
        %v5321 = vadd.f32 %v4820, %v5255
        %v5322 = vadd.f32 %v4821, %v5258
        %v5323 = vadd.f32 %v4822, %v5263
        %v5324 = vadd.f32 %v4823, %v5266
        %v5325 = vadd.f32 %v4824, %v5271
        %v5326 = vadd.f32 %v4825, %v5274
        %v5327 = vadd.f32 %v4826, %v5279
        %v5328 = vadd.f32 %v4827, %v5282
        %v5329 = vadd.f32 %v4828, %v5287
        %v5330 = vadd.f32 %v4829, %v5290
        %v5331 = vadd.f32 %v4830, %v5295
        %v5332 = vadd.f32 %v4831, %v5298
        %v5333 = vmax.f32 %v5301, 0.0
        %v5334 = vmax.f32 %v5302, 0.0
        %v5335 = vmax.f32 %v5303, 0.0
        %v5336 = vmax.f32 %v5304, 0.0
        %v5337 = vmax.f32 %v5305, 0.0
        %v5338 = vmax.f32 %v5306, 0.0
        %v5339 = vmax.f32 %v5307, 0.0
        %v5340 = vmax.f32 %v5308, 0.0
        %v5341 = vmax.f32 %v5309, 0.0
        %v5342 = vmax.f32 %v5310, 0.0
        %v5343 = vmax.f32 %v5311, 0.0
        %v5344 = vmax.f32 %v5312, 0.0
        %v5345 = vmax.f32 %v5313, 0.0
        %v5346 = vmax.f32 %v5314, 0.0
        %v5347 = vmax.f32 %v5315, 0.0
        %v5348 = vmax.f32 %v5316, 0.0
        %v5349 = vmax.f32 %v5317, 0.0
        %v5350 = vmax.f32 %v5318, 0.0
        %v5351 = vmax.f32 %v5319, 0.0
        %v5352 = vmax.f32 %v5320, 0.0
        %v5353 = vmax.f32 %v5321, 0.0
        %v5354 = vmax.f32 %v5322, 0.0
        %v5355 = vmax.f32 %v5323, 0.0
        %v5356 = vmax.f32 %v5324, 0.0
        %v5357 = vmax.f32 %v5325, 0.0
        %v5358 = vmax.f32 %v5326, 0.0
        %v5359 = vmax.f32 %v5327, 0.0
        %v5360 = vmax.f32 %v5328, 0.0
        %v5361 = vmax.f32 %v5329, 0.0
        %v5362 = vmax.f32 %v5330, 0.0
        %v5363 = vmax.f32 %v5331, 0.0
        %v5364 = vmax.f32 %v5332, 0.0
        %v5365 = vpack.c.bf16 %v5334, %v5333
        %v5366 = vpack.c.bf16 %v5336, %v5335
        %v5367 = vpack.c.bf16 %v5338, %v5337
        %v5368 = vpack.c.bf16 %v5340, %v5339
        %v5369 = vpack.c.bf16 %v5342, %v5341
        %v5370 = vpack.c.bf16 %v5344, %v5343
        %v5371 = vpack.c.bf16 %v5346, %v5345
        %v5372 = vpack.c.bf16 %v5348, %v5347
        %v5373 = vpack.c.bf16 %v5350, %v5349
        %v5374 = vpack.c.bf16 %v5352, %v5351
        %v5375 = vpack.c.bf16 %v5354, %v5353
        %v5376 = vpack.c.bf16 %v5356, %v5355
        %v5377 = vpack.c.bf16 %v5358, %v5357
        %v5378 = vpack.c.bf16 %v5360, %v5359
        %v5379 = vpack.c.bf16 %v5362, %v5361
        %v5380 = vpack.c.bf16 %v5364, %v5363
        %v5397 = vunpack.c.l.b16 %v5365
        %v5398 = vunpack.c.h.b16 %v5365
        %v5399 = vunpack.c.l.b16 %v5366
        %v5400 = vunpack.c.h.b16 %v5366
        %v5401 = vunpack.c.l.b16 %v5367
        %v5402 = vunpack.c.h.b16 %v5367
        %v5403 = vunpack.c.l.b16 %v5368
        %v5404 = vunpack.c.h.b16 %v5368
        %v5405 = vunpack.c.l.b16 %v5369
        %v5406 = vunpack.c.h.b16 %v5369
        %v5407 = vunpack.c.l.b16 %v5370
        %v5408 = vunpack.c.h.b16 %v5370
        %v5409 = vunpack.c.l.b16 %v5371
        %v5410 = vunpack.c.h.b16 %v5371
        %v5411 = vunpack.c.l.b16 %v5372
        %v5412 = vunpack.c.h.b16 %v5372
        %v5413 = vunpack.c.l.b16 %v5373
        %v5414 = vunpack.c.h.b16 %v5373
        %v5415 = vunpack.c.l.b16 %v5374
        %v5416 = vunpack.c.h.b16 %v5374
        %v5417 = vunpack.c.l.b16 %v5375
        %v5418 = vunpack.c.h.b16 %v5375
        %v5419 = vunpack.c.l.b16 %v5376
        %v5420 = vunpack.c.h.b16 %v5376
        %v5421 = vunpack.c.l.b16 %v5377
        %v5422 = vunpack.c.h.b16 %v5377
        %v5423 = vunpack.c.l.b16 %v5378
        %v5424 = vunpack.c.h.b16 %v5378
        %v5425 = vunpack.c.l.b16 %v5379
        %v5426 = vunpack.c.h.b16 %v5379
        %v5427 = vunpack.c.l.b16 %v5380
        %v5428 = vunpack.c.h.b16 %v5380
        %v5429 = vpack.c.b16 %v5397, %v5397
        %v5430 = vpack.c.b16 %v5398, %v5398
        %v5431 = vpack.c.b16 %v5399, %v5399
        %v5432 = vpack.c.b16 %v5400, %v5400
        %v5433 = vpack.c.b16 %v5401, %v5401
        %v5434 = vpack.c.b16 %v5402, %v5402
        %v5435 = vpack.c.b16 %v5403, %v5403
        %v5436 = vpack.c.b16 %v5404, %v5404
        %v5437 = vpack.c.b16 %v5405, %v5405
        %v5438 = vpack.c.b16 %v5406, %v5406
        %v5439 = vpack.c.b16 %v5407, %v5407
        %v5440 = vpack.c.b16 %v5408, %v5408
        %v5441 = vpack.c.b16 %v5409, %v5409
        %v5442 = vpack.c.b16 %v5410, %v5410
        %v5443 = vpack.c.b16 %v5411, %v5411
        %v5444 = vpack.c.b16 %v5412, %v5412
        %v5445 = vpack.c.b16 %v5413, %v5413
        %v5446 = vpack.c.b16 %v5414, %v5414
        %v5447 = vpack.c.b16 %v5415, %v5415
        %v5448 = vpack.c.b16 %v5416, %v5416
        %v5449 = vpack.c.b16 %v5417, %v5417
        %v5450 = vpack.c.b16 %v5418, %v5418
        %v5451 = vpack.c.b16 %v5419, %v5419
        %v5452 = vpack.c.b16 %v5420, %v5420
        %v5453 = vpack.c.b16 %v5421, %v5421
        %v5454 = vpack.c.b16 %v5422, %v5422
        %v5455 = vpack.c.b16 %v5423, %v5423
        %v5456 = vpack.c.b16 %v5424, %v5424
        %v5457 = vpack.c.b16 %v5425, %v5425
        %v5458 = vpack.c.b16 %v5426, %v5426
        %v5459 = vpack.c.b16 %v5427, %v5427
        %v5460 = vpack.c.b16 %v5428, %v5428
        %vm5461 = vsmask.f32 256
        %vm5462 = vsmask.f32 4368
        %vm5463 = vmor %vm5461, %vm5462
        %v5465 = vshrl.u32 %v5429, 16
        %v5467 = vrot.slane %v5465, 7
        %v5468 = vshll.u32 %v5429, 16
        %v5470 = vor.u32 %v5467, %v5468
        %v5471 = vrot.slane %v5467, 4
        %v5473 = vshrl.u32 %v5430, 16
        %v5475 = vrot.slane %v5473, 7
        %v5476 = vshll.u32 %v5430, 16
        %v5478 = vor.u32 %v5475, %v5476
        %v5479 = vsel %vm5463, %v5471, %v5478
        %v5480 = vrot.slane %v5475, 4
        %v5482 = vshrl.u32 %v5431, 16
        %v5484 = vrot.slane %v5482, 7
        %v5485 = vshll.u32 %v5431, 16
        %v5487 = vor.u32 %v5484, %v5485
        %v5488 = vrot.slane %v5484, 4
        %v5490 = vshrl.u32 %v5432, 16
        %v5492 = vrot.slane %v5490, 7
        %v5493 = vshll.u32 %v5432, 16
        %v5495 = vor.u32 %v5492, %v5493
        %v5496 = vsel %vm5463, %v5488, %v5495
        %v5497 = vrot.slane %v5492, 4
        %v5499 = vshrl.u32 %v5433, 16
        %v5501 = vrot.slane %v5499, 7
        %v5502 = vshll.u32 %v5433, 16
        %v5504 = vor.u32 %v5501, %v5502
        %v5505 = vrot.slane %v5501, 4
        %v5507 = vshrl.u32 %v5434, 16
        %v5509 = vrot.slane %v5507, 7
        %v5510 = vshll.u32 %v5434, 16
        %v5512 = vor.u32 %v5509, %v5510
        %v5513 = vsel %vm5463, %v5505, %v5512
        %v5514 = vrot.slane %v5509, 4
        %v5516 = vshrl.u32 %v5435, 16
        %v5518 = vrot.slane %v5516, 7
        %v5519 = vshll.u32 %v5435, 16
        %v5521 = vor.u32 %v5518, %v5519
        %v5522 = vrot.slane %v5518, 4
        %v5524 = vshrl.u32 %v5436, 16
        %v5526 = vrot.slane %v5524, 7
        %v5527 = vshll.u32 %v5436, 16
        %v5529 = vor.u32 %v5526, %v5527
        %v5530 = vsel %vm5463, %v5522, %v5529
        %v5531 = vrot.slane %v5526, 4
        %v5533 = vshrl.u32 %v5437, 16
        %v5535 = vrot.slane %v5533, 7
        %v5536 = vshll.u32 %v5437, 16
        %v5538 = vor.u32 %v5535, %v5536
        %v5539 = vrot.slane %v5535, 4
        %v5541 = vshrl.u32 %v5438, 16
        %v5543 = vrot.slane %v5541, 7
        %v5544 = vshll.u32 %v5438, 16
        %v5546 = vor.u32 %v5543, %v5544
        %v5547 = vsel %vm5463, %v5539, %v5546
        %v5548 = vrot.slane %v5543, 4
        %v5550 = vshrl.u32 %v5439, 16
        %v5552 = vrot.slane %v5550, 7
        %v5553 = vshll.u32 %v5439, 16
        %v5555 = vor.u32 %v5552, %v5553
        %v5556 = vrot.slane %v5552, 4
        %v5558 = vshrl.u32 %v5440, 16
        %v5560 = vrot.slane %v5558, 7
        %v5561 = vshll.u32 %v5440, 16
        %v5563 = vor.u32 %v5560, %v5561
        %v5564 = vsel %vm5463, %v5556, %v5563
        %v5565 = vrot.slane %v5560, 4
        %v5567 = vshrl.u32 %v5441, 16
        %v5569 = vrot.slane %v5567, 7
        %v5570 = vshll.u32 %v5441, 16
        %v5572 = vor.u32 %v5569, %v5570
        %v5573 = vrot.slane %v5569, 4
        %v5575 = vshrl.u32 %v5442, 16
        %v5577 = vrot.slane %v5575, 7
        %v5578 = vshll.u32 %v5442, 16
        %v5580 = vor.u32 %v5577, %v5578
        %v5581 = vsel %vm5463, %v5573, %v5580
        %v5582 = vrot.slane %v5577, 4
        %v5584 = vshrl.u32 %v5443, 16
        %v5586 = vrot.slane %v5584, 7
        %v5587 = vshll.u32 %v5443, 16
        %v5589 = vor.u32 %v5586, %v5587
        %v5590 = vrot.slane %v5586, 4
        %v5592 = vshrl.u32 %v5444, 16
        %v5594 = vrot.slane %v5592, 7
        %v5595 = vshll.u32 %v5444, 16
        %v5597 = vor.u32 %v5594, %v5595
        %v5598 = vsel %vm5463, %v5590, %v5597
        %v5599 = vrot.slane %v5594, 4
        %v5601 = vshrl.u32 %v5445, 16
        %v5603 = vrot.slane %v5601, 7
        %v5604 = vshll.u32 %v5445, 16
        %v5606 = vor.u32 %v5603, %v5604
        %v5607 = vrot.slane %v5603, 4
        %v5609 = vshrl.u32 %v5446, 16
        %v5611 = vrot.slane %v5609, 7
        %v5612 = vshll.u32 %v5446, 16
        %v5614 = vor.u32 %v5611, %v5612
        %v5615 = vsel %vm5463, %v5607, %v5614
        %v5616 = vrot.slane %v5611, 4
        %v5618 = vshrl.u32 %v5447, 16
        %v5620 = vrot.slane %v5618, 7
        %v5621 = vshll.u32 %v5447, 16
        %v5623 = vor.u32 %v5620, %v5621
        %v5624 = vrot.slane %v5620, 4
        %v5626 = vshrl.u32 %v5448, 16
        %v5628 = vrot.slane %v5626, 7
        %v5629 = vshll.u32 %v5448, 16
        %v5631 = vor.u32 %v5628, %v5629
        %v5632 = vsel %vm5463, %v5624, %v5631
        %v5633 = vrot.slane %v5628, 4
        %v5635 = vshrl.u32 %v5449, 16
        %v5637 = vrot.slane %v5635, 7
        %v5638 = vshll.u32 %v5449, 16
        %v5640 = vor.u32 %v5637, %v5638
        %v5641 = vrot.slane %v5637, 4
        %v5643 = vshrl.u32 %v5450, 16
        %v5645 = vrot.slane %v5643, 7
        %v5646 = vshll.u32 %v5450, 16
        %v5648 = vor.u32 %v5645, %v5646
        %v5649 = vsel %vm5463, %v5641, %v5648
        %v5650 = vrot.slane %v5645, 4
        %v5652 = vshrl.u32 %v5451, 16
        %v5654 = vrot.slane %v5652, 7
        %v5655 = vshll.u32 %v5451, 16
        %v5657 = vor.u32 %v5654, %v5655
        %v5658 = vrot.slane %v5654, 4
        %v5660 = vshrl.u32 %v5452, 16
        %v5662 = vrot.slane %v5660, 7
        %v5663 = vshll.u32 %v5452, 16
        %v5665 = vor.u32 %v5662, %v5663
        %v5666 = vsel %vm5463, %v5658, %v5665
        %v5667 = vrot.slane %v5662, 4
        %v5669 = vshrl.u32 %v5453, 16
        %v5671 = vrot.slane %v5669, 7
        %v5672 = vshll.u32 %v5453, 16
        %v5674 = vor.u32 %v5671, %v5672
        %v5675 = vrot.slane %v5671, 4
        %v5677 = vshrl.u32 %v5454, 16
        %v5679 = vrot.slane %v5677, 7
        %v5680 = vshll.u32 %v5454, 16
        %v5682 = vor.u32 %v5679, %v5680
        %v5683 = vsel %vm5463, %v5675, %v5682
        %v5684 = vrot.slane %v5679, 4
        %v5686 = vshrl.u32 %v5455, 16
        %v5688 = vrot.slane %v5686, 7
        %v5689 = vshll.u32 %v5455, 16
        %v5691 = vor.u32 %v5688, %v5689
        %v5692 = vrot.slane %v5688, 4
        %v5694 = vshrl.u32 %v5456, 16
        %v5696 = vrot.slane %v5694, 7
        %v5697 = vshll.u32 %v5456, 16
        %v5699 = vor.u32 %v5696, %v5697
        %v5700 = vsel %vm5463, %v5692, %v5699
        %v5701 = vrot.slane %v5696, 4
        %v5703 = vshrl.u32 %v5457, 16
        %v5705 = vrot.slane %v5703, 7
        %v5706 = vshll.u32 %v5457, 16
        %v5708 = vor.u32 %v5705, %v5706
        %v5709 = vrot.slane %v5705, 4
        %v5711 = vshrl.u32 %v5458, 16
        %v5713 = vrot.slane %v5711, 7
        %v5714 = vshll.u32 %v5458, 16
        %v5716 = vor.u32 %v5713, %v5714
        %v5717 = vsel %vm5463, %v5709, %v5716
        %v5718 = vrot.slane %v5713, 4
        %v5720 = vshrl.u32 %v5459, 16
        %v5722 = vrot.slane %v5720, 7
        %v5723 = vshll.u32 %v5459, 16
        %v5725 = vor.u32 %v5722, %v5723
        %v5726 = vrot.slane %v5722, 4
        %v5728 = vshrl.u32 %v5460, 16
        %v5730 = vrot.slane %v5728, 7
        %v5731 = vshll.u32 %v5460, 16
        %v5733 = vor.u32 %v5730, %v5731
        %v5734 = vsel %vm5463, %v5726, %v5733
        %v5735 = vrot.slane %v5730, 4
        %vm5784 = vcmask 519168
        %vm5785 = vsmask.f32 7938
        %vm5786 = vmand %vm5784, %vm5785
        %v5787 = vsel %vm5786, %v5470, %v2427
        %5788 = vst [vmem:[%s2037] sm:$0xf] %v5787
        %5789 = vst.msk [vmem:[%s2037 + $0x4] sm:$0xf] %vm433, %v5479
        %vm5790 = vcmask 516096
        %vm5791 = vmand %vm5790, %vm5461
        %v5792 = vld [vmem:[%s2037 + $0x8] sm:$0x1]
        %v5793 = vsel %vm5791, %v5480, %v5792
        %5794 = vst [vmem:[%s2037 + $0x8] sm:$0x1] %v5793
        %v5795 = vld [vmem:[%s2037 + $0xc] sm:$0xf]
        %v5796 = vsel %vm5786, %v5487, %v5795
        %5797 = vst [vmem:[%s2037 + $0xc] sm:$0xf] %v5796
        %5798 = vst.msk [vmem:[%s2037 + $0x10] sm:$0xf] %vm433, %v5496
        %v5799 = vld [vmem:[%s2037 + $0x14] sm:$0x1]
        %v5800 = vsel %vm5791, %v5497, %v5799
        %5801 = vst [vmem:[%s2037 + $0x14] sm:$0x1] %v5800
        %v5802 = vld [vmem:[%s2037 + $0x18] sm:$0xf]
        %v5803 = vsel %vm5786, %v5504, %v5802
        %5804 = vst [vmem:[%s2037 + $0x18] sm:$0xf] %v5803
        %5805 = vst.msk [vmem:[%s2037 + $0x1c] sm:$0xf] %vm433, %v5513
        %v5806 = vld [vmem:[%s2037 + $0x20] sm:$0x1]
        %v5807 = vsel %vm5791, %v5514, %v5806
        %5808 = vst [vmem:[%s2037 + $0x20] sm:$0x1] %v5807
        %v5809 = vld [vmem:[%s2037 + $0x24] sm:$0xf]
        %v5810 = vsel %vm5786, %v5521, %v5809
        %5811 = vst [vmem:[%s2037 + $0x24] sm:$0xf] %v5810
        %5812 = vst.msk [vmem:[%s2037 + $0x28] sm:$0xf] %vm433, %v5530
        %v5813 = vld [vmem:[%s2037 + $0x2c] sm:$0x1]
        %v5814 = vsel %vm5791, %v5531, %v5813
        %5815 = vst [vmem:[%s2037 + $0x2c] sm:$0x1] %v5814
        %v5816 = vld [vmem:[%s2037 + $0x30] sm:$0xf]
        %v5817 = vsel %vm5786, %v5538, %v5816
        %5818 = vst [vmem:[%s2037 + $0x30] sm:$0xf] %v5817
        %5819 = vst.msk [vmem:[%s2037 + $0x34] sm:$0xf] %vm433, %v5547
        %v5820 = vld [vmem:[%s2037 + $0x38] sm:$0x1]
        %v5821 = vsel %vm5791, %v5548, %v5820
        %5822 = vst [vmem:[%s2037 + $0x38] sm:$0x1] %v5821
        %v5823 = vld [vmem:[%s2037 + $0x3c] sm:$0xf]
        %v5824 = vsel %vm5786, %v5555, %v5823
        %5825 = vst [vmem:[%s2037 + $0x3c] sm:$0xf] %v5824
        %5826 = vst.msk [vmem:[%s2037 + $0x40] sm:$0xf] %vm433, %v5564
        %v5827 = vld [vmem:[%s2037 + $0x44] sm:$0x1]
        %v5828 = vsel %vm5791, %v5565, %v5827
        %5829 = vst [vmem:[%s2037 + $0x44] sm:$0x1] %v5828
        %v5830 = vld [vmem:[%s2037 + $0x48] sm:$0xf]
        %v5831 = vsel %vm5786, %v5572, %v5830
        %5832 = vst [vmem:[%s2037 + $0x48] sm:$0xf] %v5831
        %5833 = vst.msk [vmem:[%s2037 + $0x4c] sm:$0xf] %vm433, %v5581
        %v5834 = vld [vmem:[%s2037 + $0x50] sm:$0x1]
        %v5835 = vsel %vm5791, %v5582, %v5834
        %5836 = vst [vmem:[%s2037 + $0x50] sm:$0x1] %v5835
        %v5837 = vld [vmem:[%s2037 + $0x54] sm:$0xf]
        %v5838 = vsel %vm5786, %v5589, %v5837
        %5839 = vst [vmem:[%s2037 + $0x54] sm:$0xf] %v5838
        %5840 = vst.msk [vmem:[%s2037 + $0x58] sm:$0xf] %vm433, %v5598
        %v5841 = vld [vmem:[%s2037 + $0x5c] sm:$0x1]
        %v5842 = vsel %vm5791, %v5599, %v5841
        %5843 = vst [vmem:[%s2037 + $0x5c] sm:$0x1] %v5842
        %v5844 = vld [vmem:[%s2037 + $0x60] sm:$0xf]
        %v5845 = vsel %vm5786, %v5606, %v5844
        %5846 = vst [vmem:[%s2037 + $0x60] sm:$0xf] %v5845
        %5847 = vst.msk [vmem:[%s2037 + $0x64] sm:$0xf] %vm433, %v5615
        %v5848 = vld [vmem:[%s2037 + $0x68] sm:$0x1]
        %v5849 = vsel %vm5791, %v5616, %v5848
        %5850 = vst [vmem:[%s2037 + $0x68] sm:$0x1] %v5849
        %v5851 = vld [vmem:[%s2037 + $0x6c] sm:$0xf]
        %v5852 = vsel %vm5786, %v5623, %v5851
        %5853 = vst [vmem:[%s2037 + $0x6c] sm:$0xf] %v5852
        %5854 = vst.msk [vmem:[%s2037 + $0x70] sm:$0xf] %vm433, %v5632
        %v5855 = vld [vmem:[%s2037 + $0x74] sm:$0x1]
        %v5856 = vsel %vm5791, %v5633, %v5855
        %5857 = vst [vmem:[%s2037 + $0x74] sm:$0x1] %v5856
        %v5858 = vld [vmem:[%s2037 + $0x78] sm:$0xf]
        %v5859 = vsel %vm5786, %v5640, %v5858
        %5860 = vst [vmem:[%s2037 + $0x78] sm:$0xf] %v5859
        %5861 = vst.msk [vmem:[%s2037 + $0x7c] sm:$0xf] %vm433, %v5649
        %v5862 = vld [vmem:[%s2037 + $0x80] sm:$0x1]
        %v5863 = vsel %vm5791, %v5650, %v5862
        %5864 = vst [vmem:[%s2037 + $0x80] sm:$0x1] %v5863
        %v5865 = vld [vmem:[%s2037 + $0x84] sm:$0xf]
        %v5866 = vsel %vm5786, %v5657, %v5865
        %5867 = vst [vmem:[%s2037 + $0x84] sm:$0xf] %v5866
        %5868 = vst.msk [vmem:[%s2037 + $0x88] sm:$0xf] %vm433, %v5666
        %v5869 = vld [vmem:[%s2037 + $0x8c] sm:$0x1]
        %v5870 = vsel %vm5791, %v5667, %v5869
        %5871 = vst [vmem:[%s2037 + $0x8c] sm:$0x1] %v5870
        %v5872 = vld [vmem:[%s2037 + $0x90] sm:$0xf]
        %v5873 = vsel %vm5786, %v5674, %v5872
        %5874 = vst [vmem:[%s2037 + $0x90] sm:$0xf] %v5873
        %5875 = vst.msk [vmem:[%s2037 + $0x94] sm:$0xf] %vm433, %v5683
        %v5876 = vld [vmem:[%s2037 + $0x98] sm:$0x1]
        %v5877 = vsel %vm5791, %v5684, %v5876
        %5878 = vst [vmem:[%s2037 + $0x98] sm:$0x1] %v5877
        %v5879 = vld [vmem:[%s2037 + $0x9c] sm:$0xf]
        %v5880 = vsel %vm5786, %v5691, %v5879
        %5881 = vst [vmem:[%s2037 + $0x9c] sm:$0xf] %v5880
        %5882 = vst.msk [vmem:[%s2037 + $0xa0] sm:$0xf] %vm433, %v5700
        %v5883 = vld [vmem:[%s2037 + $0xa4] sm:$0x1]
        %v5884 = vsel %vm5791, %v5701, %v5883
        %5885 = vst [vmem:[%s2037 + $0xa4] sm:$0x1] %v5884
        %v5886 = vld [vmem:[%s2037 + $0xa8] sm:$0xf]
        %v5887 = vsel %vm5786, %v5708, %v5886
        %5888 = vst [vmem:[%s2037 + $0xa8] sm:$0xf] %v5887
        %5889 = vst.msk [vmem:[%s2037 + $0xac] sm:$0xf] %vm433, %v5717
        %v5890 = vld [vmem:[%s2037 + $0xb0] sm:$0x1]
        %v5891 = vsel %vm5791, %v5718, %v5890
        %5892 = vst [vmem:[%s2037 + $0xb0] sm:$0x1] %v5891
        %v5893 = vld [vmem:[%s2037 + $0xb4] sm:$0xf]
        %v5894 = vsel %vm5786, %v5725, %v5893
        %5895 = vst [vmem:[%s2037 + $0xb4] sm:$0xf] %v5894
        %5896 = vst.msk [vmem:[%s2037 + $0xb8] sm:$0xf] %vm433, %v5734
        %v5897 = vld [vmem:[%s2037 + $0xbc] sm:$0x1]
        %v5898 = vsel %vm5791, %v5735, %v5897
        %5899 = vst [vmem:[%s2037 + $0xbc] sm:$0x1] %v5898
      $region33: #{edsr_forward.1} parent=27 // loop_footer
        %s494 = sadd.s32 1, %s490
      $region34: #{edsr_forward.1} parent=27 // loop_footer_branch
        %489 = sbr.rel target = $region30
      $region35: #{edsr_forward.1} parent=27 // loop_exit
        _
      %v5900 = vld [vmem:[#allocation2] sm:$0xf]
      %v5901 = vld [vmem:[#allocation2 + $0x4] sm:$0xf]
      %v5902 = vld [vmem:[#allocation2 + $0xc] sm:$0xf]
      %v5903 = vld [vmem:[#allocation2 + $0x10] sm:$0xf]
      %v5904 = vld [vmem:[#allocation2 + $0x18] sm:$0xf]
      %v5905 = vld [vmem:[#allocation2 + $0x1c] sm:$0xf]
      %v5906 = vld [vmem:[#allocation2 + $0x24] sm:$0xf]
      %v5907 = vld [vmem:[#allocation2 + $0x28] sm:$0xf]
      %v5908 = vld [vmem:[#allocation2 + $0x30] sm:$0xf]
      %v5909 = vld [vmem:[#allocation2 + $0x34] sm:$0xf]
      %v5910 = vld [vmem:[#allocation2 + $0x3c] sm:$0xf]
      %v5911 = vld [vmem:[#allocation2 + $0x40] sm:$0xf]
      %v5912 = vld [vmem:[#allocation2 + $0x48] sm:$0xf]
      %v5913 = vld [vmem:[#allocation2 + $0x4c] sm:$0xf]
      %v5914 = vld [vmem:[#allocation2 + $0x54] sm:$0xf]
      %v5915 = vld [vmem:[#allocation2 + $0x58] sm:$0xf]
      %v5916 = vld [vmem:[#allocation2 + $0x60] sm:$0xf]
      %v5917 = vld [vmem:[#allocation2 + $0x64] sm:$0xf]
      %v5918 = vld [vmem:[#allocation2 + $0x6c] sm:$0xf]
      %v5919 = vld [vmem:[#allocation2 + $0x70] sm:$0xf]
      %v5920 = vld [vmem:[#allocation2 + $0x78] sm:$0xf]
      %v5921 = vld [vmem:[#allocation2 + $0x7c] sm:$0xf]
      %v5922 = vld [vmem:[#allocation2 + $0x84] sm:$0xf]
      %v5923 = vld [vmem:[#allocation2 + $0x88] sm:$0xf]
      %v5924 = vld [vmem:[#allocation2 + $0x90] sm:$0xf]
      %v5925 = vld [vmem:[#allocation2 + $0x94] sm:$0xf]
      %v5926 = vld [vmem:[#allocation2 + $0x9c] sm:$0xf]
      %v5927 = vld [vmem:[#allocation2 + $0xa0] sm:$0xf]
      %v5928 = vld [vmem:[#allocation2 + $0xa8] sm:$0xf]
      %v5929 = vld [vmem:[#allocation2 + $0xac] sm:$0xf]
      %v5930 = vld [vmem:[#allocation2 + $0xb4] sm:$0xf]
      %v5931 = vld [vmem:[#allocation2 + $0xb8] sm:$0xf]
      %s5932 = scalar_lea.vmem %s1, 5472
      %v5933 = vld [vmem:[%s5932] sm:$0xf]
      %v5934 = vld [vmem:[%s5932 + $0x4] sm:$0xf]
      %v5935 = vld [vmem:[%s5932 + $0x8] sm:$0xf]
      %v5936 = vld [vmem:[%s5932 + $0xc] sm:$0xf]
      %v5937 = vld [vmem:[%s5932 + $0x10] sm:$0xf]
      %v5938 = vld [vmem:[%s5932 + $0x14] sm:$0xf]
      %v5939 = vld [vmem:[%s5932 + $0x18] sm:$0xf]
      %v5940 = vld [vmem:[%s5932 + $0x1c] sm:$0xf]
      %v5941 = vld [vmem:[#allocation2 + $0x8] sm:$0x1]
      %v5942 = vld [vmem:[#allocation2 + $0x14] sm:$0x1]
      %v5943 = vld [vmem:[#allocation2 + $0x20] sm:$0x1]
      %v5944 = vld [vmem:[#allocation2 + $0x2c] sm:$0x1]
      %v5945 = vld [vmem:[#allocation2 + $0x38] sm:$0x1]
      %v5946 = vld [vmem:[#allocation2 + $0x44] sm:$0x1]
      %v5947 = vld [vmem:[#allocation2 + $0x50] sm:$0x1]
      %v5948 = vld [vmem:[#allocation2 + $0x5c] sm:$0x1]
      %v5949 = vld [vmem:[#allocation2 + $0x68] sm:$0x1]
      %v5950 = vld [vmem:[#allocation2 + $0x74] sm:$0x1]
      %v5951 = vld [vmem:[#allocation2 + $0x80] sm:$0x1]
      %v5952 = vld [vmem:[#allocation2 + $0x8c] sm:$0x1]
      %v5953 = vld [vmem:[#allocation2 + $0x98] sm:$0x1]
      %v5954 = vld [vmem:[#allocation2 + $0xa4] sm:$0x1]
      %v5955 = vld [vmem:[#allocation2 + $0xb0] sm:$0x1]
      %v5956 = vld [vmem:[#allocation2 + $0xbc] sm:$0x1]
      %vm5957 = vsmask.f32 3328
      %vm5958 = vsmask.f32 7440
      %vm5959 = vmor %vm5957, %vm5958
      %v5961 = vshrl.u32 %v5900, 16
      %v5963 = vrot.slane %v5961, 4
      %v5964 = vshll.u32 %v5900, 16
      %v5966 = vrot.slane %v5964, 5
      %v5967 = vor.u32 %v5963, %v5966
      %v5968 = vrot.slane %v5967, 4
      %v5970 = vshll.u32 %v5901, 16
      %v5972 = vrot.slane %v5970, 5
      %v5973 = vsel %vm5959, %v5968, %v5972
      %v5974 = vshrl.u32 %v5901, 16
      %v5976 = vrot.slane %v5974, 4
      %v5977 = vor.u32 %v5976, %v5972
      %v5978 = vrot.slane %v5977, 4
      %v5980 = vshll.u32 %v5941, 16
      %v5982 = vrot.slane %v5980, 5
      %v5983 = vsel %vm5959, %v5978, %v5982
      %v5985 = vshrl.u32 %v5902, 16
      %v5987 = vrot.slane %v5985, 4
      %v5988 = vshll.u32 %v5902, 16
      %v5990 = vrot.slane %v5988, 5
      %v5991 = vor.u32 %v5987, %v5990
      %v5992 = vrot.slane %v5991, 4
      %v5994 = vshll.u32 %v5903, 16
      %v5996 = vrot.slane %v5994, 5
      %v5997 = vsel %vm5959, %v5992, %v5996
      %v5998 = vshrl.u32 %v5903, 16
      %v6000 = vrot.slane %v5998, 4
      %v6001 = vor.u32 %v6000, %v5996
      %v6002 = vrot.slane %v6001, 4
      %v6004 = vshll.u32 %v5942, 16
      %v6006 = vrot.slane %v6004, 5
      %v6007 = vsel %vm5959, %v6002, %v6006
      %v6009 = vshrl.u32 %v5904, 16
      %v6011 = vrot.slane %v6009, 4
      %v6012 = vshll.u32 %v5904, 16
      %v6014 = vrot.slane %v6012, 5
      %v6015 = vor.u32 %v6011, %v6014
      %v6016 = vrot.slane %v6015, 4
      %v6018 = vshll.u32 %v5905, 16
      %v6020 = vrot.slane %v6018, 5
      %v6021 = vsel %vm5959, %v6016, %v6020
      %v6022 = vshrl.u32 %v5905, 16
      %v6024 = vrot.slane %v6022, 4
      %v6025 = vor.u32 %v6024, %v6020
      %v6026 = vrot.slane %v6025, 4
      %v6028 = vshll.u32 %v5943, 16
      %v6030 = vrot.slane %v6028, 5
      %v6031 = vsel %vm5959, %v6026, %v6030
      %v6033 = vshrl.u32 %v5906, 16
      %v6035 = vrot.slane %v6033, 4
      %v6036 = vshll.u32 %v5906, 16
      %v6038 = vrot.slane %v6036, 5
      %v6039 = vor.u32 %v6035, %v6038
      %v6040 = vrot.slane %v6039, 4
      %v6042 = vshll.u32 %v5907, 16
      %v6044 = vrot.slane %v6042, 5
      %v6045 = vsel %vm5959, %v6040, %v6044
      %v6046 = vshrl.u32 %v5907, 16
      %v6048 = vrot.slane %v6046, 4
      %v6049 = vor.u32 %v6048, %v6044
      %v6050 = vrot.slane %v6049, 4
      %v6052 = vshll.u32 %v5944, 16
      %v6054 = vrot.slane %v6052, 5
      %v6055 = vsel %vm5959, %v6050, %v6054
      %v6057 = vshrl.u32 %v5908, 16
      %v6059 = vrot.slane %v6057, 4
      %v6060 = vshll.u32 %v5908, 16
      %v6062 = vrot.slane %v6060, 5
      %v6063 = vor.u32 %v6059, %v6062
      %v6064 = vrot.slane %v6063, 4
      %v6066 = vshll.u32 %v5909, 16
      %v6068 = vrot.slane %v6066, 5
      %v6069 = vsel %vm5959, %v6064, %v6068
      %v6070 = vshrl.u32 %v5909, 16
      %v6072 = vrot.slane %v6070, 4
      %v6073 = vor.u32 %v6072, %v6068
      %v6074 = vrot.slane %v6073, 4
      %v6076 = vshll.u32 %v5945, 16
      %v6078 = vrot.slane %v6076, 5
      %v6079 = vsel %vm5959, %v6074, %v6078
      %v6081 = vshrl.u32 %v5910, 16
      %v6083 = vrot.slane %v6081, 4
      %v6084 = vshll.u32 %v5910, 16
      %v6086 = vrot.slane %v6084, 5
      %v6087 = vor.u32 %v6083, %v6086
      %v6088 = vrot.slane %v6087, 4
      %v6090 = vshll.u32 %v5911, 16
      %v6092 = vrot.slane %v6090, 5
      %v6093 = vsel %vm5959, %v6088, %v6092
      %v6094 = vshrl.u32 %v5911, 16
      %v6096 = vrot.slane %v6094, 4
      %v6097 = vor.u32 %v6096, %v6092
      %v6098 = vrot.slane %v6097, 4
      %v6100 = vshll.u32 %v5946, 16
      %v6102 = vrot.slane %v6100, 5
      %v6103 = vsel %vm5959, %v6098, %v6102
      %v6105 = vshrl.u32 %v5912, 16
      %v6107 = vrot.slane %v6105, 4
      %v6108 = vshll.u32 %v5912, 16
      %v6110 = vrot.slane %v6108, 5
      %v6111 = vor.u32 %v6107, %v6110
      %v6112 = vrot.slane %v6111, 4
      %v6114 = vshll.u32 %v5913, 16
      %v6116 = vrot.slane %v6114, 5
      %v6117 = vsel %vm5959, %v6112, %v6116
      %v6118 = vshrl.u32 %v5913, 16
      %v6120 = vrot.slane %v6118, 4
      %v6121 = vor.u32 %v6120, %v6116
      %v6122 = vrot.slane %v6121, 4
      %v6124 = vshll.u32 %v5947, 16
      %v6126 = vrot.slane %v6124, 5
      %v6127 = vsel %vm5959, %v6122, %v6126
      %v6129 = vshrl.u32 %v5914, 16
      %v6131 = vrot.slane %v6129, 4
      %v6132 = vshll.u32 %v5914, 16
      %v6134 = vrot.slane %v6132, 5
      %v6135 = vor.u32 %v6131, %v6134
      %v6136 = vrot.slane %v6135, 4
      %v6138 = vshll.u32 %v5915, 16
      %v6140 = vrot.slane %v6138, 5
      %v6141 = vsel %vm5959, %v6136, %v6140
      %v6142 = vshrl.u32 %v5915, 16
      %v6144 = vrot.slane %v6142, 4
      %v6145 = vor.u32 %v6144, %v6140
      %v6146 = vrot.slane %v6145, 4
      %v6148 = vshll.u32 %v5948, 16
      %v6150 = vrot.slane %v6148, 5
      %v6151 = vsel %vm5959, %v6146, %v6150
      %v6153 = vshrl.u32 %v5916, 16
      %v6155 = vrot.slane %v6153, 4
      %v6156 = vshll.u32 %v5916, 16
      %v6158 = vrot.slane %v6156, 5
      %v6159 = vor.u32 %v6155, %v6158
      %v6160 = vrot.slane %v6159, 4
      %v6162 = vshll.u32 %v5917, 16
      %v6164 = vrot.slane %v6162, 5
      %v6165 = vsel %vm5959, %v6160, %v6164
      %v6166 = vshrl.u32 %v5917, 16
      %v6168 = vrot.slane %v6166, 4
      %v6169 = vor.u32 %v6168, %v6164
      %v6170 = vrot.slane %v6169, 4
      %v6172 = vshll.u32 %v5949, 16
      %v6174 = vrot.slane %v6172, 5
      %v6175 = vsel %vm5959, %v6170, %v6174
      %v6177 = vshrl.u32 %v5918, 16
      %v6179 = vrot.slane %v6177, 4
      %v6180 = vshll.u32 %v5918, 16
      %v6182 = vrot.slane %v6180, 5
      %v6183 = vor.u32 %v6179, %v6182
      %v6184 = vrot.slane %v6183, 4
      %v6186 = vshll.u32 %v5919, 16
      %v6188 = vrot.slane %v6186, 5
      %v6189 = vsel %vm5959, %v6184, %v6188
      %v6190 = vshrl.u32 %v5919, 16
      %v6192 = vrot.slane %v6190, 4
      %v6193 = vor.u32 %v6192, %v6188
      %v6194 = vrot.slane %v6193, 4
      %v6196 = vshll.u32 %v5950, 16
      %v6198 = vrot.slane %v6196, 5
      %v6199 = vsel %vm5959, %v6194, %v6198
      %v6201 = vshrl.u32 %v5920, 16
      %v6203 = vrot.slane %v6201, 4
      %v6204 = vshll.u32 %v5920, 16
      %v6206 = vrot.slane %v6204, 5
      %v6207 = vor.u32 %v6203, %v6206
      %v6208 = vrot.slane %v6207, 4
      %v6210 = vshll.u32 %v5921, 16
      %v6212 = vrot.slane %v6210, 5
      %v6213 = vsel %vm5959, %v6208, %v6212
      %v6214 = vshrl.u32 %v5921, 16
      %v6216 = vrot.slane %v6214, 4
      %v6217 = vor.u32 %v6216, %v6212
      %v6218 = vrot.slane %v6217, 4
      %v6220 = vshll.u32 %v5951, 16
      %v6222 = vrot.slane %v6220, 5
      %v6223 = vsel %vm5959, %v6218, %v6222
      %v6225 = vshrl.u32 %v5922, 16
      %v6227 = vrot.slane %v6225, 4
      %v6228 = vshll.u32 %v5922, 16
      %v6230 = vrot.slane %v6228, 5
      %v6231 = vor.u32 %v6227, %v6230
      %v6232 = vrot.slane %v6231, 4
      %v6234 = vshll.u32 %v5923, 16
      %v6236 = vrot.slane %v6234, 5
      %v6237 = vsel %vm5959, %v6232, %v6236
      %v6238 = vshrl.u32 %v5923, 16
      %v6240 = vrot.slane %v6238, 4
      %v6241 = vor.u32 %v6240, %v6236
      %v6242 = vrot.slane %v6241, 4
      %v6244 = vshll.u32 %v5952, 16
      %v6246 = vrot.slane %v6244, 5
      %v6247 = vsel %vm5959, %v6242, %v6246
      %v6249 = vshrl.u32 %v5924, 16
      %v6251 = vrot.slane %v6249, 4
      %v6252 = vshll.u32 %v5924, 16
      %v6254 = vrot.slane %v6252, 5
      %v6255 = vor.u32 %v6251, %v6254
      %v6256 = vrot.slane %v6255, 4
      %v6258 = vshll.u32 %v5925, 16
      %v6260 = vrot.slane %v6258, 5
      %v6261 = vsel %vm5959, %v6256, %v6260
      %v6262 = vshrl.u32 %v5925, 16
      %v6264 = vrot.slane %v6262, 4
      %v6265 = vor.u32 %v6264, %v6260
      %v6266 = vrot.slane %v6265, 4
      %v6268 = vshll.u32 %v5953, 16
      %v6270 = vrot.slane %v6268, 5
      %v6271 = vsel %vm5959, %v6266, %v6270
      %v6273 = vshrl.u32 %v5926, 16
      %v6275 = vrot.slane %v6273, 4
      %v6276 = vshll.u32 %v5926, 16
      %v6278 = vrot.slane %v6276, 5
      %v6279 = vor.u32 %v6275, %v6278
      %v6280 = vrot.slane %v6279, 4
      %v6282 = vshll.u32 %v5927, 16
      %v6284 = vrot.slane %v6282, 5
      %v6285 = vsel %vm5959, %v6280, %v6284
      %v6286 = vshrl.u32 %v5927, 16
      %v6288 = vrot.slane %v6286, 4
      %v6289 = vor.u32 %v6288, %v6284
      %v6290 = vrot.slane %v6289, 4
      %v6292 = vshll.u32 %v5954, 16
      %v6294 = vrot.slane %v6292, 5
      %v6295 = vsel %vm5959, %v6290, %v6294
      %v6297 = vshrl.u32 %v5928, 16
      %v6299 = vrot.slane %v6297, 4
      %v6300 = vshll.u32 %v5928, 16
      %v6302 = vrot.slane %v6300, 5
      %v6303 = vor.u32 %v6299, %v6302
      %v6304 = vrot.slane %v6303, 4
      %v6306 = vshll.u32 %v5929, 16
      %v6308 = vrot.slane %v6306, 5
      %v6309 = vsel %vm5959, %v6304, %v6308
      %v6310 = vshrl.u32 %v5929, 16
      %v6312 = vrot.slane %v6310, 4
      %v6313 = vor.u32 %v6312, %v6308
      %v6314 = vrot.slane %v6313, 4
      %v6316 = vshll.u32 %v5955, 16
      %v6318 = vrot.slane %v6316, 5
      %v6319 = vsel %vm5959, %v6314, %v6318
      %v6321 = vshrl.u32 %v5930, 16
      %v6323 = vrot.slane %v6321, 4
      %v6324 = vshll.u32 %v5930, 16
      %v6326 = vrot.slane %v6324, 5
      %v6327 = vor.u32 %v6323, %v6326
      %v6328 = vrot.slane %v6327, 4
      %v6330 = vshll.u32 %v5931, 16
      %v6332 = vrot.slane %v6330, 5
      %v6333 = vsel %vm5959, %v6328, %v6332
      %v6334 = vshrl.u32 %v5931, 16
      %v6336 = vrot.slane %v6334, 4
      %v6337 = vor.u32 %v6336, %v6332
      %v6338 = vrot.slane %v6337, 4
      %v6340 = vshll.u32 %v5956, 16
      %v6342 = vrot.slane %v6340, 5
      %v6343 = vsel %vm5959, %v6338, %v6342
      %s6344 = scalar_lea.vmem %s1, 5504
      %v6345 = vld [vmem:[%s6344] sm:$0xf]
      %v6346 = vld [vmem:[%s6344 + $0x4] sm:$0xf]
      %v6347 = vld [vmem:[%s6344 + $0x8] sm:$0xf]
      %v6348 = vld [vmem:[%s6344 + $0xc] sm:$0xf]
      %v6349 = vld [vmem:[%s6344 + $0x10] sm:$0xf]
      %v6350 = vld [vmem:[%s6344 + $0x14] sm:$0xf]
      %v6351 = vld [vmem:[%s6344 + $0x18] sm:$0xf]
      %v6352 = vld [vmem:[%s6344 + $0x1c] sm:$0xf]
      %v6353 = vunpack.c.l.b16 %v5973
      %v6354 = vunpack.c.l.b16 %v5983
      %v6355 = vunpack.c.l.b16 %v5997
      %v6356 = vunpack.c.l.b16 %v6007
      %v6357 = vunpack.c.l.b16 %v6021
      %v6358 = vunpack.c.l.b16 %v6031
      %v6359 = vunpack.c.l.b16 %v6045
      %v6360 = vunpack.c.l.b16 %v6055
      %v6361 = vunpack.c.l.b16 %v6069
      %v6362 = vunpack.c.l.b16 %v6079
      %v6363 = vunpack.c.l.b16 %v6093
      %v6364 = vunpack.c.l.b16 %v6103
      %v6365 = vunpack.c.l.b16 %v6117
      %v6366 = vunpack.c.l.b16 %v6127
      %v6367 = vunpack.c.l.b16 %v6141
      %v6368 = vunpack.c.l.b16 %v6151
      %v6369 = vunpack.c.l.b16 %v6165
      %v6370 = vunpack.c.l.b16 %v6175
      %v6371 = vunpack.c.l.b16 %v6189
      %v6372 = vunpack.c.l.b16 %v6199
      %v6373 = vunpack.c.l.b16 %v6213
      %v6374 = vunpack.c.l.b16 %v6223
      %v6375 = vunpack.c.l.b16 %v6237
      %v6376 = vunpack.c.l.b16 %v6247
      %v6377 = vunpack.c.l.b16 %v6261
      %v6378 = vunpack.c.l.b16 %v6271
      %v6379 = vunpack.c.l.b16 %v6285
      %v6380 = vunpack.c.l.b16 %v6295
      %v6381 = vunpack.c.l.b16 %v6309
      %v6382 = vunpack.c.l.b16 %v6319
      %v6383 = vunpack.c.l.b16 %v6333
      %v6384 = vunpack.c.l.b16 %v6343
      %v6385 = vpack.c.b16 %v6354, %v6353
      %v6386 = vpack.c.b16 %v6356, %v6355
      %v6387 = vpack.c.b16 %v6358, %v6357
      %v6388 = vpack.c.b16 %v6360, %v6359
      %v6389 = vpack.c.b16 %v6362, %v6361
      %v6390 = vpack.c.b16 %v6364, %v6363
      %v6391 = vpack.c.b16 %v6366, %v6365
      %v6392 = vpack.c.b16 %v6368, %v6367
      %v6393 = vpack.c.b16 %v6370, %v6369
      %v6394 = vpack.c.b16 %v6372, %v6371
      %v6395 = vpack.c.b16 %v6374, %v6373
      %v6396 = vpack.c.b16 %v6376, %v6375
      %v6397 = vpack.c.b16 %v6378, %v6377
      %v6398 = vpack.c.b16 %v6380, %v6379
      %v6399 = vpack.c.b16 %v6382, %v6381
      %v6400 = vpack.c.b16 %v6384, %v6383
      %v6409 = vunpack.c.l.b16 %v6345
      %v6410 = vunpack.c.l.b16 %v6346
      %v6411 = vunpack.c.l.b16 %v6347
      %v6412 = vunpack.c.l.b16 %v6348
      %v6413 = vunpack.c.l.b16 %v6349
      %v6414 = vunpack.c.l.b16 %v6350
      %v6415 = vunpack.c.l.b16 %v6351
      %v6416 = vunpack.c.l.b16 %v6352
      %v6417 = vpack.c.b16 %v6410, %v6409
      %v6418 = vpack.c.b16 %v6412, %v6411
      %v6419 = vpack.c.b16 %v6414, %v6413
      %v6420 = vpack.c.b16 %v6416, %v6415
      %vm6425 = vcmask 523264
      %v6427 = vsel %vm6425, %v6385, 0
      %v6430 = vsel %vm6425, %v6386, 0
      %v6433 = vsel %vm6425, %v6387, 0
      %v6436 = vsel %vm6425, %v6388, 0
      %v6439 = vsel %vm6425, %v6389, 0
      %v6442 = vsel %vm6425, %v6390, 0
      %v6445 = vsel %vm6425, %v6391, 0
      %v6448 = vsel %vm6425, %v6392, 0
      %v6451 = vsel %vm6425, %v6393, 0
      %v6454 = vsel %vm6425, %v6394, 0
      %v6457 = vsel %vm6425, %v6395, 0
      %v6460 = vsel %vm6425, %v6396, 0
      %v6463 = vsel %vm6425, %v6397, 0
      %v6466 = vsel %vm6425, %v6398, 0
      %v6469 = vsel %vm6425, %v6399, 0
      %v6472 = vsel %vm6425, %v6400, 0
      %6474 = vmatprep.subr.bf16.mxu0 0
      %6475 = vmatpush1.bf16.msra.mxu0 %v6417
      %6476 = vmatprep.subr.bf16.mxu0 0
      %6477 = vmatpush1.bf16.msra.mxu0 %v6418
      %6478 = vmatprep.subr.bf16.mxu0 0
      %6479 = vmatpush1.bf16.msra.mxu0 %v6419
      %6480 = vmatprep.subr.bf16.mxu0 0
      %6481 = vmatpush1.bf16.msra.mxu0 %v6420
      %6482 = vmatprep.subr.bf16.mxu0 0
      %6483 = vmatpush1.bf16.msra.mxu0 0
      %6484 = vmatprep.subr.bf16.mxu0 0
      %6485 = vmatpush1.bf16.msra.mxu0 0
      %6486 = vmatprep.subr.bf16.mxu0 0
      %6487 = vmatpush1.bf16.msra.mxu0 0
      %6488 = vmatprep.subr.bf16.mxu0 0
      %6489 = vmatpush1.bf16.msra.mxu0 0
      %6490 = vmatprep.subr.bf16.mxu0 0
      %6491 = vmatpush1.bf16.msra.mxu0 0
      %6492 = vmatprep.subr.bf16.mxu0 0
      %6493 = vmatpush1.bf16.msra.mxu0 0
      %6494 = vmatprep.subr.bf16.mxu0 0
      %6495 = vmatpush1.bf16.msra.mxu0 0
      %6496 = vmatprep.subr.bf16.mxu0 0
      %6497 = vmatpush1.bf16.msra.mxu0 0
      %6498 = vmatprep.subr.bf16.mxu0 0
      %6499 = vmatpush1.bf16.msra.mxu0 0
      %6500 = vmatprep.subr.bf16.mxu0 0
      %6501 = vmatpush1.bf16.msra.mxu0 0
      %6502 = vmatprep.subr.bf16.mxu0 0
      %6503 = vmatpush1.bf16.msra.mxu0 0
      %6504 = vmatprep.subr.bf16.mxu0 0
      %6505 = vmatpush1.bf16.msra.mxu0 0
      %6506 = vmatprep.mubr.bf16.mxu0 0
      %6507 = vmatmul.mubr.bf16.gmra.mrb[0].mxu0 %v6427
      %v6508 = vpop.f32.mrb[0].mxu0
      %v6509 = vadd.f32 0.0, %v6508
      %v6510 = vpop.f32.mrb[0].mxu0
      %v6511 = vpop.f32.mrb[0].mxu0
      %v6512 = vadd.f32 0.0, %v6511
      %v6513 = vpop.f32.mrb[0].mxu0
      %6514 = vmatprep.mubr.bf16.mxu0 0
      %6515 = vmatmul.mubr.bf16.gmra.mrb[0].mxu0 %v6430
      %v6516 = vpop.f32.mrb[0].mxu0
      %v6517 = vadd.f32 0.0, %v6516
      %v6518 = vpop.f32.mrb[0].mxu0
      %v6519 = vpop.f32.mrb[0].mxu0
      %v6520 = vadd.f32 0.0, %v6519
      %v6521 = vpop.f32.mrb[0].mxu0
      %6522 = vmatprep.mubr.bf16.mxu0 0
      %6523 = vmatmul.mubr.bf16.gmra.mrb[0].mxu0 %v6433
      %v6524 = vpop.f32.mrb[0].mxu0
      %v6525 = vadd.f32 0.0, %v6524
      %v6526 = vpop.f32.mrb[0].mxu0
      %v6527 = vpop.f32.mrb[0].mxu0
      %v6528 = vadd.f32 0.0, %v6527
      %v6529 = vpop.f32.mrb[0].mxu0
      %6530 = vmatprep.mubr.bf16.mxu0 0
      %6531 = vmatmul.mubr.bf16.gmra.mrb[0].mxu0 %v6436
      %v6532 = vpop.f32.mrb[0].mxu0
      %v6533 = vadd.f32 0.0, %v6532
      %v6534 = vpop.f32.mrb[0].mxu0
      %v6535 = vpop.f32.mrb[0].mxu0
      %v6536 = vadd.f32 0.0, %v6535
      %v6537 = vpop.f32.mrb[0].mxu0
      %6538 = vmatprep.mubr.bf16.mxu0 0
      %6539 = vmatmul.mubr.bf16.gmra.mrb[0].mxu0 %v6439
      %v6540 = vpop.f32.mrb[0].mxu0
      %v6541 = vadd.f32 0.0, %v6540
      %v6542 = vpop.f32.mrb[0].mxu0
      %v6543 = vpop.f32.mrb[0].mxu0
      %v6544 = vadd.f32 0.0, %v6543
      %v6545 = vpop.f32.mrb[0].mxu0
      %6546 = vmatprep.mubr.bf16.mxu0 0
      %6547 = vmatmul.mubr.bf16.gmra.mrb[0].mxu0 %v6442
      %v6548 = vpop.f32.mrb[0].mxu0
      %v6549 = vadd.f32 0.0, %v6548
      %v6550 = vpop.f32.mrb[0].mxu0
      %v6551 = vpop.f32.mrb[0].mxu0
      %v6552 = vadd.f32 0.0, %v6551
      %v6553 = vpop.f32.mrb[0].mxu0
      %6554 = vmatprep.mubr.bf16.mxu0 0
      %6555 = vmatmul.mubr.bf16.gmra.mrb[0].mxu0 %v6445
      %v6556 = vpop.f32.mrb[0].mxu0
      %v6557 = vadd.f32 0.0, %v6556
      %v6558 = vpop.f32.mrb[0].mxu0
      %v6559 = vpop.f32.mrb[0].mxu0
      %v6560 = vadd.f32 0.0, %v6559
      %v6561 = vpop.f32.mrb[0].mxu0
      %6562 = vmatprep.mubr.bf16.mxu0 0
      %6563 = vmatmul.mubr.bf16.gmra.mrb[0].mxu0 %v6448
      %v6564 = vpop.f32.mrb[0].mxu0
      %v6565 = vadd.f32 0.0, %v6564
      %v6566 = vpop.f32.mrb[0].mxu0
      %v6567 = vpop.f32.mrb[0].mxu0
      %v6568 = vadd.f32 0.0, %v6567
      %v6569 = vpop.f32.mrb[0].mxu0
      %6570 = vmatprep.mubr.bf16.mxu0 0
      %6571 = vmatmul.mubr.bf16.gmra.mrb[0].mxu0 %v6451
      %v6572 = vpop.f32.mrb[0].mxu0
      %v6573 = vadd.f32 0.0, %v6572
      %v6574 = vpop.f32.mrb[0].mxu0
      %v6575 = vpop.f32.mrb[0].mxu0
      %v6576 = vadd.f32 0.0, %v6575
      %v6577 = vpop.f32.mrb[0].mxu0
      %6578 = vmatprep.mubr.bf16.mxu0 0
      %6579 = vmatmul.mubr.bf16.gmra.mrb[0].mxu0 %v6454
      %v6580 = vpop.f32.mrb[0].mxu0
      %v6581 = vadd.f32 0.0, %v6580
      %v6582 = vpop.f32.mrb[0].mxu0
      %v6583 = vpop.f32.mrb[0].mxu0
      %v6584 = vadd.f32 0.0, %v6583
      %v6585 = vpop.f32.mrb[0].mxu0
      %6586 = vmatprep.mubr.bf16.mxu0 0
      %6587 = vmatmul.mubr.bf16.gmra.mrb[0].mxu0 %v6457
      %v6588 = vpop.f32.mrb[0].mxu0
      %v6589 = vadd.f32 0.0, %v6588
      %v6590 = vpop.f32.mrb[0].mxu0
      %v6591 = vpop.f32.mrb[0].mxu0
      %v6592 = vadd.f32 0.0, %v6591
      %v6593 = vpop.f32.mrb[0].mxu0
      %6594 = vmatprep.mubr.bf16.mxu0 0
      %6595 = vmatmul.mubr.bf16.gmra.mrb[0].mxu0 %v6460
      %v6596 = vpop.f32.mrb[0].mxu0
      %v6597 = vadd.f32 0.0, %v6596
      %v6598 = vpop.f32.mrb[0].mxu0
      %v6599 = vpop.f32.mrb[0].mxu0
      %v6600 = vadd.f32 0.0, %v6599
      %v6601 = vpop.f32.mrb[0].mxu0
      %6602 = vmatprep.mubr.bf16.mxu0 0
      %6603 = vmatmul.mubr.bf16.gmra.mrb[0].mxu0 %v6463
      %v6604 = vpop.f32.mrb[0].mxu0
      %v6605 = vadd.f32 0.0, %v6604
      %v6606 = vpop.f32.mrb[0].mxu0
      %v6607 = vpop.f32.mrb[0].mxu0
      %v6608 = vadd.f32 0.0, %v6607
      %v6609 = vpop.f32.mrb[0].mxu0
      %6610 = vmatprep.mubr.bf16.mxu0 0
      %6611 = vmatmul.mubr.bf16.gmra.mrb[0].mxu0 %v6466
      %v6612 = vpop.f32.mrb[0].mxu0
      %v6613 = vadd.f32 0.0, %v6612
      %v6614 = vpop.f32.mrb[0].mxu0
      %v6615 = vpop.f32.mrb[0].mxu0
      %v6616 = vadd.f32 0.0, %v6615
      %v6617 = vpop.f32.mrb[0].mxu0
      %6618 = vmatprep.mubr.bf16.mxu0 0
      %6619 = vmatmul.mubr.bf16.gmra.mrb[0].mxu0 %v6469
      %v6620 = vpop.f32.mrb[0].mxu0
      %v6621 = vadd.f32 0.0, %v6620
      %v6622 = vpop.f32.mrb[0].mxu0
      %v6623 = vpop.f32.mrb[0].mxu0
      %v6624 = vadd.f32 0.0, %v6623
      %v6625 = vpop.f32.mrb[0].mxu0
      %6626 = vmatprep.mubr.bf16.mxu0 0
      %6627 = vmatmul.mubr.bf16.gmra.mrb[0].mxu0 %v6472
      %v6628 = vpop.f32.mrb[0].mxu0
      %v6629 = vadd.f32 0.0, %v6628
      %v6630 = vpop.f32.mrb[0].mxu0
      %v6631 = vpop.f32.mrb[0].mxu0
      %v6632 = vadd.f32 0.0, %v6631
      %v6633 = vpop.f32.mrb[0].mxu0
      %6634 = vdwg.mxu0
      %v6667 = vunpack.c.l.b16 %v5900
      %v6668 = vunpack.c.l.b16 %v5901
      %v6669 = vunpack.c.l.b16 %v5902
      %v6670 = vunpack.c.l.b16 %v5903
      %v6671 = vunpack.c.l.b16 %v5904
      %v6672 = vunpack.c.l.b16 %v5905
      %v6673 = vunpack.c.l.b16 %v5906
      %v6674 = vunpack.c.l.b16 %v5907
      %v6675 = vunpack.c.l.b16 %v5908
      %v6676 = vunpack.c.l.b16 %v5909
      %v6677 = vunpack.c.l.b16 %v5910
      %v6678 = vunpack.c.l.b16 %v5911
      %v6679 = vunpack.c.l.b16 %v5912
      %v6680 = vunpack.c.l.b16 %v5913
      %v6681 = vunpack.c.l.b16 %v5914
      %v6682 = vunpack.c.l.b16 %v5915
      %v6683 = vunpack.c.l.b16 %v5916
      %v6684 = vunpack.c.l.b16 %v5917
      %v6685 = vunpack.c.l.b16 %v5918
      %v6686 = vunpack.c.l.b16 %v5919
      %v6687 = vunpack.c.l.b16 %v5920
      %v6688 = vunpack.c.l.b16 %v5921
      %v6689 = vunpack.c.l.b16 %v5922
      %v6690 = vunpack.c.l.b16 %v5923
      %v6691 = vunpack.c.l.b16 %v5924
      %v6692 = vunpack.c.l.b16 %v5925
      %v6693 = vunpack.c.l.b16 %v5926
      %v6694 = vunpack.c.l.b16 %v5927
      %v6695 = vunpack.c.l.b16 %v5928
      %v6696 = vunpack.c.l.b16 %v5929
      %v6697 = vunpack.c.l.b16 %v5930
      %v6698 = vunpack.c.l.b16 %v5931
      %v6699 = vpack.c.b16 %v6668, %v6667
      %v6700 = vpack.c.b16 %v6670, %v6669
      %v6701 = vpack.c.b16 %v6672, %v6671
      %v6702 = vpack.c.b16 %v6674, %v6673
      %v6703 = vpack.c.b16 %v6676, %v6675
      %v6704 = vpack.c.b16 %v6678, %v6677
      %v6705 = vpack.c.b16 %v6680, %v6679
      %v6706 = vpack.c.b16 %v6682, %v6681
      %v6707 = vpack.c.b16 %v6684, %v6683
      %v6708 = vpack.c.b16 %v6686, %v6685
      %v6709 = vpack.c.b16 %v6688, %v6687
      %v6710 = vpack.c.b16 %v6690, %v6689
      %v6711 = vpack.c.b16 %v6692, %v6691
      %v6712 = vpack.c.b16 %v6694, %v6693
      %v6713 = vpack.c.b16 %v6696, %v6695
      %v6714 = vpack.c.b16 %v6698, %v6697
      %v6723 = vunpack.c.l.b16 %v5933
      %v6724 = vunpack.c.l.b16 %v5934
      %v6725 = vunpack.c.l.b16 %v5935
      %v6726 = vunpack.c.l.b16 %v5936
      %v6727 = vunpack.c.l.b16 %v5937
      %v6728 = vunpack.c.l.b16 %v5938
      %v6729 = vunpack.c.l.b16 %v5939
      %v6730 = vunpack.c.l.b16 %v5940
      %v6731 = vpack.c.b16 %v6724, %v6723
      %v6732 = vpack.c.b16 %v6726, %v6725
      %v6733 = vpack.c.b16 %v6728, %v6727
      %v6734 = vpack.c.b16 %v6730, %v6729
      %v6740 = vsel %vm6425, %v6699, 0
      %v6743 = vsel %vm6425, %v6700, 0
      %v6746 = vsel %vm6425, %v6701, 0
      %v6749 = vsel %vm6425, %v6702, 0
      %v6752 = vsel %vm6425, %v6703, 0
      %v6755 = vsel %vm6425, %v6704, 0
      %v6758 = vsel %vm6425, %v6705, 0
      %v6761 = vsel %vm6425, %v6706, 0
      %v6764 = vsel %vm6425, %v6707, 0
      %v6767 = vsel %vm6425, %v6708, 0
      %v6770 = vsel %vm6425, %v6709, 0
      %v6773 = vsel %vm6425, %v6710, 0
      %v6776 = vsel %vm6425, %v6711, 0
      %v6779 = vsel %vm6425, %v6712, 0
      %v6782 = vsel %vm6425, %v6713, 0
      %v6785 = vsel %vm6425, %v6714, 0
      %6787 = vmatprep.subr.bf16.mxu0 0
      %6788 = vmatpush1.bf16.msra.mxu0 %v6731
      %6789 = vmatprep.subr.bf16.mxu0 0
      %6790 = vmatpush1.bf16.msra.mxu0 %v6732
      %6791 = vmatprep.subr.bf16.mxu0 0
      %6792 = vmatpush1.bf16.msra.mxu0 %v6733
      %6793 = vmatprep.subr.bf16.mxu0 0
      %6794 = vmatpush1.bf16.msra.mxu0 %v6734
      %6795 = vmatprep.subr.bf16.mxu0 0
      %6796 = vmatpush1.bf16.msra.mxu0 0
      %6797 = vmatprep.subr.bf16.mxu0 0
      %6798 = vmatpush1.bf16.msra.mxu0 0
      %6799 = vmatprep.subr.bf16.mxu0 0
      %6800 = vmatpush1.bf16.msra.mxu0 0
      %6801 = vmatprep.subr.bf16.mxu0 0
      %6802 = vmatpush1.bf16.msra.mxu0 0
      %6803 = vmatprep.subr.bf16.mxu0 0
      %6804 = vmatpush1.bf16.msra.mxu0 0
      %6805 = vmatprep.subr.bf16.mxu0 0
      %6806 = vmatpush1.bf16.msra.mxu0 0
      %6807 = vmatprep.subr.bf16.mxu0 0
      %6808 = vmatpush1.bf16.msra.mxu0 0
      %6809 = vmatprep.subr.bf16.mxu0 0
      %6810 = vmatpush1.bf16.msra.mxu0 0
      %6811 = vmatprep.subr.bf16.mxu0 0
      %6812 = vmatpush1.bf16.msra.mxu0 0
      %6813 = vmatprep.subr.bf16.mxu0 0
      %6814 = vmatpush1.bf16.msra.mxu0 0
      %6815 = vmatprep.subr.bf16.mxu0 0
      %6816 = vmatpush1.bf16.msra.mxu0 0
      %6817 = vmatprep.subr.bf16.mxu0 0
      %6818 = vmatpush1.bf16.msra.mxu0 0
      %6819 = vmatprep.mubr.bf16.mxu0 0
      %6820 = vmatmul.mubr.bf16.gmra.mrb[0].mxu0 %v6740
      %v6821 = vpop.f32.mrb[0].mxu0
      %v6822 = vadd.f32 %v6509, %v6821
      %v6823 = vpop.f32.mrb[0].mxu0
      %v6824 = vpop.f32.mrb[0].mxu0
      %v6825 = vadd.f32 %v6512, %v6824
      %v6826 = vpop.f32.mrb[0].mxu0
      %6827 = vmatprep.mubr.bf16.mxu0 0
      %6828 = vmatmul.mubr.bf16.gmra.mrb[0].mxu0 %v6743
      %v6829 = vpop.f32.mrb[0].mxu0
      %v6830 = vadd.f32 %v6517, %v6829
      %v6831 = vpop.f32.mrb[0].mxu0
      %v6832 = vpop.f32.mrb[0].mxu0
      %v6833 = vadd.f32 %v6520, %v6832
      %v6834 = vpop.f32.mrb[0].mxu0
      %6835 = vmatprep.mubr.bf16.mxu0 0
      %6836 = vmatmul.mubr.bf16.gmra.mrb[0].mxu0 %v6746
      %v6837 = vpop.f32.mrb[0].mxu0
      %v6838 = vadd.f32 %v6525, %v6837
      %v6839 = vpop.f32.mrb[0].mxu0
      %v6840 = vpop.f32.mrb[0].mxu0
      %v6841 = vadd.f32 %v6528, %v6840
      %v6842 = vpop.f32.mrb[0].mxu0
      %6843 = vmatprep.mubr.bf16.mxu0 0
      %6844 = vmatmul.mubr.bf16.gmra.mrb[0].mxu0 %v6749
      %v6845 = vpop.f32.mrb[0].mxu0
      %v6846 = vadd.f32 %v6533, %v6845
      %v6847 = vpop.f32.mrb[0].mxu0
      %v6848 = vpop.f32.mrb[0].mxu0
      %v6849 = vadd.f32 %v6536, %v6848
      %v6850 = vpop.f32.mrb[0].mxu0
      %6851 = vmatprep.mubr.bf16.mxu0 0
      %6852 = vmatmul.mubr.bf16.gmra.mrb[0].mxu0 %v6752
      %v6853 = vpop.f32.mrb[0].mxu0
      %v6854 = vadd.f32 %v6541, %v6853
      %v6855 = vpop.f32.mrb[0].mxu0
      %v6856 = vpop.f32.mrb[0].mxu0
      %v6857 = vadd.f32 %v6544, %v6856
      %v6858 = vpop.f32.mrb[0].mxu0
      %6859 = vmatprep.mubr.bf16.mxu0 0
      %6860 = vmatmul.mubr.bf16.gmra.mrb[0].mxu0 %v6755
      %v6861 = vpop.f32.mrb[0].mxu0
      %v6862 = vadd.f32 %v6549, %v6861
      %v6863 = vpop.f32.mrb[0].mxu0
      %v6864 = vpop.f32.mrb[0].mxu0
      %v6865 = vadd.f32 %v6552, %v6864
      %v6866 = vpop.f32.mrb[0].mxu0
      %6867 = vmatprep.mubr.bf16.mxu0 0
      %6868 = vmatmul.mubr.bf16.gmra.mrb[0].mxu0 %v6758
      %v6869 = vpop.f32.mrb[0].mxu0
      %v6870 = vadd.f32 %v6557, %v6869
      %v6871 = vpop.f32.mrb[0].mxu0
      %v6872 = vpop.f32.mrb[0].mxu0
      %v6873 = vadd.f32 %v6560, %v6872
      %v6874 = vpop.f32.mrb[0].mxu0
      %6875 = vmatprep.mubr.bf16.mxu0 0
      %6876 = vmatmul.mubr.bf16.gmra.mrb[0].mxu0 %v6761
      %v6877 = vpop.f32.mrb[0].mxu0
      %v6878 = vadd.f32 %v6565, %v6877
      %v6879 = vpop.f32.mrb[0].mxu0
      %v6880 = vpop.f32.mrb[0].mxu0
      %v6881 = vadd.f32 %v6568, %v6880
      %v6882 = vpop.f32.mrb[0].mxu0
      %6883 = vmatprep.mubr.bf16.mxu0 0
      %6884 = vmatmul.mubr.bf16.gmra.mrb[0].mxu0 %v6764
      %v6885 = vpop.f32.mrb[0].mxu0
      %v6886 = vadd.f32 %v6573, %v6885
      %v6887 = vpop.f32.mrb[0].mxu0
      %v6888 = vpop.f32.mrb[0].mxu0
      %v6889 = vadd.f32 %v6576, %v6888
      %v6890 = vpop.f32.mrb[0].mxu0
      %6891 = vmatprep.mubr.bf16.mxu0 0
      %6892 = vmatmul.mubr.bf16.gmra.mrb[0].mxu0 %v6767
      %v6893 = vpop.f32.mrb[0].mxu0
      %v6894 = vadd.f32 %v6581, %v6893
      %v6895 = vpop.f32.mrb[0].mxu0
      %v6896 = vpop.f32.mrb[0].mxu0
      %v6897 = vadd.f32 %v6584, %v6896
      %v6898 = vpop.f32.mrb[0].mxu0
      %6899 = vmatprep.mubr.bf16.mxu0 0
      %6900 = vmatmul.mubr.bf16.gmra.mrb[0].mxu0 %v6770
      %v6901 = vpop.f32.mrb[0].mxu0
      %v6902 = vadd.f32 %v6589, %v6901
      %v6903 = vpop.f32.mrb[0].mxu0
      %v6904 = vpop.f32.mrb[0].mxu0
      %v6905 = vadd.f32 %v6592, %v6904
      %v6906 = vpop.f32.mrb[0].mxu0
      %6907 = vmatprep.mubr.bf16.mxu0 0
      %6908 = vmatmul.mubr.bf16.gmra.mrb[0].mxu0 %v6773
      %v6909 = vpop.f32.mrb[0].mxu0
      %v6910 = vadd.f32 %v6597, %v6909
      %v6911 = vpop.f32.mrb[0].mxu0
      %v6912 = vpop.f32.mrb[0].mxu0
      %v6913 = vadd.f32 %v6600, %v6912
      %v6914 = vpop.f32.mrb[0].mxu0
      %6915 = vmatprep.mubr.bf16.mxu0 0
      %6916 = vmatmul.mubr.bf16.gmra.mrb[0].mxu0 %v6776
      %v6917 = vpop.f32.mrb[0].mxu0
      %v6918 = vadd.f32 %v6605, %v6917
      %v6919 = vpop.f32.mrb[0].mxu0
      %v6920 = vpop.f32.mrb[0].mxu0
      %v6921 = vadd.f32 %v6608, %v6920
      %v6922 = vpop.f32.mrb[0].mxu0
      %6923 = vmatprep.mubr.bf16.mxu0 0
      %6924 = vmatmul.mubr.bf16.gmra.mrb[0].mxu0 %v6779
      %v6925 = vpop.f32.mrb[0].mxu0
      %v6926 = vadd.f32 %v6613, %v6925
      %v6927 = vpop.f32.mrb[0].mxu0
      %v6928 = vpop.f32.mrb[0].mxu0
      %v6929 = vadd.f32 %v6616, %v6928
      %v6930 = vpop.f32.mrb[0].mxu0
      %6931 = vmatprep.mubr.bf16.mxu0 0
      %6932 = vmatmul.mubr.bf16.gmra.mrb[0].mxu0 %v6782
      %v6933 = vpop.f32.mrb[0].mxu0
      %v6934 = vadd.f32 %v6621, %v6933
      %v6935 = vpop.f32.mrb[0].mxu0
      %v6936 = vpop.f32.mrb[0].mxu0
      %v6937 = vadd.f32 %v6624, %v6936
      %v6938 = vpop.f32.mrb[0].mxu0
      %6939 = vmatprep.mubr.bf16.mxu0 0
      %6940 = vmatmul.mubr.bf16.gmra.mrb[0].mxu0 %v6785
      %v6941 = vpop.f32.mrb[0].mxu0
      %v6942 = vadd.f32 %v6629, %v6941
      %v6943 = vpop.f32.mrb[0].mxu0
      %v6944 = vpop.f32.mrb[0].mxu0
      %v6945 = vadd.f32 %v6632, %v6944
      %v6946 = vpop.f32.mrb[0].mxu0
      %6947 = vdwg.mxu0
      %v6948 = vld [vmem:[#allocation2] sm:$0xe]
      %v6949 = vld [vmem:[#allocation2 + $0xc] sm:$0xe]
      %v6950 = vld [vmem:[#allocation2 + $0x18] sm:$0xe]
      %v6951 = vld [vmem:[#allocation2 + $0x24] sm:$0xe]
      %v6952 = vld [vmem:[#allocation2 + $0x30] sm:$0xe]
      %v6953 = vld [vmem:[#allocation2 + $0x3c] sm:$0xe]
      %v6954 = vld [vmem:[#allocation2 + $0x48] sm:$0xe]
      %v6955 = vld [vmem:[#allocation2 + $0x54] sm:$0xe]
      %v6956 = vld [vmem:[#allocation2 + $0x60] sm:$0xe]
      %v6957 = vld [vmem:[#allocation2 + $0x6c] sm:$0xe]
      %v6958 = vld [vmem:[#allocation2 + $0x78] sm:$0xe]
      %v6959 = vld [vmem:[#allocation2 + $0x84] sm:$0xe]
      %v6960 = vld [vmem:[#allocation2 + $0x90] sm:$0xe]
      %v6961 = vld [vmem:[#allocation2 + $0x9c] sm:$0xe]
      %v6962 = vld [vmem:[#allocation2 + $0xa8] sm:$0xe]
      %v6963 = vld [vmem:[#allocation2 + $0xb4] sm:$0xe]
      %vm6996 = vcmask 1042432
      %vm6997 = vcmask 1046532
      %vm6998 = vmor %vm6996, %vm6997
      %v6999 = vrot.slane %v6948, 5
      %v7000 = vrot.slane %v6999, 4
      %v7001 = vrot.slane %v5901, 5
      %v7002 = vsel %vm6998, %v7000, %v7001
      %v7003 = vrot.slane %v7001, 4
      %v7004 = vrot.slane %v5941, 5
      %v7005 = vsel %vm6998, %v7003, %v7004
      %v7006 = vrot.slane %v6949, 5
      %v7007 = vrot.slane %v7006, 4
      %v7008 = vrot.slane %v5903, 5
      %v7009 = vsel %vm6998, %v7007, %v7008
      %v7010 = vrot.slane %v7008, 4
      %v7011 = vrot.slane %v5942, 5
      %v7012 = vsel %vm6998, %v7010, %v7011
      %v7013 = vrot.slane %v6950, 5
      %v7014 = vrot.slane %v7013, 4
      %v7015 = vrot.slane %v5905, 5
      %v7016 = vsel %vm6998, %v7014, %v7015
      %v7017 = vrot.slane %v7015, 4
      %v7018 = vrot.slane %v5943, 5
      %v7019 = vsel %vm6998, %v7017, %v7018
      %v7020 = vrot.slane %v6951, 5
      %v7021 = vrot.slane %v7020, 4
      %v7022 = vrot.slane %v5907, 5
      %v7023 = vsel %vm6998, %v7021, %v7022
      %v7024 = vrot.slane %v7022, 4
      %v7025 = vrot.slane %v5944, 5
      %v7026 = vsel %vm6998, %v7024, %v7025
      %v7027 = vrot.slane %v6952, 5
      %v7028 = vrot.slane %v7027, 4
      %v7029 = vrot.slane %v5909, 5
      %v7030 = vsel %vm6998, %v7028, %v7029
      %v7031 = vrot.slane %v7029, 4
      %v7032 = vrot.slane %v5945, 5
      %v7033 = vsel %vm6998, %v7031, %v7032
      %v7034 = vrot.slane %v6953, 5
      %v7035 = vrot.slane %v7034, 4
      %v7036 = vrot.slane %v5911, 5
      %v7037 = vsel %vm6998, %v7035, %v7036
      %v7038 = vrot.slane %v7036, 4
      %v7039 = vrot.slane %v5946, 5
      %v7040 = vsel %vm6998, %v7038, %v7039
      %v7041 = vrot.slane %v6954, 5
      %v7042 = vrot.slane %v7041, 4
      %v7043 = vrot.slane %v5913, 5
      %v7044 = vsel %vm6998, %v7042, %v7043
      %v7045 = vrot.slane %v7043, 4
      %v7046 = vrot.slane %v5947, 5
      %v7047 = vsel %vm6998, %v7045, %v7046
      %v7048 = vrot.slane %v6955, 5
      %v7049 = vrot.slane %v7048, 4
      %v7050 = vrot.slane %v5915, 5
      %v7051 = vsel %vm6998, %v7049, %v7050
      %v7052 = vrot.slane %v7050, 4
      %v7053 = vrot.slane %v5948, 5
      %v7054 = vsel %vm6998, %v7052, %v7053
      %v7055 = vrot.slane %v6956, 5
      %v7056 = vrot.slane %v7055, 4
      %v7057 = vrot.slane %v5917, 5
      %v7058 = vsel %vm6998, %v7056, %v7057
      %v7059 = vrot.slane %v7057, 4
      %v7060 = vrot.slane %v5949, 5
      %v7061 = vsel %vm6998, %v7059, %v7060
      %v7062 = vrot.slane %v6957, 5
      %v7063 = vrot.slane %v7062, 4
      %v7064 = vrot.slane %v5919, 5
      %v7065 = vsel %vm6998, %v7063, %v7064
      %v7066 = vrot.slane %v7064, 4
      %v7067 = vrot.slane %v5950, 5
      %v7068 = vsel %vm6998, %v7066, %v7067
      %v7069 = vrot.slane %v6958, 5
      %v7070 = vrot.slane %v7069, 4
      %v7071 = vrot.slane %v5921, 5
      %v7072 = vsel %vm6998, %v7070, %v7071
      %v7073 = vrot.slane %v7071, 4
      %v7074 = vrot.slane %v5951, 5
      %v7075 = vsel %vm6998, %v7073, %v7074
      %v7076 = vrot.slane %v6959, 5
      %v7077 = vrot.slane %v7076, 4
      %v7078 = vrot.slane %v5923, 5
      %v7079 = vsel %vm6998, %v7077, %v7078
      %v7080 = vrot.slane %v7078, 4
      %v7081 = vrot.slane %v5952, 5
      %v7082 = vsel %vm6998, %v7080, %v7081
      %v7083 = vrot.slane %v6960, 5
      %v7084 = vrot.slane %v7083, 4
      %v7085 = vrot.slane %v5925, 5
      %v7086 = vsel %vm6998, %v7084, %v7085
      %v7087 = vrot.slane %v7085, 4
      %v7088 = vrot.slane %v5953, 5
      %v7089 = vsel %vm6998, %v7087, %v7088
      %v7090 = vrot.slane %v6961, 5
      %v7091 = vrot.slane %v7090, 4
      %v7092 = vrot.slane %v5927, 5
      %v7093 = vsel %vm6998, %v7091, %v7092
      %v7094 = vrot.slane %v7092, 4
      %v7095 = vrot.slane %v5954, 5
      %v7096 = vsel %vm6998, %v7094, %v7095
      %v7097 = vrot.slane %v6962, 5
      %v7098 = vrot.slane %v7097, 4
      %v7099 = vrot.slane %v5929, 5
      %v7100 = vsel %vm6998, %v7098, %v7099
      %v7101 = vrot.slane %v7099, 4
      %v7102 = vrot.slane %v5955, 5
      %v7103 = vsel %vm6998, %v7101, %v7102
      %v7104 = vrot.slane %v6963, 5
      %v7105 = vrot.slane %v7104, 4
      %v7106 = vrot.slane %v5931, 5
      %v7107 = vsel %vm6998, %v7105, %v7106
      %v7108 = vrot.slane %v7106, 4
      %v7109 = vrot.slane %v5956, 5
      %v7110 = vsel %vm6998, %v7108, %v7109
      %s7111 = scalar_lea.vmem %s1, 5536
      %v7112 = vld [vmem:[%s7111] sm:$0xf]
      %v7113 = vld [vmem:[%s7111 + $0x4] sm:$0xf]
      %v7114 = vld [vmem:[%s7111 + $0x8] sm:$0xf]
      %v7115 = vld [vmem:[%s7111 + $0xc] sm:$0xf]
      %v7116 = vld [vmem:[%s7111 + $0x10] sm:$0xf]
      %v7117 = vld [vmem:[%s7111 + $0x14] sm:$0xf]
      %v7118 = vld [vmem:[%s7111 + $0x18] sm:$0xf]
      %v7119 = vld [vmem:[%s7111 + $0x1c] sm:$0xf]
      %v7120 = vunpack.c.l.b16 %v7002
      %v7121 = vunpack.c.l.b16 %v7005
      %v7122 = vunpack.c.l.b16 %v7009
      %v7123 = vunpack.c.l.b16 %v7012
      %v7124 = vunpack.c.l.b16 %v7016
      %v7125 = vunpack.c.l.b16 %v7019
      %v7126 = vunpack.c.l.b16 %v7023
      %v7127 = vunpack.c.l.b16 %v7026
      %v7128 = vunpack.c.l.b16 %v7030
      %v7129 = vunpack.c.l.b16 %v7033
      %v7130 = vunpack.c.l.b16 %v7037
      %v7131 = vunpack.c.l.b16 %v7040
      %v7132 = vunpack.c.l.b16 %v7044
      %v7133 = vunpack.c.l.b16 %v7047
      %v7134 = vunpack.c.l.b16 %v7051
      %v7135 = vunpack.c.l.b16 %v7054
      %v7136 = vunpack.c.l.b16 %v7058
      %v7137 = vunpack.c.l.b16 %v7061
      %v7138 = vunpack.c.l.b16 %v7065
      %v7139 = vunpack.c.l.b16 %v7068
      %v7140 = vunpack.c.l.b16 %v7072
      %v7141 = vunpack.c.l.b16 %v7075
      %v7142 = vunpack.c.l.b16 %v7079
      %v7143 = vunpack.c.l.b16 %v7082
      %v7144 = vunpack.c.l.b16 %v7086
      %v7145 = vunpack.c.l.b16 %v7089
      %v7146 = vunpack.c.l.b16 %v7093
      %v7147 = vunpack.c.l.b16 %v7096
      %v7148 = vunpack.c.l.b16 %v7100
      %v7149 = vunpack.c.l.b16 %v7103
      %v7150 = vunpack.c.l.b16 %v7107
      %v7151 = vunpack.c.l.b16 %v7110
      %v7152 = vpack.c.b16 %v7121, %v7120
      %v7153 = vpack.c.b16 %v7123, %v7122
      %v7154 = vpack.c.b16 %v7125, %v7124
      %v7155 = vpack.c.b16 %v7127, %v7126
      %v7156 = vpack.c.b16 %v7129, %v7128
      %v7157 = vpack.c.b16 %v7131, %v7130
      %v7158 = vpack.c.b16 %v7133, %v7132
      %v7159 = vpack.c.b16 %v7135, %v7134
      %v7160 = vpack.c.b16 %v7137, %v7136
      %v7161 = vpack.c.b16 %v7139, %v7138
      %v7162 = vpack.c.b16 %v7141, %v7140
      %v7163 = vpack.c.b16 %v7143, %v7142
      %v7164 = vpack.c.b16 %v7145, %v7144
      %v7165 = vpack.c.b16 %v7147, %v7146
      %v7166 = vpack.c.b16 %v7149, %v7148
      %v7167 = vpack.c.b16 %v7151, %v7150
      %v7176 = vunpack.c.l.b16 %v7112
      %v7177 = vunpack.c.l.b16 %v7113
      %v7178 = vunpack.c.l.b16 %v7114
      %v7179 = vunpack.c.l.b16 %v7115
      %v7180 = vunpack.c.l.b16 %v7116
      %v7181 = vunpack.c.l.b16 %v7117
      %v7182 = vunpack.c.l.b16 %v7118
      %v7183 = vunpack.c.l.b16 %v7119
      %v7184 = vpack.c.b16 %v7177, %v7176
      %v7185 = vpack.c.b16 %v7179, %v7178
      %v7186 = vpack.c.b16 %v7181, %v7180
      %v7187 = vpack.c.b16 %v7183, %v7182
      %v7193 = vsel %vm6425, %v7152, 0
      %v7196 = vsel %vm6425, %v7153, 0
      %v7199 = vsel %vm6425, %v7154, 0
      %v7202 = vsel %vm6425, %v7155, 0
      %v7205 = vsel %vm6425, %v7156, 0
      %v7208 = vsel %vm6425, %v7157, 0
      %v7211 = vsel %vm6425, %v7158, 0
      %v7214 = vsel %vm6425, %v7159, 0
      %v7217 = vsel %vm6425, %v7160, 0
      %v7220 = vsel %vm6425, %v7161, 0
      %v7223 = vsel %vm6425, %v7162, 0
      %v7226 = vsel %vm6425, %v7163, 0
      %v7229 = vsel %vm6425, %v7164, 0
      %v7232 = vsel %vm6425, %v7165, 0
      %v7235 = vsel %vm6425, %v7166, 0
      %v7238 = vsel %vm6425, %v7167, 0
      %7240 = vmatprep.subr.bf16.mxu0 0
      %7241 = vmatpush1.bf16.msra.mxu0 %v7184
      %7242 = vmatprep.subr.bf16.mxu0 0
      %7243 = vmatpush1.bf16.msra.mxu0 %v7185
      %7244 = vmatprep.subr.bf16.mxu0 0
      %7245 = vmatpush1.bf16.msra.mxu0 %v7186
      %7246 = vmatprep.subr.bf16.mxu0 0
      %7247 = vmatpush1.bf16.msra.mxu0 %v7187
      %7248 = vmatprep.subr.bf16.mxu0 0
      %7249 = vmatpush1.bf16.msra.mxu0 0
      %7250 = vmatprep.subr.bf16.mxu0 0
      %7251 = vmatpush1.bf16.msra.mxu0 0
      %7252 = vmatprep.subr.bf16.mxu0 0
      %7253 = vmatpush1.bf16.msra.mxu0 0
      %7254 = vmatprep.subr.bf16.mxu0 0
      %7255 = vmatpush1.bf16.msra.mxu0 0
      %7256 = vmatprep.subr.bf16.mxu0 0
      %7257 = vmatpush1.bf16.msra.mxu0 0
      %7258 = vmatprep.subr.bf16.mxu0 0
      %7259 = vmatpush1.bf16.msra.mxu0 0
      %7260 = vmatprep.subr.bf16.mxu0 0
      %7261 = vmatpush1.bf16.msra.mxu0 0
      %7262 = vmatprep.subr.bf16.mxu0 0
      %7263 = vmatpush1.bf16.msra.mxu0 0
      %7264 = vmatprep.subr.bf16.mxu0 0
      %7265 = vmatpush1.bf16.msra.mxu0 0
      %7266 = vmatprep.subr.bf16.mxu0 0
      %7267 = vmatpush1.bf16.msra.mxu0 0
      %7268 = vmatprep.subr.bf16.mxu0 0
      %7269 = vmatpush1.bf16.msra.mxu0 0
      %7270 = vmatprep.subr.bf16.mxu0 0
      %7271 = vmatpush1.bf16.msra.mxu0 0
      %7272 = vmatprep.mubr.bf16.mxu0 0
      %7273 = vmatmul.mubr.bf16.gmra.mrb[0].mxu0 %v7193
      %v7274 = vpop.f32.mrb[0].mxu0
      %v7275 = vadd.f32 0.0, %v7274
      %v7276 = vpop.f32.mrb[0].mxu0
      %v7277 = vpop.f32.mrb[0].mxu0
      %v7278 = vadd.f32 0.0, %v7277
      %v7279 = vpop.f32.mrb[0].mxu0
      %7280 = vmatprep.mubr.bf16.mxu0 0
      %7281 = vmatmul.mubr.bf16.gmra.mrb[0].mxu0 %v7196
      %v7282 = vpop.f32.mrb[0].mxu0
      %v7283 = vadd.f32 0.0, %v7282
      %v7284 = vpop.f32.mrb[0].mxu0
      %v7285 = vpop.f32.mrb[0].mxu0
      %v7286 = vadd.f32 0.0, %v7285
      %v7287 = vpop.f32.mrb[0].mxu0
      %7288 = vmatprep.mubr.bf16.mxu0 0
      %7289 = vmatmul.mubr.bf16.gmra.mrb[0].mxu0 %v7199
      %v7290 = vpop.f32.mrb[0].mxu0
      %v7291 = vadd.f32 0.0, %v7290
      %v7292 = vpop.f32.mrb[0].mxu0
      %v7293 = vpop.f32.mrb[0].mxu0
      %v7294 = vadd.f32 0.0, %v7293
      %v7295 = vpop.f32.mrb[0].mxu0
      %7296 = vmatprep.mubr.bf16.mxu0 0
      %7297 = vmatmul.mubr.bf16.gmra.mrb[0].mxu0 %v7202
      %v7298 = vpop.f32.mrb[0].mxu0
      %v7299 = vadd.f32 0.0, %v7298
      %v7300 = vpop.f32.mrb[0].mxu0
      %v7301 = vpop.f32.mrb[0].mxu0
      %v7302 = vadd.f32 0.0, %v7301
      %v7303 = vpop.f32.mrb[0].mxu0
      %7304 = vmatprep.mubr.bf16.mxu0 0
      %7305 = vmatmul.mubr.bf16.gmra.mrb[0].mxu0 %v7205
      %v7306 = vpop.f32.mrb[0].mxu0
      %v7307 = vadd.f32 0.0, %v7306
      %v7308 = vpop.f32.mrb[0].mxu0
      %v7309 = vpop.f32.mrb[0].mxu0
      %v7310 = vadd.f32 0.0, %v7309
      %v7311 = vpop.f32.mrb[0].mxu0
      %7312 = vmatprep.mubr.bf16.mxu0 0
      %7313 = vmatmul.mubr.bf16.gmra.mrb[0].mxu0 %v7208
      %v7314 = vpop.f32.mrb[0].mxu0
      %v7315 = vadd.f32 0.0, %v7314
      %v7316 = vpop.f32.mrb[0].mxu0
      %v7317 = vpop.f32.mrb[0].mxu0
      %v7318 = vadd.f32 0.0, %v7317
      %v7319 = vpop.f32.mrb[0].mxu0
      %7320 = vmatprep.mubr.bf16.mxu0 0
      %7321 = vmatmul.mubr.bf16.gmra.mrb[0].mxu0 %v7211
      %v7322 = vpop.f32.mrb[0].mxu0
      %v7323 = vadd.f32 0.0, %v7322
      %v7324 = vpop.f32.mrb[0].mxu0
      %v7325 = vpop.f32.mrb[0].mxu0
      %v7326 = vadd.f32 0.0, %v7325
      %v7327 = vpop.f32.mrb[0].mxu0
      %7328 = vmatprep.mubr.bf16.mxu0 0
      %7329 = vmatmul.mubr.bf16.gmra.mrb[0].mxu0 %v7214
      %v7330 = vpop.f32.mrb[0].mxu0
      %v7331 = vadd.f32 0.0, %v7330
      %v7332 = vpop.f32.mrb[0].mxu0
      %v7333 = vpop.f32.mrb[0].mxu0
      %v7334 = vadd.f32 0.0, %v7333
      %v7335 = vpop.f32.mrb[0].mxu0
      %7336 = vmatprep.mubr.bf16.mxu0 0
      %7337 = vmatmul.mubr.bf16.gmra.mrb[0].mxu0 %v7217
      %v7338 = vpop.f32.mrb[0].mxu0
      %v7339 = vadd.f32 0.0, %v7338
      %v7340 = vpop.f32.mrb[0].mxu0
      %v7341 = vpop.f32.mrb[0].mxu0
      %v7342 = vadd.f32 0.0, %v7341
      %v7343 = vpop.f32.mrb[0].mxu0
      %7344 = vmatprep.mubr.bf16.mxu0 0
      %7345 = vmatmul.mubr.bf16.gmra.mrb[0].mxu0 %v7220
      %v7346 = vpop.f32.mrb[0].mxu0
      %v7347 = vadd.f32 0.0, %v7346
      %v7348 = vpop.f32.mrb[0].mxu0
      %v7349 = vpop.f32.mrb[0].mxu0
      %v7350 = vadd.f32 0.0, %v7349
      %v7351 = vpop.f32.mrb[0].mxu0
      %7352 = vmatprep.mubr.bf16.mxu0 0
      %7353 = vmatmul.mubr.bf16.gmra.mrb[0].mxu0 %v7223
      %v7354 = vpop.f32.mrb[0].mxu0
      %v7355 = vadd.f32 0.0, %v7354
      %v7356 = vpop.f32.mrb[0].mxu0
      %v7357 = vpop.f32.mrb[0].mxu0
      %v7358 = vadd.f32 0.0, %v7357
      %v7359 = vpop.f32.mrb[0].mxu0
      %7360 = vmatprep.mubr.bf16.mxu0 0
      %7361 = vmatmul.mubr.bf16.gmra.mrb[0].mxu0 %v7226
      %v7362 = vpop.f32.mrb[0].mxu0
      %v7363 = vadd.f32 0.0, %v7362
      %v7364 = vpop.f32.mrb[0].mxu0
      %v7365 = vpop.f32.mrb[0].mxu0
      %v7366 = vadd.f32 0.0, %v7365
      %v7367 = vpop.f32.mrb[0].mxu0
      %7368 = vmatprep.mubr.bf16.mxu0 0
      %7369 = vmatmul.mubr.bf16.gmra.mrb[0].mxu0 %v7229
      %v7370 = vpop.f32.mrb[0].mxu0
      %v7371 = vadd.f32 0.0, %v7370
      %v7372 = vpop.f32.mrb[0].mxu0
      %v7373 = vpop.f32.mrb[0].mxu0
      %v7374 = vadd.f32 0.0, %v7373
      %v7375 = vpop.f32.mrb[0].mxu0
      %7376 = vmatprep.mubr.bf16.mxu0 0
      %7377 = vmatmul.mubr.bf16.gmra.mrb[0].mxu0 %v7232
      %v7378 = vpop.f32.mrb[0].mxu0
      %v7379 = vadd.f32 0.0, %v7378
      %v7380 = vpop.f32.mrb[0].mxu0
      %v7381 = vpop.f32.mrb[0].mxu0
      %v7382 = vadd.f32 0.0, %v7381
      %v7383 = vpop.f32.mrb[0].mxu0
      %7384 = vmatprep.mubr.bf16.mxu0 0
      %7385 = vmatmul.mubr.bf16.gmra.mrb[0].mxu0 %v7235
      %v7386 = vpop.f32.mrb[0].mxu0
      %v7387 = vadd.f32 0.0, %v7386
      %v7388 = vpop.f32.mrb[0].mxu0
      %v7389 = vpop.f32.mrb[0].mxu0
      %v7390 = vadd.f32 0.0, %v7389
      %v7391 = vpop.f32.mrb[0].mxu0
      %7392 = vmatprep.mubr.bf16.mxu0 0
      %7393 = vmatmul.mubr.bf16.gmra.mrb[0].mxu0 %v7238
      %v7394 = vpop.f32.mrb[0].mxu0
      %v7395 = vadd.f32 0.0, %v7394
      %v7396 = vpop.f32.mrb[0].mxu0
      %v7397 = vpop.f32.mrb[0].mxu0
      %v7398 = vadd.f32 0.0, %v7397
      %v7399 = vpop.f32.mrb[0].mxu0
      %7400 = vdwg.mxu0
      %v7401 = vadd.f32 %v6822, %v7275
      %v7402 = vadd.f32 %v6825, %v7278
      %v7403 = vadd.f32 %v6830, %v7283
      %v7404 = vadd.f32 %v6833, %v7286
      %v7405 = vadd.f32 %v6838, %v7291
      %v7406 = vadd.f32 %v6841, %v7294
      %v7407 = vadd.f32 %v6846, %v7299
      %v7408 = vadd.f32 %v6849, %v7302
      %v7409 = vadd.f32 %v6854, %v7307
      %v7410 = vadd.f32 %v6857, %v7310
      %v7411 = vadd.f32 %v6862, %v7315
      %v7412 = vadd.f32 %v6865, %v7318
      %v7413 = vadd.f32 %v6870, %v7323
      %v7414 = vadd.f32 %v6873, %v7326
      %v7415 = vadd.f32 %v6878, %v7331
      %v7416 = vadd.f32 %v6881, %v7334
      %v7417 = vadd.f32 %v6886, %v7339
      %v7418 = vadd.f32 %v6889, %v7342
      %v7419 = vadd.f32 %v6894, %v7347
      %v7420 = vadd.f32 %v6897, %v7350
      %v7421 = vadd.f32 %v6902, %v7355
      %v7422 = vadd.f32 %v6905, %v7358
      %v7423 = vadd.f32 %v6910, %v7363
      %v7424 = vadd.f32 %v6913, %v7366
      %v7425 = vadd.f32 %v6918, %v7371
      %v7426 = vadd.f32 %v6921, %v7374
      %v7427 = vadd.f32 %v6926, %v7379
      %v7428 = vadd.f32 %v6929, %v7382
      %v7429 = vadd.f32 %v6934, %v7387
      %v7430 = vadd.f32 %v6937, %v7390
      %v7431 = vadd.f32 %v6942, %v7395
      %v7432 = vadd.f32 %v6945, %v7398
      %s7433 = scalar_lea.vmem [#allocation2], 12
      %v7434 = vld [vmem:[%s7433] sm:$0xf]
      %v7435 = vld [vmem:[%s7433 + $0x4] sm:$0xf]
      %v7436 = vld [vmem:[%s7433 + $0xc] sm:$0xf]
      %v7437 = vld [vmem:[%s7433 + $0x10] sm:$0xf]
      %v7438 = vld [vmem:[%s7433 + $0x18] sm:$0xf]
      %v7439 = vld [vmem:[%s7433 + $0x1c] sm:$0xf]
      %v7440 = vld [vmem:[%s7433 + $0x24] sm:$0xf]
      %v7441 = vld [vmem:[%s7433 + $0x28] sm:$0xf]
      %v7442 = vld [vmem:[%s7433 + $0x30] sm:$0xf]
      %v7443 = vld [vmem:[%s7433 + $0x34] sm:$0xf]
      %v7444 = vld [vmem:[%s7433 + $0x3c] sm:$0xf]
      %v7445 = vld [vmem:[%s7433 + $0x40] sm:$0xf]
      %v7446 = vld [vmem:[%s7433 + $0x48] sm:$0xf]
      %v7447 = vld [vmem:[%s7433 + $0x4c] sm:$0xf]
      %v7448 = vld [vmem:[%s7433 + $0x54] sm:$0xf]
      %v7449 = vld [vmem:[%s7433 + $0x58] sm:$0xf]
      %v7450 = vld [vmem:[%s7433 + $0x60] sm:$0xf]
      %v7451 = vld [vmem:[%s7433 + $0x64] sm:$0xf]
      %v7452 = vld [vmem:[%s7433 + $0x6c] sm:$0xf]
      %v7453 = vld [vmem:[%s7433 + $0x70] sm:$0xf]
      %v7454 = vld [vmem:[%s7433 + $0x78] sm:$0xf]
      %v7455 = vld [vmem:[%s7433 + $0x7c] sm:$0xf]
      %v7456 = vld [vmem:[%s7433 + $0x84] sm:$0xf]
      %v7457 = vld [vmem:[%s7433 + $0x88] sm:$0xf]
      %v7458 = vld [vmem:[%s7433 + $0x90] sm:$0xf]
      %v7459 = vld [vmem:[%s7433 + $0x94] sm:$0xf]
      %v7460 = vld [vmem:[%s7433 + $0x9c] sm:$0xf]
      %v7461 = vld [vmem:[%s7433 + $0xa0] sm:$0xf]
      %v7462 = vld [vmem:[%s7433 + $0xa8] sm:$0xf]
      %v7463 = vld [vmem:[%s7433 + $0xac] sm:$0xf]
      %v7464 = vld [vmem:[%s7433 + $0xb4] sm:$0xf]
      %v7465 = vld [vmem:[%s7433 + $0xb8] sm:$0xf]
      %s7466 = scalar_lea.vmem %s1, 5568
      %v7467 = vld [vmem:[%s7466] sm:$0xf]
      %v7468 = vld [vmem:[%s7466 + $0x4] sm:$0xf]
      %v7469 = vld [vmem:[%s7466 + $0x8] sm:$0xf]
      %v7470 = vld [vmem:[%s7466 + $0xc] sm:$0xf]
      %v7471 = vld [vmem:[%s7466 + $0x10] sm:$0xf]
      %v7472 = vld [vmem:[%s7466 + $0x14] sm:$0xf]
      %v7473 = vld [vmem:[%s7466 + $0x18] sm:$0xf]
      %v7474 = vld [vmem:[%s7466 + $0x1c] sm:$0xf]
      %v7507 = vunpack.c.l.b16 %v7434
      %v7508 = vunpack.c.l.b16 %v7435
      %v7509 = vunpack.c.l.b16 %v7436
      %v7510 = vunpack.c.l.b16 %v7437
      %v7511 = vunpack.c.l.b16 %v7438
      %v7512 = vunpack.c.l.b16 %v7439
      %v7513 = vunpack.c.l.b16 %v7440
      %v7514 = vunpack.c.l.b16 %v7441
      %v7515 = vunpack.c.l.b16 %v7442
      %v7516 = vunpack.c.l.b16 %v7443
      %v7517 = vunpack.c.l.b16 %v7444
      %v7518 = vunpack.c.l.b16 %v7445
      %v7519 = vunpack.c.l.b16 %v7446
      %v7520 = vunpack.c.l.b16 %v7447
      %v7521 = vunpack.c.l.b16 %v7448
      %v7522 = vunpack.c.l.b16 %v7449
      %v7523 = vunpack.c.l.b16 %v7450
      %v7524 = vunpack.c.l.b16 %v7451
      %v7525 = vunpack.c.l.b16 %v7452
      %v7526 = vunpack.c.l.b16 %v7453
      %v7527 = vunpack.c.l.b16 %v7454
      %v7528 = vunpack.c.l.b16 %v7455
      %v7529 = vunpack.c.l.b16 %v7456
      %v7530 = vunpack.c.l.b16 %v7457
      %v7531 = vunpack.c.l.b16 %v7458
      %v7532 = vunpack.c.l.b16 %v7459
      %v7533 = vunpack.c.l.b16 %v7460
      %v7534 = vunpack.c.l.b16 %v7461
      %v7535 = vunpack.c.l.b16 %v7462
      %v7536 = vunpack.c.l.b16 %v7463
      %v7537 = vunpack.c.l.b16 %v7464
      %v7538 = vunpack.c.l.b16 %v7465
      %v7539 = vpack.c.b16 %v7508, %v7507
      %v7540 = vpack.c.b16 %v7510, %v7509
      %v7541 = vpack.c.b16 %v7512, %v7511
      %v7542 = vpack.c.b16 %v7514, %v7513
      %v7543 = vpack.c.b16 %v7516, %v7515
      %v7544 = vpack.c.b16 %v7518, %v7517
      %v7545 = vpack.c.b16 %v7520, %v7519
      %v7546 = vpack.c.b16 %v7522, %v7521
      %v7547 = vpack.c.b16 %v7524, %v7523
      %v7548 = vpack.c.b16 %v7526, %v7525
      %v7549 = vpack.c.b16 %v7528, %v7527
      %v7550 = vpack.c.b16 %v7530, %v7529
      %v7551 = vpack.c.b16 %v7532, %v7531
      %v7552 = vpack.c.b16 %v7534, %v7533
      %v7553 = vpack.c.b16 %v7536, %v7535
      %v7554 = vpack.c.b16 %v7538, %v7537
      %v7563 = vunpack.c.l.b16 %v7467
      %v7564 = vunpack.c.l.b16 %v7468
      %v7565 = vunpack.c.l.b16 %v7469
      %v7566 = vunpack.c.l.b16 %v7470
      %v7567 = vunpack.c.l.b16 %v7471
      %v7568 = vunpack.c.l.b16 %v7472
      %v7569 = vunpack.c.l.b16 %v7473
      %v7570 = vunpack.c.l.b16 %v7474
      %v7571 = vpack.c.b16 %v7564, %v7563
      %v7572 = vpack.c.b16 %v7566, %v7565
      %v7573 = vpack.c.b16 %v7568, %v7567
      %v7574 = vpack.c.b16 %v7570, %v7569
      %v7580 = vsel %vm6425, %v7539, 0
      %v7583 = vsel %vm6425, %v7540, 0
      %v7586 = vsel %vm6425, %v7541, 0
      %v7589 = vsel %vm6425, %v7542, 0
      %v7592 = vsel %vm6425, %v7543, 0
      %v7595 = vsel %vm6425, %v7544, 0
      %v7598 = vsel %vm6425, %v7545, 0
      %v7601 = vsel %vm6425, %v7546, 0
      %v7604 = vsel %vm6425, %v7547, 0
      %v7607 = vsel %vm6425, %v7548, 0
      %v7610 = vsel %vm6425, %v7549, 0
      %v7613 = vsel %vm6425, %v7550, 0
      %v7616 = vsel %vm6425, %v7551, 0
      %v7619 = vsel %vm6425, %v7552, 0
      %v7622 = vsel %vm6425, %v7553, 0
      %v7625 = vsel %vm6425, %v7554, 0
      %7627 = vmatprep.subr.bf16.mxu0 0
      %7628 = vmatpush1.bf16.msra.mxu0 %v7571
      %7629 = vmatprep.subr.bf16.mxu0 0
      %7630 = vmatpush1.bf16.msra.mxu0 %v7572
      %7631 = vmatprep.subr.bf16.mxu0 0
      %7632 = vmatpush1.bf16.msra.mxu0 %v7573
      %7633 = vmatprep.subr.bf16.mxu0 0
      %7634 = vmatpush1.bf16.msra.mxu0 %v7574
      %7635 = vmatprep.subr.bf16.mxu0 0
      %7636 = vmatpush1.bf16.msra.mxu0 0
      %7637 = vmatprep.subr.bf16.mxu0 0
      %7638 = vmatpush1.bf16.msra.mxu0 0
      %7639 = vmatprep.subr.bf16.mxu0 0
      %7640 = vmatpush1.bf16.msra.mxu0 0
      %7641 = vmatprep.subr.bf16.mxu0 0
      %7642 = vmatpush1.bf16.msra.mxu0 0
      %7643 = vmatprep.subr.bf16.mxu0 0
      %7644 = vmatpush1.bf16.msra.mxu0 0
      %7645 = vmatprep.subr.bf16.mxu0 0
      %7646 = vmatpush1.bf16.msra.mxu0 0
      %7647 = vmatprep.subr.bf16.mxu0 0
      %7648 = vmatpush1.bf16.msra.mxu0 0
      %7649 = vmatprep.subr.bf16.mxu0 0
      %7650 = vmatpush1.bf16.msra.mxu0 0
      %7651 = vmatprep.subr.bf16.mxu0 0
      %7652 = vmatpush1.bf16.msra.mxu0 0
      %7653 = vmatprep.subr.bf16.mxu0 0
      %7654 = vmatpush1.bf16.msra.mxu0 0
      %7655 = vmatprep.subr.bf16.mxu0 0
      %7656 = vmatpush1.bf16.msra.mxu0 0
      %7657 = vmatprep.subr.bf16.mxu0 0
      %7658 = vmatpush1.bf16.msra.mxu0 0
      %7659 = vmatprep.mubr.bf16.mxu0 0
      %7660 = vmatmul.mubr.bf16.gmra.mrb[0].mxu0 %v7580
      %v7661 = vpop.f32.mrb[0].mxu0
      %v7662 = vadd.f32 0.0, %v7661
      %v7663 = vpop.f32.mrb[0].mxu0
      %v7664 = vpop.f32.mrb[0].mxu0
      %v7665 = vadd.f32 0.0, %v7664
      %v7666 = vpop.f32.mrb[0].mxu0
      %7667 = vmatprep.mubr.bf16.mxu0 0
      %7668 = vmatmul.mubr.bf16.gmra.mrb[0].mxu0 %v7583
      %v7669 = vpop.f32.mrb[0].mxu0
      %v7670 = vadd.f32 0.0, %v7669
      %v7671 = vpop.f32.mrb[0].mxu0
      %v7672 = vpop.f32.mrb[0].mxu0
      %v7673 = vadd.f32 0.0, %v7672
      %v7674 = vpop.f32.mrb[0].mxu0
      %7675 = vmatprep.mubr.bf16.mxu0 0
      %7676 = vmatmul.mubr.bf16.gmra.mrb[0].mxu0 %v7586
      %v7677 = vpop.f32.mrb[0].mxu0
      %v7678 = vadd.f32 0.0, %v7677
      %v7679 = vpop.f32.mrb[0].mxu0
      %v7680 = vpop.f32.mrb[0].mxu0
      %v7681 = vadd.f32 0.0, %v7680
      %v7682 = vpop.f32.mrb[0].mxu0
      %7683 = vmatprep.mubr.bf16.mxu0 0
      %7684 = vmatmul.mubr.bf16.gmra.mrb[0].mxu0 %v7589
      %v7685 = vpop.f32.mrb[0].mxu0
      %v7686 = vadd.f32 0.0, %v7685
      %v7687 = vpop.f32.mrb[0].mxu0
      %v7688 = vpop.f32.mrb[0].mxu0
      %v7689 = vadd.f32 0.0, %v7688
      %v7690 = vpop.f32.mrb[0].mxu0
      %7691 = vmatprep.mubr.bf16.mxu0 0
      %7692 = vmatmul.mubr.bf16.gmra.mrb[0].mxu0 %v7592
      %v7693 = vpop.f32.mrb[0].mxu0
      %v7694 = vadd.f32 0.0, %v7693
      %v7695 = vpop.f32.mrb[0].mxu0
      %v7696 = vpop.f32.mrb[0].mxu0
      %v7697 = vadd.f32 0.0, %v7696
      %v7698 = vpop.f32.mrb[0].mxu0
      %7699 = vmatprep.mubr.bf16.mxu0 0
      %7700 = vmatmul.mubr.bf16.gmra.mrb[0].mxu0 %v7595
      %v7701 = vpop.f32.mrb[0].mxu0
      %v7702 = vadd.f32 0.0, %v7701
      %v7703 = vpop.f32.mrb[0].mxu0
      %v7704 = vpop.f32.mrb[0].mxu0
      %v7705 = vadd.f32 0.0, %v7704
      %v7706 = vpop.f32.mrb[0].mxu0
      %7707 = vmatprep.mubr.bf16.mxu0 0
      %7708 = vmatmul.mubr.bf16.gmra.mrb[0].mxu0 %v7598
      %v7709 = vpop.f32.mrb[0].mxu0
      %v7710 = vadd.f32 0.0, %v7709
      %v7711 = vpop.f32.mrb[0].mxu0
      %v7712 = vpop.f32.mrb[0].mxu0
      %v7713 = vadd.f32 0.0, %v7712
      %v7714 = vpop.f32.mrb[0].mxu0
      %7715 = vmatprep.mubr.bf16.mxu0 0
      %7716 = vmatmul.mubr.bf16.gmra.mrb[0].mxu0 %v7601
      %v7717 = vpop.f32.mrb[0].mxu0
      %v7718 = vadd.f32 0.0, %v7717
      %v7719 = vpop.f32.mrb[0].mxu0
      %v7720 = vpop.f32.mrb[0].mxu0
      %v7721 = vadd.f32 0.0, %v7720
      %v7722 = vpop.f32.mrb[0].mxu0
      %7723 = vmatprep.mubr.bf16.mxu0 0
      %7724 = vmatmul.mubr.bf16.gmra.mrb[0].mxu0 %v7604
      %v7725 = vpop.f32.mrb[0].mxu0
      %v7726 = vadd.f32 0.0, %v7725
      %v7727 = vpop.f32.mrb[0].mxu0
      %v7728 = vpop.f32.mrb[0].mxu0
      %v7729 = vadd.f32 0.0, %v7728
      %v7730 = vpop.f32.mrb[0].mxu0
      %7731 = vmatprep.mubr.bf16.mxu0 0
      %7732 = vmatmul.mubr.bf16.gmra.mrb[0].mxu0 %v7607
      %v7733 = vpop.f32.mrb[0].mxu0
      %v7734 = vadd.f32 0.0, %v7733
      %v7735 = vpop.f32.mrb[0].mxu0
      %v7736 = vpop.f32.mrb[0].mxu0
      %v7737 = vadd.f32 0.0, %v7736
      %v7738 = vpop.f32.mrb[0].mxu0
      %7739 = vmatprep.mubr.bf16.mxu0 0
      %7740 = vmatmul.mubr.bf16.gmra.mrb[0].mxu0 %v7610
      %v7741 = vpop.f32.mrb[0].mxu0
      %v7742 = vadd.f32 0.0, %v7741
      %v7743 = vpop.f32.mrb[0].mxu0
      %v7744 = vpop.f32.mrb[0].mxu0
      %v7745 = vadd.f32 0.0, %v7744
      %v7746 = vpop.f32.mrb[0].mxu0
      %7747 = vmatprep.mubr.bf16.mxu0 0
      %7748 = vmatmul.mubr.bf16.gmra.mrb[0].mxu0 %v7613
      %v7749 = vpop.f32.mrb[0].mxu0
      %v7750 = vadd.f32 0.0, %v7749
      %v7751 = vpop.f32.mrb[0].mxu0
      %v7752 = vpop.f32.mrb[0].mxu0
      %v7753 = vadd.f32 0.0, %v7752
      %v7754 = vpop.f32.mrb[0].mxu0
      %7755 = vmatprep.mubr.bf16.mxu0 0
      %7756 = vmatmul.mubr.bf16.gmra.mrb[0].mxu0 %v7616
      %v7757 = vpop.f32.mrb[0].mxu0
      %v7758 = vadd.f32 0.0, %v7757
      %v7759 = vpop.f32.mrb[0].mxu0
      %v7760 = vpop.f32.mrb[0].mxu0
      %v7761 = vadd.f32 0.0, %v7760
      %v7762 = vpop.f32.mrb[0].mxu0
      %7763 = vmatprep.mubr.bf16.mxu0 0
      %7764 = vmatmul.mubr.bf16.gmra.mrb[0].mxu0 %v7619
      %v7765 = vpop.f32.mrb[0].mxu0
      %v7766 = vadd.f32 0.0, %v7765
      %v7767 = vpop.f32.mrb[0].mxu0
      %v7768 = vpop.f32.mrb[0].mxu0
      %v7769 = vadd.f32 0.0, %v7768
      %v7770 = vpop.f32.mrb[0].mxu0
      %7771 = vmatprep.mubr.bf16.mxu0 0
      %7772 = vmatmul.mubr.bf16.gmra.mrb[0].mxu0 %v7622
      %v7773 = vpop.f32.mrb[0].mxu0
      %v7774 = vadd.f32 0.0, %v7773
      %v7775 = vpop.f32.mrb[0].mxu0
      %v7776 = vpop.f32.mrb[0].mxu0
      %v7777 = vadd.f32 0.0, %v7776
      %v7778 = vpop.f32.mrb[0].mxu0
      %7779 = vmatprep.mubr.bf16.mxu0 0
      %7780 = vmatmul.mubr.bf16.gmra.mrb[0].mxu0 %v7625
      %v7781 = vpop.f32.mrb[0].mxu0
      %v7782 = vadd.f32 0.0, %v7781
      %v7783 = vpop.f32.mrb[0].mxu0
      %v7784 = vpop.f32.mrb[0].mxu0
      %v7785 = vadd.f32 0.0, %v7784
      %v7786 = vpop.f32.mrb[0].mxu0
      %7787 = vdwg.mxu0
      %v7788 = vadd.f32 %v7401, %v7662
      %v7789 = vadd.f32 %v7402, %v7665
      %v7790 = vadd.f32 %v7403, %v7670
      %v7791 = vadd.f32 %v7404, %v7673
      %v7792 = vadd.f32 %v7405, %v7678
      %v7793 = vadd.f32 %v7406, %v7681
      %v7794 = vadd.f32 %v7407, %v7686
      %v7795 = vadd.f32 %v7408, %v7689
      %v7796 = vadd.f32 %v7409, %v7694
      %v7797 = vadd.f32 %v7410, %v7697
      %v7798 = vadd.f32 %v7411, %v7702
      %v7799 = vadd.f32 %v7412, %v7705
      %v7800 = vadd.f32 %v7413, %v7710
      %v7801 = vadd.f32 %v7414, %v7713
      %v7802 = vadd.f32 %v7415, %v7718
      %v7803 = vadd.f32 %v7416, %v7721
      %v7804 = vadd.f32 %v7417, %v7726
      %v7805 = vadd.f32 %v7418, %v7729
      %v7806 = vadd.f32 %v7419, %v7734
      %v7807 = vadd.f32 %v7420, %v7737
      %v7808 = vadd.f32 %v7421, %v7742
      %v7809 = vadd.f32 %v7422, %v7745
      %v7810 = vadd.f32 %v7423, %v7750
      %v7811 = vadd.f32 %v7424, %v7753
      %v7812 = vadd.f32 %v7425, %v7758
      %v7813 = vadd.f32 %v7426, %v7761
      %v7814 = vadd.f32 %v7427, %v7766
      %v7815 = vadd.f32 %v7428, %v7769
      %v7816 = vadd.f32 %v7429, %v7774
      %v7817 = vadd.f32 %v7430, %v7777
      %v7818 = vadd.f32 %v7431, %v7782
      %v7819 = vadd.f32 %v7432, %v7785
      %v7820 = vld [vmem:[%s7433] sm:$0xf]
      %v7821 = vld [vmem:[%s7433 + $0x4] sm:$0xf]
      %v7822 = vld [vmem:[%s7433 + $0x8] sm:$0x1]
      %v7823 = vld [vmem:[%s7433 + $0xc] sm:$0xf]
      %v7824 = vld [vmem:[%s7433 + $0x10] sm:$0xf]
      %v7825 = vld [vmem:[%s7433 + $0x14] sm:$0x1]
      %v7826 = vld [vmem:[%s7433 + $0x18] sm:$0xf]
      %v7827 = vld [vmem:[%s7433 + $0x1c] sm:$0xf]
      %v7828 = vld [vmem:[%s7433 + $0x20] sm:$0x1]
      %v7829 = vld [vmem:[%s7433 + $0x24] sm:$0xf]
      %v7830 = vld [vmem:[%s7433 + $0x28] sm:$0xf]
      %v7831 = vld [vmem:[%s7433 + $0x2c] sm:$0x1]
      %v7832 = vld [vmem:[%s7433 + $0x30] sm:$0xf]
      %v7833 = vld [vmem:[%s7433 + $0x34] sm:$0xf]
      %v7834 = vld [vmem:[%s7433 + $0x38] sm:$0x1]
      %v7835 = vld [vmem:[%s7433 + $0x3c] sm:$0xf]
      %v7836 = vld [vmem:[%s7433 + $0x40] sm:$0xf]
      %v7837 = vld [vmem:[%s7433 + $0x44] sm:$0x1]
      %v7838 = vld [vmem:[%s7433 + $0x48] sm:$0xf]
      %v7839 = vld [vmem:[%s7433 + $0x4c] sm:$0xf]
      %v7840 = vld [vmem:[%s7433 + $0x50] sm:$0x1]
      %v7841 = vld [vmem:[%s7433 + $0x54] sm:$0xf]
      %v7842 = vld [vmem:[%s7433 + $0x58] sm:$0xf]
      %v7843 = vld [vmem:[%s7433 + $0x5c] sm:$0x1]
      %v7844 = vld [vmem:[%s7433 + $0x60] sm:$0xf]
      %v7845 = vld [vmem:[%s7433 + $0x64] sm:$0xf]
      %v7846 = vld [vmem:[%s7433 + $0x68] sm:$0x1]
      %v7847 = vld [vmem:[%s7433 + $0x6c] sm:$0xf]
      %v7848 = vld [vmem:[%s7433 + $0x70] sm:$0xf]
      %v7849 = vld [vmem:[%s7433 + $0x74] sm:$0x1]
      %v7850 = vld [vmem:[%s7433 + $0x78] sm:$0xf]
      %v7851 = vld [vmem:[%s7433 + $0x7c] sm:$0xf]
      %v7852 = vld [vmem:[%s7433 + $0x80] sm:$0x1]
      %v7853 = vld [vmem:[%s7433 + $0x84] sm:$0xf]
      %v7854 = vld [vmem:[%s7433 + $0x88] sm:$0xf]
      %v7855 = vld [vmem:[%s7433 + $0x8c] sm:$0x1]
      %v7856 = vld [vmem:[%s7433 + $0x90] sm:$0xf]
      %v7857 = vld [vmem:[%s7433 + $0x94] sm:$0xf]
      %v7858 = vld [vmem:[%s7433 + $0x98] sm:$0x1]
      %v7859 = vld [vmem:[%s7433 + $0x9c] sm:$0xf]
      %v7860 = vld [vmem:[%s7433 + $0xa0] sm:$0xf]
      %v7861 = vld [vmem:[%s7433 + $0xa4] sm:$0x1]
      %v7862 = vld [vmem:[%s7433 + $0xa8] sm:$0xf]
      %v7863 = vld [vmem:[%s7433 + $0xac] sm:$0xf]
      %v7864 = vld [vmem:[%s7433 + $0xb0] sm:$0x1]
      %v7865 = vld [vmem:[%s7433 + $0xb4] sm:$0xf]
      %v7866 = vld [vmem:[%s7433 + $0xb8] sm:$0xf]
      %v7867 = vld [vmem:[%s7433 + $0xbc] sm:$0x1]
      %v7869 = vshrl.u32 %v7820, 16
      %v7871 = vrot.slane %v7869, 4
      %v7872 = vshll.u32 %v7820, 16
      %v7874 = vrot.slane %v7872, 5
      %v7875 = vor.u32 %v7871, %v7874
      %v7876 = vrot.slane %v7875, 4
      %v7878 = vshll.u32 %v7821, 16
      %v7880 = vrot.slane %v7878, 5
      %v7881 = vsel %vm5959, %v7876, %v7880
      %v7882 = vshrl.u32 %v7821, 16
      %v7884 = vrot.slane %v7882, 4
      %v7885 = vor.u32 %v7884, %v7880
      %v7886 = vrot.slane %v7885, 4
      %v7888 = vshll.u32 %v7822, 16
      %v7890 = vrot.slane %v7888, 5
      %v7891 = vsel %vm5959, %v7886, %v7890
      %v7893 = vshrl.u32 %v7823, 16
      %v7895 = vrot.slane %v7893, 4
      %v7896 = vshll.u32 %v7823, 16
      %v7898 = vrot.slane %v7896, 5
      %v7899 = vor.u32 %v7895, %v7898
      %v7900 = vrot.slane %v7899, 4
      %v7902 = vshll.u32 %v7824, 16
      %v7904 = vrot.slane %v7902, 5
      %v7905 = vsel %vm5959, %v7900, %v7904
      %v7906 = vshrl.u32 %v7824, 16
      %v7908 = vrot.slane %v7906, 4
      %v7909 = vor.u32 %v7908, %v7904
      %v7910 = vrot.slane %v7909, 4
      %v7912 = vshll.u32 %v7825, 16
      %v7914 = vrot.slane %v7912, 5
      %v7915 = vsel %vm5959, %v7910, %v7914
      %v7917 = vshrl.u32 %v7826, 16
      %v7919 = vrot.slane %v7917, 4
      %v7920 = vshll.u32 %v7826, 16
      %v7922 = vrot.slane %v7920, 5
      %v7923 = vor.u32 %v7919, %v7922
      %v7924 = vrot.slane %v7923, 4
      %v7926 = vshll.u32 %v7827, 16
      %v7928 = vrot.slane %v7926, 5
      %v7929 = vsel %vm5959, %v7924, %v7928
      %v7930 = vshrl.u32 %v7827, 16
      %v7932 = vrot.slane %v7930, 4
      %v7933 = vor.u32 %v7932, %v7928
      %v7934 = vrot.slane %v7933, 4
      %v7936 = vshll.u32 %v7828, 16
      %v7938 = vrot.slane %v7936, 5
      %v7939 = vsel %vm5959, %v7934, %v7938
      %v7941 = vshrl.u32 %v7829, 16
      %v7943 = vrot.slane %v7941, 4
      %v7944 = vshll.u32 %v7829, 16
      %v7946 = vrot.slane %v7944, 5
      %v7947 = vor.u32 %v7943, %v7946
      %v7948 = vrot.slane %v7947, 4
      %v7950 = vshll.u32 %v7830, 16
      %v7952 = vrot.slane %v7950, 5
      %v7953 = vsel %vm5959, %v7948, %v7952
      %v7954 = vshrl.u32 %v7830, 16
      %v7956 = vrot.slane %v7954, 4
      %v7957 = vor.u32 %v7956, %v7952
      %v7958 = vrot.slane %v7957, 4
      %v7960 = vshll.u32 %v7831, 16
      %v7962 = vrot.slane %v7960, 5
      %v7963 = vsel %vm5959, %v7958, %v7962
      %v7965 = vshrl.u32 %v7832, 16
      %v7967 = vrot.slane %v7965, 4
      %v7968 = vshll.u32 %v7832, 16
      %v7970 = vrot.slane %v7968, 5
      %v7971 = vor.u32 %v7967, %v7970
      %v7972 = vrot.slane %v7971, 4
      %v7974 = vshll.u32 %v7833, 16
      %v7976 = vrot.slane %v7974, 5
      %v7977 = vsel %vm5959, %v7972, %v7976
      %v7978 = vshrl.u32 %v7833, 16
      %v7980 = vrot.slane %v7978, 4
      %v7981 = vor.u32 %v7980, %v7976
      %v7982 = vrot.slane %v7981, 4
      %v7984 = vshll.u32 %v7834, 16
      %v7986 = vrot.slane %v7984, 5
      %v7987 = vsel %vm5959, %v7982, %v7986
      %v7989 = vshrl.u32 %v7835, 16
      %v7991 = vrot.slane %v7989, 4
      %v7992 = vshll.u32 %v7835, 16
      %v7994 = vrot.slane %v7992, 5
      %v7995 = vor.u32 %v7991, %v7994
      %v7996 = vrot.slane %v7995, 4
      %v7998 = vshll.u32 %v7836, 16
      %v8000 = vrot.slane %v7998, 5
      %v8001 = vsel %vm5959, %v7996, %v8000
      %v8002 = vshrl.u32 %v7836, 16
      %v8004 = vrot.slane %v8002, 4
      %v8005 = vor.u32 %v8004, %v8000
      %v8006 = vrot.slane %v8005, 4
      %v8008 = vshll.u32 %v7837, 16
      %v8010 = vrot.slane %v8008, 5
      %v8011 = vsel %vm5959, %v8006, %v8010
      %v8013 = vshrl.u32 %v7838, 16
      %v8015 = vrot.slane %v8013, 4
      %v8016 = vshll.u32 %v7838, 16
      %v8018 = vrot.slane %v8016, 5
      %v8019 = vor.u32 %v8015, %v8018
      %v8020 = vrot.slane %v8019, 4
      %v8022 = vshll.u32 %v7839, 16
      %v8024 = vrot.slane %v8022, 5
      %v8025 = vsel %vm5959, %v8020, %v8024
      %v8026 = vshrl.u32 %v7839, 16
      %v8028 = vrot.slane %v8026, 4
      %v8029 = vor.u32 %v8028, %v8024
      %v8030 = vrot.slane %v8029, 4
      %v8032 = vshll.u32 %v7840, 16
      %v8034 = vrot.slane %v8032, 5
      %v8035 = vsel %vm5959, %v8030, %v8034
      %v8037 = vshrl.u32 %v7841, 16
      %v8039 = vrot.slane %v8037, 4
      %v8040 = vshll.u32 %v7841, 16
      %v8042 = vrot.slane %v8040, 5
      %v8043 = vor.u32 %v8039, %v8042
      %v8044 = vrot.slane %v8043, 4
      %v8046 = vshll.u32 %v7842, 16
      %v8048 = vrot.slane %v8046, 5
      %v8049 = vsel %vm5959, %v8044, %v8048
      %v8050 = vshrl.u32 %v7842, 16
      %v8052 = vrot.slane %v8050, 4
      %v8053 = vor.u32 %v8052, %v8048
      %v8054 = vrot.slane %v8053, 4
      %v8056 = vshll.u32 %v7843, 16
      %v8058 = vrot.slane %v8056, 5
      %v8059 = vsel %vm5959, %v8054, %v8058
      %v8061 = vshrl.u32 %v7844, 16
      %v8063 = vrot.slane %v8061, 4
      %v8064 = vshll.u32 %v7844, 16
      %v8066 = vrot.slane %v8064, 5
      %v8067 = vor.u32 %v8063, %v8066
      %v8068 = vrot.slane %v8067, 4
      %v8070 = vshll.u32 %v7845, 16
      %v8072 = vrot.slane %v8070, 5
      %v8073 = vsel %vm5959, %v8068, %v8072
      %v8074 = vshrl.u32 %v7845, 16
      %v8076 = vrot.slane %v8074, 4
      %v8077 = vor.u32 %v8076, %v8072
      %v8078 = vrot.slane %v8077, 4
      %v8080 = vshll.u32 %v7846, 16
      %v8082 = vrot.slane %v8080, 5
      %v8083 = vsel %vm5959, %v8078, %v8082
      %v8085 = vshrl.u32 %v7847, 16
      %v8087 = vrot.slane %v8085, 4
      %v8088 = vshll.u32 %v7847, 16
      %v8090 = vrot.slane %v8088, 5
      %v8091 = vor.u32 %v8087, %v8090
      %v8092 = vrot.slane %v8091, 4
      %v8094 = vshll.u32 %v7848, 16
      %v8096 = vrot.slane %v8094, 5
      %v8097 = vsel %vm5959, %v8092, %v8096
      %v8098 = vshrl.u32 %v7848, 16
      %v8100 = vrot.slane %v8098, 4
      %v8101 = vor.u32 %v8100, %v8096
      %v8102 = vrot.slane %v8101, 4
      %v8104 = vshll.u32 %v7849, 16
      %v8106 = vrot.slane %v8104, 5
      %v8107 = vsel %vm5959, %v8102, %v8106
      %v8109 = vshrl.u32 %v7850, 16
      %v8111 = vrot.slane %v8109, 4
      %v8112 = vshll.u32 %v7850, 16
      %v8114 = vrot.slane %v8112, 5
      %v8115 = vor.u32 %v8111, %v8114
      %v8116 = vrot.slane %v8115, 4
      %v8118 = vshll.u32 %v7851, 16
      %v8120 = vrot.slane %v8118, 5
      %v8121 = vsel %vm5959, %v8116, %v8120
      %v8122 = vshrl.u32 %v7851, 16
      %v8124 = vrot.slane %v8122, 4
      %v8125 = vor.u32 %v8124, %v8120
      %v8126 = vrot.slane %v8125, 4
      %v8128 = vshll.u32 %v7852, 16
      %v8130 = vrot.slane %v8128, 5
      %v8131 = vsel %vm5959, %v8126, %v8130
      %v8133 = vshrl.u32 %v7853, 16
      %v8135 = vrot.slane %v8133, 4
      %v8136 = vshll.u32 %v7853, 16
      %v8138 = vrot.slane %v8136, 5
      %v8139 = vor.u32 %v8135, %v8138
      %v8140 = vrot.slane %v8139, 4
      %v8142 = vshll.u32 %v7854, 16
      %v8144 = vrot.slane %v8142, 5
      %v8145 = vsel %vm5959, %v8140, %v8144
      %v8146 = vshrl.u32 %v7854, 16
      %v8148 = vrot.slane %v8146, 4
      %v8149 = vor.u32 %v8148, %v8144
      %v8150 = vrot.slane %v8149, 4
      %v8152 = vshll.u32 %v7855, 16
      %v8154 = vrot.slane %v8152, 5
      %v8155 = vsel %vm5959, %v8150, %v8154
      %v8157 = vshrl.u32 %v7856, 16
      %v8159 = vrot.slane %v8157, 4
      %v8160 = vshll.u32 %v7856, 16
      %v8162 = vrot.slane %v8160, 5
      %v8163 = vor.u32 %v8159, %v8162
      %v8164 = vrot.slane %v8163, 4
      %v8166 = vshll.u32 %v7857, 16
      %v8168 = vrot.slane %v8166, 5
      %v8169 = vsel %vm5959, %v8164, %v8168
      %v8170 = vshrl.u32 %v7857, 16
      %v8172 = vrot.slane %v8170, 4
      %v8173 = vor.u32 %v8172, %v8168
      %v8174 = vrot.slane %v8173, 4
      %v8176 = vshll.u32 %v7858, 16
      %v8178 = vrot.slane %v8176, 5
      %v8179 = vsel %vm5959, %v8174, %v8178
      %v8181 = vshrl.u32 %v7859, 16
      %v8183 = vrot.slane %v8181, 4
      %v8184 = vshll.u32 %v7859, 16
      %v8186 = vrot.slane %v8184, 5
      %v8187 = vor.u32 %v8183, %v8186
      %v8188 = vrot.slane %v8187, 4
      %v8190 = vshll.u32 %v7860, 16
      %v8192 = vrot.slane %v8190, 5
      %v8193 = vsel %vm5959, %v8188, %v8192
      %v8194 = vshrl.u32 %v7860, 16
      %v8196 = vrot.slane %v8194, 4
      %v8197 = vor.u32 %v8196, %v8192
      %v8198 = vrot.slane %v8197, 4
      %v8200 = vshll.u32 %v7861, 16
      %v8202 = vrot.slane %v8200, 5
      %v8203 = vsel %vm5959, %v8198, %v8202
      %v8205 = vshrl.u32 %v7862, 16
      %v8207 = vrot.slane %v8205, 4
      %v8208 = vshll.u32 %v7862, 16
      %v8210 = vrot.slane %v8208, 5
      %v8211 = vor.u32 %v8207, %v8210
      %v8212 = vrot.slane %v8211, 4
      %v8214 = vshll.u32 %v7863, 16
      %v8216 = vrot.slane %v8214, 5
      %v8217 = vsel %vm5959, %v8212, %v8216
      %v8218 = vshrl.u32 %v7863, 16
      %v8220 = vrot.slane %v8218, 4
      %v8221 = vor.u32 %v8220, %v8216
      %v8222 = vrot.slane %v8221, 4
      %v8224 = vshll.u32 %v7864, 16
      %v8226 = vrot.slane %v8224, 5
      %v8227 = vsel %vm5959, %v8222, %v8226
      %v8229 = vshrl.u32 %v7865, 16
      %v8231 = vrot.slane %v8229, 4
      %v8232 = vshll.u32 %v7865, 16
      %v8234 = vrot.slane %v8232, 5
      %v8235 = vor.u32 %v8231, %v8234
      %v8236 = vrot.slane %v8235, 4
      %v8238 = vshll.u32 %v7866, 16
      %v8240 = vrot.slane %v8238, 5
      %v8241 = vsel %vm5959, %v8236, %v8240
      %v8242 = vshrl.u32 %v7866, 16
      %v8244 = vrot.slane %v8242, 4
      %v8245 = vor.u32 %v8244, %v8240
      %v8246 = vrot.slane %v8245, 4
      %v8248 = vshll.u32 %v7867, 16
      %v8250 = vrot.slane %v8248, 5
      %v8251 = vsel %vm5959, %v8246, %v8250
      %s8252 = scalar_lea.vmem %s1, 5600
      %v8253 = vld [vmem:[%s8252] sm:$0xf]
      %v8254 = vld [vmem:[%s8252 + $0x4] sm:$0xf]
      %v8255 = vld [vmem:[%s8252 + $0x8] sm:$0xf]
      %v8256 = vld [vmem:[%s8252 + $0xc] sm:$0xf]
      %v8257 = vld [vmem:[%s8252 + $0x10] sm:$0xf]
      %v8258 = vld [vmem:[%s8252 + $0x14] sm:$0xf]
      %v8259 = vld [vmem:[%s8252 + $0x18] sm:$0xf]
      %v8260 = vld [vmem:[%s8252 + $0x1c] sm:$0xf]
      %v8261 = vunpack.c.l.b16 %v7881
      %v8262 = vunpack.c.l.b16 %v7891
      %v8263 = vunpack.c.l.b16 %v7905
      %v8264 = vunpack.c.l.b16 %v7915
      %v8265 = vunpack.c.l.b16 %v7929
      %v8266 = vunpack.c.l.b16 %v7939
      %v8267 = vunpack.c.l.b16 %v7953
      %v8268 = vunpack.c.l.b16 %v7963
      %v8269 = vunpack.c.l.b16 %v7977
      %v8270 = vunpack.c.l.b16 %v7987
      %v8271 = vunpack.c.l.b16 %v8001
      %v8272 = vunpack.c.l.b16 %v8011
      %v8273 = vunpack.c.l.b16 %v8025
      %v8274 = vunpack.c.l.b16 %v8035
      %v8275 = vunpack.c.l.b16 %v8049
      %v8276 = vunpack.c.l.b16 %v8059
      %v8277 = vunpack.c.l.b16 %v8073
      %v8278 = vunpack.c.l.b16 %v8083
      %v8279 = vunpack.c.l.b16 %v8097
      %v8280 = vunpack.c.l.b16 %v8107
      %v8281 = vunpack.c.l.b16 %v8121
      %v8282 = vunpack.c.l.b16 %v8131
      %v8283 = vunpack.c.l.b16 %v8145
      %v8284 = vunpack.c.l.b16 %v8155
      %v8285 = vunpack.c.l.b16 %v8169
      %v8286 = vunpack.c.l.b16 %v8179
      %v8287 = vunpack.c.l.b16 %v8193
      %v8288 = vunpack.c.l.b16 %v8203
      %v8289 = vunpack.c.l.b16 %v8217
      %v8290 = vunpack.c.l.b16 %v8227
      %v8291 = vunpack.c.l.b16 %v8241
      %v8292 = vunpack.c.l.b16 %v8251
      %v8293 = vpack.c.b16 %v8262, %v8261
      %v8294 = vpack.c.b16 %v8264, %v8263
      %v8295 = vpack.c.b16 %v8266, %v8265
      %v8296 = vpack.c.b16 %v8268, %v8267
      %v8297 = vpack.c.b16 %v8270, %v8269
      %v8298 = vpack.c.b16 %v8272, %v8271
      %v8299 = vpack.c.b16 %v8274, %v8273
      %v8300 = vpack.c.b16 %v8276, %v8275
      %v8301 = vpack.c.b16 %v8278, %v8277
      %v8302 = vpack.c.b16 %v8280, %v8279
      %v8303 = vpack.c.b16 %v8282, %v8281
      %v8304 = vpack.c.b16 %v8284, %v8283
      %v8305 = vpack.c.b16 %v8286, %v8285
      %v8306 = vpack.c.b16 %v8288, %v8287
      %v8307 = vpack.c.b16 %v8290, %v8289
      %v8308 = vpack.c.b16 %v8292, %v8291
      %v8317 = vunpack.c.l.b16 %v8253
      %v8318 = vunpack.c.l.b16 %v8254
      %v8319 = vunpack.c.l.b16 %v8255
      %v8320 = vunpack.c.l.b16 %v8256
      %v8321 = vunpack.c.l.b16 %v8257
      %v8322 = vunpack.c.l.b16 %v8258
      %v8323 = vunpack.c.l.b16 %v8259
      %v8324 = vunpack.c.l.b16 %v8260
      %v8325 = vpack.c.b16 %v8318, %v8317
      %v8326 = vpack.c.b16 %v8320, %v8319
      %v8327 = vpack.c.b16 %v8322, %v8321
      %v8328 = vpack.c.b16 %v8324, %v8323
      %v8334 = vsel %vm6425, %v8293, 0
      %v8337 = vsel %vm6425, %v8294, 0
      %v8340 = vsel %vm6425, %v8295, 0
      %v8343 = vsel %vm6425, %v8296, 0
      %v8346 = vsel %vm6425, %v8297, 0
      %v8349 = vsel %vm6425, %v8298, 0
      %v8352 = vsel %vm6425, %v8299, 0
      %v8355 = vsel %vm6425, %v8300, 0
      %v8358 = vsel %vm6425, %v8301, 0
      %v8361 = vsel %vm6425, %v8302, 0
      %v8364 = vsel %vm6425, %v8303, 0
      %v8367 = vsel %vm6425, %v8304, 0
      %v8370 = vsel %vm6425, %v8305, 0
      %v8373 = vsel %vm6425, %v8306, 0
      %v8376 = vsel %vm6425, %v8307, 0
      %v8379 = vsel %vm6425, %v8308, 0
      %8381 = vmatprep.subr.bf16.mxu0 0
      %8382 = vmatpush1.bf16.msra.mxu0 %v8325
      %8383 = vmatprep.subr.bf16.mxu0 0
      %8384 = vmatpush1.bf16.msra.mxu0 %v8326
      %8385 = vmatprep.subr.bf16.mxu0 0
      %8386 = vmatpush1.bf16.msra.mxu0 %v8327
      %8387 = vmatprep.subr.bf16.mxu0 0
      %8388 = vmatpush1.bf16.msra.mxu0 %v8328
      %8389 = vmatprep.subr.bf16.mxu0 0
      %8390 = vmatpush1.bf16.msra.mxu0 0
      %8391 = vmatprep.subr.bf16.mxu0 0
      %8392 = vmatpush1.bf16.msra.mxu0 0
      %8393 = vmatprep.subr.bf16.mxu0 0
      %8394 = vmatpush1.bf16.msra.mxu0 0
      %8395 = vmatprep.subr.bf16.mxu0 0
      %8396 = vmatpush1.bf16.msra.mxu0 0
      %8397 = vmatprep.subr.bf16.mxu0 0
      %8398 = vmatpush1.bf16.msra.mxu0 0
      %8399 = vmatprep.subr.bf16.mxu0 0
      %8400 = vmatpush1.bf16.msra.mxu0 0
      %8401 = vmatprep.subr.bf16.mxu0 0
      %8402 = vmatpush1.bf16.msra.mxu0 0
      %8403 = vmatprep.subr.bf16.mxu0 0
      %8404 = vmatpush1.bf16.msra.mxu0 0
      %8405 = vmatprep.subr.bf16.mxu0 0
      %8406 = vmatpush1.bf16.msra.mxu0 0
      %8407 = vmatprep.subr.bf16.mxu0 0
      %8408 = vmatpush1.bf16.msra.mxu0 0
      %8409 = vmatprep.subr.bf16.mxu0 0
      %8410 = vmatpush1.bf16.msra.mxu0 0
      %8411 = vmatprep.subr.bf16.mxu0 0
      %8412 = vmatpush1.bf16.msra.mxu0 0
      %8413 = vmatprep.mubr.bf16.mxu0 0
      %8414 = vmatmul.mubr.bf16.gmra.mrb[0].mxu0 %v8334
      %v8415 = vpop.f32.mrb[0].mxu0
      %v8416 = vadd.f32 0.0, %v8415
      %v8417 = vpop.f32.mrb[0].mxu0
      %v8418 = vpop.f32.mrb[0].mxu0
      %v8419 = vadd.f32 0.0, %v8418
      %v8420 = vpop.f32.mrb[0].mxu0
      %8421 = vmatprep.mubr.bf16.mxu0 0
      %8422 = vmatmul.mubr.bf16.gmra.mrb[0].mxu0 %v8337
      %v8423 = vpop.f32.mrb[0].mxu0
      %v8424 = vadd.f32 0.0, %v8423
      %v8425 = vpop.f32.mrb[0].mxu0
      %v8426 = vpop.f32.mrb[0].mxu0
      %v8427 = vadd.f32 0.0, %v8426
      %v8428 = vpop.f32.mrb[0].mxu0
      %8429 = vmatprep.mubr.bf16.mxu0 0
      %8430 = vmatmul.mubr.bf16.gmra.mrb[0].mxu0 %v8340
      %v8431 = vpop.f32.mrb[0].mxu0
      %v8432 = vadd.f32 0.0, %v8431
      %v8433 = vpop.f32.mrb[0].mxu0
      %v8434 = vpop.f32.mrb[0].mxu0
      %v8435 = vadd.f32 0.0, %v8434
      %v8436 = vpop.f32.mrb[0].mxu0
      %8437 = vmatprep.mubr.bf16.mxu0 0
      %8438 = vmatmul.mubr.bf16.gmra.mrb[0].mxu0 %v8343
      %v8439 = vpop.f32.mrb[0].mxu0
      %v8440 = vadd.f32 0.0, %v8439
      %v8441 = vpop.f32.mrb[0].mxu0
      %v8442 = vpop.f32.mrb[0].mxu0
      %v8443 = vadd.f32 0.0, %v8442
      %v8444 = vpop.f32.mrb[0].mxu0
      %8445 = vmatprep.mubr.bf16.mxu0 0
      %8446 = vmatmul.mubr.bf16.gmra.mrb[0].mxu0 %v8346
      %v8447 = vpop.f32.mrb[0].mxu0
      %v8448 = vadd.f32 0.0, %v8447
      %v8449 = vpop.f32.mrb[0].mxu0
      %v8450 = vpop.f32.mrb[0].mxu0
      %v8451 = vadd.f32 0.0, %v8450
      %v8452 = vpop.f32.mrb[0].mxu0
      %8453 = vmatprep.mubr.bf16.mxu0 0
      %8454 = vmatmul.mubr.bf16.gmra.mrb[0].mxu0 %v8349
      %v8455 = vpop.f32.mrb[0].mxu0
      %v8456 = vadd.f32 0.0, %v8455
      %v8457 = vpop.f32.mrb[0].mxu0
      %v8458 = vpop.f32.mrb[0].mxu0
      %v8459 = vadd.f32 0.0, %v8458
      %v8460 = vpop.f32.mrb[0].mxu0
      %8461 = vmatprep.mubr.bf16.mxu0 0
      %8462 = vmatmul.mubr.bf16.gmra.mrb[0].mxu0 %v8352
      %v8463 = vpop.f32.mrb[0].mxu0
      %v8464 = vadd.f32 0.0, %v8463
      %v8465 = vpop.f32.mrb[0].mxu0
      %v8466 = vpop.f32.mrb[0].mxu0
      %v8467 = vadd.f32 0.0, %v8466
      %v8468 = vpop.f32.mrb[0].mxu0
      %8469 = vmatprep.mubr.bf16.mxu0 0
      %8470 = vmatmul.mubr.bf16.gmra.mrb[0].mxu0 %v8355
      %v8471 = vpop.f32.mrb[0].mxu0
      %v8472 = vadd.f32 0.0, %v8471
      %v8473 = vpop.f32.mrb[0].mxu0
      %v8474 = vpop.f32.mrb[0].mxu0
      %v8475 = vadd.f32 0.0, %v8474
      %v8476 = vpop.f32.mrb[0].mxu0
      %8477 = vmatprep.mubr.bf16.mxu0 0
      %8478 = vmatmul.mubr.bf16.gmra.mrb[0].mxu0 %v8358
      %v8479 = vpop.f32.mrb[0].mxu0
      %v8480 = vadd.f32 0.0, %v8479
      %v8481 = vpop.f32.mrb[0].mxu0
      %v8482 = vpop.f32.mrb[0].mxu0
      %v8483 = vadd.f32 0.0, %v8482
      %v8484 = vpop.f32.mrb[0].mxu0
      %8485 = vmatprep.mubr.bf16.mxu0 0
      %8486 = vmatmul.mubr.bf16.gmra.mrb[0].mxu0 %v8361
      %v8487 = vpop.f32.mrb[0].mxu0
      %v8488 = vadd.f32 0.0, %v8487
      %v8489 = vpop.f32.mrb[0].mxu0
      %v8490 = vpop.f32.mrb[0].mxu0
      %v8491 = vadd.f32 0.0, %v8490
      %v8492 = vpop.f32.mrb[0].mxu0
      %8493 = vmatprep.mubr.bf16.mxu0 0
      %8494 = vmatmul.mubr.bf16.gmra.mrb[0].mxu0 %v8364
      %v8495 = vpop.f32.mrb[0].mxu0
      %v8496 = vadd.f32 0.0, %v8495
      %v8497 = vpop.f32.mrb[0].mxu0
      %v8498 = vpop.f32.mrb[0].mxu0
      %v8499 = vadd.f32 0.0, %v8498
      %v8500 = vpop.f32.mrb[0].mxu0
      %8501 = vmatprep.mubr.bf16.mxu0 0
      %8502 = vmatmul.mubr.bf16.gmra.mrb[0].mxu0 %v8367
      %v8503 = vpop.f32.mrb[0].mxu0
      %v8504 = vadd.f32 0.0, %v8503
      %v8505 = vpop.f32.mrb[0].mxu0
      %v8506 = vpop.f32.mrb[0].mxu0
      %v8507 = vadd.f32 0.0, %v8506
      %v8508 = vpop.f32.mrb[0].mxu0
      %8509 = vmatprep.mubr.bf16.mxu0 0
      %8510 = vmatmul.mubr.bf16.gmra.mrb[0].mxu0 %v8370
      %v8511 = vpop.f32.mrb[0].mxu0
      %v8512 = vadd.f32 0.0, %v8511
      %v8513 = vpop.f32.mrb[0].mxu0
      %v8514 = vpop.f32.mrb[0].mxu0
      %v8515 = vadd.f32 0.0, %v8514
      %v8516 = vpop.f32.mrb[0].mxu0
      %8517 = vmatprep.mubr.bf16.mxu0 0
      %8518 = vmatmul.mubr.bf16.gmra.mrb[0].mxu0 %v8373
      %v8519 = vpop.f32.mrb[0].mxu0
      %v8520 = vadd.f32 0.0, %v8519
      %v8521 = vpop.f32.mrb[0].mxu0
      %v8522 = vpop.f32.mrb[0].mxu0
      %v8523 = vadd.f32 0.0, %v8522
      %v8524 = vpop.f32.mrb[0].mxu0
      %8525 = vmatprep.mubr.bf16.mxu0 0
      %8526 = vmatmul.mubr.bf16.gmra.mrb[0].mxu0 %v8376
      %v8527 = vpop.f32.mrb[0].mxu0
      %v8528 = vadd.f32 0.0, %v8527
      %v8529 = vpop.f32.mrb[0].mxu0
      %v8530 = vpop.f32.mrb[0].mxu0
      %v8531 = vadd.f32 0.0, %v8530
      %v8532 = vpop.f32.mrb[0].mxu0
      %8533 = vmatprep.mubr.bf16.mxu0 0
      %8534 = vmatmul.mubr.bf16.gmra.mrb[0].mxu0 %v8379
      %v8535 = vpop.f32.mrb[0].mxu0
      %v8536 = vadd.f32 0.0, %v8535
      %v8537 = vpop.f32.mrb[0].mxu0
      %v8538 = vpop.f32.mrb[0].mxu0
      %v8539 = vadd.f32 0.0, %v8538
      %v8540 = vpop.f32.mrb[0].mxu0
      %8541 = vdwg.mxu0
      %v8542 = vadd.f32 %v7788, %v8416
      %v8543 = vadd.f32 %v7789, %v8419
      %v8544 = vadd.f32 %v7790, %v8424
      %v8545 = vadd.f32 %v7791, %v8427
      %v8546 = vadd.f32 %v7792, %v8432
      %v8547 = vadd.f32 %v7793, %v8435
      %v8548 = vadd.f32 %v7794, %v8440
      %v8549 = vadd.f32 %v7795, %v8443
      %v8550 = vadd.f32 %v7796, %v8448
      %v8551 = vadd.f32 %v7797, %v8451
      %v8552 = vadd.f32 %v7798, %v8456
      %v8553 = vadd.f32 %v7799, %v8459
      %v8554 = vadd.f32 %v7800, %v8464
      %v8555 = vadd.f32 %v7801, %v8467
      %v8556 = vadd.f32 %v7802, %v8472
      %v8557 = vadd.f32 %v7803, %v8475
      %v8558 = vadd.f32 %v7804, %v8480
      %v8559 = vadd.f32 %v7805, %v8483
      %v8560 = vadd.f32 %v7806, %v8488
      %v8561 = vadd.f32 %v7807, %v8491
      %v8562 = vadd.f32 %v7808, %v8496
      %v8563 = vadd.f32 %v7809, %v8499
      %v8564 = vadd.f32 %v7810, %v8504
      %v8565 = vadd.f32 %v7811, %v8507
      %v8566 = vadd.f32 %v7812, %v8512
      %v8567 = vadd.f32 %v7813, %v8515
      %v8568 = vadd.f32 %v7814, %v8520
      %v8569 = vadd.f32 %v7815, %v8523
      %v8570 = vadd.f32 %v7816, %v8528
      %v8571 = vadd.f32 %v7817, %v8531
      %v8572 = vadd.f32 %v7818, %v8536
      %v8573 = vadd.f32 %v7819, %v8539
      %v8574 = vld [vmem:[%s7433] sm:$0xe]
      %v8575 = vld [vmem:[%s7433 + $0xc] sm:$0xe]
      %v8576 = vld [vmem:[%s7433 + $0x18] sm:$0xe]
      %v8577 = vld [vmem:[%s7433 + $0x24] sm:$0xe]
      %v8578 = vld [vmem:[%s7433 + $0x30] sm:$0xe]
      %v8579 = vld [vmem:[%s7433 + $0x3c] sm:$0xe]
      %v8580 = vld [vmem:[%s7433 + $0x48] sm:$0xe]
      %v8581 = vld [vmem:[%s7433 + $0x54] sm:$0xe]
      %v8582 = vld [vmem:[%s7433 + $0x60] sm:$0xe]
      %v8583 = vld [vmem:[%s7433 + $0x6c] sm:$0xe]
      %v8584 = vld [vmem:[%s7433 + $0x78] sm:$0xe]
      %v8585 = vld [vmem:[%s7433 + $0x84] sm:$0xe]
      %v8586 = vld [vmem:[%s7433 + $0x90] sm:$0xe]
      %v8587 = vld [vmem:[%s7433 + $0x9c] sm:$0xe]
      %v8588 = vld [vmem:[%s7433 + $0xa8] sm:$0xe]
      %v8589 = vld [vmem:[%s7433 + $0xb4] sm:$0xe]
      %v8638 = vrot.slane %v8574, 5
      %v8639 = vrot.slane %v8638, 4
      %v8640 = vrot.slane %v7821, 5
      %v8641 = vsel %vm6998, %v8639, %v8640
      %v8642 = vrot.slane %v8640, 4
      %v8643 = vrot.slane %v7822, 5
      %v8644 = vsel %vm6998, %v8642, %v8643
      %v8645 = vrot.slane %v8575, 5
      %v8646 = vrot.slane %v8645, 4
      %v8647 = vrot.slane %v7824, 5
      %v8648 = vsel %vm6998, %v8646, %v8647
      %v8649 = vrot.slane %v8647, 4
      %v8650 = vrot.slane %v7825, 5
      %v8651 = vsel %vm6998, %v8649, %v8650
      %v8652 = vrot.slane %v8576, 5
      %v8653 = vrot.slane %v8652, 4
      %v8654 = vrot.slane %v7827, 5
      %v8655 = vsel %vm6998, %v8653, %v8654
      %v8656 = vrot.slane %v8654, 4
      %v8657 = vrot.slane %v7828, 5
      %v8658 = vsel %vm6998, %v8656, %v8657
      %v8659 = vrot.slane %v8577, 5
      %v8660 = vrot.slane %v8659, 4
      %v8661 = vrot.slane %v7830, 5
      %v8662 = vsel %vm6998, %v8660, %v8661
      %v8663 = vrot.slane %v8661, 4
      %v8664 = vrot.slane %v7831, 5
      %v8665 = vsel %vm6998, %v8663, %v8664
      %v8666 = vrot.slane %v8578, 5
      %v8667 = vrot.slane %v8666, 4
      %v8668 = vrot.slane %v7833, 5
      %v8669 = vsel %vm6998, %v8667, %v8668
      %v8670 = vrot.slane %v8668, 4
      %v8671 = vrot.slane %v7834, 5
      %v8672 = vsel %vm6998, %v8670, %v8671
      %v8673 = vrot.slane %v8579, 5
      %v8674 = vrot.slane %v8673, 4
      %v8675 = vrot.slane %v7836, 5
      %v8676 = vsel %vm6998, %v8674, %v8675
      %v8677 = vrot.slane %v8675, 4
      %v8678 = vrot.slane %v7837, 5
      %v8679 = vsel %vm6998, %v8677, %v8678
      %v8680 = vrot.slane %v8580, 5
      %v8681 = vrot.slane %v8680, 4
      %v8682 = vrot.slane %v7839, 5
      %v8683 = vsel %vm6998, %v8681, %v8682
      %v8684 = vrot.slane %v8682, 4
      %v8685 = vrot.slane %v7840, 5
      %v8686 = vsel %vm6998, %v8684, %v8685
      %v8687 = vrot.slane %v8581, 5
      %v8688 = vrot.slane %v8687, 4
      %v8689 = vrot.slane %v7842, 5
      %v8690 = vsel %vm6998, %v8688, %v8689
      %v8691 = vrot.slane %v8689, 4
      %v8692 = vrot.slane %v7843, 5
      %v8693 = vsel %vm6998, %v8691, %v8692
      %v8694 = vrot.slane %v8582, 5
      %v8695 = vrot.slane %v8694, 4
      %v8696 = vrot.slane %v7845, 5
      %v8697 = vsel %vm6998, %v8695, %v8696
      %v8698 = vrot.slane %v8696, 4
      %v8699 = vrot.slane %v7846, 5
      %v8700 = vsel %vm6998, %v8698, %v8699
      %v8701 = vrot.slane %v8583, 5
      %v8702 = vrot.slane %v8701, 4
      %v8703 = vrot.slane %v7848, 5
      %v8704 = vsel %vm6998, %v8702, %v8703
      %v8705 = vrot.slane %v8703, 4
      %v8706 = vrot.slane %v7849, 5
      %v8707 = vsel %vm6998, %v8705, %v8706
      %v8708 = vrot.slane %v8584, 5
      %v8709 = vrot.slane %v8708, 4
      %v8710 = vrot.slane %v7851, 5
      %v8711 = vsel %vm6998, %v8709, %v8710
      %v8712 = vrot.slane %v8710, 4
      %v8713 = vrot.slane %v7852, 5
      %v8714 = vsel %vm6998, %v8712, %v8713
      %v8715 = vrot.slane %v8585, 5
      %v8716 = vrot.slane %v8715, 4
      %v8717 = vrot.slane %v7854, 5
      %v8718 = vsel %vm6998, %v8716, %v8717
      %v8719 = vrot.slane %v8717, 4
      %v8720 = vrot.slane %v7855, 5
      %v8721 = vsel %vm6998, %v8719, %v8720
      %v8722 = vrot.slane %v8586, 5
      %v8723 = vrot.slane %v8722, 4
      %v8724 = vrot.slane %v7857, 5
      %v8725 = vsel %vm6998, %v8723, %v8724
      %v8726 = vrot.slane %v8724, 4
      %v8727 = vrot.slane %v7858, 5
      %v8728 = vsel %vm6998, %v8726, %v8727
      %v8729 = vrot.slane %v8587, 5
      %v8730 = vrot.slane %v8729, 4
      %v8731 = vrot.slane %v7860, 5
      %v8732 = vsel %vm6998, %v8730, %v8731
      %v8733 = vrot.slane %v8731, 4
      %v8734 = vrot.slane %v7861, 5
      %v8735 = vsel %vm6998, %v8733, %v8734
      %v8736 = vrot.slane %v8588, 5
      %v8737 = vrot.slane %v8736, 4
      %v8738 = vrot.slane %v7863, 5
      %v8739 = vsel %vm6998, %v8737, %v8738
      %v8740 = vrot.slane %v8738, 4
      %v8741 = vrot.slane %v7864, 5
      %v8742 = vsel %vm6998, %v8740, %v8741
      %v8743 = vrot.slane %v8589, 5
      %v8744 = vrot.slane %v8743, 4
      %v8745 = vrot.slane %v7866, 5
      %v8746 = vsel %vm6998, %v8744, %v8745
      %v8747 = vrot.slane %v8745, 4
      %v8748 = vrot.slane %v7867, 5
      %v8749 = vsel %vm6998, %v8747, %v8748
      %s8750 = scalar_lea.vmem %s1, 5632
      %v8751 = vld [vmem:[%s8750] sm:$0xf]
      %v8752 = vld [vmem:[%s8750 + $0x4] sm:$0xf]
      %v8753 = vld [vmem:[%s8750 + $0x8] sm:$0xf]
      %v8754 = vld [vmem:[%s8750 + $0xc] sm:$0xf]
      %v8755 = vld [vmem:[%s8750 + $0x10] sm:$0xf]
      %v8756 = vld [vmem:[%s8750 + $0x14] sm:$0xf]
      %v8757 = vld [vmem:[%s8750 + $0x18] sm:$0xf]
      %v8758 = vld [vmem:[%s8750 + $0x1c] sm:$0xf]
      %v8759 = vunpack.c.l.b16 %v8641
      %v8760 = vunpack.c.l.b16 %v8644
      %v8761 = vunpack.c.l.b16 %v8648
      %v8762 = vunpack.c.l.b16 %v8651
      %v8763 = vunpack.c.l.b16 %v8655
      %v8764 = vunpack.c.l.b16 %v8658
      %v8765 = vunpack.c.l.b16 %v8662
      %v8766 = vunpack.c.l.b16 %v8665
      %v8767 = vunpack.c.l.b16 %v8669
      %v8768 = vunpack.c.l.b16 %v8672
      %v8769 = vunpack.c.l.b16 %v8676
      %v8770 = vunpack.c.l.b16 %v8679
      %v8771 = vunpack.c.l.b16 %v8683
      %v8772 = vunpack.c.l.b16 %v8686
      %v8773 = vunpack.c.l.b16 %v8690
      %v8774 = vunpack.c.l.b16 %v8693
      %v8775 = vunpack.c.l.b16 %v8697
      %v8776 = vunpack.c.l.b16 %v8700
      %v8777 = vunpack.c.l.b16 %v8704
      %v8778 = vunpack.c.l.b16 %v8707
      %v8779 = vunpack.c.l.b16 %v8711
      %v8780 = vunpack.c.l.b16 %v8714
      %v8781 = vunpack.c.l.b16 %v8718
      %v8782 = vunpack.c.l.b16 %v8721
      %v8783 = vunpack.c.l.b16 %v8725
      %v8784 = vunpack.c.l.b16 %v8728
      %v8785 = vunpack.c.l.b16 %v8732
      %v8786 = vunpack.c.l.b16 %v8735
      %v8787 = vunpack.c.l.b16 %v8739
      %v8788 = vunpack.c.l.b16 %v8742
      %v8789 = vunpack.c.l.b16 %v8746
      %v8790 = vunpack.c.l.b16 %v8749
      %v8791 = vpack.c.b16 %v8760, %v8759
      %v8792 = vpack.c.b16 %v8762, %v8761
      %v8793 = vpack.c.b16 %v8764, %v8763
      %v8794 = vpack.c.b16 %v8766, %v8765
      %v8795 = vpack.c.b16 %v8768, %v8767
      %v8796 = vpack.c.b16 %v8770, %v8769
      %v8797 = vpack.c.b16 %v8772, %v8771
      %v8798 = vpack.c.b16 %v8774, %v8773
      %v8799 = vpack.c.b16 %v8776, %v8775
      %v8800 = vpack.c.b16 %v8778, %v8777
      %v8801 = vpack.c.b16 %v8780, %v8779
      %v8802 = vpack.c.b16 %v8782, %v8781
      %v8803 = vpack.c.b16 %v8784, %v8783
      %v8804 = vpack.c.b16 %v8786, %v8785
      %v8805 = vpack.c.b16 %v8788, %v8787
      %v8806 = vpack.c.b16 %v8790, %v8789
      %v8815 = vunpack.c.l.b16 %v8751
      %v8816 = vunpack.c.l.b16 %v8752
      %v8817 = vunpack.c.l.b16 %v8753
      %v8818 = vunpack.c.l.b16 %v8754
      %v8819 = vunpack.c.l.b16 %v8755
      %v8820 = vunpack.c.l.b16 %v8756
      %v8821 = vunpack.c.l.b16 %v8757
      %v8822 = vunpack.c.l.b16 %v8758
      %v8823 = vpack.c.b16 %v8816, %v8815
      %v8824 = vpack.c.b16 %v8818, %v8817
      %v8825 = vpack.c.b16 %v8820, %v8819
      %v8826 = vpack.c.b16 %v8822, %v8821
      %v8832 = vsel %vm6425, %v8791, 0
      %v8835 = vsel %vm6425, %v8792, 0
      %v8838 = vsel %vm6425, %v8793, 0
      %v8841 = vsel %vm6425, %v8794, 0
      %v8844 = vsel %vm6425, %v8795, 0
      %v8847 = vsel %vm6425, %v8796, 0
      %v8850 = vsel %vm6425, %v8797, 0
      %v8853 = vsel %vm6425, %v8798, 0
      %v8856 = vsel %vm6425, %v8799, 0
      %v8859 = vsel %vm6425, %v8800, 0
      %v8862 = vsel %vm6425, %v8801, 0
      %v8865 = vsel %vm6425, %v8802, 0
      %v8868 = vsel %vm6425, %v8803, 0
      %v8871 = vsel %vm6425, %v8804, 0
      %v8874 = vsel %vm6425, %v8805, 0
      %v8877 = vsel %vm6425, %v8806, 0
      %8879 = vmatprep.subr.bf16.mxu0 0
      %8880 = vmatpush1.bf16.msra.mxu0 %v8823
      %8881 = vmatprep.subr.bf16.mxu0 0
      %8882 = vmatpush1.bf16.msra.mxu0 %v8824
      %8883 = vmatprep.subr.bf16.mxu0 0
      %8884 = vmatpush1.bf16.msra.mxu0 %v8825
      %8885 = vmatprep.subr.bf16.mxu0 0
      %8886 = vmatpush1.bf16.msra.mxu0 %v8826
      %8887 = vmatprep.subr.bf16.mxu0 0
      %8888 = vmatpush1.bf16.msra.mxu0 0
      %8889 = vmatprep.subr.bf16.mxu0 0
      %8890 = vmatpush1.bf16.msra.mxu0 0
      %8891 = vmatprep.subr.bf16.mxu0 0
      %8892 = vmatpush1.bf16.msra.mxu0 0
      %8893 = vmatprep.subr.bf16.mxu0 0
      %8894 = vmatpush1.bf16.msra.mxu0 0
      %8895 = vmatprep.subr.bf16.mxu0 0
      %8896 = vmatpush1.bf16.msra.mxu0 0
      %8897 = vmatprep.subr.bf16.mxu0 0
      %8898 = vmatpush1.bf16.msra.mxu0 0
      %8899 = vmatprep.subr.bf16.mxu0 0
      %8900 = vmatpush1.bf16.msra.mxu0 0
      %8901 = vmatprep.subr.bf16.mxu0 0
      %8902 = vmatpush1.bf16.msra.mxu0 0
      %8903 = vmatprep.subr.bf16.mxu0 0
      %8904 = vmatpush1.bf16.msra.mxu0 0
      %8905 = vmatprep.subr.bf16.mxu0 0
      %8906 = vmatpush1.bf16.msra.mxu0 0
      %8907 = vmatprep.subr.bf16.mxu0 0
      %8908 = vmatpush1.bf16.msra.mxu0 0
      %8909 = vmatprep.subr.bf16.mxu0 0
      %8910 = vmatpush1.bf16.msra.mxu0 0
      %8911 = vmatprep.mubr.bf16.mxu0 0
      %8912 = vmatmul.mubr.bf16.gmra.mrb[0].mxu0 %v8832
      %v8913 = vpop.f32.mrb[0].mxu0
      %v8914 = vadd.f32 0.0, %v8913
      %v8915 = vpop.f32.mrb[0].mxu0
      %v8916 = vpop.f32.mrb[0].mxu0
      %v8917 = vadd.f32 0.0, %v8916
      %v8918 = vpop.f32.mrb[0].mxu0
      %8919 = vmatprep.mubr.bf16.mxu0 0
      %8920 = vmatmul.mubr.bf16.gmra.mrb[0].mxu0 %v8835
      %v8921 = vpop.f32.mrb[0].mxu0
      %v8922 = vadd.f32 0.0, %v8921
      %v8923 = vpop.f32.mrb[0].mxu0
      %v8924 = vpop.f32.mrb[0].mxu0
      %v8925 = vadd.f32 0.0, %v8924
      %v8926 = vpop.f32.mrb[0].mxu0
      %8927 = vmatprep.mubr.bf16.mxu0 0
      %8928 = vmatmul.mubr.bf16.gmra.mrb[0].mxu0 %v8838
      %v8929 = vpop.f32.mrb[0].mxu0
      %v8930 = vadd.f32 0.0, %v8929
      %v8931 = vpop.f32.mrb[0].mxu0
      %v8932 = vpop.f32.mrb[0].mxu0
      %v8933 = vadd.f32 0.0, %v8932
      %v8934 = vpop.f32.mrb[0].mxu0
      %8935 = vmatprep.mubr.bf16.mxu0 0
      %8936 = vmatmul.mubr.bf16.gmra.mrb[0].mxu0 %v8841
      %v8937 = vpop.f32.mrb[0].mxu0
      %v8938 = vadd.f32 0.0, %v8937
      %v8939 = vpop.f32.mrb[0].mxu0
      %v8940 = vpop.f32.mrb[0].mxu0
      %v8941 = vadd.f32 0.0, %v8940
      %v8942 = vpop.f32.mrb[0].mxu0
      %8943 = vmatprep.mubr.bf16.mxu0 0
      %8944 = vmatmul.mubr.bf16.gmra.mrb[0].mxu0 %v8844
      %v8945 = vpop.f32.mrb[0].mxu0
      %v8946 = vadd.f32 0.0, %v8945
      %v8947 = vpop.f32.mrb[0].mxu0
      %v8948 = vpop.f32.mrb[0].mxu0
      %v8949 = vadd.f32 0.0, %v8948
      %v8950 = vpop.f32.mrb[0].mxu0
      %8951 = vmatprep.mubr.bf16.mxu0 0
      %8952 = vmatmul.mubr.bf16.gmra.mrb[0].mxu0 %v8847
      %v8953 = vpop.f32.mrb[0].mxu0
      %v8954 = vadd.f32 0.0, %v8953
      %v8955 = vpop.f32.mrb[0].mxu0
      %v8956 = vpop.f32.mrb[0].mxu0
      %v8957 = vadd.f32 0.0, %v8956
      %v8958 = vpop.f32.mrb[0].mxu0
      %8959 = vmatprep.mubr.bf16.mxu0 0
      %8960 = vmatmul.mubr.bf16.gmra.mrb[0].mxu0 %v8850
      %v8961 = vpop.f32.mrb[0].mxu0
      %v8962 = vadd.f32 0.0, %v8961
      %v8963 = vpop.f32.mrb[0].mxu0
      %v8964 = vpop.f32.mrb[0].mxu0
      %v8965 = vadd.f32 0.0, %v8964
      %v8966 = vpop.f32.mrb[0].mxu0
      %8967 = vmatprep.mubr.bf16.mxu0 0
      %8968 = vmatmul.mubr.bf16.gmra.mrb[0].mxu0 %v8853
      %v8969 = vpop.f32.mrb[0].mxu0
      %v8970 = vadd.f32 0.0, %v8969
      %v8971 = vpop.f32.mrb[0].mxu0
      %v8972 = vpop.f32.mrb[0].mxu0
      %v8973 = vadd.f32 0.0, %v8972
      %v8974 = vpop.f32.mrb[0].mxu0
      %8975 = vmatprep.mubr.bf16.mxu0 0
      %8976 = vmatmul.mubr.bf16.gmra.mrb[0].mxu0 %v8856
      %v8977 = vpop.f32.mrb[0].mxu0
      %v8978 = vadd.f32 0.0, %v8977
      %v8979 = vpop.f32.mrb[0].mxu0
      %v8980 = vpop.f32.mrb[0].mxu0
      %v8981 = vadd.f32 0.0, %v8980
      %v8982 = vpop.f32.mrb[0].mxu0
      %8983 = vmatprep.mubr.bf16.mxu0 0
      %8984 = vmatmul.mubr.bf16.gmra.mrb[0].mxu0 %v8859
      %v8985 = vpop.f32.mrb[0].mxu0
      %v8986 = vadd.f32 0.0, %v8985
      %v8987 = vpop.f32.mrb[0].mxu0
      %v8988 = vpop.f32.mrb[0].mxu0
      %v8989 = vadd.f32 0.0, %v8988
      %v8990 = vpop.f32.mrb[0].mxu0
      %8991 = vmatprep.mubr.bf16.mxu0 0
      %8992 = vmatmul.mubr.bf16.gmra.mrb[0].mxu0 %v8862
      %v8993 = vpop.f32.mrb[0].mxu0
      %v8994 = vadd.f32 0.0, %v8993
      %v8995 = vpop.f32.mrb[0].mxu0
      %v8996 = vpop.f32.mrb[0].mxu0
      %v8997 = vadd.f32 0.0, %v8996
      %v8998 = vpop.f32.mrb[0].mxu0
      %8999 = vmatprep.mubr.bf16.mxu0 0
      %9000 = vmatmul.mubr.bf16.gmra.mrb[0].mxu0 %v8865
      %v9001 = vpop.f32.mrb[0].mxu0
      %v9002 = vadd.f32 0.0, %v9001
      %v9003 = vpop.f32.mrb[0].mxu0
      %v9004 = vpop.f32.mrb[0].mxu0
      %v9005 = vadd.f32 0.0, %v9004
      %v9006 = vpop.f32.mrb[0].mxu0
      %9007 = vmatprep.mubr.bf16.mxu0 0
      %9008 = vmatmul.mubr.bf16.gmra.mrb[0].mxu0 %v8868
      %v9009 = vpop.f32.mrb[0].mxu0
      %v9010 = vadd.f32 0.0, %v9009
      %v9011 = vpop.f32.mrb[0].mxu0
      %v9012 = vpop.f32.mrb[0].mxu0
      %v9013 = vadd.f32 0.0, %v9012
      %v9014 = vpop.f32.mrb[0].mxu0
      %9015 = vmatprep.mubr.bf16.mxu0 0
      %9016 = vmatmul.mubr.bf16.gmra.mrb[0].mxu0 %v8871
      %v9017 = vpop.f32.mrb[0].mxu0
      %v9018 = vadd.f32 0.0, %v9017
      %v9019 = vpop.f32.mrb[0].mxu0
      %v9020 = vpop.f32.mrb[0].mxu0
      %v9021 = vadd.f32 0.0, %v9020
      %v9022 = vpop.f32.mrb[0].mxu0
      %9023 = vmatprep.mubr.bf16.mxu0 0
      %9024 = vmatmul.mubr.bf16.gmra.mrb[0].mxu0 %v8874
      %v9025 = vpop.f32.mrb[0].mxu0
      %v9026 = vadd.f32 0.0, %v9025
      %v9027 = vpop.f32.mrb[0].mxu0
      %v9028 = vpop.f32.mrb[0].mxu0
      %v9029 = vadd.f32 0.0, %v9028
      %v9030 = vpop.f32.mrb[0].mxu0
      %9031 = vmatprep.mubr.bf16.mxu0 0
      %9032 = vmatmul.mubr.bf16.gmra.mrb[0].mxu0 %v8877
      %v9033 = vpop.f32.mrb[0].mxu0
      %v9034 = vadd.f32 0.0, %v9033
      %v9035 = vpop.f32.mrb[0].mxu0
      %v9036 = vpop.f32.mrb[0].mxu0
      %v9037 = vadd.f32 0.0, %v9036
      %v9038 = vpop.f32.mrb[0].mxu0
      %9039 = vdwg.mxu0
      %v9040 = vadd.f32 %v8542, %v8914
      %v9041 = vadd.f32 %v8543, %v8917
      %v9042 = vadd.f32 %v8544, %v8922
      %v9043 = vadd.f32 %v8545, %v8925
      %v9044 = vadd.f32 %v8546, %v8930
      %v9045 = vadd.f32 %v8547, %v8933
      %v9046 = vadd.f32 %v8548, %v8938
      %v9047 = vadd.f32 %v8549, %v8941
      %v9048 = vadd.f32 %v8550, %v8946
      %v9049 = vadd.f32 %v8551, %v8949
      %v9050 = vadd.f32 %v8552, %v8954
      %v9051 = vadd.f32 %v8553, %v8957
      %v9052 = vadd.f32 %v8554, %v8962
      %v9053 = vadd.f32 %v8555, %v8965
      %v9054 = vadd.f32 %v8556, %v8970
      %v9055 = vadd.f32 %v8557, %v8973
      %v9056 = vadd.f32 %v8558, %v8978
      %v9057 = vadd.f32 %v8559, %v8981
      %v9058 = vadd.f32 %v8560, %v8986
      %v9059 = vadd.f32 %v8561, %v8989
      %v9060 = vadd.f32 %v8562, %v8994
      %v9061 = vadd.f32 %v8563, %v8997
      %v9062 = vadd.f32 %v8564, %v9002
      %v9063 = vadd.f32 %v8565, %v9005
      %v9064 = vadd.f32 %v8566, %v9010
      %v9065 = vadd.f32 %v8567, %v9013
      %v9066 = vadd.f32 %v8568, %v9018
      %v9067 = vadd.f32 %v8569, %v9021
      %v9068 = vadd.f32 %v8570, %v9026
      %v9069 = vadd.f32 %v8571, %v9029
      %v9070 = vadd.f32 %v8572, %v9034
      %v9071 = vadd.f32 %v8573, %v9037
      %s9072 = scalar_lea.vmem [#allocation2], 24
      %v9073 = vld [vmem:[%s9072] sm:$0xf]
      %v9074 = vld [vmem:[%s9072 + $0x4] sm:$0xf]
      %v9075 = vld [vmem:[%s9072 + $0xc] sm:$0xf]
      %v9076 = vld [vmem:[%s9072 + $0x10] sm:$0xf]
      %v9077 = vld [vmem:[%s9072 + $0x18] sm:$0xf]
      %v9078 = vld [vmem:[%s9072 + $0x1c] sm:$0xf]
      %v9079 = vld [vmem:[%s9072 + $0x24] sm:$0xf]
      %v9080 = vld [vmem:[%s9072 + $0x28] sm:$0xf]
      %v9081 = vld [vmem:[%s9072 + $0x30] sm:$0xf]
      %v9082 = vld [vmem:[%s9072 + $0x34] sm:$0xf]
      %v9083 = vld [vmem:[%s9072 + $0x3c] sm:$0xf]
      %v9084 = vld [vmem:[%s9072 + $0x40] sm:$0xf]
      %v9085 = vld [vmem:[%s9072 + $0x48] sm:$0xf]
      %v9086 = vld [vmem:[%s9072 + $0x4c] sm:$0xf]
      %v9087 = vld [vmem:[%s9072 + $0x54] sm:$0xf]
      %v9088 = vld [vmem:[%s9072 + $0x58] sm:$0xf]
      %v9089 = vld [vmem:[%s9072 + $0x60] sm:$0xf]
      %v9090 = vld [vmem:[%s9072 + $0x64] sm:$0xf]
      %v9091 = vld [vmem:[%s9072 + $0x6c] sm:$0xf]
      %v9092 = vld [vmem:[%s9072 + $0x70] sm:$0xf]
      %v9093 = vld [vmem:[%s9072 + $0x78] sm:$0xf]
      %v9094 = vld [vmem:[%s9072 + $0x7c] sm:$0xf]
      %v9095 = vld [vmem:[%s9072 + $0x84] sm:$0xf]
      %v9096 = vld [vmem:[%s9072 + $0x88] sm:$0xf]
      %v9097 = vld [vmem:[%s9072 + $0x90] sm:$0xf]
      %v9098 = vld [vmem:[%s9072 + $0x94] sm:$0xf]
      %v9099 = vld [vmem:[%s9072 + $0x9c] sm:$0xf]
      %v9100 = vld [vmem:[%s9072 + $0xa0] sm:$0xf]
      %v9101 = vld [vmem:[%s9072 + $0xa8] sm:$0xf]
      %v9102 = vld [vmem:[%s9072 + $0xac] sm:$0xf]
      %v9103 = vld [vmem:[%s9072 + $0xb4] sm:$0xf]
      %v9104 = vld [vmem:[%s9072 + $0xb8] sm:$0xf]
      %s9105 = scalar_lea.vmem %s1, 5664
      %v9106 = vld [vmem:[%s9105] sm:$0xf]
      %v9107 = vld [vmem:[%s9105 + $0x4] sm:$0xf]
      %v9108 = vld [vmem:[%s9105 + $0x8] sm:$0xf]
      %v9109 = vld [vmem:[%s9105 + $0xc] sm:$0xf]
      %v9110 = vld [vmem:[%s9105 + $0x10] sm:$0xf]
      %v9111 = vld [vmem:[%s9105 + $0x14] sm:$0xf]
      %v9112 = vld [vmem:[%s9105 + $0x18] sm:$0xf]
      %v9113 = vld [vmem:[%s9105 + $0x1c] sm:$0xf]
      %v9146 = vunpack.c.l.b16 %v9073
      %v9147 = vunpack.c.l.b16 %v9074
      %v9148 = vunpack.c.l.b16 %v9075
      %v9149 = vunpack.c.l.b16 %v9076
      %v9150 = vunpack.c.l.b16 %v9077
      %v9151 = vunpack.c.l.b16 %v9078
      %v9152 = vunpack.c.l.b16 %v9079
      %v9153 = vunpack.c.l.b16 %v9080
      %v9154 = vunpack.c.l.b16 %v9081
      %v9155 = vunpack.c.l.b16 %v9082
      %v9156 = vunpack.c.l.b16 %v9083
      %v9157 = vunpack.c.l.b16 %v9084
      %v9158 = vunpack.c.l.b16 %v9085
      %v9159 = vunpack.c.l.b16 %v9086
      %v9160 = vunpack.c.l.b16 %v9087
      %v9161 = vunpack.c.l.b16 %v9088
      %v9162 = vunpack.c.l.b16 %v9089
      %v9163 = vunpack.c.l.b16 %v9090
      %v9164 = vunpack.c.l.b16 %v9091
      %v9165 = vunpack.c.l.b16 %v9092
      %v9166 = vunpack.c.l.b16 %v9093
      %v9167 = vunpack.c.l.b16 %v9094
      %v9168 = vunpack.c.l.b16 %v9095
      %v9169 = vunpack.c.l.b16 %v9096
      %v9170 = vunpack.c.l.b16 %v9097
      %v9171 = vunpack.c.l.b16 %v9098
      %v9172 = vunpack.c.l.b16 %v9099
      %v9173 = vunpack.c.l.b16 %v9100
      %v9174 = vunpack.c.l.b16 %v9101
      %v9175 = vunpack.c.l.b16 %v9102
      %v9176 = vunpack.c.l.b16 %v9103
      %v9177 = vunpack.c.l.b16 %v9104
      %v9178 = vpack.c.b16 %v9147, %v9146
      %v9179 = vpack.c.b16 %v9149, %v9148
      %v9180 = vpack.c.b16 %v9151, %v9150
      %v9181 = vpack.c.b16 %v9153, %v9152
      %v9182 = vpack.c.b16 %v9155, %v9154
      %v9183 = vpack.c.b16 %v9157, %v9156
      %v9184 = vpack.c.b16 %v9159, %v9158
      %v9185 = vpack.c.b16 %v9161, %v9160
      %v9186 = vpack.c.b16 %v9163, %v9162
      %v9187 = vpack.c.b16 %v9165, %v9164
      %v9188 = vpack.c.b16 %v9167, %v9166
      %v9189 = vpack.c.b16 %v9169, %v9168
      %v9190 = vpack.c.b16 %v9171, %v9170
      %v9191 = vpack.c.b16 %v9173, %v9172
      %v9192 = vpack.c.b16 %v9175, %v9174
      %v9193 = vpack.c.b16 %v9177, %v9176
      %v9202 = vunpack.c.l.b16 %v9106
      %v9203 = vunpack.c.l.b16 %v9107
      %v9204 = vunpack.c.l.b16 %v9108
      %v9205 = vunpack.c.l.b16 %v9109
      %v9206 = vunpack.c.l.b16 %v9110
      %v9207 = vunpack.c.l.b16 %v9111
      %v9208 = vunpack.c.l.b16 %v9112
      %v9209 = vunpack.c.l.b16 %v9113
      %v9210 = vpack.c.b16 %v9203, %v9202
      %v9211 = vpack.c.b16 %v9205, %v9204
      %v9212 = vpack.c.b16 %v9207, %v9206
      %v9213 = vpack.c.b16 %v9209, %v9208
      %v9219 = vsel %vm6425, %v9178, 0
      %v9222 = vsel %vm6425, %v9179, 0
      %v9225 = vsel %vm6425, %v9180, 0
      %v9228 = vsel %vm6425, %v9181, 0
      %v9231 = vsel %vm6425, %v9182, 0
      %v9234 = vsel %vm6425, %v9183, 0
      %v9237 = vsel %vm6425, %v9184, 0
      %v9240 = vsel %vm6425, %v9185, 0
      %v9243 = vsel %vm6425, %v9186, 0
      %v9246 = vsel %vm6425, %v9187, 0
      %v9249 = vsel %vm6425, %v9188, 0
      %v9252 = vsel %vm6425, %v9189, 0
      %v9255 = vsel %vm6425, %v9190, 0
      %v9258 = vsel %vm6425, %v9191, 0
      %v9261 = vsel %vm6425, %v9192, 0
      %v9264 = vsel %vm6425, %v9193, 0
      %9266 = vmatprep.subr.bf16.mxu0 0
      %9267 = vmatpush1.bf16.msra.mxu0 %v9210
      %9268 = vmatprep.subr.bf16.mxu0 0
      %9269 = vmatpush1.bf16.msra.mxu0 %v9211
      %9270 = vmatprep.subr.bf16.mxu0 0
      %9271 = vmatpush1.bf16.msra.mxu0 %v9212
      %9272 = vmatprep.subr.bf16.mxu0 0
      %9273 = vmatpush1.bf16.msra.mxu0 %v9213
      %9274 = vmatprep.subr.bf16.mxu0 0
      %9275 = vmatpush1.bf16.msra.mxu0 0
      %9276 = vmatprep.subr.bf16.mxu0 0
      %9277 = vmatpush1.bf16.msra.mxu0 0
      %9278 = vmatprep.subr.bf16.mxu0 0
      %9279 = vmatpush1.bf16.msra.mxu0 0
      %9280 = vmatprep.subr.bf16.mxu0 0
      %9281 = vmatpush1.bf16.msra.mxu0 0
      %9282 = vmatprep.subr.bf16.mxu0 0
      %9283 = vmatpush1.bf16.msra.mxu0 0
      %9284 = vmatprep.subr.bf16.mxu0 0
      %9285 = vmatpush1.bf16.msra.mxu0 0
      %9286 = vmatprep.subr.bf16.mxu0 0
      %9287 = vmatpush1.bf16.msra.mxu0 0
      %9288 = vmatprep.subr.bf16.mxu0 0
      %9289 = vmatpush1.bf16.msra.mxu0 0
      %9290 = vmatprep.subr.bf16.mxu0 0
      %9291 = vmatpush1.bf16.msra.mxu0 0
      %9292 = vmatprep.subr.bf16.mxu0 0
      %9293 = vmatpush1.bf16.msra.mxu0 0
      %9294 = vmatprep.subr.bf16.mxu0 0
      %9295 = vmatpush1.bf16.msra.mxu0 0
      %9296 = vmatprep.subr.bf16.mxu0 0
      %9297 = vmatpush1.bf16.msra.mxu0 0
      %9298 = vmatprep.mubr.bf16.mxu0 0
      %9299 = vmatmul.mubr.bf16.gmra.mrb[0].mxu0 %v9219
      %v9300 = vpop.f32.mrb[0].mxu0
      %v9301 = vadd.f32 0.0, %v9300
      %v9302 = vpop.f32.mrb[0].mxu0
      %v9303 = vpop.f32.mrb[0].mxu0
      %v9304 = vadd.f32 0.0, %v9303
      %v9305 = vpop.f32.mrb[0].mxu0
      %9306 = vmatprep.mubr.bf16.mxu0 0
      %9307 = vmatmul.mubr.bf16.gmra.mrb[0].mxu0 %v9222
      %v9308 = vpop.f32.mrb[0].mxu0
      %v9309 = vadd.f32 0.0, %v9308
      %v9310 = vpop.f32.mrb[0].mxu0
      %v9311 = vpop.f32.mrb[0].mxu0
      %v9312 = vadd.f32 0.0, %v9311
      %v9313 = vpop.f32.mrb[0].mxu0
      %9314 = vmatprep.mubr.bf16.mxu0 0
      %9315 = vmatmul.mubr.bf16.gmra.mrb[0].mxu0 %v9225
      %v9316 = vpop.f32.mrb[0].mxu0
      %v9317 = vadd.f32 0.0, %v9316
      %v9318 = vpop.f32.mrb[0].mxu0
      %v9319 = vpop.f32.mrb[0].mxu0
      %v9320 = vadd.f32 0.0, %v9319
      %v9321 = vpop.f32.mrb[0].mxu0
      %9322 = vmatprep.mubr.bf16.mxu0 0
      %9323 = vmatmul.mubr.bf16.gmra.mrb[0].mxu0 %v9228
      %v9324 = vpop.f32.mrb[0].mxu0
      %v9325 = vadd.f32 0.0, %v9324
      %v9326 = vpop.f32.mrb[0].mxu0
      %v9327 = vpop.f32.mrb[0].mxu0
      %v9328 = vadd.f32 0.0, %v9327
      %v9329 = vpop.f32.mrb[0].mxu0
      %9330 = vmatprep.mubr.bf16.mxu0 0
      %9331 = vmatmul.mubr.bf16.gmra.mrb[0].mxu0 %v9231
      %v9332 = vpop.f32.mrb[0].mxu0
      %v9333 = vadd.f32 0.0, %v9332
      %v9334 = vpop.f32.mrb[0].mxu0
      %v9335 = vpop.f32.mrb[0].mxu0
      %v9336 = vadd.f32 0.0, %v9335
      %v9337 = vpop.f32.mrb[0].mxu0
      %9338 = vmatprep.mubr.bf16.mxu0 0
      %9339 = vmatmul.mubr.bf16.gmra.mrb[0].mxu0 %v9234
      %v9340 = vpop.f32.mrb[0].mxu0
      %v9341 = vadd.f32 0.0, %v9340
      %v9342 = vpop.f32.mrb[0].mxu0
      %v9343 = vpop.f32.mrb[0].mxu0
      %v9344 = vadd.f32 0.0, %v9343
      %v9345 = vpop.f32.mrb[0].mxu0
      %9346 = vmatprep.mubr.bf16.mxu0 0
      %9347 = vmatmul.mubr.bf16.gmra.mrb[0].mxu0 %v9237
      %v9348 = vpop.f32.mrb[0].mxu0
      %v9349 = vadd.f32 0.0, %v9348
      %v9350 = vpop.f32.mrb[0].mxu0
      %v9351 = vpop.f32.mrb[0].mxu0
      %v9352 = vadd.f32 0.0, %v9351
      %v9353 = vpop.f32.mrb[0].mxu0
      %9354 = vmatprep.mubr.bf16.mxu0 0
      %9355 = vmatmul.mubr.bf16.gmra.mrb[0].mxu0 %v9240
      %v9356 = vpop.f32.mrb[0].mxu0
      %v9357 = vadd.f32 0.0, %v9356
      %v9358 = vpop.f32.mrb[0].mxu0
      %v9359 = vpop.f32.mrb[0].mxu0
      %v9360 = vadd.f32 0.0, %v9359
      %v9361 = vpop.f32.mrb[0].mxu0
      %9362 = vmatprep.mubr.bf16.mxu0 0
      %9363 = vmatmul.mubr.bf16.gmra.mrb[0].mxu0 %v9243
      %v9364 = vpop.f32.mrb[0].mxu0
      %v9365 = vadd.f32 0.0, %v9364
      %v9366 = vpop.f32.mrb[0].mxu0
      %v9367 = vpop.f32.mrb[0].mxu0
      %v9368 = vadd.f32 0.0, %v9367
      %v9369 = vpop.f32.mrb[0].mxu0
      %9370 = vmatprep.mubr.bf16.mxu0 0
      %9371 = vmatmul.mubr.bf16.gmra.mrb[0].mxu0 %v9246
      %v9372 = vpop.f32.mrb[0].mxu0
      %v9373 = vadd.f32 0.0, %v9372
      %v9374 = vpop.f32.mrb[0].mxu0
      %v9375 = vpop.f32.mrb[0].mxu0
      %v9376 = vadd.f32 0.0, %v9375
      %v9377 = vpop.f32.mrb[0].mxu0
      %9378 = vmatprep.mubr.bf16.mxu0 0
      %9379 = vmatmul.mubr.bf16.gmra.mrb[0].mxu0 %v9249
      %v9380 = vpop.f32.mrb[0].mxu0
      %v9381 = vadd.f32 0.0, %v9380
      %v9382 = vpop.f32.mrb[0].mxu0
      %v9383 = vpop.f32.mrb[0].mxu0
      %v9384 = vadd.f32 0.0, %v9383
      %v9385 = vpop.f32.mrb[0].mxu0
      %9386 = vmatprep.mubr.bf16.mxu0 0
      %9387 = vmatmul.mubr.bf16.gmra.mrb[0].mxu0 %v9252
      %v9388 = vpop.f32.mrb[0].mxu0
      %v9389 = vadd.f32 0.0, %v9388
      %v9390 = vpop.f32.mrb[0].mxu0
      %v9391 = vpop.f32.mrb[0].mxu0
      %v9392 = vadd.f32 0.0, %v9391
      %v9393 = vpop.f32.mrb[0].mxu0
      %9394 = vmatprep.mubr.bf16.mxu0 0
      %9395 = vmatmul.mubr.bf16.gmra.mrb[0].mxu0 %v9255
      %v9396 = vpop.f32.mrb[0].mxu0
      %v9397 = vadd.f32 0.0, %v9396
      %v9398 = vpop.f32.mrb[0].mxu0
      %v9399 = vpop.f32.mrb[0].mxu0
      %v9400 = vadd.f32 0.0, %v9399
      %v9401 = vpop.f32.mrb[0].mxu0
      %9402 = vmatprep.mubr.bf16.mxu0 0
      %9403 = vmatmul.mubr.bf16.gmra.mrb[0].mxu0 %v9258
      %v9404 = vpop.f32.mrb[0].mxu0
      %v9405 = vadd.f32 0.0, %v9404
      %v9406 = vpop.f32.mrb[0].mxu0
      %v9407 = vpop.f32.mrb[0].mxu0
      %v9408 = vadd.f32 0.0, %v9407
      %v9409 = vpop.f32.mrb[0].mxu0
      %9410 = vmatprep.mubr.bf16.mxu0 0
      %9411 = vmatmul.mubr.bf16.gmra.mrb[0].mxu0 %v9261
      %v9412 = vpop.f32.mrb[0].mxu0
      %v9413 = vadd.f32 0.0, %v9412
      %v9414 = vpop.f32.mrb[0].mxu0
      %v9415 = vpop.f32.mrb[0].mxu0
      %v9416 = vadd.f32 0.0, %v9415
      %v9417 = vpop.f32.mrb[0].mxu0
      %9418 = vmatprep.mubr.bf16.mxu0 0
      %9419 = vmatmul.mubr.bf16.gmra.mrb[0].mxu0 %v9264
      %v9420 = vpop.f32.mrb[0].mxu0
      %v9421 = vadd.f32 0.0, %v9420
      %v9422 = vpop.f32.mrb[0].mxu0
      %v9423 = vpop.f32.mrb[0].mxu0
      %v9424 = vadd.f32 0.0, %v9423
      %v9425 = vpop.f32.mrb[0].mxu0
      %9426 = vdwg.mxu0
      %v9427 = vadd.f32 %v9040, %v9301
      %v9428 = vadd.f32 %v9041, %v9304
      %v9429 = vadd.f32 %v9042, %v9309
      %v9430 = vadd.f32 %v9043, %v9312
      %v9431 = vadd.f32 %v9044, %v9317
      %v9432 = vadd.f32 %v9045, %v9320
      %v9433 = vadd.f32 %v9046, %v9325
      %v9434 = vadd.f32 %v9047, %v9328
      %v9435 = vadd.f32 %v9048, %v9333
      %v9436 = vadd.f32 %v9049, %v9336
      %v9437 = vadd.f32 %v9050, %v9341
      %v9438 = vadd.f32 %v9051, %v9344
      %v9439 = vadd.f32 %v9052, %v9349
      %v9440 = vadd.f32 %v9053, %v9352
      %v9441 = vadd.f32 %v9054, %v9357
      %v9442 = vadd.f32 %v9055, %v9360
      %v9443 = vadd.f32 %v9056, %v9365
      %v9444 = vadd.f32 %v9057, %v9368
      %v9445 = vadd.f32 %v9058, %v9373
      %v9446 = vadd.f32 %v9059, %v9376
      %v9447 = vadd.f32 %v9060, %v9381
      %v9448 = vadd.f32 %v9061, %v9384
      %v9449 = vadd.f32 %v9062, %v9389
      %v9450 = vadd.f32 %v9063, %v9392
      %v9451 = vadd.f32 %v9064, %v9397
      %v9452 = vadd.f32 %v9065, %v9400
      %v9453 = vadd.f32 %v9066, %v9405
      %v9454 = vadd.f32 %v9067, %v9408
      %v9455 = vadd.f32 %v9068, %v9413
      %v9456 = vadd.f32 %v9069, %v9416
      %v9457 = vadd.f32 %v9070, %v9421
      %v9458 = vadd.f32 %v9071, %v9424
      %v9459 = vld [vmem:[%s9072] sm:$0xf]
      %v9460 = vld [vmem:[%s9072 + $0x4] sm:$0xf]
      %v9461 = vld [vmem:[%s9072 + $0x8] sm:$0x1]
      %v9462 = vld [vmem:[%s9072 + $0xc] sm:$0xf]
      %v9463 = vld [vmem:[%s9072 + $0x10] sm:$0xf]
      %v9464 = vld [vmem:[%s9072 + $0x14] sm:$0x1]
      %v9465 = vld [vmem:[%s9072 + $0x18] sm:$0xf]
      %v9466 = vld [vmem:[%s9072 + $0x1c] sm:$0xf]
      %v9467 = vld [vmem:[%s9072 + $0x20] sm:$0x1]
      %v9468 = vld [vmem:[%s9072 + $0x24] sm:$0xf]
      %v9469 = vld [vmem:[%s9072 + $0x28] sm:$0xf]
      %v9470 = vld [vmem:[%s9072 + $0x2c] sm:$0x1]
      %v9471 = vld [vmem:[%s9072 + $0x30] sm:$0xf]
      %v9472 = vld [vmem:[%s9072 + $0x34] sm:$0xf]
      %v9473 = vld [vmem:[%s9072 + $0x38] sm:$0x1]
      %v9474 = vld [vmem:[%s9072 + $0x3c] sm:$0xf]
      %v9475 = vld [vmem:[%s9072 + $0x40] sm:$0xf]
      %v9476 = vld [vmem:[%s9072 + $0x44] sm:$0x1]
      %v9477 = vld [vmem:[%s9072 + $0x48] sm:$0xf]
      %v9478 = vld [vmem:[%s9072 + $0x4c] sm:$0xf]
      %v9479 = vld [vmem:[%s9072 + $0x50] sm:$0x1]
      %v9480 = vld [vmem:[%s9072 + $0x54] sm:$0xf]
      %v9481 = vld [vmem:[%s9072 + $0x58] sm:$0xf]
      %v9482 = vld [vmem:[%s9072 + $0x5c] sm:$0x1]
      %v9483 = vld [vmem:[%s9072 + $0x60] sm:$0xf]
      %v9484 = vld [vmem:[%s9072 + $0x64] sm:$0xf]
      %v9485 = vld [vmem:[%s9072 + $0x68] sm:$0x1]
      %v9486 = vld [vmem:[%s9072 + $0x6c] sm:$0xf]
      %v9487 = vld [vmem:[%s9072 + $0x70] sm:$0xf]
      %v9488 = vld [vmem:[%s9072 + $0x74] sm:$0x1]
      %v9489 = vld [vmem:[%s9072 + $0x78] sm:$0xf]
      %v9490 = vld [vmem:[%s9072 + $0x7c] sm:$0xf]
      %v9491 = vld [vmem:[%s9072 + $0x80] sm:$0x1]
      %v9492 = vld [vmem:[%s9072 + $0x84] sm:$0xf]
      %v9493 = vld [vmem:[%s9072 + $0x88] sm:$0xf]
      %v9494 = vld [vmem:[%s9072 + $0x8c] sm:$0x1]
      %v9495 = vld [vmem:[%s9072 + $0x90] sm:$0xf]
      %v9496 = vld [vmem:[%s9072 + $0x94] sm:$0xf]
      %v9497 = vld [vmem:[%s9072 + $0x98] sm:$0x1]
      %v9498 = vld [vmem:[%s9072 + $0x9c] sm:$0xf]
      %v9499 = vld [vmem:[%s9072 + $0xa0] sm:$0xf]
      %v9500 = vld [vmem:[%s9072 + $0xa4] sm:$0x1]
      %v9501 = vld [vmem:[%s9072 + $0xa8] sm:$0xf]
      %v9502 = vld [vmem:[%s9072 + $0xac] sm:$0xf]
      %v9503 = vld [vmem:[%s9072 + $0xb0] sm:$0x1]
      %v9504 = vld [vmem:[%s9072 + $0xb4] sm:$0xf]
      %v9505 = vld [vmem:[%s9072 + $0xb8] sm:$0xf]
      %v9506 = vld [vmem:[%s9072 + $0xbc] sm:$0x1]
      %v9508 = vshrl.u32 %v9459, 16
      %v9510 = vrot.slane %v9508, 4
      %v9511 = vshll.u32 %v9459, 16
      %v9513 = vrot.slane %v9511, 5
      %v9514 = vor.u32 %v9510, %v9513
      %v9515 = vrot.slane %v9514, 4
      %v9517 = vshll.u32 %v9460, 16
      %v9519 = vrot.slane %v9517, 5
      %v9520 = vsel %vm5959, %v9515, %v9519
      %v9521 = vshrl.u32 %v9460, 16
      %v9523 = vrot.slane %v9521, 4
      %v9524 = vor.u32 %v9523, %v9519
      %v9525 = vrot.slane %v9524, 4
      %v9527 = vshll.u32 %v9461, 16
      %v9529 = vrot.slane %v9527, 5
      %v9530 = vsel %vm5959, %v9525, %v9529
      %v9532 = vshrl.u32 %v9462, 16
      %v9534 = vrot.slane %v9532, 4
      %v9535 = vshll.u32 %v9462, 16
      %v9537 = vrot.slane %v9535, 5
      %v9538 = vor.u32 %v9534, %v9537
      %v9539 = vrot.slane %v9538, 4
      %v9541 = vshll.u32 %v9463, 16
      %v9543 = vrot.slane %v9541, 5
      %v9544 = vsel %vm5959, %v9539, %v9543
      %v9545 = vshrl.u32 %v9463, 16
      %v9547 = vrot.slane %v9545, 4
      %v9548 = vor.u32 %v9547, %v9543
      %v9549 = vrot.slane %v9548, 4
      %v9551 = vshll.u32 %v9464, 16
      %v9553 = vrot.slane %v9551, 5
      %v9554 = vsel %vm5959, %v9549, %v9553
      %v9556 = vshrl.u32 %v9465, 16
      %v9558 = vrot.slane %v9556, 4
      %v9559 = vshll.u32 %v9465, 16
      %v9561 = vrot.slane %v9559, 5
      %v9562 = vor.u32 %v9558, %v9561
      %v9563 = vrot.slane %v9562, 4
      %v9565 = vshll.u32 %v9466, 16
      %v9567 = vrot.slane %v9565, 5
      %v9568 = vsel %vm5959, %v9563, %v9567
      %v9569 = vshrl.u32 %v9466, 16
      %v9571 = vrot.slane %v9569, 4
      %v9572 = vor.u32 %v9571, %v9567
      %v9573 = vrot.slane %v9572, 4
      %v9575 = vshll.u32 %v9467, 16
      %v9577 = vrot.slane %v9575, 5
      %v9578 = vsel %vm5959, %v9573, %v9577
      %v9580 = vshrl.u32 %v9468, 16
      %v9582 = vrot.slane %v9580, 4
      %v9583 = vshll.u32 %v9468, 16
      %v9585 = vrot.slane %v9583, 5
      %v9586 = vor.u32 %v9582, %v9585
      %v9587 = vrot.slane %v9586, 4
      %v9589 = vshll.u32 %v9469, 16
      %v9591 = vrot.slane %v9589, 5
      %v9592 = vsel %vm5959, %v9587, %v9591
      %v9593 = vshrl.u32 %v9469, 16
      %v9595 = vrot.slane %v9593, 4
      %v9596 = vor.u32 %v9595, %v9591
      %v9597 = vrot.slane %v9596, 4
      %v9599 = vshll.u32 %v9470, 16
      %v9601 = vrot.slane %v9599, 5
      %v9602 = vsel %vm5959, %v9597, %v9601
      %v9604 = vshrl.u32 %v9471, 16
      %v9606 = vrot.slane %v9604, 4
      %v9607 = vshll.u32 %v9471, 16
      %v9609 = vrot.slane %v9607, 5
      %v9610 = vor.u32 %v9606, %v9609
      %v9611 = vrot.slane %v9610, 4
      %v9613 = vshll.u32 %v9472, 16
      %v9615 = vrot.slane %v9613, 5
      %v9616 = vsel %vm5959, %v9611, %v9615
      %v9617 = vshrl.u32 %v9472, 16
      %v9619 = vrot.slane %v9617, 4
      %v9620 = vor.u32 %v9619, %v9615
      %v9621 = vrot.slane %v9620, 4
      %v9623 = vshll.u32 %v9473, 16
      %v9625 = vrot.slane %v9623, 5
      %v9626 = vsel %vm5959, %v9621, %v9625
      %v9628 = vshrl.u32 %v9474, 16
      %v9630 = vrot.slane %v9628, 4
      %v9631 = vshll.u32 %v9474, 16
      %v9633 = vrot.slane %v9631, 5
      %v9634 = vor.u32 %v9630, %v9633
      %v9635 = vrot.slane %v9634, 4
      %v9637 = vshll.u32 %v9475, 16
      %v9639 = vrot.slane %v9637, 5
      %v9640 = vsel %vm5959, %v9635, %v9639
      %v9641 = vshrl.u32 %v9475, 16
      %v9643 = vrot.slane %v9641, 4
      %v9644 = vor.u32 %v9643, %v9639
      %v9645 = vrot.slane %v9644, 4
      %v9647 = vshll.u32 %v9476, 16
      %v9649 = vrot.slane %v9647, 5
      %v9650 = vsel %vm5959, %v9645, %v9649
      %v9652 = vshrl.u32 %v9477, 16
      %v9654 = vrot.slane %v9652, 4
      %v9655 = vshll.u32 %v9477, 16
      %v9657 = vrot.slane %v9655, 5
      %v9658 = vor.u32 %v9654, %v9657
      %v9659 = vrot.slane %v9658, 4
      %v9661 = vshll.u32 %v9478, 16
      %v9663 = vrot.slane %v9661, 5
      %v9664 = vsel %vm5959, %v9659, %v9663
      %v9665 = vshrl.u32 %v9478, 16
      %v9667 = vrot.slane %v9665, 4
      %v9668 = vor.u32 %v9667, %v9663
      %v9669 = vrot.slane %v9668, 4
      %v9671 = vshll.u32 %v9479, 16
      %v9673 = vrot.slane %v9671, 5
      %v9674 = vsel %vm5959, %v9669, %v9673
      %v9676 = vshrl.u32 %v9480, 16
      %v9678 = vrot.slane %v9676, 4
      %v9679 = vshll.u32 %v9480, 16
      %v9681 = vrot.slane %v9679, 5
      %v9682 = vor.u32 %v9678, %v9681
      %v9683 = vrot.slane %v9682, 4
      %v9685 = vshll.u32 %v9481, 16
      %v9687 = vrot.slane %v9685, 5
      %v9688 = vsel %vm5959, %v9683, %v9687
      %v9689 = vshrl.u32 %v9481, 16
      %v9691 = vrot.slane %v9689, 4
      %v9692 = vor.u32 %v9691, %v9687
      %v9693 = vrot.slane %v9692, 4
      %v9695 = vshll.u32 %v9482, 16
      %v9697 = vrot.slane %v9695, 5
      %v9698 = vsel %vm5959, %v9693, %v9697
      %v9700 = vshrl.u32 %v9483, 16
      %v9702 = vrot.slane %v9700, 4
      %v9703 = vshll.u32 %v9483, 16
      %v9705 = vrot.slane %v9703, 5
      %v9706 = vor.u32 %v9702, %v9705
      %v9707 = vrot.slane %v9706, 4
      %v9709 = vshll.u32 %v9484, 16
      %v9711 = vrot.slane %v9709, 5
      %v9712 = vsel %vm5959, %v9707, %v9711
      %v9713 = vshrl.u32 %v9484, 16
      %v9715 = vrot.slane %v9713, 4
      %v9716 = vor.u32 %v9715, %v9711
      %v9717 = vrot.slane %v9716, 4
      %v9719 = vshll.u32 %v9485, 16
      %v9721 = vrot.slane %v9719, 5
      %v9722 = vsel %vm5959, %v9717, %v9721
      %v9724 = vshrl.u32 %v9486, 16
      %v9726 = vrot.slane %v9724, 4
      %v9727 = vshll.u32 %v9486, 16
      %v9729 = vrot.slane %v9727, 5
      %v9730 = vor.u32 %v9726, %v9729
      %v9731 = vrot.slane %v9730, 4
      %v9733 = vshll.u32 %v9487, 16
      %v9735 = vrot.slane %v9733, 5
      %v9736 = vsel %vm5959, %v9731, %v9735
      %v9737 = vshrl.u32 %v9487, 16
      %v9739 = vrot.slane %v9737, 4
      %v9740 = vor.u32 %v9739, %v9735
      %v9741 = vrot.slane %v9740, 4
      %v9743 = vshll.u32 %v9488, 16
      %v9745 = vrot.slane %v9743, 5
      %v9746 = vsel %vm5959, %v9741, %v9745
      %v9748 = vshrl.u32 %v9489, 16
      %v9750 = vrot.slane %v9748, 4
      %v9751 = vshll.u32 %v9489, 16
      %v9753 = vrot.slane %v9751, 5
      %v9754 = vor.u32 %v9750, %v9753
      %v9755 = vrot.slane %v9754, 4
      %v9757 = vshll.u32 %v9490, 16
      %v9759 = vrot.slane %v9757, 5
      %v9760 = vsel %vm5959, %v9755, %v9759
      %v9761 = vshrl.u32 %v9490, 16
      %v9763 = vrot.slane %v9761, 4
      %v9764 = vor.u32 %v9763, %v9759
      %v9765 = vrot.slane %v9764, 4
      %v9767 = vshll.u32 %v9491, 16
      %v9769 = vrot.slane %v9767, 5
      %v9770 = vsel %vm5959, %v9765, %v9769
      %v9772 = vshrl.u32 %v9492, 16
      %v9774 = vrot.slane %v9772, 4
      %v9775 = vshll.u32 %v9492, 16
      %v9777 = vrot.slane %v9775, 5
      %v9778 = vor.u32 %v9774, %v9777
      %v9779 = vrot.slane %v9778, 4
      %v9781 = vshll.u32 %v9493, 16
      %v9783 = vrot.slane %v9781, 5
      %v9784 = vsel %vm5959, %v9779, %v9783
      %v9785 = vshrl.u32 %v9493, 16
      %v9787 = vrot.slane %v9785, 4
      %v9788 = vor.u32 %v9787, %v9783
      %v9789 = vrot.slane %v9788, 4
      %v9791 = vshll.u32 %v9494, 16
      %v9793 = vrot.slane %v9791, 5
      %v9794 = vsel %vm5959, %v9789, %v9793
      %v9796 = vshrl.u32 %v9495, 16
      %v9798 = vrot.slane %v9796, 4
      %v9799 = vshll.u32 %v9495, 16
      %v9801 = vrot.slane %v9799, 5
      %v9802 = vor.u32 %v9798, %v9801
      %v9803 = vrot.slane %v9802, 4
      %v9805 = vshll.u32 %v9496, 16
      %v9807 = vrot.slane %v9805, 5
      %v9808 = vsel %vm5959, %v9803, %v9807
      %v9809 = vshrl.u32 %v9496, 16
      %v9811 = vrot.slane %v9809, 4
      %v9812 = vor.u32 %v9811, %v9807
      %v9813 = vrot.slane %v9812, 4
      %v9815 = vshll.u32 %v9497, 16
      %v9817 = vrot.slane %v9815, 5
      %v9818 = vsel %vm5959, %v9813, %v9817
      %v9820 = vshrl.u32 %v9498, 16
      %v9822 = vrot.slane %v9820, 4
      %v9823 = vshll.u32 %v9498, 16
      %v9825 = vrot.slane %v9823, 5
      %v9826 = vor.u32 %v9822, %v9825
      %v9827 = vrot.slane %v9826, 4
      %v9829 = vshll.u32 %v9499, 16
      %v9831 = vrot.slane %v9829, 5
      %v9832 = vsel %vm5959, %v9827, %v9831
      %v9833 = vshrl.u32 %v9499, 16
      %v9835 = vrot.slane %v9833, 4
      %v9836 = vor.u32 %v9835, %v9831
      %v9837 = vrot.slane %v9836, 4
      %v9839 = vshll.u32 %v9500, 16
      %v9841 = vrot.slane %v9839, 5
      %v9842 = vsel %vm5959, %v9837, %v9841
      %v9844 = vshrl.u32 %v9501, 16
      %v9846 = vrot.slane %v9844, 4
      %v9847 = vshll.u32 %v9501, 16
      %v9849 = vrot.slane %v9847, 5
      %v9850 = vor.u32 %v9846, %v9849
      %v9851 = vrot.slane %v9850, 4
      %v9853 = vshll.u32 %v9502, 16
      %v9855 = vrot.slane %v9853, 5
      %v9856 = vsel %vm5959, %v9851, %v9855
      %v9857 = vshrl.u32 %v9502, 16
      %v9859 = vrot.slane %v9857, 4
      %v9860 = vor.u32 %v9859, %v9855
      %v9861 = vrot.slane %v9860, 4
      %v9863 = vshll.u32 %v9503, 16
      %v9865 = vrot.slane %v9863, 5
      %v9866 = vsel %vm5959, %v9861, %v9865
      %v9868 = vshrl.u32 %v9504, 16
      %v9870 = vrot.slane %v9868, 4
      %v9871 = vshll.u32 %v9504, 16
      %v9873 = vrot.slane %v9871, 5
      %v9874 = vor.u32 %v9870, %v9873
      %v9875 = vrot.slane %v9874, 4
      %v9877 = vshll.u32 %v9505, 16
      %v9879 = vrot.slane %v9877, 5
      %v9880 = vsel %vm5959, %v9875, %v9879
      %v9881 = vshrl.u32 %v9505, 16
      %v9883 = vrot.slane %v9881, 4
      %v9884 = vor.u32 %v9883, %v9879
      %v9885 = vrot.slane %v9884, 4
      %v9887 = vshll.u32 %v9506, 16
      %v9889 = vrot.slane %v9887, 5
      %v9890 = vsel %vm5959, %v9885, %v9889
      %s9891 = scalar_lea.vmem %s1, 5696
      %v9892 = vld [vmem:[%s9891] sm:$0xf]
      %v9893 = vld [vmem:[%s9891 + $0x4] sm:$0xf]
      %v9894 = vld [vmem:[%s9891 + $0x8] sm:$0xf]
      %v9895 = vld [vmem:[%s9891 + $0xc] sm:$0xf]
      %v9896 = vld [vmem:[%s9891 + $0x10] sm:$0xf]
      %v9897 = vld [vmem:[%s9891 + $0x14] sm:$0xf]
      %v9898 = vld [vmem:[%s9891 + $0x18] sm:$0xf]
      %v9899 = vld [vmem:[%s9891 + $0x1c] sm:$0xf]
      %v9900 = vunpack.c.l.b16 %v9520
      %v9901 = vunpack.c.l.b16 %v9530
      %v9902 = vunpack.c.l.b16 %v9544
      %v9903 = vunpack.c.l.b16 %v9554
      %v9904 = vunpack.c.l.b16 %v9568
      %v9905 = vunpack.c.l.b16 %v9578
      %v9906 = vunpack.c.l.b16 %v9592
      %v9907 = vunpack.c.l.b16 %v9602
      %v9908 = vunpack.c.l.b16 %v9616
      %v9909 = vunpack.c.l.b16 %v9626
      %v9910 = vunpack.c.l.b16 %v9640
      %v9911 = vunpack.c.l.b16 %v9650
      %v9912 = vunpack.c.l.b16 %v9664
      %v9913 = vunpack.c.l.b16 %v9674
      %v9914 = vunpack.c.l.b16 %v9688
      %v9915 = vunpack.c.l.b16 %v9698
      %v9916 = vunpack.c.l.b16 %v9712
      %v9917 = vunpack.c.l.b16 %v9722
      %v9918 = vunpack.c.l.b16 %v9736
      %v9919 = vunpack.c.l.b16 %v9746
      %v9920 = vunpack.c.l.b16 %v9760
      %v9921 = vunpack.c.l.b16 %v9770
      %v9922 = vunpack.c.l.b16 %v9784
      %v9923 = vunpack.c.l.b16 %v9794
      %v9924 = vunpack.c.l.b16 %v9808
      %v9925 = vunpack.c.l.b16 %v9818
      %v9926 = vunpack.c.l.b16 %v9832
      %v9927 = vunpack.c.l.b16 %v9842
      %v9928 = vunpack.c.l.b16 %v9856
      %v9929 = vunpack.c.l.b16 %v9866
      %v9930 = vunpack.c.l.b16 %v9880
      %v9931 = vunpack.c.l.b16 %v9890
      %v9932 = vpack.c.b16 %v9901, %v9900
      %v9933 = vpack.c.b16 %v9903, %v9902
      %v9934 = vpack.c.b16 %v9905, %v9904
      %v9935 = vpack.c.b16 %v9907, %v9906
      %v9936 = vpack.c.b16 %v9909, %v9908
      %v9937 = vpack.c.b16 %v9911, %v9910
      %v9938 = vpack.c.b16 %v9913, %v9912
      %v9939 = vpack.c.b16 %v9915, %v9914
      %v9940 = vpack.c.b16 %v9917, %v9916
      %v9941 = vpack.c.b16 %v9919, %v9918
      %v9942 = vpack.c.b16 %v9921, %v9920
      %v9943 = vpack.c.b16 %v9923, %v9922
      %v9944 = vpack.c.b16 %v9925, %v9924
      %v9945 = vpack.c.b16 %v9927, %v9926
      %v9946 = vpack.c.b16 %v9929, %v9928
      %v9947 = vpack.c.b16 %v9931, %v9930
      %v9956 = vunpack.c.l.b16 %v9892
      %v9957 = vunpack.c.l.b16 %v9893
      %v9958 = vunpack.c.l.b16 %v9894
      %v9959 = vunpack.c.l.b16 %v9895
      %v9960 = vunpack.c.l.b16 %v9896
      %v9961 = vunpack.c.l.b16 %v9897
      %v9962 = vunpack.c.l.b16 %v9898
      %v9963 = vunpack.c.l.b16 %v9899
      %v9964 = vpack.c.b16 %v9957, %v9956
      %v9965 = vpack.c.b16 %v9959, %v9958
      %v9966 = vpack.c.b16 %v9961, %v9960
      %v9967 = vpack.c.b16 %v9963, %v9962
      %v9973 = vsel %vm6425, %v9932, 0
      %v9976 = vsel %vm6425, %v9933, 0
      %v9979 = vsel %vm6425, %v9934, 0
      %v9982 = vsel %vm6425, %v9935, 0
      %v9985 = vsel %vm6425, %v9936, 0
      %v9988 = vsel %vm6425, %v9937, 0
      %v9991 = vsel %vm6425, %v9938, 0
      %v9994 = vsel %vm6425, %v9939, 0
      %v9997 = vsel %vm6425, %v9940, 0
      %v10000 = vsel %vm6425, %v9941, 0
      %v10003 = vsel %vm6425, %v9942, 0
      %v10006 = vsel %vm6425, %v9943, 0
      %v10009 = vsel %vm6425, %v9944, 0
      %v10012 = vsel %vm6425, %v9945, 0
      %v10015 = vsel %vm6425, %v9946, 0
      %v10018 = vsel %vm6425, %v9947, 0
      %10020 = vmatprep.subr.bf16.mxu0 0
      %10021 = vmatpush1.bf16.msra.mxu0 %v9964
      %10022 = vmatprep.subr.bf16.mxu0 0
      %10023 = vmatpush1.bf16.msra.mxu0 %v9965
      %10024 = vmatprep.subr.bf16.mxu0 0
      %10025 = vmatpush1.bf16.msra.mxu0 %v9966
      %10026 = vmatprep.subr.bf16.mxu0 0
      %10027 = vmatpush1.bf16.msra.mxu0 %v9967
      %10028 = vmatprep.subr.bf16.mxu0 0
      %10029 = vmatpush1.bf16.msra.mxu0 0
      %10030 = vmatprep.subr.bf16.mxu0 0
      %10031 = vmatpush1.bf16.msra.mxu0 0
      %10032 = vmatprep.subr.bf16.mxu0 0
      %10033 = vmatpush1.bf16.msra.mxu0 0
      %10034 = vmatprep.subr.bf16.mxu0 0
      %10035 = vmatpush1.bf16.msra.mxu0 0
      %10036 = vmatprep.subr.bf16.mxu0 0
      %10037 = vmatpush1.bf16.msra.mxu0 0
      %10038 = vmatprep.subr.bf16.mxu0 0
      %10039 = vmatpush1.bf16.msra.mxu0 0
      %10040 = vmatprep.subr.bf16.mxu0 0
      %10041 = vmatpush1.bf16.msra.mxu0 0
      %10042 = vmatprep.subr.bf16.mxu0 0
      %10043 = vmatpush1.bf16.msra.mxu0 0
      %10044 = vmatprep.subr.bf16.mxu0 0
      %10045 = vmatpush1.bf16.msra.mxu0 0
      %10046 = vmatprep.subr.bf16.mxu0 0
      %10047 = vmatpush1.bf16.msra.mxu0 0
      %10048 = vmatprep.subr.bf16.mxu0 0
      %10049 = vmatpush1.bf16.msra.mxu0 0
      %10050 = vmatprep.subr.bf16.mxu0 0
      %10051 = vmatpush1.bf16.msra.mxu0 0
      %10052 = vmatprep.mubr.bf16.mxu0 0
      %10053 = vmatmul.mubr.bf16.gmra.mrb[0].mxu0 %v9973
      %v10054 = vpop.f32.mrb[0].mxu0
      %v10055 = vadd.f32 0.0, %v10054
      %v10056 = vpop.f32.mrb[0].mxu0
      %v10057 = vpop.f32.mrb[0].mxu0
      %v10058 = vadd.f32 0.0, %v10057
      %v10059 = vpop.f32.mrb[0].mxu0
      %10060 = vmatprep.mubr.bf16.mxu0 0
      %10061 = vmatmul.mubr.bf16.gmra.mrb[0].mxu0 %v9976
      %v10062 = vpop.f32.mrb[0].mxu0
      %v10063 = vadd.f32 0.0, %v10062
      %v10064 = vpop.f32.mrb[0].mxu0
      %v10065 = vpop.f32.mrb[0].mxu0
      %v10066 = vadd.f32 0.0, %v10065
      %v10067 = vpop.f32.mrb[0].mxu0
      %10068 = vmatprep.mubr.bf16.mxu0 0
      %10069 = vmatmul.mubr.bf16.gmra.mrb[0].mxu0 %v9979
      %v10070 = vpop.f32.mrb[0].mxu0
      %v10071 = vadd.f32 0.0, %v10070
      %v10072 = vpop.f32.mrb[0].mxu0
      %v10073 = vpop.f32.mrb[0].mxu0
      %v10074 = vadd.f32 0.0, %v10073
      %v10075 = vpop.f32.mrb[0].mxu0
      %10076 = vmatprep.mubr.bf16.mxu0 0
      %10077 = vmatmul.mubr.bf16.gmra.mrb[0].mxu0 %v9982
      %v10078 = vpop.f32.mrb[0].mxu0
      %v10079 = vadd.f32 0.0, %v10078
      %v10080 = vpop.f32.mrb[0].mxu0
      %v10081 = vpop.f32.mrb[0].mxu0
      %v10082 = vadd.f32 0.0, %v10081
      %v10083 = vpop.f32.mrb[0].mxu0
      %10084 = vmatprep.mubr.bf16.mxu0 0
      %10085 = vmatmul.mubr.bf16.gmra.mrb[0].mxu0 %v9985
      %v10086 = vpop.f32.mrb[0].mxu0
      %v10087 = vadd.f32 0.0, %v10086
      %v10088 = vpop.f32.mrb[0].mxu0
      %v10089 = vpop.f32.mrb[0].mxu0
      %v10090 = vadd.f32 0.0, %v10089
      %v10091 = vpop.f32.mrb[0].mxu0
      %10092 = vmatprep.mubr.bf16.mxu0 0
      %10093 = vmatmul.mubr.bf16.gmra.mrb[0].mxu0 %v9988
      %v10094 = vpop.f32.mrb[0].mxu0
      %v10095 = vadd.f32 0.0, %v10094
      %v10096 = vpop.f32.mrb[0].mxu0
      %v10097 = vpop.f32.mrb[0].mxu0
      %v10098 = vadd.f32 0.0, %v10097
      %v10099 = vpop.f32.mrb[0].mxu0
      %10100 = vmatprep.mubr.bf16.mxu0 0
      %10101 = vmatmul.mubr.bf16.gmra.mrb[0].mxu0 %v9991
      %v10102 = vpop.f32.mrb[0].mxu0
      %v10103 = vadd.f32 0.0, %v10102
      %v10104 = vpop.f32.mrb[0].mxu0
      %v10105 = vpop.f32.mrb[0].mxu0
      %v10106 = vadd.f32 0.0, %v10105
      %v10107 = vpop.f32.mrb[0].mxu0
      %10108 = vmatprep.mubr.bf16.mxu0 0
      %10109 = vmatmul.mubr.bf16.gmra.mrb[0].mxu0 %v9994
      %v10110 = vpop.f32.mrb[0].mxu0
      %v10111 = vadd.f32 0.0, %v10110
      %v10112 = vpop.f32.mrb[0].mxu0
      %v10113 = vpop.f32.mrb[0].mxu0
      %v10114 = vadd.f32 0.0, %v10113
      %v10115 = vpop.f32.mrb[0].mxu0
      %10116 = vmatprep.mubr.bf16.mxu0 0
      %10117 = vmatmul.mubr.bf16.gmra.mrb[0].mxu0 %v9997
      %v10118 = vpop.f32.mrb[0].mxu0
      %v10119 = vadd.f32 0.0, %v10118
      %v10120 = vpop.f32.mrb[0].mxu0
      %v10121 = vpop.f32.mrb[0].mxu0
      %v10122 = vadd.f32 0.0, %v10121
      %v10123 = vpop.f32.mrb[0].mxu0
      %10124 = vmatprep.mubr.bf16.mxu0 0
      %10125 = vmatmul.mubr.bf16.gmra.mrb[0].mxu0 %v10000
      %v10126 = vpop.f32.mrb[0].mxu0
      %v10127 = vadd.f32 0.0, %v10126
      %v10128 = vpop.f32.mrb[0].mxu0
      %v10129 = vpop.f32.mrb[0].mxu0
      %v10130 = vadd.f32 0.0, %v10129
      %v10131 = vpop.f32.mrb[0].mxu0
      %10132 = vmatprep.mubr.bf16.mxu0 0
      %10133 = vmatmul.mubr.bf16.gmra.mrb[0].mxu0 %v10003
      %v10134 = vpop.f32.mrb[0].mxu0
      %v10135 = vadd.f32 0.0, %v10134
      %v10136 = vpop.f32.mrb[0].mxu0
      %v10137 = vpop.f32.mrb[0].mxu0
      %v10138 = vadd.f32 0.0, %v10137
      %v10139 = vpop.f32.mrb[0].mxu0
      %10140 = vmatprep.mubr.bf16.mxu0 0
      %10141 = vmatmul.mubr.bf16.gmra.mrb[0].mxu0 %v10006
      %v10142 = vpop.f32.mrb[0].mxu0
      %v10143 = vadd.f32 0.0, %v10142
      %v10144 = vpop.f32.mrb[0].mxu0
      %v10145 = vpop.f32.mrb[0].mxu0
      %v10146 = vadd.f32 0.0, %v10145
      %v10147 = vpop.f32.mrb[0].mxu0
      %10148 = vmatprep.mubr.bf16.mxu0 0
      %10149 = vmatmul.mubr.bf16.gmra.mrb[0].mxu0 %v10009
      %v10150 = vpop.f32.mrb[0].mxu0
      %v10151 = vadd.f32 0.0, %v10150
      %v10152 = vpop.f32.mrb[0].mxu0
      %v10153 = vpop.f32.mrb[0].mxu0
      %v10154 = vadd.f32 0.0, %v10153
      %v10155 = vpop.f32.mrb[0].mxu0
      %10156 = vmatprep.mubr.bf16.mxu0 0
      %10157 = vmatmul.mubr.bf16.gmra.mrb[0].mxu0 %v10012
      %v10158 = vpop.f32.mrb[0].mxu0
      %v10159 = vadd.f32 0.0, %v10158
      %v10160 = vpop.f32.mrb[0].mxu0
      %v10161 = vpop.f32.mrb[0].mxu0
      %v10162 = vadd.f32 0.0, %v10161
      %v10163 = vpop.f32.mrb[0].mxu0
      %10164 = vmatprep.mubr.bf16.mxu0 0
      %10165 = vmatmul.mubr.bf16.gmra.mrb[0].mxu0 %v10015
      %v10166 = vpop.f32.mrb[0].mxu0
      %v10167 = vadd.f32 0.0, %v10166
      %v10168 = vpop.f32.mrb[0].mxu0
      %v10169 = vpop.f32.mrb[0].mxu0
      %v10170 = vadd.f32 0.0, %v10169
      %v10171 = vpop.f32.mrb[0].mxu0
      %10172 = vmatprep.mubr.bf16.mxu0 0
      %10173 = vmatmul.mubr.bf16.gmra.mrb[0].mxu0 %v10018
      %v10174 = vpop.f32.mrb[0].mxu0
      %v10175 = vadd.f32 0.0, %v10174
      %v10176 = vpop.f32.mrb[0].mxu0
      %v10177 = vpop.f32.mrb[0].mxu0
      %v10178 = vadd.f32 0.0, %v10177
      %v10179 = vpop.f32.mrb[0].mxu0
      %10180 = vdwg.mxu0
      %v10181 = vadd.f32 %v9427, %v10055
      %v10182 = vadd.f32 %v9428, %v10058
      %v10183 = vadd.f32 %v9429, %v10063
      %v10184 = vadd.f32 %v9430, %v10066
      %v10185 = vadd.f32 %v9431, %v10071
      %v10186 = vadd.f32 %v9432, %v10074
      %v10187 = vadd.f32 %v9433, %v10079
      %v10188 = vadd.f32 %v9434, %v10082
      %v10189 = vadd.f32 %v9435, %v10087
      %v10190 = vadd.f32 %v9436, %v10090
      %v10191 = vadd.f32 %v9437, %v10095
      %v10192 = vadd.f32 %v9438, %v10098
      %v10193 = vadd.f32 %v9439, %v10103
      %v10194 = vadd.f32 %v9440, %v10106
      %v10195 = vadd.f32 %v9441, %v10111
      %v10196 = vadd.f32 %v9442, %v10114
      %v10197 = vadd.f32 %v9443, %v10119
      %v10198 = vadd.f32 %v9444, %v10122
      %v10199 = vadd.f32 %v9445, %v10127
      %v10200 = vadd.f32 %v9446, %v10130
      %v10201 = vadd.f32 %v9447, %v10135
      %v10202 = vadd.f32 %v9448, %v10138
      %v10203 = vadd.f32 %v9449, %v10143
      %v10204 = vadd.f32 %v9450, %v10146
      %v10205 = vadd.f32 %v9451, %v10151
      %v10206 = vadd.f32 %v9452, %v10154
      %v10207 = vadd.f32 %v9453, %v10159
      %v10208 = vadd.f32 %v9454, %v10162
      %v10209 = vadd.f32 %v9455, %v10167
      %v10210 = vadd.f32 %v9456, %v10170
      %v10211 = vadd.f32 %v9457, %v10175
      %v10212 = vadd.f32 %v9458, %v10178
      %v10213 = vld [vmem:[%s9072] sm:$0xe]
      %v10214 = vld [vmem:[%s9072 + $0xc] sm:$0xe]
      %v10215 = vld [vmem:[%s9072 + $0x18] sm:$0xe]
      %v10216 = vld [vmem:[%s9072 + $0x24] sm:$0xe]
      %v10217 = vld [vmem:[%s9072 + $0x30] sm:$0xe]
      %v10218 = vld [vmem:[%s9072 + $0x3c] sm:$0xe]
      %v10219 = vld [vmem:[%s9072 + $0x48] sm:$0xe]
      %v10220 = vld [vmem:[%s9072 + $0x54] sm:$0xe]
      %v10221 = vld [vmem:[%s9072 + $0x60] sm:$0xe]
      %v10222 = vld [vmem:[%s9072 + $0x6c] sm:$0xe]
      %v10223 = vld [vmem:[%s9072 + $0x78] sm:$0xe]
      %v10224 = vld [vmem:[%s9072 + $0x84] sm:$0xe]
      %v10225 = vld [vmem:[%s9072 + $0x90] sm:$0xe]
      %v10226 = vld [vmem:[%s9072 + $0x9c] sm:$0xe]
      %v10227 = vld [vmem:[%s9072 + $0xa8] sm:$0xe]
      %v10228 = vld [vmem:[%s9072 + $0xb4] sm:$0xe]
      %v10277 = vrot.slane %v10213, 5
      %v10278 = vrot.slane %v10277, 4
      %v10279 = vrot.slane %v9460, 5
      %v10280 = vsel %vm6998, %v10278, %v10279
      %v10281 = vrot.slane %v10279, 4
      %v10282 = vrot.slane %v9461, 5
      %v10283 = vsel %vm6998, %v10281, %v10282
      %v10284 = vrot.slane %v10214, 5
      %v10285 = vrot.slane %v10284, 4
      %v10286 = vrot.slane %v9463, 5
      %v10287 = vsel %vm6998, %v10285, %v10286
      %v10288 = vrot.slane %v10286, 4
      %v10289 = vrot.slane %v9464, 5
      %v10290 = vsel %vm6998, %v10288, %v10289
      %v10291 = vrot.slane %v10215, 5
      %v10292 = vrot.slane %v10291, 4
      %v10293 = vrot.slane %v9466, 5
      %v10294 = vsel %vm6998, %v10292, %v10293
      %v10295 = vrot.slane %v10293, 4
      %v10296 = vrot.slane %v9467, 5
      %v10297 = vsel %vm6998, %v10295, %v10296
      %v10298 = vrot.slane %v10216, 5
      %v10299 = vrot.slane %v10298, 4
      %v10300 = vrot.slane %v9469, 5
      %v10301 = vsel %vm6998, %v10299, %v10300
      %v10302 = vrot.slane %v10300, 4
      %v10303 = vrot.slane %v9470, 5
      %v10304 = vsel %vm6998, %v10302, %v10303
      %v10305 = vrot.slane %v10217, 5
      %v10306 = vrot.slane %v10305, 4
      %v10307 = vrot.slane %v9472, 5
      %v10308 = vsel %vm6998, %v10306, %v10307
      %v10309 = vrot.slane %v10307, 4
      %v10310 = vrot.slane %v9473, 5
      %v10311 = vsel %vm6998, %v10309, %v10310
      %v10312 = vrot.slane %v10218, 5
      %v10313 = vrot.slane %v10312, 4
      %v10314 = vrot.slane %v9475, 5
      %v10315 = vsel %vm6998, %v10313, %v10314
      %v10316 = vrot.slane %v10314, 4
      %v10317 = vrot.slane %v9476, 5
      %v10318 = vsel %vm6998, %v10316, %v10317
      %v10319 = vrot.slane %v10219, 5
      %v10320 = vrot.slane %v10319, 4
      %v10321 = vrot.slane %v9478, 5
      %v10322 = vsel %vm6998, %v10320, %v10321
      %v10323 = vrot.slane %v10321, 4
      %v10324 = vrot.slane %v9479, 5
      %v10325 = vsel %vm6998, %v10323, %v10324
      %v10326 = vrot.slane %v10220, 5
      %v10327 = vrot.slane %v10326, 4
      %v10328 = vrot.slane %v9481, 5
      %v10329 = vsel %vm6998, %v10327, %v10328
      %v10330 = vrot.slane %v10328, 4
      %v10331 = vrot.slane %v9482, 5
      %v10332 = vsel %vm6998, %v10330, %v10331
      %v10333 = vrot.slane %v10221, 5
      %v10334 = vrot.slane %v10333, 4
      %v10335 = vrot.slane %v9484, 5
      %v10336 = vsel %vm6998, %v10334, %v10335
      %v10337 = vrot.slane %v10335, 4
      %v10338 = vrot.slane %v9485, 5
      %v10339 = vsel %vm6998, %v10337, %v10338
      %v10340 = vrot.slane %v10222, 5
      %v10341 = vrot.slane %v10340, 4
      %v10342 = vrot.slane %v9487, 5
      %v10343 = vsel %vm6998, %v10341, %v10342
      %v10344 = vrot.slane %v10342, 4
      %v10345 = vrot.slane %v9488, 5
      %v10346 = vsel %vm6998, %v10344, %v10345
      %v10347 = vrot.slane %v10223, 5
      %v10348 = vrot.slane %v10347, 4
      %v10349 = vrot.slane %v9490, 5
      %v10350 = vsel %vm6998, %v10348, %v10349
      %v10351 = vrot.slane %v10349, 4
      %v10352 = vrot.slane %v9491, 5
      %v10353 = vsel %vm6998, %v10351, %v10352
      %v10354 = vrot.slane %v10224, 5
      %v10355 = vrot.slane %v10354, 4
      %v10356 = vrot.slane %v9493, 5
      %v10357 = vsel %vm6998, %v10355, %v10356
      %v10358 = vrot.slane %v10356, 4
      %v10359 = vrot.slane %v9494, 5
      %v10360 = vsel %vm6998, %v10358, %v10359
      %v10361 = vrot.slane %v10225, 5
      %v10362 = vrot.slane %v10361, 4
      %v10363 = vrot.slane %v9496, 5
      %v10364 = vsel %vm6998, %v10362, %v10363
      %v10365 = vrot.slane %v10363, 4
      %v10366 = vrot.slane %v9497, 5
      %v10367 = vsel %vm6998, %v10365, %v10366
      %v10368 = vrot.slane %v10226, 5
      %v10369 = vrot.slane %v10368, 4
      %v10370 = vrot.slane %v9499, 5
      %v10371 = vsel %vm6998, %v10369, %v10370
      %v10372 = vrot.slane %v10370, 4
      %v10373 = vrot.slane %v9500, 5
      %v10374 = vsel %vm6998, %v10372, %v10373
      %v10375 = vrot.slane %v10227, 5
      %v10376 = vrot.slane %v10375, 4
      %v10377 = vrot.slane %v9502, 5
      %v10378 = vsel %vm6998, %v10376, %v10377
      %v10379 = vrot.slane %v10377, 4
      %v10380 = vrot.slane %v9503, 5
      %v10381 = vsel %vm6998, %v10379, %v10380
      %v10382 = vrot.slane %v10228, 5
      %v10383 = vrot.slane %v10382, 4
      %v10384 = vrot.slane %v9505, 5
      %v10385 = vsel %vm6998, %v10383, %v10384
      %v10386 = vrot.slane %v10384, 4
      %v10387 = vrot.slane %v9506, 5
      %v10388 = vsel %vm6998, %v10386, %v10387
      %s10389 = scalar_lea.vmem %s1, 5728
      %v10390 = vld [vmem:[%s10389] sm:$0xf]
      %v10391 = vld [vmem:[%s10389 + $0x4] sm:$0xf]
      %v10392 = vld [vmem:[%s10389 + $0x8] sm:$0xf]
      %v10393 = vld [vmem:[%s10389 + $0xc] sm:$0xf]
      %v10394 = vld [vmem:[%s10389 + $0x10] sm:$0xf]
      %v10395 = vld [vmem:[%s10389 + $0x14] sm:$0xf]
      %v10396 = vld [vmem:[%s10389 + $0x18] sm:$0xf]
      %v10397 = vld [vmem:[%s10389 + $0x1c] sm:$0xf]
      %v10398 = vunpack.c.l.b16 %v10280
      %v10399 = vunpack.c.l.b16 %v10283
      %v10400 = vunpack.c.l.b16 %v10287
      %v10401 = vunpack.c.l.b16 %v10290
      %v10402 = vunpack.c.l.b16 %v10294
      %v10403 = vunpack.c.l.b16 %v10297
      %v10404 = vunpack.c.l.b16 %v10301
      %v10405 = vunpack.c.l.b16 %v10304
      %v10406 = vunpack.c.l.b16 %v10308
      %v10407 = vunpack.c.l.b16 %v10311
      %v10408 = vunpack.c.l.b16 %v10315
      %v10409 = vunpack.c.l.b16 %v10318
      %v10410 = vunpack.c.l.b16 %v10322
      %v10411 = vunpack.c.l.b16 %v10325
      %v10412 = vunpack.c.l.b16 %v10329
      %v10413 = vunpack.c.l.b16 %v10332
      %v10414 = vunpack.c.l.b16 %v10336
      %v10415 = vunpack.c.l.b16 %v10339
      %v10416 = vunpack.c.l.b16 %v10343
      %v10417 = vunpack.c.l.b16 %v10346
      %v10418 = vunpack.c.l.b16 %v10350
      %v10419 = vunpack.c.l.b16 %v10353
      %v10420 = vunpack.c.l.b16 %v10357
      %v10421 = vunpack.c.l.b16 %v10360
      %v10422 = vunpack.c.l.b16 %v10364
      %v10423 = vunpack.c.l.b16 %v10367
      %v10424 = vunpack.c.l.b16 %v10371
      %v10425 = vunpack.c.l.b16 %v10374
      %v10426 = vunpack.c.l.b16 %v10378
      %v10427 = vunpack.c.l.b16 %v10381
      %v10428 = vunpack.c.l.b16 %v10385
      %v10429 = vunpack.c.l.b16 %v10388
      %v10430 = vpack.c.b16 %v10399, %v10398
      %v10431 = vpack.c.b16 %v10401, %v10400
      %v10432 = vpack.c.b16 %v10403, %v10402
      %v10433 = vpack.c.b16 %v10405, %v10404
      %v10434 = vpack.c.b16 %v10407, %v10406
      %v10435 = vpack.c.b16 %v10409, %v10408
      %v10436 = vpack.c.b16 %v10411, %v10410
      %v10437 = vpack.c.b16 %v10413, %v10412
      %v10438 = vpack.c.b16 %v10415, %v10414
      %v10439 = vpack.c.b16 %v10417, %v10416
      %v10440 = vpack.c.b16 %v10419, %v10418
      %v10441 = vpack.c.b16 %v10421, %v10420
      %v10442 = vpack.c.b16 %v10423, %v10422
      %v10443 = vpack.c.b16 %v10425, %v10424
      %v10444 = vpack.c.b16 %v10427, %v10426
      %v10445 = vpack.c.b16 %v10429, %v10428
      %v10454 = vunpack.c.l.b16 %v10390
      %v10455 = vunpack.c.l.b16 %v10391
      %v10456 = vunpack.c.l.b16 %v10392
      %v10457 = vunpack.c.l.b16 %v10393
      %v10458 = vunpack.c.l.b16 %v10394
      %v10459 = vunpack.c.l.b16 %v10395
      %v10460 = vunpack.c.l.b16 %v10396
      %v10461 = vunpack.c.l.b16 %v10397
      %v10462 = vpack.c.b16 %v10455, %v10454
      %v10463 = vpack.c.b16 %v10457, %v10456
      %v10464 = vpack.c.b16 %v10459, %v10458
      %v10465 = vpack.c.b16 %v10461, %v10460
      %v10471 = vsel %vm6425, %v10430, 0
      %v10474 = vsel %vm6425, %v10431, 0
      %v10477 = vsel %vm6425, %v10432, 0
      %v10480 = vsel %vm6425, %v10433, 0
      %v10483 = vsel %vm6425, %v10434, 0
      %v10486 = vsel %vm6425, %v10435, 0
      %v10489 = vsel %vm6425, %v10436, 0
      %v10492 = vsel %vm6425, %v10437, 0
      %v10495 = vsel %vm6425, %v10438, 0
      %v10498 = vsel %vm6425, %v10439, 0
      %v10501 = vsel %vm6425, %v10440, 0
      %v10504 = vsel %vm6425, %v10441, 0
      %v10507 = vsel %vm6425, %v10442, 0
      %v10510 = vsel %vm6425, %v10443, 0
      %v10513 = vsel %vm6425, %v10444, 0
      %v10516 = vsel %vm6425, %v10445, 0
      %10518 = vmatprep.subr.bf16.mxu0 0
      %10519 = vmatpush1.bf16.msra.mxu0 %v10462
      %10520 = vmatprep.subr.bf16.mxu0 0
      %10521 = vmatpush1.bf16.msra.mxu0 %v10463
      %10522 = vmatprep.subr.bf16.mxu0 0
      %10523 = vmatpush1.bf16.msra.mxu0 %v10464
      %10524 = vmatprep.subr.bf16.mxu0 0
      %10525 = vmatpush1.bf16.msra.mxu0 %v10465
      %10526 = vmatprep.subr.bf16.mxu0 0
      %10527 = vmatpush1.bf16.msra.mxu0 0
      %10528 = vmatprep.subr.bf16.mxu0 0
      %10529 = vmatpush1.bf16.msra.mxu0 0
      %10530 = vmatprep.subr.bf16.mxu0 0
      %10531 = vmatpush1.bf16.msra.mxu0 0
      %10532 = vmatprep.subr.bf16.mxu0 0
      %10533 = vmatpush1.bf16.msra.mxu0 0
      %10534 = vmatprep.subr.bf16.mxu0 0
      %10535 = vmatpush1.bf16.msra.mxu0 0
      %10536 = vmatprep.subr.bf16.mxu0 0
      %10537 = vmatpush1.bf16.msra.mxu0 0
      %10538 = vmatprep.subr.bf16.mxu0 0
      %10539 = vmatpush1.bf16.msra.mxu0 0
      %10540 = vmatprep.subr.bf16.mxu0 0
      %10541 = vmatpush1.bf16.msra.mxu0 0
      %10542 = vmatprep.subr.bf16.mxu0 0
      %10543 = vmatpush1.bf16.msra.mxu0 0
      %10544 = vmatprep.subr.bf16.mxu0 0
      %10545 = vmatpush1.bf16.msra.mxu0 0
      %10546 = vmatprep.subr.bf16.mxu0 0
      %10547 = vmatpush1.bf16.msra.mxu0 0
      %10548 = vmatprep.subr.bf16.mxu0 0
      %10549 = vmatpush1.bf16.msra.mxu0 0
      %10550 = vmatprep.mubr.bf16.mxu0 0
      %10551 = vmatmul.mubr.bf16.gmra.mrb[0].mxu0 %v10471
      %v10552 = vpop.f32.mrb[0].mxu0
      %v10553 = vadd.f32 0.0, %v10552
      %v10554 = vpop.f32.mrb[0].mxu0
      %v10555 = vpop.f32.mrb[0].mxu0
      %v10556 = vadd.f32 0.0, %v10555
      %v10557 = vpop.f32.mrb[0].mxu0
      %10558 = vmatprep.mubr.bf16.mxu0 0
      %10559 = vmatmul.mubr.bf16.gmra.mrb[0].mxu0 %v10474
      %v10560 = vpop.f32.mrb[0].mxu0
      %v10561 = vadd.f32 0.0, %v10560
      %v10562 = vpop.f32.mrb[0].mxu0
      %v10563 = vpop.f32.mrb[0].mxu0
      %v10564 = vadd.f32 0.0, %v10563
      %v10565 = vpop.f32.mrb[0].mxu0
      %10566 = vmatprep.mubr.bf16.mxu0 0
      %10567 = vmatmul.mubr.bf16.gmra.mrb[0].mxu0 %v10477
      %v10568 = vpop.f32.mrb[0].mxu0
      %v10569 = vadd.f32 0.0, %v10568
      %v10570 = vpop.f32.mrb[0].mxu0
      %v10571 = vpop.f32.mrb[0].mxu0
      %v10572 = vadd.f32 0.0, %v10571
      %v10573 = vpop.f32.mrb[0].mxu0
      %10574 = vmatprep.mubr.bf16.mxu0 0
      %10575 = vmatmul.mubr.bf16.gmra.mrb[0].mxu0 %v10480
      %v10576 = vpop.f32.mrb[0].mxu0
      %v10577 = vadd.f32 0.0, %v10576
      %v10578 = vpop.f32.mrb[0].mxu0
      %v10579 = vpop.f32.mrb[0].mxu0
      %v10580 = vadd.f32 0.0, %v10579
      %v10581 = vpop.f32.mrb[0].mxu0
      %10582 = vmatprep.mubr.bf16.mxu0 0
      %10583 = vmatmul.mubr.bf16.gmra.mrb[0].mxu0 %v10483
      %v10584 = vpop.f32.mrb[0].mxu0
      %v10585 = vadd.f32 0.0, %v10584
      %v10586 = vpop.f32.mrb[0].mxu0
      %v10587 = vpop.f32.mrb[0].mxu0
      %v10588 = vadd.f32 0.0, %v10587
      %v10589 = vpop.f32.mrb[0].mxu0
      %10590 = vmatprep.mubr.bf16.mxu0 0
      %10591 = vmatmul.mubr.bf16.gmra.mrb[0].mxu0 %v10486
      %v10592 = vpop.f32.mrb[0].mxu0
      %v10593 = vadd.f32 0.0, %v10592
      %v10594 = vpop.f32.mrb[0].mxu0
      %v10595 = vpop.f32.mrb[0].mxu0
      %v10596 = vadd.f32 0.0, %v10595
      %v10597 = vpop.f32.mrb[0].mxu0
      %10598 = vmatprep.mubr.bf16.mxu0 0
      %10599 = vmatmul.mubr.bf16.gmra.mrb[0].mxu0 %v10489
      %v10600 = vpop.f32.mrb[0].mxu0
      %v10601 = vadd.f32 0.0, %v10600
      %v10602 = vpop.f32.mrb[0].mxu0
      %v10603 = vpop.f32.mrb[0].mxu0
      %v10604 = vadd.f32 0.0, %v10603
      %v10605 = vpop.f32.mrb[0].mxu0
      %10606 = vmatprep.mubr.bf16.mxu0 0
      %10607 = vmatmul.mubr.bf16.gmra.mrb[0].mxu0 %v10492
      %v10608 = vpop.f32.mrb[0].mxu0
      %v10609 = vadd.f32 0.0, %v10608
      %v10610 = vpop.f32.mrb[0].mxu0
      %v10611 = vpop.f32.mrb[0].mxu0
      %v10612 = vadd.f32 0.0, %v10611
      %v10613 = vpop.f32.mrb[0].mxu0
      %10614 = vmatprep.mubr.bf16.mxu0 0
      %10615 = vmatmul.mubr.bf16.gmra.mrb[0].mxu0 %v10495
      %v10616 = vpop.f32.mrb[0].mxu0
      %v10617 = vadd.f32 0.0, %v10616
      %v10618 = vpop.f32.mrb[0].mxu0
      %v10619 = vpop.f32.mrb[0].mxu0
      %v10620 = vadd.f32 0.0, %v10619
      %v10621 = vpop.f32.mrb[0].mxu0
      %10622 = vmatprep.mubr.bf16.mxu0 0
      %10623 = vmatmul.mubr.bf16.gmra.mrb[0].mxu0 %v10498
      %v10624 = vpop.f32.mrb[0].mxu0
      %v10625 = vadd.f32 0.0, %v10624
      %v10626 = vpop.f32.mrb[0].mxu0
      %v10627 = vpop.f32.mrb[0].mxu0
      %v10628 = vadd.f32 0.0, %v10627
      %v10629 = vpop.f32.mrb[0].mxu0
      %10630 = vmatprep.mubr.bf16.mxu0 0
      %10631 = vmatmul.mubr.bf16.gmra.mrb[0].mxu0 %v10501
      %v10632 = vpop.f32.mrb[0].mxu0
      %v10633 = vadd.f32 0.0, %v10632
      %v10634 = vpop.f32.mrb[0].mxu0
      %v10635 = vpop.f32.mrb[0].mxu0
      %v10636 = vadd.f32 0.0, %v10635
      %v10637 = vpop.f32.mrb[0].mxu0
      %10638 = vmatprep.mubr.bf16.mxu0 0
      %10639 = vmatmul.mubr.bf16.gmra.mrb[0].mxu0 %v10504
      %v10640 = vpop.f32.mrb[0].mxu0
      %v10641 = vadd.f32 0.0, %v10640
      %v10642 = vpop.f32.mrb[0].mxu0
      %v10643 = vpop.f32.mrb[0].mxu0
      %v10644 = vadd.f32 0.0, %v10643
      %v10645 = vpop.f32.mrb[0].mxu0
      %10646 = vmatprep.mubr.bf16.mxu0 0
      %10647 = vmatmul.mubr.bf16.gmra.mrb[0].mxu0 %v10507
      %v10648 = vpop.f32.mrb[0].mxu0
      %v10649 = vadd.f32 0.0, %v10648
      %v10650 = vpop.f32.mrb[0].mxu0
      %v10651 = vpop.f32.mrb[0].mxu0
      %v10652 = vadd.f32 0.0, %v10651
      %v10653 = vpop.f32.mrb[0].mxu0
      %10654 = vmatprep.mubr.bf16.mxu0 0
      %10655 = vmatmul.mubr.bf16.gmra.mrb[0].mxu0 %v10510
      %v10656 = vpop.f32.mrb[0].mxu0
      %v10657 = vadd.f32 0.0, %v10656
      %v10658 = vpop.f32.mrb[0].mxu0
      %v10659 = vpop.f32.mrb[0].mxu0
      %v10660 = vadd.f32 0.0, %v10659
      %v10661 = vpop.f32.mrb[0].mxu0
      %10662 = vmatprep.mubr.bf16.mxu0 0
      %10663 = vmatmul.mubr.bf16.gmra.mrb[0].mxu0 %v10513
      %v10664 = vpop.f32.mrb[0].mxu0
      %v10665 = vadd.f32 0.0, %v10664
      %v10666 = vpop.f32.mrb[0].mxu0
      %v10667 = vpop.f32.mrb[0].mxu0
      %v10668 = vadd.f32 0.0, %v10667
      %v10669 = vpop.f32.mrb[0].mxu0
      %10670 = vmatprep.mubr.bf16.mxu0 0
      %10671 = vmatmul.mubr.bf16.gmra.mrb[0].mxu0 %v10516
      %v10672 = vpop.f32.mrb[0].mxu0
      %v10673 = vadd.f32 0.0, %v10672
      %v10674 = vpop.f32.mrb[0].mxu0
      %v10675 = vpop.f32.mrb[0].mxu0
      %v10676 = vadd.f32 0.0, %v10675
      %v10677 = vpop.f32.mrb[0].mxu0
      %10678 = vdwg.mxu0
      %v10679 = vadd.f32 %v10181, %v10553
      %v10680 = vadd.f32 %v10182, %v10556
      %v10681 = vadd.f32 %v10183, %v10561
      %v10682 = vadd.f32 %v10184, %v10564
      %v10683 = vadd.f32 %v10185, %v10569
      %v10684 = vadd.f32 %v10186, %v10572
      %v10685 = vadd.f32 %v10187, %v10577
      %v10686 = vadd.f32 %v10188, %v10580
      %v10687 = vadd.f32 %v10189, %v10585
      %v10688 = vadd.f32 %v10190, %v10588
      %v10689 = vadd.f32 %v10191, %v10593
      %v10690 = vadd.f32 %v10192, %v10596
      %v10691 = vadd.f32 %v10193, %v10601
      %v10692 = vadd.f32 %v10194, %v10604
      %v10693 = vadd.f32 %v10195, %v10609
      %v10694 = vadd.f32 %v10196, %v10612
      %v10695 = vadd.f32 %v10197, %v10617
      %v10696 = vadd.f32 %v10198, %v10620
      %v10697 = vadd.f32 %v10199, %v10625
      %v10698 = vadd.f32 %v10200, %v10628
      %v10699 = vadd.f32 %v10201, %v10633
      %v10700 = vadd.f32 %v10202, %v10636
      %v10701 = vadd.f32 %v10203, %v10641
      %v10702 = vadd.f32 %v10204, %v10644
      %v10703 = vadd.f32 %v10205, %v10649
      %v10704 = vadd.f32 %v10206, %v10652
      %v10705 = vadd.f32 %v10207, %v10657
      %v10706 = vadd.f32 %v10208, %v10660
      %v10707 = vadd.f32 %v10209, %v10665
      %v10708 = vadd.f32 %v10210, %v10668
      %v10709 = vadd.f32 %v10211, %v10673
      %v10710 = vadd.f32 %v10212, %v10676
      %s10711 = scalar_lea.vmem %s138, 24
      %v10712 = vld [vmem:[%s10711 + $0x1] sm:$0xff]
      %v10713 = vld [vmem:[%s10711 + $0x9] sm:$0xff]
      %v10714 = vld [vmem:[%s10711 + $0x19] sm:$0xff]
      %v10715 = vld [vmem:[%s10711 + $0x21] sm:$0xff]
      %v10716 = vld [vmem:[%s10711 + $0x31] sm:$0xff]
      %v10717 = vld [vmem:[%s10711 + $0x39] sm:$0xff]
      %v10718 = vld [vmem:[%s10711 + $0x49] sm:$0xff]
      %v10719 = vld [vmem:[%s10711 + $0x51] sm:$0xff]
      %v10720 = vld [vmem:[%s10711 + $0x61] sm:$0xff]
      %v10721 = vld [vmem:[%s10711 + $0x69] sm:$0xff]
      %v10722 = vld [vmem:[%s10711 + $0x79] sm:$0xff]
      %v10723 = vld [vmem:[%s10711 + $0x81] sm:$0xff]
      %v10724 = vld [vmem:[%s10711 + $0x91] sm:$0xff]
      %v10725 = vld [vmem:[%s10711 + $0x99] sm:$0xff]
      %v10726 = vld [vmem:[%s10711 + $0xa9] sm:$0xff]
      %v10727 = vld [vmem:[%s10711 + $0xb1] sm:$0xff]
      %v10728 = vld [vmem:[%s10711 + $0xc1] sm:$0xff]
      %v10729 = vld [vmem:[%s10711 + $0xc9] sm:$0xff]
      %v10730 = vld [vmem:[%s10711 + $0xd9] sm:$0xff]
      %v10731 = vld [vmem:[%s10711 + $0xe1] sm:$0xff]
      %v10732 = vld [vmem:[%s10711 + $0xf1] sm:$0xff]
      %v10733 = vld [vmem:[%s10711 + $0xf9] sm:$0xff]
      %v10734 = vld [vmem:[%s10711 + $0x109] sm:$0xff]
      %v10735 = vld [vmem:[%s10711 + $0x111] sm:$0xff]
      %v10736 = vld [vmem:[%s10711 + $0x121] sm:$0xff]
      %v10737 = vld [vmem:[%s10711 + $0x129] sm:$0xff]
      %v10738 = vld [vmem:[%s10711 + $0x139] sm:$0xff]
      %v10739 = vld [vmem:[%s10711 + $0x141] sm:$0xff]
      %v10740 = vld [vmem:[%s10711 + $0x151] sm:$0xff]
      %v10741 = vld [vmem:[%s10711 + $0x159] sm:$0xff]
      %v10742 = vld [vmem:[%s10711 + $0x169] sm:$0xff]
      %v10743 = vld [vmem:[%s10711 + $0x171] sm:$0xff]
      %v10744 = vadd.f32 %v10679, %v10712
      %v10745 = vadd.f32 %v10680, %v10713
      %v10746 = vadd.f32 %v10681, %v10714
      %v10747 = vadd.f32 %v10682, %v10715
      %v10748 = vadd.f32 %v10683, %v10716
      %v10749 = vadd.f32 %v10684, %v10717
      %v10750 = vadd.f32 %v10685, %v10718
      %v10751 = vadd.f32 %v10686, %v10719
      %v10752 = vadd.f32 %v10687, %v10720
      %v10753 = vadd.f32 %v10688, %v10721
      %v10754 = vadd.f32 %v10689, %v10722
      %v10755 = vadd.f32 %v10690, %v10723
      %v10756 = vadd.f32 %v10691, %v10724
      %v10757 = vadd.f32 %v10692, %v10725
      %v10758 = vadd.f32 %v10693, %v10726
      %v10759 = vadd.f32 %v10694, %v10727
      %v10760 = vadd.f32 %v10695, %v10728
      %v10761 = vadd.f32 %v10696, %v10729
      %v10762 = vadd.f32 %v10697, %v10730
      %v10763 = vadd.f32 %v10698, %v10731
      %v10764 = vadd.f32 %v10699, %v10732
      %v10765 = vadd.f32 %v10700, %v10733
      %v10766 = vadd.f32 %v10701, %v10734
      %v10767 = vadd.f32 %v10702, %v10735
      %v10768 = vadd.f32 %v10703, %v10736
      %v10769 = vadd.f32 %v10704, %v10737
      %v10770 = vadd.f32 %v10705, %v10738
      %v10771 = vadd.f32 %v10706, %v10739
      %v10772 = vadd.f32 %v10707, %v10740
      %v10773 = vadd.f32 %v10708, %v10741
      %v10774 = vadd.f32 %v10709, %v10742
      %v10775 = vadd.f32 %v10710, %v10743
      %10776 = vst.msk [vmem:[%s143] sm:$0xff] %vm6425, %v10744
      %10777 = vst.msk [vmem:[%s143 + $0x8] sm:$0xff] %vm6425, %v10745
      %10778 = vst.msk [vmem:[%s143 + $0x10] sm:$0xff] %vm6425, %v10746
      %10779 = vst.msk [vmem:[%s143 + $0x18] sm:$0xff] %vm6425, %v10747
      %10780 = vst.msk [vmem:[%s143 + $0x20] sm:$0xff] %vm6425, %v10748
      %10781 = vst.msk [vmem:[%s143 + $0x28] sm:$0xff] %vm6425, %v10749
      %10782 = vst.msk [vmem:[%s143 + $0x30] sm:$0xff] %vm6425, %v10750
      %10783 = vst.msk [vmem:[%s143 + $0x38] sm:$0xff] %vm6425, %v10751
      %10784 = vst.msk [vmem:[%s143 + $0x40] sm:$0xff] %vm6425, %v10752
      %10785 = vst.msk [vmem:[%s143 + $0x48] sm:$0xff] %vm6425, %v10753
      %10786 = vst.msk [vmem:[%s143 + $0x50] sm:$0xff] %vm6425, %v10754
      %10787 = vst.msk [vmem:[%s143 + $0x58] sm:$0xff] %vm6425, %v10755
      %10788 = vst.msk [vmem:[%s143 + $0x60] sm:$0xff] %vm6425, %v10756
      %10789 = vst.msk [vmem:[%s143 + $0x68] sm:$0xff] %vm6425, %v10757
      %10790 = vst.msk [vmem:[%s143 + $0x70] sm:$0xff] %vm6425, %v10758
      %10791 = vst.msk [vmem:[%s143 + $0x78] sm:$0xff] %vm6425, %v10759
      %10792 = vst.msk [vmem:[%s143 + $0x80] sm:$0xff] %vm6425, %v10760
      %10793 = vst.msk [vmem:[%s143 + $0x88] sm:$0xff] %vm6425, %v10761
      %10794 = vst.msk [vmem:[%s143 + $0x90] sm:$0xff] %vm6425, %v10762
      %10795 = vst.msk [vmem:[%s143 + $0x98] sm:$0xff] %vm6425, %v10763
      %10796 = vst.msk [vmem:[%s143 + $0xa0] sm:$0xff] %vm6425, %v10764
      %10797 = vst.msk [vmem:[%s143 + $0xa8] sm:$0xff] %vm6425, %v10765
      %10798 = vst.msk [vmem:[%s143 + $0xb0] sm:$0xff] %vm6425, %v10766
      %10799 = vst.msk [vmem:[%s143 + $0xb8] sm:$0xff] %vm6425, %v10767
      %10800 = vst.msk [vmem:[%s143 + $0xc0] sm:$0xff] %vm6425, %v10768
      %10801 = vst.msk [vmem:[%s143 + $0xc8] sm:$0xff] %vm6425, %v10769
      %10802 = vst.msk [vmem:[%s143 + $0xd0] sm:$0xff] %vm6425, %v10770
      %10803 = vst.msk [vmem:[%s143 + $0xd8] sm:$0xff] %vm6425, %v10771
      %10804 = vst.msk [vmem:[%s143 + $0xe0] sm:$0xff] %vm6425, %v10772
      %10805 = vst.msk [vmem:[%s143 + $0xe8] sm:$0xff] %vm6425, %v10773
      %10806 = vst.msk [vmem:[%s143 + $0xf0] sm:$0xff] %vm6425, %v10774
      %10807 = vst.msk [vmem:[%s143 + $0xf8] sm:$0xff] %vm6425, %v10775
      %p10808 = scmp.lt.s32.totalorder %s13, 1
      %s10809 = scalar_select %p10808, %s13, 1
      %s10810 = smul.addr %s10809, 32
      %s10811 = smul.addr %s10810, 8
      %s10812 = scalar_lea.vmem %s2, %s10811
      // Predicated region
      $region36: #{edsr_forward.1} parent=27 // pred_check
        %p10813 = pneg %p78
      $region37: #{edsr_forward.1} parent=27 // pred_check_branch
        %10815 = sbr.rel (%p10813) target = $region39
      $region38: #{edsr_forward.1} parent=27 // pred_region
        _
      $region39: #{edsr_forward.1} parent=27 // pred_fallthru
        _
    $region28: #{edsr_forward.1} parent=5 // pred_fallthru
      _
    %p10816 = scmp.le.s32.totalorder 2, %s8
    // Predicated region
    $region40: #{edsr_forward.1} parent=5 // pred_check
      %p10817 = pneg %p10816
    $region41: #{edsr_forward.1} parent=5 // pred_check_branch
      %10819 = sbr.rel (%p10817) target = $region43
    $region42: #{edsr_forward.1} parent=5 // pred_region
      %s10820 = ssub.s32 %s8, 2
      // Predicated region
      $region44: #{edsr_forward.1} parent=42 // pred_check
        %p10821 = pneg %p84
      $region45: #{edsr_forward.1} parent=42 // pred_check_branch
        %10823 = sbr.rel (%p10821) target = $region47
      $region46: #{edsr_forward.1} parent=42 // pred_region
        %p10824 = scmp.lt.s32.totalorder %s14, 1
        %s10825 = scalar_select %p10824, %s14, 1
        %s10826 = smul.addr %s10825, 32
        %s10827 = smul.addr %s10826, 8
        %s10828 = scalar_lea.vmem %s2, %s10827
      $region47: #{edsr_forward.1} parent=42 // pred_fallthru
        _
    $region43: #{edsr_forward.1} parent=5 // pred_fallthru
      _
  $region6: #{edsr_forward.1} parent=0 // loop_footer
    %s12 = sadd.s32 1, %s8
  $region7: #{edsr_forward.1} parent=0 // loop_footer_branch
    %7 = sbr.rel target = $region3
  $region8: #{edsr_forward.1} parent=0 // loop_exit
    _

</llo_original>
